<compile_context>
chip_gen: v7x
topology: tpu7x:2x2x1
jax: 0.10.0
libtpu: 0.0.40
codegen_flags: <defaults>
</compile_context>

<pallas_src>
import functools

import jax
import jax.numpy as jnp
import numpy as np
from jax import lax
from jax.experimental import pallas as pl
from jax.experimental.pallas import tpu as pltpu


def _round_up(v, m):
    return (v + m - 1) // m * m


def fold_bn(gamma, beta, mean, var, eps=1e-5):
    scale = gamma / jnp.sqrt(var + eps)
    bias = beta - mean * scale
    return scale, bias


# -----------------------------------------------------------------------------
# Fused kernel: 1x1 conv + BN1 + SiLU  ->  3x3 conv + BN2 + SiLU (+ residual)
# -----------------------------------------------------------------------------
def _bottleneck_kernel(x_ref, xt_ref, xb_ref, w1_ref, s1_ref, b1_ref,
                       w2_ref, s2_ref, b2_ref, o_ref, *, TH, W, use_add):
    rb = pl.program_id(1)
    n_rb = pl.num_programs(1)
    Cp = x_ref.shape[3]                 # padded in channels
    Op = o_ref.shape[3]                 # padded out channels
    n_pix = TH * W                      # output pixels this step
    n_ext = (TH + 2) * W                # pixels incl. +/-1 halo rows

    w1 = w1_ref[...]
    s1 = s1_ref[...]
    b1 = b1_ref[...]

    def conv1_bn_silu(xp):
        z = jnp.dot(xp, w1, preferred_element_type=jnp.float32)
        z = z * s1 + b1
        # exact reciprocal here: stage-1 error would be amplified through conv2
        return z * pl.reciprocal(1.0 + jnp.exp(-z), approx=False)

    # ---- stage 1: three dots (no concatenated x copy) ---------------------------
    x_mid = x_ref[0].reshape(n_pix, Cp)                     # bf16, also the residual
    h_mid = conv1_bn_silu(x_mid)                            # (TH*W, Hp) f32
    h_top = conv1_bn_silu(xt_ref[0].reshape(W, Cp))         # row above (clamped DMA)
    h_bot = conv1_bn_silu(xb_ref[0].reshape(W, Cp))         # row below (clamped DMA)
    # conv2 zero-pads h at the image border: kill halo rows that fall outside.
    h_top = h_top * (rb > 0).astype(jnp.float32)
    h_bot = h_bot * (rb < n_rb - 1).astype(jnp.float32)
    h_ext = jnp.concatenate([h_top, h_mid, h_bot], axis=0)  # (n_ext, Hp) f32

    # ---- stage 2: roll-based im2col + ONE deep-K matmul -------------------------
    # Column-validity masks (replace the old zero-padded-column scratch).
    col = lax.broadcasted_iota(jnp.int32, (n_pix, 1), 0) % W
    not_left = (col != 0).astype(jnp.float32)               # tap at column c-1
    not_right = (col != W - 1).astype(jnp.float32)          # tap at column c+1

    # dx shifts via XLU sublane rotation; wrapped rows are exactly the masked ones.
    g_left = pltpu.roll(h_ext, shift=1, axis=0)             # g_left[i]  = h_ext[i-1]
    g_right = pltpu.roll(h_ext, shift=n_ext - 1, axis=0)    # g_right[i] = h_ext[i+1]

    taps = []
    for dy in range(3):
        r0 = dy * W                                          # aligned row offset
        taps.append((g_left[r0:r0 + n_pix] * not_left).astype(jnp.bfloat16))
        taps.append(h_ext[r0:r0 + n_pix].astype(jnp.bfloat16))
        taps.append((g_right[r0:r0 + n_pix] * not_right).astype(jnp.bfloat16))
    patch = jnp.concatenate(taps, axis=1)                    # (TH*W, 9*Hp) bf16

    acc = jnp.dot(patch, w2_ref[...], preferred_element_type=jnp.float32)

    # ---- epilogue: BN2 + SiLU (+ residual), bf16 lane-dense store ---------------
    y = acc * s2_ref[...] + b2_ref[...]
    y = y * pl.reciprocal(1.0 + jnp.exp(-y), approx=True)    # EUP slot
    if use_add:
        y = y + x_mid.astype(jnp.float32)                    # Cp == Op here
    o_ref[0] = y.reshape(TH, W, Op).astype(o_ref.dtype)


# -----------------------------------------------------------------------------
# Tiling / VMEM configuration (per TPU generation)
# -----------------------------------------------------------------------------
def _vmem_capacity_bytes():
    try:
        return int(pltpu.get_tpu_info().vmem_capacity_bytes)
    except Exception:
        return 64 * 1024 * 1024          # conservative (v7x-sized)


def _pick_row_tile(H, max_rows):
    if H <= max_rows:
        return H
    best = 1
    for t in range(int(max_rows), 0, -1):
        if H % t == 0:
            best = t
            break
    if best >= 8:
        return best
    return H        # pathological height: take the whole image per step


def _tile_config(H, W, Cp, Hp, Op):
    cap = _vmem_capacity_bytes()
    # ~3/4 of physical, capped: v5e/v6e -> 96 MiB, v7x -> 48 MiB.
    vmem_limit = int(min(cap * 3 // 4, 100 * 1024 * 1024))
    # Fixed cost: weights / scale / bias (worst case double-buffered, bf16/f32).
    fixed = 2 * (Cp * Hp + 9 * Hp * Op) * 2 + 2 * 4 * (Hp + Op) * 4
    # Per-row cost: x & out slabs (double-buffered bf16), h_ext f32, im2col patch
    # bf16, plus headroom for roll/tap temporaries.
    per_row = W * (2 * Cp * 2 + 2 * Op * 2 + Hp * 4 + 9 * Hp * 2 + 4 * Hp * 4)
    budget = max(vmem_limit // 2 - fixed, per_row * 8)
    max_rows = max(8, min(64, budget // per_row))
    return vmem_limit, _pick_row_tile(H, max_rows)


# -----------------------------------------------------------------------------
# pallas_call construction + wrapper
# -----------------------------------------------------------------------------
def _build_call(N, H, W, TH, Cp, Hp, Op, use_add, vmem_limit, single_buffer_consts):
    nrb = H // TH
    row_hi = H - 1
    kernel = functools.partial(_bottleneck_kernel, TH=TH, W=W, use_add=use_add)

    def const_spec(shape):
        idx = lambda n, rb, _s=shape: (0,) * len(_s)
        if single_buffer_consts:
            # Invariant operands: a single resident buffer is enough.
            return pl.BlockSpec(shape, idx, pipeline_mode=pl.Buffered(1))
        return pl.BlockSpec(shape, idx)

    in_specs = [
        # main TH-row slab of x (also the residual when use_add)
        pl.BlockSpec((1, TH, W, Cp), lambda n, rb: (n, rb, 0, 0)),
        # 1-row halos above / below, clamped at the image border
        pl.BlockSpec((1, 1, W, Cp),
                     lambda n, rb: (n, jnp.maximum(rb * TH - 1, 0), 0, 0)),
        pl.BlockSpec((1, 1, W, Cp),
                     lambda n, rb: (n, jnp.minimum(rb * TH + TH, row_hi), 0, 0)),
        const_spec((Cp, Hp)),            # w1
        const_spec((1, Hp)),             # bn1 scale
        const_spec((1, Hp)),             # bn1 bias
        const_spec((9 * Hp, Op)),        # w2 reshaped for the deep-K matmul
        const_spec((1, Op)),             # bn2 scale
        const_spec((1, Op)),             # bn2 bias
    ]

    return pl.pallas_call(
        kernel,
        out_shape=jax.ShapeDtypeStruct((N, H, W, Op), jnp.bfloat16),
        grid_spec=pltpu.PrefetchScalarGridSpec(
            num_scalar_prefetch=0,
            grid=(N, nrb),
            in_specs=in_specs,
            out_specs=pl.BlockSpec((1, TH, W, Op), lambda n, rb: (n, rb, 0, 0)),
        ),
        compiler_params=pltpu.CompilerParams(
            dimension_semantics=("parallel", "parallel"),
            vmem_limit_bytes=vmem_limit),
    )


@functools.partial(jax.jit, static_argnums=(2, 3))
def _forward_impl(x_nchw, params, shortcut, single_buffer_consts):
    w1, bn1, w2, bn2 = params["w1"], params["bn1"], params["w2"], params["bn2"]
    Cin = x_nchw.shape[1]
    Chid = w1.shape[1]
    Cout = w2.shape[-1]
    use_add = bool(shortcut) and Cin == Cout

    # Lane-dense padding of every channel axis.
    Cp = _round_up(Cin, 128)
    Hp = _round_up(Chid, 128)
    Op = _round_up(Cout, 128)

    # NCHW -> NHWC, bf16 matmul inputs, zero-padded channels.
    x = jnp.transpose(x_nchw, (0, 2, 3, 1)).astype(jnp.bfloat16)
    x = jnp.pad(x, ((0, 0), (0, 0), (0, 0), (0, Cp - Cin)))
    N, H, W, _ = x.shape

    s1, b1 = fold_bn(*bn1)
    s2, b2 = fold_bn(*bn2)
    w1p = jnp.pad(w1.astype(jnp.bfloat16), ((0, Cp - Cin), (0, Hp - Chid)))
    s1p = jnp.pad(s1, (0, Hp - Chid)).reshape(1, Hp).astype(jnp.float32)
    b1p = jnp.pad(b1, (0, Hp - Chid)).reshape(1, Hp).astype(jnp.float32)
    w2p = jnp.pad(w2.astype(jnp.bfloat16),
                  ((0, 0), (0, 0), (0, Hp - Chid), (0, Op - Cout)))
    w2f = w2p.reshape(9 * Hp, Op)        # (dy, dx, cin) flattened -> deep-K weight
    s2p = jnp.pad(s2, (0, Op - Cout)).reshape(1, Op).astype(jnp.float32)
    b2p = jnp.pad(b2, (0, Op - Cout)).reshape(1, Op).astype(jnp.float32)

    vmem_limit, TH = _tile_config(H, W, Cp, Hp, Op)

    call = _build_call(N, H, W, TH, Cp, Hp, Op, use_add, vmem_limit,
                       single_buffer_consts)
    y = call(x, x, x, w1p, s1p, b1p, w2f, s2p, b2p)

    y = y[..., :Cout].astype(jnp.float32)
    return jnp.transpose(y, (0, 3, 1, 2))


def bottleneck_forward(x_nchw, params, *, shortcut=True):
    try:
        return _forward_impl(x_nchw, params, shortcut, True)
    except Exception:
        # pipeline_mode=pl.Buffered(1) not supported on this JAX build ->
        # fall back to default double buffering for the invariant operands.
        return _forward_impl(x_nchw, params, shortcut, False)


# -----------------------------------------------------------------------------
# Pure-JAX f32 reference for validation.
# -----------------------------------------------------------------------------
def bottleneck_reference(x_nchw, params, *, shortcut=True):
    x = jnp.transpose(x_nchw, (0, 2, 3, 1)).astype(jnp.float32)
    w1, bn1, w2, bn2 = params["w1"], params["bn1"], params["w2"], params["bn2"]
    s1, b1 = fold_bn(*bn1)
    s2, b2 = fold_bn(*bn2)

    h = jnp.einsum("nhwc,co->nhwo", x, w1)
    h = h * s1 + b1
    h = h * jax.nn.sigmoid(h)

    y = jax.lax.conv_general_dilated(
        h, w2, window_strides=(1, 1), padding="SAME",
        dimension_numbers=("NHWC", "HWIO", "NHWC"))
    y = y * s2 + b2
    y = y * jax.nn.sigmoid(y)
    if shortcut and x.shape[-1] == y.shape[-1]:
        y = y + x
    return jnp.transpose(y, (0, 3, 1, 2))


if __name__ == "__main__":
    # Small deterministic config: in=out=8 channels, expansion 0.5 -> hidden=4.
    N, C, H, W = 2, 8, 16, 16
    hidden = int(C * 0.5)

    key = jax.random.PRNGKey(0)
    k_x, k_w1, k_w2, k_g1, k_b1, k_g2, k_b2 = jax.random.split(key, 7)

    x = jax.random.normal(k_x, (N, C, H, W), dtype=jnp.float32)

    params = {
        # 1x1 conv weight as (Cin, Chid)
        "w1": jax.random.normal(k_w1, (C, hidden), dtype=jnp.float32) * 0.1,
        # BN1: (gamma, beta, running_mean, running_var)
        "bn1": (
            1.0 + 0.1 * jax.random.normal(k_g1, (hidden,), dtype=jnp.float32),
            0.1 * jax.random.normal(k_b1, (hidden,), dtype=jnp.float32),
            jnp.zeros((hidden,), jnp.float32),
            jnp.ones((hidden,), jnp.float32),
        ),
        # 3x3 conv weight, HWIO layout: (3, 3, Chid, Cout)
        "w2": jax.random.normal(k_w2, (3, 3, hidden, C), dtype=jnp.float32) * 0.1,
        "bn2": (
            1.0 + 0.1 * jax.random.normal(k_g2, (C,), dtype=jnp.float32),
            0.1 * jax.random.normal(k_b2, (C,), dtype=jnp.float32),
            jnp.zeros((C,), jnp.float32),
            jnp.ones((C,), jnp.float32),
        ),
    }

    y = jax.block_until_ready(bottleneck_forward(x, params, shortcut=True))
    y_ref = jax.block_until_ready(bottleneck_reference(x, params, shortcut=True))

    # bf16 matmul inputs, bf16 output and bf16 residual path -> compare against the
    # f32 reference with a correspondingly loose tolerance.
    np.testing.assert_allclose(np.asarray(y), np.asarray(y_ref),
                               rtol=3e-2, atol=3e-2)

    print("KERNEL_OK")
</pallas_src>

<mosaic_0001>
module attributes {stable_mosaic.version = 11 : i64} {
  func.func @_bottleneck_kernel(%arg0: i32, %arg1: i32, %arg2: memref<1x16x16x128xbf16, #tpu.memory_space<vmem>>, %arg3: memref<1x1x16x128xbf16, #tpu.memory_space<vmem>>, %arg4: memref<1x1x16x128xbf16, #tpu.memory_space<vmem>>, %arg5: memref<128x128xbf16, #tpu.memory_space<vmem>>, %arg6: memref<1x128xf32, #tpu.memory_space<vmem>>, %arg7: memref<1x128xf32, #tpu.memory_space<vmem>>, %arg8: memref<1152x128xbf16, #tpu.memory_space<vmem>>, %arg9: memref<1x128xf32, #tpu.memory_space<vmem>>, %arg10: memref<1x128xf32, #tpu.memory_space<vmem>>, %arg11: memref<1x16x16x128xbf16, #tpu.memory_space<vmem>>) attributes {dimension_semantics = [#tpu.dimension_semantics<parallel>, #tpu.dimension_semantics<parallel>], iteration_bounds = array<i64: 2, 1>, scalar_prefetch = 0 : i64, scratch_operands = 0 : i64, tpu.core_type = #tpu.core_type<tc>, window_params = [{transform_indices = @transform_0, window_bounds = array<i64: 1, 16, 16, 128>}, {transform_indices = @transform_1, window_bounds = array<i64: 1, 1, 16, 128>}, {transform_indices = @transform_2, window_bounds = array<i64: 1, 1, 16, 128>}, {pipeline_mode = #tpu.pipeline_mode<synchronous>, transform_indices = @transform_3, window_bounds = array<i64: 128, 128>}, {pipeline_mode = #tpu.pipeline_mode<synchronous>, transform_indices = @transform_4, window_bounds = array<i64: 1, 128>}, {pipeline_mode = #tpu.pipeline_mode<synchronous>, transform_indices = @transform_5, window_bounds = array<i64: 1, 128>}, {pipeline_mode = #tpu.pipeline_mode<synchronous>, transform_indices = @transform_6, window_bounds = array<i64: 1152, 128>}, {pipeline_mode = #tpu.pipeline_mode<synchronous>, transform_indices = @transform_7, window_bounds = array<i64: 1, 128>}, {pipeline_mode = #tpu.pipeline_mode<synchronous>, transform_indices = @transform_8, window_bounds = array<i64: 1, 128>}, {transform_indices = @transform_9, window_bounds = array<i64: 1, 16, 16, 128>}]} {
    %c0 = arith.constant 0 : index
    %c0_0 = arith.constant 0 : index
    %0 = vector.load %arg5[%c0, %c0_0] : memref<128x128xbf16, #tpu.memory_space<vmem>>, vector<128x128xbf16>
    %c0_1 = arith.constant 0 : index
    %c0_2 = arith.constant 0 : index
    %1 = vector.load %arg6[%c0_1, %c0_2] : memref<1x128xf32, #tpu.memory_space<vmem>>, vector<1x128xf32>
    %c0_3 = arith.constant 0 : index
    %c0_4 = arith.constant 0 : index
    %2 = vector.load %arg7[%c0_3, %c0_4] : memref<1x128xf32, #tpu.memory_space<vmem>>, vector<1x128xf32>
    %c0_5 = arith.constant 0 : index
    %c0_6 = arith.constant 0 : index
    %c0_7 = arith.constant 0 : index
    %c0_8 = arith.constant 0 : index
    %3 = vector.load %arg2[%c0_5, %c0_6, %c0_7, %c0_8] : memref<1x16x16x128xbf16, #tpu.memory_space<vmem>>, vector<1x16x16x128xbf16>
    %4 = vector.shape_cast %3 : vector<1x16x16x128xbf16> to vector<16x16x128xbf16>
    %5 = vector.shape_cast %4 : vector<16x16x128xbf16> to vector<256x128xbf16>
    %cst = arith.constant dense<0.000000e+00> : vector<256x128xf32>
    %6 = tpu.matmul %5, %0, %cst {dimension_numbers = #tpu.dot_dimension_numbers<[1], [0], [0], [1], [0, 0, 1, 1], [], []>} : vector<256x128xbf16>, vector<128x128xbf16>, vector<256x128xf32> -> vector<256x128xf32>
    %7 = vector.broadcast %1 : vector<1x128xf32> to vector<256x128xf32>
    %8 = arith.mulf %6, %7 : vector<256x128xf32>
    %9 = vector.broadcast %2 : vector<1x128xf32> to vector<256x128xf32>
    %10 = arith.addf %8, %9 : vector<256x128xf32>
    %cst_9 = arith.constant 0.000000e+00 : f32
    %11 = vector.broadcast %cst_9 : f32 to vector<256x128xf32>
    %12 = arith.subf %11, %10 : vector<256x128xf32>
    %13 = math.exp %12 : vector<256x128xf32>
    %cst_10 = arith.constant 1.000000e+00 : f32
    %14 = vector.broadcast %cst_10 : f32 to vector<256x128xf32>
    %15 = arith.addf %14, %13 : vector<256x128xf32>
    %16 = tpu.reciprocal %15 : vector<256x128xf32> -> vector<256x128xf32>
    %17 = arith.mulf %10, %16 : vector<256x128xf32>
    %c0_11 = arith.constant 0 : index
    %c0_12 = arith.constant 0 : index
    %c0_13 = arith.constant 0 : index
    %c0_14 = arith.constant 0 : index
    %18 = vector.load %arg3[%c0_11, %c0_12, %c0_13, %c0_14] : memref<1x1x16x128xbf16, #tpu.memory_space<vmem>>, vector<1x1x16x128xbf16>
    %19 = vector.shape_cast %18 : vector<1x1x16x128xbf16> to vector<1x16x128xbf16>
    %20 = vector.shape_cast %19 : vector<1x16x128xbf16> to vector<16x128xbf16>
    %cst_15 = arith.constant dense<0.000000e+00> : vector<16x128xf32>
    %21 = tpu.matmul %20, %0, %cst_15 {dimension_numbers = #tpu.dot_dimension_numbers<[1], [0], [0], [1], [0, 0, 1, 1], [], []>} : vector<16x128xbf16>, vector<128x128xbf16>, vector<16x128xf32> -> vector<16x128xf32>
    %22 = vector.broadcast %1 : vector<1x128xf32> to vector<16x128xf32>
    %23 = arith.mulf %21, %22 : vector<16x128xf32>
    %24 = vector.broadcast %2 : vector<1x128xf32> to vector<16x128xf32>
    %25 = arith.addf %23, %24 : vector<16x128xf32>
    %cst_16 = arith.constant 0.000000e+00 : f32
    %26 = vector.broadcast %cst_16 : f32 to vector<16x128xf32>
    %27 = arith.subf %26, %25 : vector<16x128xf32>
    %28 = math.exp %27 : vector<16x128xf32>
    %cst_17 = arith.constant 1.000000e+00 : f32
    %29 = vector.broadcast %cst_17 : f32 to vector<16x128xf32>
    %30 = arith.addf %29, %28 : vector<16x128xf32>
    %31 = tpu.reciprocal %30 : vector<16x128xf32> -> vector<16x128xf32>
    %32 = arith.mulf %25, %31 : vector<16x128xf32>
    %c0_18 = arith.constant 0 : index
    %c0_19 = arith.constant 0 : index
    %c0_20 = arith.constant 0 : index
    %c0_21 = arith.constant 0 : index
    %33 = vector.load %arg4[%c0_18, %c0_19, %c0_20, %c0_21] : memref<1x1x16x128xbf16, #tpu.memory_space<vmem>>, vector<1x1x16x128xbf16>
    %34 = vector.shape_cast %33 : vector<1x1x16x128xbf16> to vector<1x16x128xbf16>
    %35 = vector.shape_cast %34 : vector<1x16x128xbf16> to vector<16x128xbf16>
    %cst_22 = arith.constant dense<0.000000e+00> : vector<16x128xf32>
    %36 = tpu.matmul %35, %0, %cst_22 {dimension_numbers = #tpu.dot_dimension_numbers<[1], [0], [0], [1], [0, 0, 1, 1], [], []>} : vector<16x128xbf16>, vector<128x128xbf16>, vector<16x128xf32> -> vector<16x128xf32>
    %37 = vector.broadcast %1 : vector<1x128xf32> to vector<16x128xf32>
    %38 = arith.mulf %36, %37 : vector<16x128xf32>
    %39 = vector.broadcast %2 : vector<1x128xf32> to vector<16x128xf32>
    %40 = arith.addf %38, %39 : vector<16x128xf32>
    %cst_23 = arith.constant 0.000000e+00 : f32
    %41 = vector.broadcast %cst_23 : f32 to vector<16x128xf32>
    %42 = arith.subf %41, %40 : vector<16x128xf32>
    %43 = math.exp %42 : vector<16x128xf32>
    %cst_24 = arith.constant 1.000000e+00 : f32
    %44 = vector.broadcast %cst_24 : f32 to vector<16x128xf32>
    %45 = arith.addf %44, %43 : vector<16x128xf32>
    %46 = tpu.reciprocal %45 : vector<16x128xf32> -> vector<16x128xf32>
    %47 = arith.mulf %40, %46 : vector<16x128xf32>
    %c0_i32 = arith.constant 0 : i32
    %48 = arith.cmpi sgt, %arg1, %c0_i32 : i32
    %49 = arith.extui %48 : i1 to i32
    %50 = arith.sitofp %49 : i32 to f32
    %51 = vector.broadcast %50 : f32 to vector<16x128xf32>
    %52 = arith.mulf %32, %51 : vector<16x128xf32>
    %c0_i32_25 = arith.constant 0 : i32
    %53 = arith.cmpi slt, %arg1, %c0_i32_25 : i32
    %54 = arith.extui %53 : i1 to i32
    %55 = arith.sitofp %54 : i32 to f32
    %56 = vector.broadcast %55 : f32 to vector<16x128xf32>
    %57 = arith.mulf %47, %56 : vector<16x128xf32>
    %58 = tpu.concatenate %52, %17, %57 in 0 : vector<16x128xf32>, vector<256x128xf32>, vector<16x128xf32> -> vector<288x128xf32>
    %59 = tpu.iota {dimensions = array<i32: 0>} : vector<256x1xi32>
    %c16_i32 = arith.constant 16 : i32
    %c0_i32_26 = arith.constant 0 : i32
    %60 = arith.cmpi eq, %c16_i32, %c0_i32_26 : i32
    %c1_i32 = arith.constant 1 : i32
    %61 = arith.select %60, %c1_i32, %c16_i32 : i32
    %62 = vector.broadcast %61 : i32 to vector<256x1xi32>
    %63 = arith.remsi %59, %62 : vector<256x1xi32>
    %c0_i32_27 = arith.constant 0 : i32
    %64 = vector.broadcast %c0_i32_27 : i32 to vector<256x1xi32>
    %65 = arith.cmpi ne, %63, %64 : vector<256x1xi32>
    %c0_i32_28 = arith.constant 0 : i32
    %66 = vector.broadcast %c0_i32_28 : i32 to vector<256x1xi32>
    %67 = arith.cmpi slt, %63, %66 : vector<256x1xi32>
    %c0_i32_29 = arith.constant 0 : i32
    %68 = arith.cmpi slt, %61, %c0_i32_29 : i32
    %69 = vector.broadcast %68 : i1 to vector<256x1xi1>
    %70 = vector.broadcast %69 : vector<256x1xi1> to vector<256x1xi1>
    %71 = arith.xori %67, %70 : vector<256x1xi1>
    %72 = arith.andi %71, %65 : vector<256x1xi1>
    %73 = vector.broadcast %61 : i32 to vector<256x1xi32>
    %74 = arith.addi %63, %73 : vector<256x1xi32>
    %75 = arith.select %72, %74, %63 : vector<256x1xi1>, vector<256x1xi32>
    %c0_i32_30 = arith.constant 0 : i32
    %76 = vector.broadcast %c0_i32_30 : i32 to vector<256x1xi32>
    %77 = arith.cmpi ne, %75, %76 : vector<256x1xi32>
    %78 = arith.extui %77 : vector<256x1xi1> to vector<256x1xi32>
    %79 = arith.sitofp %78 : vector<256x1xi32> to vector<256x1xf32>
    %c15_i32 = arith.constant 15 : i32
    %80 = vector.broadcast %c15_i32 : i32 to vector<256x1xi32>
    %81 = arith.cmpi ne, %75, %80 : vector<256x1xi32>
    %82 = arith.extui %81 : vector<256x1xi1> to vector<256x1xi32>
    %83 = arith.sitofp %82 : vector<256x1xi32> to vector<256x1xf32>
    %c1_i32_31 = arith.constant 1 : i32
    %84 = tpu.dynamic_rotate %58 by %c1_i32_31 dim 0 : vector<288x128xf32>, i32 -> vector<288x128xf32>
    %c287_i32 = arith.constant 287 : i32
    %85 = tpu.dynamic_rotate %58 by %c287_i32 dim 0 : vector<288x128xf32>, i32 -> vector<288x128xf32>
    %86 = vector.extract_strided_slice %84 {offsets = [0, 0], sizes = [256, 128], strides = [1, 1]} : vector<288x128xf32> to vector<256x128xf32>
    %87 = vector.broadcast %79 : vector<256x1xf32> to vector<256x128xf32>
    %88 = arith.mulf %86, %87 : vector<256x128xf32>
    %89 = arith.truncf %88 : vector<256x128xf32> to vector<256x128xbf16>
    %90 = vector.extract_strided_slice %58 {offsets = [0, 0], sizes = [256, 128], strides = [1, 1]} : vector<288x128xf32> to vector<256x128xf32>
    %91 = arith.truncf %90 : vector<256x128xf32> to vector<256x128xbf16>
    %92 = vector.extract_strided_slice %85 {offsets = [0, 0], sizes = [256, 128], strides = [1, 1]} : vector<288x128xf32> to vector<256x128xf32>
    %93 = vector.broadcast %83 : vector<256x1xf32> to vector<256x128xf32>
    %94 = arith.mulf %92, %93 : vector<256x128xf32>
    %95 = arith.truncf %94 : vector<256x128xf32> to vector<256x128xbf16>
    %96 = vector.extract_strided_slice %84 {offsets = [16, 0], sizes = [256, 128], strides = [1, 1]} : vector<288x128xf32> to vector<256x128xf32>
    %97 = vector.broadcast %79 : vector<256x1xf32> to vector<256x128xf32>
    %98 = arith.mulf %96, %97 : vector<256x128xf32>
    %99 = arith.truncf %98 : vector<256x128xf32> to vector<256x128xbf16>
    %100 = vector.extract_strided_slice %58 {offsets = [16, 0], sizes = [256, 128], strides = [1, 1]} : vector<288x128xf32> to vector<256x128xf32>
    %101 = arith.truncf %100 : vector<256x128xf32> to vector<256x128xbf16>
    %102 = vector.extract_strided_slice %85 {offsets = [16, 0], sizes = [256, 128], strides = [1, 1]} : vector<288x128xf32> to vector<256x128xf32>
    %103 = vector.broadcast %83 : vector<256x1xf32> to vector<256x128xf32>
    %104 = arith.mulf %102, %103 : vector<256x128xf32>
    %105 = arith.truncf %104 : vector<256x128xf32> to vector<256x128xbf16>
    %106 = vector.extract_strided_slice %84 {offsets = [32, 0], sizes = [256, 128], strides = [1, 1]} : vector<288x128xf32> to vector<256x128xf32>
    %107 = vector.broadcast %79 : vector<256x1xf32> to vector<256x128xf32>
    %108 = arith.mulf %106, %107 : vector<256x128xf32>
    %109 = arith.truncf %108 : vector<256x128xf32> to vector<256x128xbf16>
    %110 = vector.extract_strided_slice %58 {offsets = [32, 0], sizes = [256, 128], strides = [1, 1]} : vector<288x128xf32> to vector<256x128xf32>
    %111 = arith.truncf %110 : vector<256x128xf32> to vector<256x128xbf16>
    %112 = vector.extract_strided_slice %85 {offsets = [32, 0], sizes = [256, 128], strides = [1, 1]} : vector<288x128xf32> to vector<256x128xf32>
    %113 = vector.broadcast %83 : vector<256x1xf32> to vector<256x128xf32>
    %114 = arith.mulf %112, %113 : vector<256x128xf32>
    %115 = arith.truncf %114 : vector<256x128xf32> to vector<256x128xbf16>
    %116 = tpu.concatenate %89, %91, %95, %99, %101, %105, %109, %111, %115 in 1 : vector<256x128xbf16>, vector<256x128xbf16>, vector<256x128xbf16>, vector<256x128xbf16>, vector<256x128xbf16>, vector<256x128xbf16>, vector<256x128xbf16>, vector<256x128xbf16>, vector<256x128xbf16> -> vector<256x1152xbf16>
    %c0_32 = arith.constant 0 : index
    %c0_33 = arith.constant 0 : index
    %117 = vector.load %arg8[%c0_32, %c0_33] : memref<1152x128xbf16, #tpu.memory_space<vmem>>, vector<1152x128xbf16>
    %cst_34 = arith.constant dense<0.000000e+00> : vector<256x128xf32>
    %118 = tpu.matmul %116, %117, %cst_34 {dimension_numbers = #tpu.dot_dimension_numbers<[1], [0], [0], [1], [0, 0, 1, 1], [], []>} : vector<256x1152xbf16>, vector<1152x128xbf16>, vector<256x128xf32> -> vector<256x128xf32>
    %c0_35 = arith.constant 0 : index
    %c0_36 = arith.constant 0 : index
    %119 = vector.load %arg9[%c0_35, %c0_36] : memref<1x128xf32, #tpu.memory_space<vmem>>, vector<1x128xf32>
    %120 = vector.broadcast %119 : vector<1x128xf32> to vector<256x128xf32>
    %121 = arith.mulf %118, %120 : vector<256x128xf32>
    %c0_37 = arith.constant 0 : index
    %c0_38 = arith.constant 0 : index
    %122 = vector.load %arg10[%c0_37, %c0_38] : memref<1x128xf32, #tpu.memory_space<vmem>>, vector<1x128xf32>
    %123 = vector.broadcast %122 : vector<1x128xf32> to vector<256x128xf32>
    %124 = arith.addf %121, %123 : vector<256x128xf32>
    %cst_39 = arith.constant 0.000000e+00 : f32
    %125 = vector.broadcast %cst_39 : f32 to vector<256x128xf32>
    %126 = arith.subf %125, %124 : vector<256x128xf32>
    %127 = math.exp %126 : vector<256x128xf32>
    %cst_40 = arith.constant 1.000000e+00 : f32
    %128 = vector.broadcast %cst_40 : f32 to vector<256x128xf32>
    %129 = arith.addf %128, %127 : vector<256x128xf32>
    %130 = tpu.reciprocal %129 {approx = true} : vector<256x128xf32> -> vector<256x128xf32>
    %131 = arith.mulf %124, %130 : vector<256x128xf32>
    %132 = arith.extf %5 : vector<256x128xbf16> to vector<256x128xf32>
    %133 = arith.addf %131, %132 : vector<256x128xf32>
    %134 = vector.shape_cast %133 : vector<256x128xf32> to vector<16x16x128xf32>
    %135 = arith.truncf %134 : vector<16x16x128xf32> to vector<16x16x128xbf16>
    %c0_41 = arith.constant 0 : index
    %c0_42 = arith.constant 0 : index
    %c0_43 = arith.constant 0 : index
    %c0_44 = arith.constant 0 : index
    %136 = vector.load %arg11[%c0_41, %c0_42, %c0_43, %c0_44] : memref<1x16x16x128xbf16, #tpu.memory_space<vmem>>, vector<1x16x16x128xbf16>
    %137 = vector.shape_cast %136 : vector<1x16x16x128xbf16> to vector<16x16x128xbf16>
    %138 = vector.shape_cast %135 : vector<16x16x128xbf16> to vector<1x16x16x128xbf16>
    tpu.vector_store %arg11[%c0_41, %c0_42, %c0_43, %c0_44], %138 {strides = array<i32>} : memref<1x16x16x128xbf16, #tpu.memory_space<vmem>>, vector<1x16x16x128xbf16>,
    return
  }
  func.func @transform_0(%arg0: i32, %arg1: i32) -> (i32, i32, i32, i32) {
    %c0_i32 = arith.constant 0 : i32
    %c0_i32_0 = arith.constant 0 : i32
    %c0_i32_1 = arith.constant 0 : i32
    return %arg0, %arg1, %c0_i32, %c0_i32_0 : i32, i32, i32, i32
  }
  func.func @transform_1(%arg0: i32, %arg1: i32) -> (i32, i32, i32, i32) {
    %c16_i32 = arith.constant 16 : i32
    %0 = arith.muli %arg1, %c16_i32 : i32
    %c1_i32 = arith.constant 1 : i32
    %1 = arith.subi %0, %c1_i32 : i32
    %c0_i32 = arith.constant 0 : i32
    %2 = arith.maxsi %1, %c0_i32 : i32
    %c0_i32_0 = arith.constant 0 : i32
    %c0_i32_1 = arith.constant 0 : i32
    %c0_i32_2 = arith.constant 0 : i32
    return %arg0, %2, %c0_i32_0, %c0_i32_1 : i32, i32, i32, i32
  }
  func.func @transform_2(%arg0: i32, %arg1: i32) -> (i32, i32, i32, i32) {
    %c16_i32 = arith.constant 16 : i32
    %0 = arith.muli %arg1, %c16_i32 : i32
    %c16_i32_0 = arith.constant 16 : i32
    %1 = arith.addi %0, %c16_i32_0 : i32
    %c15_i32 = arith.constant 15 : i32
    %2 = arith.minsi %1, %c15_i32 : i32
    %c0_i32 = arith.constant 0 : i32
    %c0_i32_1 = arith.constant 0 : i32
    %c0_i32_2 = arith.constant 0 : i32
    return %arg0, %2, %c0_i32, %c0_i32_1 : i32, i32, i32, i32
  }
  func.func @transform_3(%arg0: i32, %arg1: i32) -> (i32, i32) {
    %c0_i32 = arith.constant 0 : i32
    %c0_i32_0 = arith.constant 0 : i32
    %c0_i32_1 = arith.constant 0 : i32
    return %c0_i32, %c0_i32_0 : i32, i32
  }
  func.func @transform_4(%arg0: i32, %arg1: i32) -> (i32, i32) {
    %c0_i32 = arith.constant 0 : i32
    %c0_i32_0 = arith.constant 0 : i32
    %c0_i32_1 = arith.constant 0 : i32
    return %c0_i32, %c0_i32_0 : i32, i32
  }
  func.func @transform_5(%arg0: i32, %arg1: i32) -> (i32, i32) {
    %c0_i32 = arith.constant 0 : i32
    %c0_i32_0 = arith.constant 0 : i32
    %c0_i32_1 = arith.constant 0 : i32
    return %c0_i32, %c0_i32_0 : i32, i32
  }
  func.func @transform_6(%arg0: i32, %arg1: i32) -> (i32, i32) {
    %c0_i32 = arith.constant 0 : i32
    %c0_i32_0 = arith.constant 0 : i32
    %c0_i32_1 = arith.constant 0 : i32
    return %c0_i32, %c0_i32_0 : i32, i32
  }
  func.func @transform_7(%arg0: i32, %arg1: i32) -> (i32, i32) {
    %c0_i32 = arith.constant 0 : i32
    %c0_i32_0 = arith.constant 0 : i32
    %c0_i32_1 = arith.constant 0 : i32
    return %c0_i32, %c0_i32_0 : i32, i32
  }
  func.func @transform_8(%arg0: i32, %arg1: i32) -> (i32, i32) {
    %c0_i32 = arith.constant 0 : i32
    %c0_i32_0 = arith.constant 0 : i32
    %c0_i32_1 = arith.constant 0 : i32
    return %c0_i32, %c0_i32_0 : i32, i32
  }
  func.func @transform_9(%arg0: i32, %arg1: i32) -> (i32, i32, i32, i32) {
    %c0_i32 = arith.constant 0 : i32
    %c0_i32_0 = arith.constant 0 : i32
    %c0_i32_1 = arith.constant 0 : i32
    return %arg0, %arg1, %c0_i32, %c0_i32_0 : i32, i32, i32, i32
  }
}

module attributes {stable_mosaic.version = 11 : i64} {
  func.func @_bottleneck_kernel(%arg0: i32, %arg1: i32, %arg2: memref<1x16x16x128xbf16, #tpu.memory_space<vmem>>, %arg3: memref<1x1x16x128xbf16, #tpu.memory_space<vmem>>, %arg4: memref<1x1x16x128xbf16, #tpu.memory_space<vmem>>, %arg5: memref<128x128xbf16, #tpu.memory_space<vmem>>, %arg6: memref<1x128xf32, #tpu.memory_space<vmem>>, %arg7: memref<1x128xf32, #tpu.memory_space<vmem>>, %arg8: memref<1152x128xbf16, #tpu.memory_space<vmem>>, %arg9: memref<1x128xf32, #tpu.memory_space<vmem>>, %arg10: memref<1x128xf32, #tpu.memory_space<vmem>>, %arg11: memref<1x16x16x128xbf16, #tpu.memory_space<vmem>>) attributes {dimension_semantics = [#tpu.dimension_semantics<parallel>, #tpu.dimension_semantics<parallel>], iteration_bounds = array<i64: 2, 1>, scalar_prefetch = 0 : i64, scratch_operands = 0 : i64, tpu.core_type = #tpu.core_type<tc>, window_params = [{transform_indices = @transform_0, window_bounds = array<i64: 1, 16, 16, 128>}, {transform_indices = @transform_1, window_bounds = array<i64: 1, 1, 16, 128>}, {transform_indices = @transform_2, window_bounds = array<i64: 1, 1, 16, 128>}, {pipeline_mode = #tpu.pipeline_mode<synchronous>, transform_indices = @transform_3, window_bounds = array<i64: 128, 128>}, {pipeline_mode = #tpu.pipeline_mode<synchronous>, transform_indices = @transform_4, window_bounds = array<i64: 1, 128>}, {pipeline_mode = #tpu.pipeline_mode<synchronous>, transform_indices = @transform_5, window_bounds = array<i64: 1, 128>}, {pipeline_mode = #tpu.pipeline_mode<synchronous>, transform_indices = @transform_6, window_bounds = array<i64: 1152, 128>}, {pipeline_mode = #tpu.pipeline_mode<synchronous>, transform_indices = @transform_7, window_bounds = array<i64: 1, 128>}, {pipeline_mode = #tpu.pipeline_mode<synchronous>, transform_indices = @transform_8, window_bounds = array<i64: 1, 128>}, {transform_indices = @transform_9, window_bounds = array<i64: 1, 16, 16, 128>}]} {
    %c0 = arith.constant 0 : index
    %c0_0 = arith.constant 0 : index
    %0 = vector.load %arg5[%c0, %c0_0] : memref<128x128xbf16, #tpu.memory_space<vmem>>, vector<128x128xbf16>
    %c0_1 = arith.constant 0 : index
    %c0_2 = arith.constant 0 : index
    %1 = vector.load %arg6[%c0_1, %c0_2] : memref<1x128xf32, #tpu.memory_space<vmem>>, vector<1x128xf32>
    %c0_3 = arith.constant 0 : index
    %c0_4 = arith.constant 0 : index
    %2 = vector.load %arg7[%c0_3, %c0_4] : memref<1x128xf32, #tpu.memory_space<vmem>>, vector<1x128xf32>
    %c0_5 = arith.constant 0 : index
    %c0_6 = arith.constant 0 : index
    %c0_7 = arith.constant 0 : index
    %c0_8 = arith.constant 0 : index
    %3 = vector.load %arg2[%c0_5, %c0_6, %c0_7, %c0_8] : memref<1x16x16x128xbf16, #tpu.memory_space<vmem>>, vector<1x16x16x128xbf16>
    %4 = vector.shape_cast %3 : vector<1x16x16x128xbf16> to vector<16x16x128xbf16>
    %5 = vector.shape_cast %4 : vector<16x16x128xbf16> to vector<256x128xbf16>
    %cst = arith.constant dense<0.000000e+00> : vector<256x128xf32>
    %6 = tpu.matmul %5, %0, %cst {dimension_numbers = #tpu.dot_dimension_numbers<[1], [0], [0], [1], [0, 0, 1, 1], [], []>} : vector<256x128xbf16>, vector<128x128xbf16>, vector<256x128xf32> -> vector<256x128xf32>
    %7 = vector.broadcast %1 : vector<1x128xf32> to vector<256x128xf32>
    %8 = arith.mulf %6, %7 : vector<256x128xf32>
    %9 = vector.broadcast %2 : vector<1x128xf32> to vector<256x128xf32>
    %10 = arith.addf %8, %9 : vector<256x128xf32>
    %cst_9 = arith.constant 0.000000e+00 : f32
    %11 = vector.broadcast %cst_9 : f32 to vector<256x128xf32>
    %12 = arith.subf %11, %10 : vector<256x128xf32>
    %13 = math.exp %12 : vector<256x128xf32>
    %cst_10 = arith.constant 1.000000e+00 : f32
    %14 = vector.broadcast %cst_10 : f32 to vector<256x128xf32>
    %15 = arith.addf %14, %13 : vector<256x128xf32>
    %16 = tpu.reciprocal %15 : vector<256x128xf32> -> vector<256x128xf32>
    %17 = arith.mulf %10, %16 : vector<256x128xf32>
    %c0_11 = arith.constant 0 : index
    %c0_12 = arith.constant 0 : index
    %c0_13 = arith.constant 0 : index
    %c0_14 = arith.constant 0 : index
    %18 = vector.load %arg3[%c0_11, %c0_12, %c0_13, %c0_14] : memref<1x1x16x128xbf16, #tpu.memory_space<vmem>>, vector<1x1x16x128xbf16>
    %19 = vector.shape_cast %18 : vector<1x1x16x128xbf16> to vector<1x16x128xbf16>
    %20 = vector.shape_cast %19 : vector<1x16x128xbf16> to vector<16x128xbf16>
    %cst_15 = arith.constant dense<0.000000e+00> : vector<16x128xf32>
    %21 = tpu.matmul %20, %0, %cst_15 {dimension_numbers = #tpu.dot_dimension_numbers<[1], [0], [0], [1], [0, 0, 1, 1], [], []>} : vector<16x128xbf16>, vector<128x128xbf16>, vector<16x128xf32> -> vector<16x128xf32>
    %22 = vector.broadcast %1 : vector<1x128xf32> to vector<16x128xf32>
    %23 = arith.mulf %21, %22 : vector<16x128xf32>
    %24 = vector.broadcast %2 : vector<1x128xf32> to vector<16x128xf32>
    %25 = arith.addf %23, %24 : vector<16x128xf32>
    %cst_16 = arith.constant 0.000000e+00 : f32
    %26 = vector.broadcast %cst_16 : f32 to vector<16x128xf32>
    %27 = arith.subf %26, %25 : vector<16x128xf32>
    %28 = math.exp %27 : vector<16x128xf32>
    %cst_17 = arith.constant 1.000000e+00 : f32
    %29 = vector.broadcast %cst_17 : f32 to vector<16x128xf32>
    %30 = arith.addf %29, %28 : vector<16x128xf32>
    %31 = tpu.reciprocal %30 : vector<16x128xf32> -> vector<16x128xf32>
    %32 = arith.mulf %25, %31 : vector<16x128xf32>
    %c0_18 = arith.constant 0 : index
    %c0_19 = arith.constant 0 : index
    %c0_20 = arith.constant 0 : index
    %c0_21 = arith.constant 0 : index
    %33 = vector.load %arg4[%c0_18, %c0_19, %c0_20, %c0_21] : memref<1x1x16x128xbf16, #tpu.memory_space<vmem>>, vector<1x1x16x128xbf16>
    %34 = vector.shape_cast %33 : vector<1x1x16x128xbf16> to vector<1x16x128xbf16>
    %35 = vector.shape_cast %34 : vector<1x16x128xbf16> to vector<16x128xbf16>
    %cst_22 = arith.constant dense<0.000000e+00> : vector<16x128xf32>
    %36 = tpu.matmul %35, %0, %cst_22 {dimension_numbers = #tpu.dot_dimension_numbers<[1], [0], [0], [1], [0, 0, 1, 1], [], []>} : vector<16x128xbf16>, vector<128x128xbf16>, vector<16x128xf32> -> vector<16x128xf32>
    %37 = vector.broadcast %1 : vector<1x128xf32> to vector<16x128xf32>
    %38 = arith.mulf %36, %37 : vector<16x128xf32>
    %39 = vector.broadcast %2 : vector<1x128xf32> to vector<16x128xf32>
    %40 = arith.addf %38, %39 : vector<16x128xf32>
    %cst_23 = arith.constant 0.000000e+00 : f32
    %41 = vector.broadcast %cst_23 : f32 to vector<16x128xf32>
    %42 = arith.subf %41, %40 : vector<16x128xf32>
    %43 = math.exp %42 : vector<16x128xf32>
    %cst_24 = arith.constant 1.000000e+00 : f32
    %44 = vector.broadcast %cst_24 : f32 to vector<16x128xf32>
    %45 = arith.addf %44, %43 : vector<16x128xf32>
    %46 = tpu.reciprocal %45 : vector<16x128xf32> -> vector<16x128xf32>
    %47 = arith.mulf %40, %46 : vector<16x128xf32>
    %c0_i32 = arith.constant 0 : i32
    %48 = arith.cmpi sgt, %arg1, %c0_i32 : i32
    %49 = arith.extui %48 : i1 to i32
    %50 = arith.sitofp %49 : i32 to f32
    %51 = vector.broadcast %50 : f32 to vector<16x128xf32>
    %52 = arith.mulf %32, %51 : vector<16x128xf32>
    %c0_i32_25 = arith.constant 0 : i32
    %53 = arith.cmpi slt, %arg1, %c0_i32_25 : i32
    %54 = arith.extui %53 : i1 to i32
    %55 = arith.sitofp %54 : i32 to f32
    %56 = vector.broadcast %55 : f32 to vector<16x128xf32>
    %57 = arith.mulf %47, %56 : vector<16x128xf32>
    %58 = tpu.concatenate %52, %17, %57 in 0 : vector<16x128xf32>, vector<256x128xf32>, vector<16x128xf32> -> vector<288x128xf32>
    %59 = tpu.iota {dimensions = array<i32: 0>} : vector<256x1xi32>
    %c16_i32 = arith.constant 16 : i32
    %c0_i32_26 = arith.constant 0 : i32
    %60 = arith.cmpi eq, %c16_i32, %c0_i32_26 : i32
    %c1_i32 = arith.constant 1 : i32
    %61 = arith.select %60, %c1_i32, %c16_i32 : i32
    %62 = vector.broadcast %61 : i32 to vector<256x1xi32>
    %63 = arith.remsi %59, %62 : vector<256x1xi32>
    %c0_i32_27 = arith.constant 0 : i32
    %64 = vector.broadcast %c0_i32_27 : i32 to vector<256x1xi32>
    %65 = arith.cmpi ne, %63, %64 : vector<256x1xi32>
    %c0_i32_28 = arith.constant 0 : i32
    %66 = vector.broadcast %c0_i32_28 : i32 to vector<256x1xi32>
    %67 = arith.cmpi slt, %63, %66 : vector<256x1xi32>
    %c0_i32_29 = arith.constant 0 : i32
    %68 = arith.cmpi slt, %61, %c0_i32_29 : i32
    %69 = vector.broadcast %68 : i1 to vector<256x1xi1>
    %70 = vector.broadcast %69 : vector<256x1xi1> to vector<256x1xi1>
    %71 = arith.xori %67, %70 : vector<256x1xi1>
    %72 = arith.andi %71, %65 : vector<256x1xi1>
    %73 = vector.broadcast %61 : i32 to vector<256x1xi32>
    %74 = arith.addi %63, %73 : vector<256x1xi32>
    %75 = arith.select %72, %74, %63 : vector<256x1xi1>, vector<256x1xi32>
    %c0_i32_30 = arith.constant 0 : i32
    %76 = vector.broadcast %c0_i32_30 : i32 to vector<256x1xi32>
    %77 = arith.cmpi ne, %75, %76 : vector<256x1xi32>
    %78 = arith.extui %77 : vector<256x1xi1> to vector<256x1xi32>
    %79 = arith.sitofp %78 : vector<256x1xi32> to vector<256x1xf32>
    %c15_i32 = arith.constant 15 : i32
    %80 = vector.broadcast %c15_i32 : i32 to vector<256x1xi32>
    %81 = arith.cmpi ne, %75, %80 : vector<256x1xi32>
    %82 = arith.extui %81 : vector<256x1xi1> to vector<256x1xi32>
    %83 = arith.sitofp %82 : vector<256x1xi32> to vector<256x1xf32>
    %c1_i32_31 = arith.constant 1 : i32
    %84 = tpu.dynamic_rotate %58 by %c1_i32_31 dim 0 : vector<288x128xf32>, i32 -> vector<288x128xf32>
    %c287_i32 = arith.constant 287 : i32
    %85 = tpu.dynamic_rotate %58 by %c287_i32 dim 0 : vector<288x128xf32>, i32 -> vector<288x128xf32>
    %86 = vector.extract_strided_slice %84 {offsets = [0, 0], sizes = [256, 128], strides = [1, 1]} : vector<288x128xf32> to vector<256x128xf32>
    %87 = vector.broadcast %79 : vector<256x1xf32> to vector<256x128xf32>
    %88 = arith.mulf %86, %87 : vector<256x128xf32>
    %89 = arith.truncf %88 : vector<256x128xf32> to vector<256x128xbf16>
    %90 = vector.extract_strided_slice %58 {offsets = [0, 0], sizes = [256, 128], strides = [1, 1]} : vector<288x128xf32> to vector<256x128xf32>
    %91 = arith.truncf %90 : vector<256x128xf32> to vector<256x128xbf16>
    %92 = vector.extract_strided_slice %85 {offsets = [0, 0], sizes = [256, 128], strides = [1, 1]} : vector<288x128xf32> to vector<256x128xf32>
    %93 = vector.broadcast %83 : vector<256x1xf32> to vector<256x128xf32>
    %94 = arith.mulf %92, %93 : vector<256x128xf32>
    %95 = arith.truncf %94 : vector<256x128xf32> to vector<256x128xbf16>
    %96 = vector.extract_strided_slice %84 {offsets = [16, 0], sizes = [256, 128], strides = [1, 1]} : vector<288x128xf32> to vector<256x128xf32>
    %97 = vector.broadcast %79 : vector<256x1xf32> to vector<256x128xf32>
    %98 = arith.mulf %96, %97 : vector<256x128xf32>
    %99 = arith.truncf %98 : vector<256x128xf32> to vector<256x128xbf16>
    %100 = vector.extract_strided_slice %58 {offsets = [16, 0], sizes = [256, 128], strides = [1, 1]} : vector<288x128xf32> to vector<256x128xf32>
    %101 = arith.truncf %100 : vector<256x128xf32> to vector<256x128xbf16>
    %102 = vector.extract_strided_slice %85 {offsets = [16, 0], sizes = [256, 128], strides = [1, 1]} : vector<288x128xf32> to vector<256x128xf32>
    %103 = vector.broadcast %83 : vector<256x1xf32> to vector<256x128xf32>
    %104 = arith.mulf %102, %103 : vector<256x128xf32>
    %105 = arith.truncf %104 : vector<256x128xf32> to vector<256x128xbf16>
    %106 = vector.extract_strided_slice %84 {offsets = [32, 0], sizes = [256, 128], strides = [1, 1]} : vector<288x128xf32> to vector<256x128xf32>
    %107 = vector.broadcast %79 : vector<256x1xf32> to vector<256x128xf32>
    %108 = arith.mulf %106, %107 : vector<256x128xf32>
    %109 = arith.truncf %108 : vector<256x128xf32> to vector<256x128xbf16>
    %110 = vector.extract_strided_slice %58 {offsets = [32, 0], sizes = [256, 128], strides = [1, 1]} : vector<288x128xf32> to vector<256x128xf32>
    %111 = arith.truncf %110 : vector<256x128xf32> to vector<256x128xbf16>
    %112 = vector.extract_strided_slice %85 {offsets = [32, 0], sizes = [256, 128], strides = [1, 1]} : vector<288x128xf32> to vector<256x128xf32>
    %113 = vector.broadcast %83 : vector<256x1xf32> to vector<256x128xf32>
    %114 = arith.mulf %112, %113 : vector<256x128xf32>
    %115 = arith.truncf %114 : vector<256x128xf32> to vector<256x128xbf16>
    %116 = tpu.concatenate %89, %91, %95, %99, %101, %105, %109, %111, %115 in 1 : vector<256x128xbf16>, vector<256x128xbf16>, vector<256x128xbf16>, vector<256x128xbf16>, vector<256x128xbf16>, vector<256x128xbf16>, vector<256x128xbf16>, vector<256x128xbf16>, vector<256x128xbf16> -> vector<256x1152xbf16>
    %c0_32 = arith.constant 0 : index
    %c0_33 = arith.constant 0 : index
    %117 = vector.load %arg8[%c0_32, %c0_33] : memref<1152x128xbf16, #tpu.memory_space<vmem>>, vector<1152x128xbf16>
    %cst_34 = arith.constant dense<0.000000e+00> : vector<256x128xf32>
    %118 = tpu.matmul %116, %117, %cst_34 {dimension_numbers = #tpu.dot_dimension_numbers<[1], [0], [0], [1], [0, 0, 1, 1], [], []>} : vector<256x1152xbf16>, vector<1152x128xbf16>, vector<256x128xf32> -> vector<256x128xf32>
    %c0_35 = arith.constant 0 : index
    %c0_36 = arith.constant 0 : index
    %119 = vector.load %arg9[%c0_35, %c0_36] : memref<1x128xf32, #tpu.memory_space<vmem>>, vector<1x128xf32>
    %120 = vector.broadcast %119 : vector<1x128xf32> to vector<256x128xf32>
    %121 = arith.mulf %118, %120 : vector<256x128xf32>
    %c0_37 = arith.constant 0 : index
    %c0_38 = arith.constant 0 : index
    %122 = vector.load %arg10[%c0_37, %c0_38] : memref<1x128xf32, #tpu.memory_space<vmem>>, vector<1x128xf32>
    %123 = vector.broadcast %122 : vector<1x128xf32> to vector<256x128xf32>
    %124 = arith.addf %121, %123 : vector<256x128xf32>
    %cst_39 = arith.constant 0.000000e+00 : f32
    %125 = vector.broadcast %cst_39 : f32 to vector<256x128xf32>
    %126 = arith.subf %125, %124 : vector<256x128xf32>
    %127 = math.exp %126 : vector<256x128xf32>
    %cst_40 = arith.constant 1.000000e+00 : f32
    %128 = vector.broadcast %cst_40 : f32 to vector<256x128xf32>
    %129 = arith.addf %128, %127 : vector<256x128xf32>
    %130 = tpu.reciprocal %129 {approx = true} : vector<256x128xf32> -> vector<256x128xf32>
    %131 = arith.mulf %124, %130 : vector<256x128xf32>
    %132 = arith.extf %5 : vector<256x128xbf16> to vector<256x128xf32>
    %133 = arith.addf %131, %132 : vector<256x128xf32>
    %134 = vector.shape_cast %133 : vector<256x128xf32> to vector<16x16x128xf32>
    %135 = arith.truncf %134 : vector<16x16x128xf32> to vector<16x16x128xbf16>
    %c0_41 = arith.constant 0 : index
    %c0_42 = arith.constant 0 : index
    %c0_43 = arith.constant 0 : index
    %c0_44 = arith.constant 0 : index
    %136 = vector.load %arg11[%c0_41, %c0_42, %c0_43, %c0_44] : memref<1x16x16x128xbf16, #tpu.memory_space<vmem>>, vector<1x16x16x128xbf16>
    %137 = vector.shape_cast %136 : vector<1x16x16x128xbf16> to vector<16x16x128xbf16>
    %138 = vector.shape_cast %135 : vector<16x16x128xbf16> to vector<1x16x16x128xbf16>
    tpu.vector_store %arg11[%c0_41, %c0_42, %c0_43, %c0_44], %138 {strides = array<i32>} : memref<1x16x16x128xbf16, #tpu.memory_space<vmem>>, vector<1x16x16x128xbf16>,
    return
  }
  func.func @transform_0(%arg0: i32, %arg1: i32) -> (i32, i32, i32, i32) {
    %c0_i32 = arith.constant 0 : i32
    %c0_i32_0 = arith.constant 0 : i32
    %c0_i32_1 = arith.constant 0 : i32
    return %arg0, %arg1, %c0_i32, %c0_i32_0 : i32, i32, i32, i32
  }
  func.func @transform_1(%arg0: i32, %arg1: i32) -> (i32, i32, i32, i32) {
    %c16_i32 = arith.constant 16 : i32
    %0 = arith.muli %arg1, %c16_i32 : i32
    %c1_i32 = arith.constant 1 : i32
    %1 = arith.subi %0, %c1_i32 : i32
    %c0_i32 = arith.constant 0 : i32
    %2 = arith.maxsi %1, %c0_i32 : i32
    %c0_i32_0 = arith.constant 0 : i32
    %c0_i32_1 = arith.constant 0 : i32
    %c0_i32_2 = arith.constant 0 : i32
    return %arg0, %2, %c0_i32_0, %c0_i32_1 : i32, i32, i32, i32
  }
  func.func @transform_2(%arg0: i32, %arg1: i32) -> (i32, i32, i32, i32) {
    %c16_i32 = arith.constant 16 : i32
    %0 = arith.muli %arg1, %c16_i32 : i32
    %c16_i32_0 = arith.constant 16 : i32
    %1 = arith.addi %0, %c16_i32_0 : i32
    %c15_i32 = arith.constant 15 : i32
    %2 = arith.minsi %1, %c15_i32 : i32
    %c0_i32 = arith.constant 0 : i32
    %c0_i32_1 = arith.constant 0 : i32
    %c0_i32_2 = arith.constant 0 : i32
    return %arg0, %2, %c0_i32, %c0_i32_1 : i32, i32, i32, i32
  }
  func.func @transform_3(%arg0: i32, %arg1: i32) -> (i32, i32) {
    %c0_i32 = arith.constant 0 : i32
    %c0_i32_0 = arith.constant 0 : i32
    %c0_i32_1 = arith.constant 0 : i32
    return %c0_i32, %c0_i32_0 : i32, i32
  }
  func.func @transform_4(%arg0: i32, %arg1: i32) -> (i32, i32) {
    %c0_i32 = arith.constant 0 : i32
    %c0_i32_0 = arith.constant 0 : i32
    %c0_i32_1 = arith.constant 0 : i32
    return %c0_i32, %c0_i32_0 : i32, i32
  }
  func.func @transform_5(%arg0: i32, %arg1: i32) -> (i32, i32) {
    %c0_i32 = arith.constant 0 : i32
    %c0_i32_0 = arith.constant 0 : i32
    %c0_i32_1 = arith.constant 0 : i32
    return %c0_i32, %c0_i32_0 : i32, i32
  }
  func.func @transform_6(%arg0: i32, %arg1: i32) -> (i32, i32) {
    %c0_i32 = arith.constant 0 : i32
    %c0_i32_0 = arith.constant 0 : i32
    %c0_i32_1 = arith.constant 0 : i32
    return %c0_i32, %c0_i32_0 : i32, i32
  }
  func.func @transform_7(%arg0: i32, %arg1: i32) -> (i32, i32) {
    %c0_i32 = arith.constant 0 : i32
    %c0_i32_0 = arith.constant 0 : i32
    %c0_i32_1 = arith.constant 0 : i32
    return %c0_i32, %c0_i32_0 : i32, i32
  }
  func.func @transform_8(%arg0: i32, %arg1: i32) -> (i32, i32) {
    %c0_i32 = arith.constant 0 : i32
    %c0_i32_0 = arith.constant 0 : i32
    %c0_i32_1 = arith.constant 0 : i32
    return %c0_i32, %c0_i32_0 : i32, i32
  }
  func.func @transform_9(%arg0: i32, %arg1: i32) -> (i32, i32, i32, i32) {
    %c0_i32 = arith.constant 0 : i32
    %c0_i32_0 = arith.constant 0 : i32
    %c0_i32_1 = arith.constant 0 : i32
    return %arg0, %arg1, %c0_i32, %c0_i32_0 : i32, i32, i32, i32
  }
}

</mosaic_0001>

<llo_original>
// kernel: _forward_impl.1
$region0: #{_forward_impl.1}
  #allocation0 [shape = 'u32[]', space=smem, size = 0x4, offset = 0x4, fixed_abs, tag = 'smem constant byte address 0x4 - core index']
  #allocation1 [shape = 'u32[144,128]{1,0:T(1,128)}', space=vmem, size = 0x12000, scoped, tag = 'internal scratch']
  %s0 = inlined_call_operand.vmem [shape: bf16[2,16,16,128], index: 0, kind: input, shape index: {}, may-alias: {0,1,2}]
  %s1 = inlined_call_operand.vmem [shape: bf16[2,16,16,128], index: 1, kind: input, shape index: {}, may-alias: {0,1,2}]
  %s2 = inlined_call_operand.vmem [shape: bf16[2,16,16,128], index: 2, kind: input, shape index: {}, may-alias: {0,1,2}]
  %s3 = inlined_call_operand.vmem [shape: bf16[128,128], index: 3, kind: input, shape index: {}]
  %s4 = inlined_call_operand.vmem [shape: f32[1,128], index: 4, kind: input, shape index: {}]
  %s5 = inlined_call_operand.vmem [shape: f32[1,128], index: 5, kind: input, shape index: {}]
  %s6 = inlined_call_operand.vmem [shape: bf16[1152,128], index: 6, kind: input, shape index: {}]
  %s7 = inlined_call_operand.vmem [shape: f32[1,128], index: 7, kind: input, shape index: {}]
  %s8 = inlined_call_operand.vmem [shape: f32[1,128], index: 8, kind: input, shape index: {}]
  %s9 = inlined_call_operand.vmem [shape: bf16[2,16,16,128], index: 9, kind: output, shape index: {}]
  %s10 = sld [smem:[#allocation0]]
  $region69: #{_forward_impl.1} parent=0
    _
  %s12 = ssub.s32 1, %s10
  %s13 = scalar_select 0, %s12, %s10
  loop: start=0, step=1, limit=4
  $region2: #{_forward_impl.1} parent=0 // loop_pre_header
    _
  $region3: #{_forward_impl.1} parent=0 // loop_header
    %s15 = sphi 0, %s19
    %p16 = scmp.ge.s32.totalorder %s15, 4
    %s22 = sphi 0, %s34
    %s23 = sphi 0, %s30
    %s24 = sphi 0, %s22
    %s25 = sphi 0, %s23
    %s26 = sphi 0, %s24
    %s27 = sphi 0, %s25
    %s39 = sphi 0, %s41
    %s42 = sphi 0, %s39
    %s43 = sphi 0, %s42
    %s59 = sphi 0, %s43
    %s75 = sphi 0, %s77
    %s78 = sphi 0, %s75
    %s79 = sphi 0, %s78
    %s95 = sphi 0, %s79
    %s111 = sphi 0, %s113
    %s114 = sphi 0, %s111
    %s115 = sphi 0, %s114
    %s131 = sphi 0, %s115
    %s135 = sphi 0, %s135
    %s137 = sphi 0, %s135
    %s138 = sphi 0, %s137
    %s152 = sphi 0, %s138
    %s156 = sphi 0, %s156
    %s158 = sphi 0, %s156
    %s159 = sphi 0, %s158
    %s173 = sphi 0, %s159
    %s177 = sphi 0, %s177
    %s179 = sphi 0, %s177
    %s180 = sphi 0, %s179
    %s194 = sphi 0, %s180
    %s198 = sphi 0, %s198
    %s200 = sphi 0, %s198
    %s201 = sphi 0, %s200
    %s215 = sphi 0, %s201
    %s219 = sphi 0, %s219
    %s221 = sphi 0, %s219
    %s222 = sphi 0, %s221
    %s236 = sphi 0, %s222
    %s240 = sphi 0, %s240
    %s242 = sphi 0, %s240
    %s243 = sphi 0, %s242
    %s257 = sphi 0, %s243
    %s265 = sphi 0, %s267
    %s268 = sphi 0, %s265
    %s269 = sphi 0, %s268
    %s285 = sphi 0, %s269
  $region4: #{_forward_impl.1} parent=0 // loop_header_branch
    %18 = sbr.rel (%p16) target = $region8
  $region5: #{_forward_impl.1} parent=0 // loop_body
    %s20 = ssub.s32 %s15, 1
    %s21 = ssub.s32 %s15, 2
    %s28 = sadd.s32 1, %s23
    %p29 = scmp.ge.s32.totalorder %s28, 1
    %s30 = scalar_select %p29, 0, %s28
    %s31 = sadd.s32 1, %s22
    %s32 = scalar_select %p29, %s31, %s22
    %p33 = scmp.ge.s32.totalorder %s32, 2
    %s34 = scalar_select %p33, 0, %s32
    %s35 = ssub.s32 %s22, %s34
    %s36 = ssub.s32 %s23, %s30
    %s37 = sor.u32 %s35, %s36
    %p38 = scmp.eq.s32.totalorder %s37, 0
    %s40 = sadd.s32 %s39, 1
    %s41 = scalar_select %p38, %s39, %s40
    %p44 = pneg %p38
    %p45 = scmp.eq.s32.totalorder %s15, 1
    %p46 = por %p44, %p45
    %p47 = scmp.ne.s32.totalorder %s39, %s42
    %p48 = scmp.eq.s32.totalorder %s15, 0
    %p49 = por %p47, %p48
    %p50 = scmp.ne.s32.totalorder %s39, %s42
    %p51 = scmp.eq.s32.totalorder %s20, 1
    %p52 = por %p50, %p51
    %p53 = scmp.ne.s32.totalorder %s42, %s43
    %p54 = scmp.eq.s32.totalorder %s20, 0
    %p55 = por %p53, %p54
    %p56 = scmp.ne.s32.totalorder %s42, %s43
    %p57 = scmp.eq.s32.totalorder %s21, 1
    %p58 = por %p56, %p57
    %p60 = scmp.ne.s32.totalorder %s43, %s59
    %p61 = scmp.eq.s32.totalorder %s21, 0
    %p62 = por %p60, %p61
    %s63 = smul.u32 %s23, 16
    %s64 = ssub.s32 %s63, 1
    %p65 = scmp.gt.s32.totalorder %s64, 0
    %s66 = scalar_select %p65, %s64, 0
    %s67 = smul.u32 %s30, 16
    %s68 = ssub.s32 %s67, 1
    %p69 = scmp.gt.s32.totalorder %s68, 0
    %s70 = scalar_select %p69, %s68, 0
    %s71 = ssub.s32 %s22, %s34
    %s72 = ssub.s32 %s66, %s70
    %s73 = sor.u32 %s71, %s72
    %p74 = scmp.eq.s32.totalorder %s73, 0
    %s76 = sadd.s32 %s75, 1
    %s77 = scalar_select %p74, %s75, %s76
    %p80 = pneg %p74
    %p81 = scmp.eq.s32.totalorder %s15, 1
    %p82 = por %p80, %p81
    %p83 = scmp.ne.s32.totalorder %s75, %s78
    %p84 = scmp.eq.s32.totalorder %s15, 0
    %p85 = por %p83, %p84
    %p86 = scmp.ne.s32.totalorder %s75, %s78
    %p87 = scmp.eq.s32.totalorder %s20, 1
    %p88 = por %p86, %p87
    %p89 = scmp.ne.s32.totalorder %s78, %s79
    %p90 = scmp.eq.s32.totalorder %s20, 0
    %p91 = por %p89, %p90
    %p92 = scmp.ne.s32.totalorder %s78, %s79
    %p93 = scmp.eq.s32.totalorder %s21, 1
    %p94 = por %p92, %p93
    %p96 = scmp.ne.s32.totalorder %s79, %s95
    %p97 = scmp.eq.s32.totalorder %s21, 0
    %p98 = por %p96, %p97
    %s99 = smul.u32 %s23, 16
    %s100 = sadd.s32 %s99, 16
    %p101 = scmp.lt.s32.totalorder %s100, 15
    %s102 = scalar_select %p101, %s100, 15
    %s103 = smul.u32 %s30, 16
    %s104 = sadd.s32 %s103, 16
    %p105 = scmp.lt.s32.totalorder %s104, 15
    %s106 = scalar_select %p105, %s104, 15
    %s107 = ssub.s32 %s22, %s34
    %s108 = ssub.s32 %s102, %s106
    %s109 = sor.u32 %s107, %s108
    %p110 = scmp.eq.s32.totalorder %s109, 0
    %s112 = sadd.s32 %s111, 1
    %s113 = scalar_select %p110, %s111, %s112
    %p116 = pneg %p110
    %p117 = scmp.eq.s32.totalorder %s15, 1
    %p118 = por %p116, %p117
    %p119 = scmp.ne.s32.totalorder %s111, %s114
    %p120 = scmp.eq.s32.totalorder %s15, 0
    %p121 = por %p119, %p120
    %p122 = scmp.ne.s32.totalorder %s111, %s114
    %p123 = scmp.eq.s32.totalorder %s20, 1
    %p124 = por %p122, %p123
    %p125 = scmp.ne.s32.totalorder %s114, %s115
    %p126 = scmp.eq.s32.totalorder %s20, 0
    %p127 = por %p125, %p126
    %p128 = scmp.ne.s32.totalorder %s114, %s115
    %p129 = scmp.eq.s32.totalorder %s21, 1
    %p130 = por %p128, %p129
    %p132 = scmp.ne.s32.totalorder %s115, %s131
    %p133 = scmp.eq.s32.totalorder %s21, 0
    %p134 = por %p132, %p133
    %s136 = sadd.s32 %s135, 1
    %p139 = scmp.eq.s32.totalorder %s15, 1
    %p140 = scmp.ne.s32.totalorder %s135, %s137
    %p141 = scmp.eq.s32.totalorder %s15, 0
    %p142 = por %p140, %p141
    %p143 = scmp.ne.s32.totalorder %s135, %s137
    %p144 = scmp.eq.s32.totalorder %s20, 1
    %p145 = por %p143, %p144
    %p146 = scmp.ne.s32.totalorder %s137, %s138
    %p147 = scmp.eq.s32.totalorder %s20, 0
    %p148 = por %p146, %p147
    %p149 = scmp.ne.s32.totalorder %s137, %s138
    %p150 = scmp.eq.s32.totalorder %s21, 1
    %p151 = por %p149, %p150
    %p153 = scmp.ne.s32.totalorder %s138, %s152
    %p154 = scmp.eq.s32.totalorder %s21, 0
    %p155 = por %p153, %p154
    %s157 = sadd.s32 %s156, 1
    %p160 = scmp.eq.s32.totalorder %s15, 1
    %p161 = scmp.ne.s32.totalorder %s156, %s158
    %p162 = scmp.eq.s32.totalorder %s15, 0
    %p163 = por %p161, %p162
    %p164 = scmp.ne.s32.totalorder %s156, %s158
    %p165 = scmp.eq.s32.totalorder %s20, 1
    %p166 = por %p164, %p165
    %p167 = scmp.ne.s32.totalorder %s158, %s159
    %p168 = scmp.eq.s32.totalorder %s20, 0
    %p169 = por %p167, %p168
    %p170 = scmp.ne.s32.totalorder %s158, %s159
    %p171 = scmp.eq.s32.totalorder %s21, 1
    %p172 = por %p170, %p171
    %p174 = scmp.ne.s32.totalorder %s159, %s173
    %p175 = scmp.eq.s32.totalorder %s21, 0
    %p176 = por %p174, %p175
    %s178 = sadd.s32 %s177, 1
    %p181 = scmp.eq.s32.totalorder %s15, 1
    %p182 = scmp.ne.s32.totalorder %s177, %s179
    %p183 = scmp.eq.s32.totalorder %s15, 0
    %p184 = por %p182, %p183
    %p185 = scmp.ne.s32.totalorder %s177, %s179
    %p186 = scmp.eq.s32.totalorder %s20, 1
    %p187 = por %p185, %p186
    %p188 = scmp.ne.s32.totalorder %s179, %s180
    %p189 = scmp.eq.s32.totalorder %s20, 0
    %p190 = por %p188, %p189
    %p191 = scmp.ne.s32.totalorder %s179, %s180
    %p192 = scmp.eq.s32.totalorder %s21, 1
    %p193 = por %p191, %p192
    %p195 = scmp.ne.s32.totalorder %s180, %s194
    %p196 = scmp.eq.s32.totalorder %s21, 0
    %p197 = por %p195, %p196
    %s199 = sadd.s32 %s198, 1
    %p202 = scmp.eq.s32.totalorder %s15, 1
    %p203 = scmp.ne.s32.totalorder %s198, %s200
    %p204 = scmp.eq.s32.totalorder %s15, 0
    %p205 = por %p203, %p204
    %p206 = scmp.ne.s32.totalorder %s198, %s200
    %p207 = scmp.eq.s32.totalorder %s20, 1
    %p208 = por %p206, %p207
    %p209 = scmp.ne.s32.totalorder %s200, %s201
    %p210 = scmp.eq.s32.totalorder %s20, 0
    %p211 = por %p209, %p210
    %p212 = scmp.ne.s32.totalorder %s200, %s201
    %p213 = scmp.eq.s32.totalorder %s21, 1
    %p214 = por %p212, %p213
    %p216 = scmp.ne.s32.totalorder %s201, %s215
    %p217 = scmp.eq.s32.totalorder %s21, 0
    %p218 = por %p216, %p217
    %s220 = sadd.s32 %s219, 1
    %p223 = scmp.eq.s32.totalorder %s15, 1
    %p224 = scmp.ne.s32.totalorder %s219, %s221
    %p225 = scmp.eq.s32.totalorder %s15, 0
    %p226 = por %p224, %p225
    %p227 = scmp.ne.s32.totalorder %s219, %s221
    %p228 = scmp.eq.s32.totalorder %s20, 1
    %p229 = por %p227, %p228
    %p230 = scmp.ne.s32.totalorder %s221, %s222
    %p231 = scmp.eq.s32.totalorder %s20, 0
    %p232 = por %p230, %p231
    %p233 = scmp.ne.s32.totalorder %s221, %s222
    %p234 = scmp.eq.s32.totalorder %s21, 1
    %p235 = por %p233, %p234
    %p237 = scmp.ne.s32.totalorder %s222, %s236
    %p238 = scmp.eq.s32.totalorder %s21, 0
    %p239 = por %p237, %p238
    %s241 = sadd.s32 %s240, 1
    %p244 = scmp.eq.s32.totalorder %s15, 1
    %p245 = scmp.ne.s32.totalorder %s240, %s242
    %p246 = scmp.eq.s32.totalorder %s15, 0
    %p247 = por %p245, %p246
    %p248 = scmp.ne.s32.totalorder %s240, %s242
    %p249 = scmp.eq.s32.totalorder %s20, 1
    %p250 = por %p248, %p249
    %p251 = scmp.ne.s32.totalorder %s242, %s243
    %p252 = scmp.eq.s32.totalorder %s20, 0
    %p253 = por %p251, %p252
    %p254 = scmp.ne.s32.totalorder %s242, %s243
    %p255 = scmp.eq.s32.totalorder %s21, 1
    %p256 = por %p254, %p255
    %p258 = scmp.ne.s32.totalorder %s243, %s257
    %p259 = scmp.eq.s32.totalorder %s21, 0
    %p260 = por %p258, %p259
    %s261 = ssub.s32 %s22, %s34
    %s262 = ssub.s32 %s23, %s30
    %s263 = sor.u32 %s261, %s262
    %p264 = scmp.eq.s32.totalorder %s263, 0
    %s266 = sadd.s32 %s265, 1
    %s267 = scalar_select %p264, %s265, %s266
    %p270 = pneg %p264
    %p271 = scmp.eq.s32.totalorder %s15, 1
    %p272 = por %p270, %p271
    %p273 = scmp.ne.s32.totalorder %s265, %s268
    %p274 = scmp.eq.s32.totalorder %s15, 0
    %p275 = por %p273, %p274
    %p276 = scmp.ne.s32.totalorder %s265, %s268
    %p277 = scmp.eq.s32.totalorder %s20, 1
    %p278 = por %p276, %p277
    %p279 = scmp.ne.s32.totalorder %s268, %s269
    %p280 = scmp.eq.s32.totalorder %s20, 0
    %p281 = por %p279, %p280
    %p282 = scmp.ne.s32.totalorder %s268, %s269
    %p283 = scmp.eq.s32.totalorder %s21, 1
    %p284 = por %p282, %p283
    %p286 = scmp.ne.s32.totalorder %s269, %s285
    %p287 = scmp.eq.s32.totalorder %s21, 0
    %p288 = por %p286, %p287
    %p289 = scmp.le.s32.totalorder 1, %s15
    %p290 = scmp.lt.s32.totalorder %s15, 3
    %p291 = pnand %p289, %p290
    %p292 = pneg %p291
    // Predicated region
    $region9: #{_forward_impl.1} parent=5 // pred_check
      _
    $region10: #{_forward_impl.1} parent=5 // pred_check_branch
      %294 = sbr.rel (%p291) target = $region12
    $region11: #{_forward_impl.1} parent=5 // pred_region
      %s295 = ssub.s32 %s15, 1
      // Predicated region
      $region13: #{_forward_impl.1} parent=11 // pred_check
        %p296 = pneg %p148
      $region14: #{_forward_impl.1} parent=11 // pred_check_branch
        %298 = sbr.rel (%p296) target = $region16
      $region15: #{_forward_impl.1} parent=11 // pred_region
        _
      $region16: #{_forward_impl.1} parent=11 // pred_fallthru
        _
      // Predicated region
      $region17: #{_forward_impl.1} parent=11 // pred_check
        %p299 = pneg %p169
      $region18: #{_forward_impl.1} parent=11 // pred_check_branch
        %301 = sbr.rel (%p299) target = $region20
      $region19: #{_forward_impl.1} parent=11 // pred_region
        _
      $region20: #{_forward_impl.1} parent=11 // pred_fallthru
        _
      // Predicated region
      $region21: #{_forward_impl.1} parent=11 // pred_check
        %p302 = pneg %p190
      $region22: #{_forward_impl.1} parent=11 // pred_check_branch
        %304 = sbr.rel (%p302) target = $region24
      $region23: #{_forward_impl.1} parent=11 // pred_region
        _
      $region24: #{_forward_impl.1} parent=11 // pred_fallthru
        _
      // Predicated region
      $region25: #{_forward_impl.1} parent=11 // pred_check
        %p305 = pneg %p211
      $region26: #{_forward_impl.1} parent=11 // pred_check_branch
        %307 = sbr.rel (%p305) target = $region28
      $region27: #{_forward_impl.1} parent=11 // pred_region
        _
      $region28: #{_forward_impl.1} parent=11 // pred_fallthru
        _
      // Predicated region
      $region29: #{_forward_impl.1} parent=11 // pred_check
        %p308 = pneg %p232
      $region30: #{_forward_impl.1} parent=11 // pred_check_branch
        %310 = sbr.rel (%p308) target = $region32
      $region31: #{_forward_impl.1} parent=11 // pred_region
        _
      $region32: #{_forward_impl.1} parent=11 // pred_fallthru
        _
      // Predicated region
      $region33: #{_forward_impl.1} parent=11 // pred_check
        %p311 = pneg %p253
      $region34: #{_forward_impl.1} parent=11 // pred_check_branch
        %313 = sbr.rel (%p311) target = $region36
      $region35: #{_forward_impl.1} parent=11 // pred_region
        _
      $region36: #{_forward_impl.1} parent=11 // pred_fallthru
        _
    $region12: #{_forward_impl.1} parent=5 // pred_fallthru
      _
    %p314 = scmp.lt.s32.totalorder %s15, 2
    // Predicated region
    $region37: #{_forward_impl.1} parent=5 // pred_check
      %p315 = pneg %p314
    $region38: #{_forward_impl.1} parent=5 // pred_check_branch
      %317 = sbr.rel (%p315) target = $region40
    $region39: #{_forward_impl.1} parent=5 // pred_region
      // Predicated region
      $region41: #{_forward_impl.1} parent=39 // pred_check
        %p318 = pneg %p49
      $region42: #{_forward_impl.1} parent=39 // pred_check_branch
        %320 = sbr.rel (%p318) target = $region44
      $region43: #{_forward_impl.1} parent=39 // pred_region
        %s321 = smul.u32 16, %s23
        %p322 = scmp.lt.s32.totalorder %s22, 1
        %s323 = scalar_select %p322, %s22, 1
        %p324 = scmp.lt.s32.totalorder %s321, 15
        %s325 = scalar_select %p324, %s321, 15
        %s326 = smul.addr %s325, 2
        %s327 = smul.addr %s323, 32
        %s328 = sadd.s32 %s326, %s327
        %s329 = smul.addr %s328, 4
        %s330 = scalar_lea.vmem %s0, %s329
        %s331 = smul.u32 16, %s23
      $region44: #{_forward_impl.1} parent=39 // pred_fallthru
        _
      // Predicated region
      $region45: #{_forward_impl.1} parent=39 // pred_check
        %p332 = pneg %p85
      $region46: #{_forward_impl.1} parent=39 // pred_check_branch
        %334 = sbr.rel (%p332) target = $region48
      $region47: #{_forward_impl.1} parent=39 // pred_region
        %s335 = smul.u32 %s23, 16
        %s336 = ssub.s32 %s335, 1
        %p337 = scmp.gt.s32.totalorder %s336, 0
        %s338 = scalar_select %p337, %s336, 0
        %p339 = scmp.lt.s32.totalorder %s22, 1
        %s340 = scalar_select %p339, %s22, 1
        %p341 = scmp.lt.s32.totalorder %s338, 15
        %s342 = scalar_select %p341, %s338, 15
        %s343 = smul.addr %s342, 2
        %s344 = smul.addr %s340, 32
        %s345 = sadd.s32 %s343, %s344
        %s346 = smul.addr %s345, 4
        %s347 = scalar_lea.vmem %s1, %s346
        %s348 = smul.u32 %s23, 16
        %s349 = ssub.s32 %s348, 1
        %p350 = scmp.gt.s32.totalorder %s349, 0
        %s351 = scalar_select %p350, %s349, 0
      $region48: #{_forward_impl.1} parent=39 // pred_fallthru
        _
      // Predicated region
      $region49: #{_forward_impl.1} parent=39 // pred_check
        %p352 = pneg %p121
      $region50: #{_forward_impl.1} parent=39 // pred_check_branch
        %354 = sbr.rel (%p352) target = $region52
      $region51: #{_forward_impl.1} parent=39 // pred_region
        %s355 = smul.u32 %s23, 16
        %s356 = sadd.s32 %s355, 16
        %p357 = scmp.lt.s32.totalorder %s356, 15
        %s358 = scalar_select %p357, %s356, 15
        %p359 = scmp.lt.s32.totalorder %s22, 1
        %s360 = scalar_select %p359, %s22, 1
        %p361 = scmp.lt.s32.totalorder %s358, 15
        %s362 = scalar_select %p361, %s358, 15
        %s363 = smul.addr %s362, 2
        %s364 = smul.addr %s360, 32
        %s365 = sadd.s32 %s363, %s364
        %s366 = smul.addr %s365, 4
        %s367 = scalar_lea.vmem %s2, %s366
        %s368 = smul.u32 %s23, 16
        %s369 = sadd.s32 %s368, 16
        %p370 = scmp.lt.s32.totalorder %s369, 15
        %s371 = scalar_select %p370, %s369, 15
      $region52: #{_forward_impl.1} parent=39 // pred_fallthru
        _
    $region40: #{_forward_impl.1} parent=5 // pred_fallthru
      _
    %p372 = scmp.le.s32.totalorder 1, %s15
    %p373 = scmp.lt.s32.totalorder %s15, 3
    %p374 = pnand %p372, %p373
    %p375 = pneg %p374
    // Predicated region
    $region53: #{_forward_impl.1} parent=5 // pred_check
      _
    $region54: #{_forward_impl.1} parent=5 // pred_check_branch
      %377 = sbr.rel (%p374) target = $region56
    $region55: #{_forward_impl.1} parent=5 // pred_region
      %s378 = ssub.s32 %s15, 1
      %s379 = smul.u32 16, %s25
      %p380 = scmp.lt.s32.totalorder %s24, 1
      %s381 = scalar_select %p380, %s24, 1
      %p382 = scmp.lt.s32.totalorder %s379, 15
      %s383 = scalar_select %p382, %s379, 15
      %s384 = smul.addr %s383, 2
      %s385 = smul.addr %s381, 32
      %s386 = sadd.s32 %s384, %s385
      %s387 = smul.addr %s386, 4
      %s388 = scalar_lea.vmem %s0, %s387
      %p389 = pneg %p55
      %p390 = pneg %p52
      %s391 = smul.u32 %s25, 16
      %s392 = ssub.s32 %s391, 1
      %p393 = scmp.gt.s32.totalorder %s392, 0
      %s394 = scalar_select %p393, %s392, 0
      %p395 = scmp.lt.s32.totalorder %s24, 1
      %s396 = scalar_select %p395, %s24, 1
      %p397 = scmp.lt.s32.totalorder %s394, 15
      %s398 = scalar_select %p397, %s394, 15
      %s399 = smul.addr %s398, 2
      %s400 = smul.addr %s396, 32
      %s401 = sadd.s32 %s399, %s400
      %s402 = smul.addr %s401, 4
      %s403 = scalar_lea.vmem %s1, %s402
      %p404 = pneg %p91
      %p405 = pneg %p88
      %s406 = smul.u32 %s25, 16
      %s407 = sadd.s32 %s406, 16
      %p408 = scmp.lt.s32.totalorder %s407, 15
      %s409 = scalar_select %p408, %s407, 15
      %p410 = scmp.lt.s32.totalorder %s24, 1
      %s411 = scalar_select %p410, %s24, 1
      %p412 = scmp.lt.s32.totalorder %s409, 15
      %s413 = scalar_select %p412, %s409, 15
      %s414 = smul.addr %s413, 2
      %s415 = smul.addr %s411, 32
      %s416 = sadd.s32 %s414, %s415
      %s417 = smul.addr %s416, 4
      %s418 = scalar_lea.vmem %s2, %s417
      %p419 = pneg %p127
      %p420 = pneg %p124
      %p421 = pneg %p148
      %p422 = pneg %p145
      %p423 = pneg %p169
      %p424 = pneg %p166
      %p425 = pneg %p190
      %p426 = pneg %p187
      %p427 = pneg %p211
      %p428 = pneg %p208
      %p429 = pneg %p232
      %p430 = pneg %p229
      %p431 = pneg %p253
      %p432 = pneg %p250
      %p433 = pneg %p281
      %p434 = pneg %p278
      %s435 = smul.u32 16, %s25
      %p436 = scmp.lt.s32.totalorder %s24, 1
      %s437 = scalar_select %p436, %s24, 1
      %p438 = scmp.lt.s32.totalorder %s435, 15
      %s439 = scalar_select %p438, %s435, 15
      %s440 = smul.addr %s439, 2
      %s441 = smul.addr %s437, 32
      %s442 = sadd.s32 %s440, %s441
      %s443 = smul.addr %s442, 4
      %s444 = scalar_lea.vmem %s9, %s443
      %s445 = smul.u32 16, %s25
      %p446 = scmp.lt.s32.totalorder %s24, 1
      %s447 = scalar_select %p446, %s24, 1
      %p448 = scmp.lt.s32.totalorder %s445, 15
      %s449 = scalar_select %p448, %s445, 15
      %s450 = smul.addr %s449, 2
      %s451 = smul.addr %s447, 32
      %s452 = sadd.s32 %s450, %s451
      %s453 = smul.addr %s452, 4
      %s454 = scalar_lea.vmem %s0, %s453
      %s455 = smul.u32 16, %s25
      %s456 = smul.u32 %s25, 16
      %s457 = ssub.s32 %s456, 1
      %p458 = scmp.gt.s32.totalorder %s457, 0
      %s459 = scalar_select %p458, %s457, 0
      %p460 = scmp.lt.s32.totalorder %s24, 1
      %s461 = scalar_select %p460, %s24, 1
      %p462 = scmp.lt.s32.totalorder %s459, 15
      %s463 = scalar_select %p462, %s459, 15
      %s464 = smul.addr %s463, 2
      %s465 = smul.addr %s461, 32
      %s466 = sadd.s32 %s464, %s465
      %s467 = smul.addr %s466, 4
      %s468 = scalar_lea.vmem %s1, %s467
      %s469 = smul.u32 %s25, 16
      %s470 = ssub.s32 %s469, 1
      %p471 = scmp.gt.s32.totalorder %s470, 0
      %s472 = scalar_select %p471, %s470, 0
      %s473 = smul.u32 %s25, 16
      %s474 = sadd.s32 %s473, 16
      %p475 = scmp.lt.s32.totalorder %s474, 15
      %s476 = scalar_select %p475, %s474, 15
      %p477 = scmp.lt.s32.totalorder %s24, 1
      %s478 = scalar_select %p477, %s24, 1
      %p479 = scmp.lt.s32.totalorder %s476, 15
      %s480 = scalar_select %p479, %s476, 15
      %s481 = smul.addr %s480, 2
      %s482 = smul.addr %s478, 32
      %s483 = sadd.s32 %s481, %s482
      %s484 = smul.addr %s483, 4
      %s485 = scalar_lea.vmem %s2, %s484
      %s486 = smul.u32 %s25, 16
      %s487 = sadd.s32 %s486, 16
      %p488 = scmp.lt.s32.totalorder %s487, 15
      %s489 = scalar_select %p488, %s487, 15
      %s490 = smul.u32 16, %s25
      %p491 = scmp.lt.s32.totalorder %s24, 1
      %s492 = scalar_select %p491, %s24, 1
      %p493 = scmp.lt.s32.totalorder %s490, 15
      %s494 = scalar_select %p493, %s490, 15
      %s495 = smul.addr %s494, 2
      %s496 = smul.addr %s492, 32
      %s497 = sadd.s32 %s495, %s496
      %s498 = smul.addr %s497, 4
      %s499 = scalar_lea.vmem %s9, %s498
      %s500 = smul.u32 16, %s25
      %v502 = vld [vmem:[%s3] sm:$0xf]
      %v503 = vld [vmem:[%s3 + $0x4] sm:$0xf]
      %v504 = vld [vmem:[%s3 + $0x8] sm:$0xf]
      %v505 = vld [vmem:[%s3 + $0xc] sm:$0xf]
      %v506 = vld [vmem:[%s3 + $0x10] sm:$0xf]
      %v507 = vld [vmem:[%s3 + $0x14] sm:$0xf]
      %v508 = vld [vmem:[%s3 + $0x18] sm:$0xf]
      %v509 = vld [vmem:[%s3 + $0x1c] sm:$0xf]
      %v510 = vld [vmem:[%s3 + $0x20] sm:$0xf]
      %v511 = vld [vmem:[%s3 + $0x24] sm:$0xf]
      %v512 = vld [vmem:[%s3 + $0x28] sm:$0xf]
      %v513 = vld [vmem:[%s3 + $0x2c] sm:$0xf]
      %v514 = vld [vmem:[%s3 + $0x30] sm:$0xf]
      %v515 = vld [vmem:[%s3 + $0x34] sm:$0xf]
      %v516 = vld [vmem:[%s3 + $0x38] sm:$0xf]
      %v517 = vld [vmem:[%s3 + $0x3c] sm:$0xf]
      %v518 = vld [vmem:[%s4] sm:$0x1]
      %v519 = vld [vmem:[%s5] sm:$0x1]
      %v520 = vld [vmem:[%s454] sm:$0xf]
      %v521 = vld [vmem:[%s454 + $0x4] sm:$0xf]
      %v522 = vld [vmem:[%s454 + $0x8] sm:$0xf]
      %v523 = vld [vmem:[%s454 + $0xc] sm:$0xf]
      %v524 = vld [vmem:[%s454 + $0x10] sm:$0xf]
      %v525 = vld [vmem:[%s454 + $0x14] sm:$0xf]
      %v526 = vld [vmem:[%s454 + $0x18] sm:$0xf]
      %v527 = vld [vmem:[%s454 + $0x1c] sm:$0xf]
      %v528 = vld [vmem:[%s454 + $0x20] sm:$0xf]
      %v529 = vld [vmem:[%s454 + $0x24] sm:$0xf]
      %v530 = vld [vmem:[%s454 + $0x28] sm:$0xf]
      %v531 = vld [vmem:[%s454 + $0x2c] sm:$0xf]
      %v532 = vld [vmem:[%s454 + $0x30] sm:$0xf]
      %v533 = vld [vmem:[%s454 + $0x34] sm:$0xf]
      %v534 = vld [vmem:[%s454 + $0x38] sm:$0xf]
      %v535 = vld [vmem:[%s454 + $0x3c] sm:$0xf]
      %v536 = vld [vmem:[%s454 + $0x40] sm:$0xf]
      %v537 = vld [vmem:[%s454 + $0x44] sm:$0xf]
      %v538 = vld [vmem:[%s454 + $0x48] sm:$0xf]
      %v539 = vld [vmem:[%s454 + $0x4c] sm:$0xf]
      %v540 = vld [vmem:[%s454 + $0x50] sm:$0xf]
      %v541 = vld [vmem:[%s454 + $0x54] sm:$0xf]
      %v542 = vld [vmem:[%s454 + $0x58] sm:$0xf]
      %v543 = vld [vmem:[%s454 + $0x5c] sm:$0xf]
      %v544 = vld [vmem:[%s454 + $0x60] sm:$0xf]
      %v545 = vld [vmem:[%s454 + $0x64] sm:$0xf]
      %v546 = vld [vmem:[%s454 + $0x68] sm:$0xf]
      %v547 = vld [vmem:[%s454 + $0x6c] sm:$0xf]
      %v548 = vld [vmem:[%s454 + $0x70] sm:$0xf]
      %v549 = vld [vmem:[%s454 + $0x74] sm:$0xf]
      %v550 = vld [vmem:[%s454 + $0x78] sm:$0xf]
      %v551 = vld [vmem:[%s454 + $0x7c] sm:$0xf]
      %v584 = vunpack.c.l.b16 %v520
      %v585 = vunpack.c.l.b16 %v521
      %v586 = vunpack.c.l.b16 %v522
      %v587 = vunpack.c.l.b16 %v523
      %v588 = vunpack.c.l.b16 %v524
      %v589 = vunpack.c.l.b16 %v525
      %v590 = vunpack.c.l.b16 %v526
      %v591 = vunpack.c.l.b16 %v527
      %v592 = vunpack.c.l.b16 %v528
      %v593 = vunpack.c.l.b16 %v529
      %v594 = vunpack.c.l.b16 %v530
      %v595 = vunpack.c.l.b16 %v531
      %v596 = vunpack.c.l.b16 %v532
      %v597 = vunpack.c.l.b16 %v533
      %v598 = vunpack.c.l.b16 %v534
      %v599 = vunpack.c.l.b16 %v535
      %v600 = vunpack.c.l.b16 %v536
      %v601 = vunpack.c.l.b16 %v537
      %v602 = vunpack.c.l.b16 %v538
      %v603 = vunpack.c.l.b16 %v539
      %v604 = vunpack.c.l.b16 %v540
      %v605 = vunpack.c.l.b16 %v541
      %v606 = vunpack.c.l.b16 %v542
      %v607 = vunpack.c.l.b16 %v543
      %v608 = vunpack.c.l.b16 %v544
      %v609 = vunpack.c.l.b16 %v545
      %v610 = vunpack.c.l.b16 %v546
      %v611 = vunpack.c.l.b16 %v547
      %v612 = vunpack.c.l.b16 %v548
      %v613 = vunpack.c.l.b16 %v549
      %v614 = vunpack.c.l.b16 %v550
      %v615 = vunpack.c.l.b16 %v551
      %v616 = vpack.c.b16 %v585, %v584
      %v617 = vpack.c.b16 %v587, %v586
      %v618 = vpack.c.b16 %v589, %v588
      %v619 = vpack.c.b16 %v591, %v590
      %v620 = vpack.c.b16 %v593, %v592
      %v621 = vpack.c.b16 %v595, %v594
      %v622 = vpack.c.b16 %v597, %v596
      %v623 = vpack.c.b16 %v599, %v598
      %v624 = vpack.c.b16 %v601, %v600
      %v625 = vpack.c.b16 %v603, %v602
      %v626 = vpack.c.b16 %v605, %v604
      %v627 = vpack.c.b16 %v607, %v606
      %v628 = vpack.c.b16 %v609, %v608
      %v629 = vpack.c.b16 %v611, %v610
      %v630 = vpack.c.b16 %v613, %v612
      %v631 = vpack.c.b16 %v615, %v614
      %v664 = vunpack.c.l.b16 %v502
      %v665 = vunpack.c.l.b16 %v503
      %v666 = vunpack.c.l.b16 %v504
      %v667 = vunpack.c.l.b16 %v505
      %v668 = vunpack.c.l.b16 %v506
      %v669 = vunpack.c.l.b16 %v507
      %v670 = vunpack.c.l.b16 %v508
      %v671 = vunpack.c.l.b16 %v509
      %v672 = vunpack.c.l.b16 %v510
      %v673 = vunpack.c.l.b16 %v511
      %v674 = vunpack.c.l.b16 %v512
      %v675 = vunpack.c.l.b16 %v513
      %v676 = vunpack.c.l.b16 %v514
      %v677 = vunpack.c.l.b16 %v515
      %v678 = vunpack.c.l.b16 %v516
      %v679 = vunpack.c.l.b16 %v517
      %v680 = vpack.c.b16 %v665, %v664
      %v681 = vpack.c.b16 %v667, %v666
      %v682 = vpack.c.b16 %v669, %v668
      %v683 = vpack.c.b16 %v671, %v670
      %v684 = vpack.c.b16 %v673, %v672
      %v685 = vpack.c.b16 %v675, %v674
      %v686 = vpack.c.b16 %v677, %v676
      %v687 = vpack.c.b16 %v679, %v678
      %696 = vmatprep.subr.bf16.mxu0 0
      %697 = vmatpush1.bf16.msra.mxu0 %v680
      %698 = vmatprep.subr.bf16.mxu0 0
      %699 = vmatpush1.bf16.msra.mxu0 %v681
      %700 = vmatprep.subr.bf16.mxu0 0
      %701 = vmatpush1.bf16.msra.mxu0 %v682
      %702 = vmatprep.subr.bf16.mxu0 0
      %703 = vmatpush1.bf16.msra.mxu0 %v683
      %704 = vmatprep.subr.bf16.mxu0 0
      %705 = vmatpush1.bf16.msra.mxu0 %v684
      %706 = vmatprep.subr.bf16.mxu0 0
      %707 = vmatpush1.bf16.msra.mxu0 %v685
      %708 = vmatprep.subr.bf16.mxu0 0
      %709 = vmatpush1.bf16.msra.mxu0 %v686
      %710 = vmatprep.subr.bf16.mxu0 0
      %711 = vmatpush1.bf16.msra.mxu0 %v687
      %712 = vmatprep.subr.bf16.mxu0 0
      %713 = vmatpush1.bf16.msra.mxu0 0
      %714 = vmatprep.subr.bf16.mxu0 0
      %715 = vmatpush1.bf16.msra.mxu0 0
      %716 = vmatprep.subr.bf16.mxu0 0
      %717 = vmatpush1.bf16.msra.mxu0 0
      %718 = vmatprep.subr.bf16.mxu0 0
      %719 = vmatpush1.bf16.msra.mxu0 0
      %720 = vmatprep.subr.bf16.mxu0 0
      %721 = vmatpush1.bf16.msra.mxu0 0
      %722 = vmatprep.subr.bf16.mxu0 0
      %723 = vmatpush1.bf16.msra.mxu0 0
      %724 = vmatprep.subr.bf16.mxu0 0
      %725 = vmatpush1.bf16.msra.mxu0 0
      %726 = vmatprep.subr.bf16.mxu0 0
      %727 = vmatpush1.bf16.msra.mxu0 0
      %728 = vmatprep.mubr.bf16.mxu0 0
      %729 = vmatmul.mubr.bf16.gmra.mrb[0].mxu0 %v616
      %v730 = vpop.f32.mrb[0].mxu0
      %v731 = vadd.f32 0.0, %v730
      %v732 = vpop.f32.mrb[0].mxu0
      %v733 = vpop.f32.mrb[0].mxu0
      %v734 = vadd.f32 0.0, %v733
      %v735 = vpop.f32.mrb[0].mxu0
      %736 = vmatprep.mubr.bf16.mxu0 0
      %737 = vmatmul.mubr.bf16.gmra.mrb[0].mxu0 %v617
      %v738 = vpop.f32.mrb[0].mxu0
      %v739 = vadd.f32 0.0, %v738
      %v740 = vpop.f32.mrb[0].mxu0
      %v741 = vpop.f32.mrb[0].mxu0
      %v742 = vadd.f32 0.0, %v741
      %v743 = vpop.f32.mrb[0].mxu0
      %744 = vmatprep.mubr.bf16.mxu0 0
      %745 = vmatmul.mubr.bf16.gmra.mrb[0].mxu0 %v618
      %v746 = vpop.f32.mrb[0].mxu0
      %v747 = vadd.f32 0.0, %v746
      %v748 = vpop.f32.mrb[0].mxu0
      %v749 = vpop.f32.mrb[0].mxu0
      %v750 = vadd.f32 0.0, %v749
      %v751 = vpop.f32.mrb[0].mxu0
      %752 = vmatprep.mubr.bf16.mxu0 0
      %753 = vmatmul.mubr.bf16.gmra.mrb[0].mxu0 %v619
      %v754 = vpop.f32.mrb[0].mxu0
      %v755 = vadd.f32 0.0, %v754
      %v756 = vpop.f32.mrb[0].mxu0
      %v757 = vpop.f32.mrb[0].mxu0
      %v758 = vadd.f32 0.0, %v757
      %v759 = vpop.f32.mrb[0].mxu0
      %760 = vmatprep.mubr.bf16.mxu0 0
      %761 = vmatmul.mubr.bf16.gmra.mrb[0].mxu0 %v620
      %v762 = vpop.f32.mrb[0].mxu0
      %v763 = vadd.f32 0.0, %v762
      %v764 = vpop.f32.mrb[0].mxu0
      %v765 = vpop.f32.mrb[0].mxu0
      %v766 = vadd.f32 0.0, %v765
      %v767 = vpop.f32.mrb[0].mxu0
      %768 = vmatprep.mubr.bf16.mxu0 0
      %769 = vmatmul.mubr.bf16.gmra.mrb[0].mxu0 %v621
      %v770 = vpop.f32.mrb[0].mxu0
      %v771 = vadd.f32 0.0, %v770
      %v772 = vpop.f32.mrb[0].mxu0
      %v773 = vpop.f32.mrb[0].mxu0
      %v774 = vadd.f32 0.0, %v773
      %v775 = vpop.f32.mrb[0].mxu0
      %776 = vmatprep.mubr.bf16.mxu0 0
      %777 = vmatmul.mubr.bf16.gmra.mrb[0].mxu0 %v622
      %v778 = vpop.f32.mrb[0].mxu0
      %v779 = vadd.f32 0.0, %v778
      %v780 = vpop.f32.mrb[0].mxu0
      %v781 = vpop.f32.mrb[0].mxu0
      %v782 = vadd.f32 0.0, %v781
      %v783 = vpop.f32.mrb[0].mxu0
      %784 = vmatprep.mubr.bf16.mxu0 0
      %785 = vmatmul.mubr.bf16.gmra.mrb[0].mxu0 %v623
      %v786 = vpop.f32.mrb[0].mxu0
      %v787 = vadd.f32 0.0, %v786
      %v788 = vpop.f32.mrb[0].mxu0
      %v789 = vpop.f32.mrb[0].mxu0
      %v790 = vadd.f32 0.0, %v789
      %v791 = vpop.f32.mrb[0].mxu0
      %792 = vmatprep.mubr.bf16.mxu0 0
      %793 = vmatmul.mubr.bf16.gmra.mrb[0].mxu0 %v624
      %v794 = vpop.f32.mrb[0].mxu0
      %v795 = vadd.f32 0.0, %v794
      %v796 = vpop.f32.mrb[0].mxu0
      %v797 = vpop.f32.mrb[0].mxu0
      %v798 = vadd.f32 0.0, %v797
      %v799 = vpop.f32.mrb[0].mxu0
      %800 = vmatprep.mubr.bf16.mxu0 0
      %801 = vmatmul.mubr.bf16.gmra.mrb[0].mxu0 %v625
      %v802 = vpop.f32.mrb[0].mxu0
      %v803 = vadd.f32 0.0, %v802
      %v804 = vpop.f32.mrb[0].mxu0
      %v805 = vpop.f32.mrb[0].mxu0
      %v806 = vadd.f32 0.0, %v805
      %v807 = vpop.f32.mrb[0].mxu0
      %808 = vmatprep.mubr.bf16.mxu0 0
      %809 = vmatmul.mubr.bf16.gmra.mrb[0].mxu0 %v626
      %v810 = vpop.f32.mrb[0].mxu0
      %v811 = vadd.f32 0.0, %v810
      %v812 = vpop.f32.mrb[0].mxu0
      %v813 = vpop.f32.mrb[0].mxu0
      %v814 = vadd.f32 0.0, %v813
      %v815 = vpop.f32.mrb[0].mxu0
      %816 = vmatprep.mubr.bf16.mxu0 0
      %817 = vmatmul.mubr.bf16.gmra.mrb[0].mxu0 %v627
      %v818 = vpop.f32.mrb[0].mxu0
      %v819 = vadd.f32 0.0, %v818
      %v820 = vpop.f32.mrb[0].mxu0
      %v821 = vpop.f32.mrb[0].mxu0
      %v822 = vadd.f32 0.0, %v821
      %v823 = vpop.f32.mrb[0].mxu0
      %824 = vmatprep.mubr.bf16.mxu0 0
      %825 = vmatmul.mubr.bf16.gmra.mrb[0].mxu0 %v628
      %v826 = vpop.f32.mrb[0].mxu0
      %v827 = vadd.f32 0.0, %v826
      %v828 = vpop.f32.mrb[0].mxu0
      %v829 = vpop.f32.mrb[0].mxu0
      %v830 = vadd.f32 0.0, %v829
      %v831 = vpop.f32.mrb[0].mxu0
      %832 = vmatprep.mubr.bf16.mxu0 0
      %833 = vmatmul.mubr.bf16.gmra.mrb[0].mxu0 %v629
      %v834 = vpop.f32.mrb[0].mxu0
      %v835 = vadd.f32 0.0, %v834
      %v836 = vpop.f32.mrb[0].mxu0
      %v837 = vpop.f32.mrb[0].mxu0
      %v838 = vadd.f32 0.0, %v837
      %v839 = vpop.f32.mrb[0].mxu0
      %840 = vmatprep.mubr.bf16.mxu0 0
      %841 = vmatmul.mubr.bf16.gmra.mrb[0].mxu0 %v630
      %v842 = vpop.f32.mrb[0].mxu0
      %v843 = vadd.f32 0.0, %v842
      %v844 = vpop.f32.mrb[0].mxu0
      %v845 = vpop.f32.mrb[0].mxu0
      %v846 = vadd.f32 0.0, %v845
      %v847 = vpop.f32.mrb[0].mxu0
      %848 = vmatprep.mubr.bf16.mxu0 0
      %849 = vmatmul.mubr.bf16.gmra.mrb[0].mxu0 %v631
      %v850 = vpop.f32.mrb[0].mxu0
      %v851 = vadd.f32 0.0, %v850
      %v852 = vpop.f32.mrb[0].mxu0
      %v853 = vpop.f32.mrb[0].mxu0
      %v854 = vadd.f32 0.0, %v853
      %v855 = vpop.f32.mrb[0].mxu0
      %856 = vdwg.mxu0
      %v858 = vlaneseq
      %v859 = vshrl.u32 %v858, 7
      %v860 = vsub.s32 0, %v859
      %v861 = vrot.slane %v518, %v860
      %v863 = vmul.f32 %v731, %v861
      %v864 = vmul.f32 %v734, %v861
      %v865 = vmul.f32 %v739, %v861
      %v866 = vmul.f32 %v742, %v861
      %v867 = vmul.f32 %v747, %v861
      %v868 = vmul.f32 %v750, %v861
      %v869 = vmul.f32 %v755, %v861
      %v870 = vmul.f32 %v758, %v861
      %v871 = vmul.f32 %v763, %v861
      %v872 = vmul.f32 %v766, %v861
      %v873 = vmul.f32 %v771, %v861
      %v874 = vmul.f32 %v774, %v861
      %v875 = vmul.f32 %v779, %v861
      %v876 = vmul.f32 %v782, %v861
      %v877 = vmul.f32 %v787, %v861
      %v878 = vmul.f32 %v790, %v861
      %v879 = vmul.f32 %v795, %v861
      %v880 = vmul.f32 %v798, %v861
      %v881 = vmul.f32 %v803, %v861
      %v882 = vmul.f32 %v806, %v861
      %v883 = vmul.f32 %v811, %v861
      %v884 = vmul.f32 %v814, %v861
      %v885 = vmul.f32 %v819, %v861
      %v886 = vmul.f32 %v822, %v861
      %v887 = vmul.f32 %v827, %v861
      %v888 = vmul.f32 %v830, %v861
      %v889 = vmul.f32 %v835, %v861
      %v890 = vmul.f32 %v838, %v861
      %v891 = vmul.f32 %v843, %v861
      %v892 = vmul.f32 %v846, %v861
      %v893 = vmul.f32 %v851, %v861
      %v894 = vmul.f32 %v854, %v861
      %v896 = vlaneseq
      %v897 = vshrl.u32 %v896, 7
      %v898 = vsub.s32 0, %v897
      %v899 = vrot.slane %v519, %v898
      %v901 = vadd.f32 %v863, %v899
      %v902 = vadd.f32 %v864, %v899
      %v903 = vadd.f32 %v865, %v899
      %v904 = vadd.f32 %v866, %v899
      %v905 = vadd.f32 %v867, %v899
      %v906 = vadd.f32 %v868, %v899
      %v907 = vadd.f32 %v869, %v899
      %v908 = vadd.f32 %v870, %v899
      %v909 = vadd.f32 %v871, %v899
      %v910 = vadd.f32 %v872, %v899
      %v911 = vadd.f32 %v873, %v899
      %v912 = vadd.f32 %v874, %v899
      %v913 = vadd.f32 %v875, %v899
      %v914 = vadd.f32 %v876, %v899
      %v915 = vadd.f32 %v877, %v899
      %v916 = vadd.f32 %v878, %v899
      %v917 = vadd.f32 %v879, %v899
      %v918 = vadd.f32 %v880, %v899
      %v919 = vadd.f32 %v881, %v899
      %v920 = vadd.f32 %v882, %v899
      %v921 = vadd.f32 %v883, %v899
      %v922 = vadd.f32 %v884, %v899
      %v923 = vadd.f32 %v885, %v899
      %v924 = vadd.f32 %v886, %v899
      %v925 = vadd.f32 %v887, %v899
      %v926 = vadd.f32 %v888, %v899
      %v927 = vadd.f32 %v889, %v899
      %v928 = vadd.f32 %v890, %v899
      %v929 = vadd.f32 %v891, %v899
      %v930 = vadd.f32 %v892, %v899
      %v931 = vadd.f32 %v893, %v899
      %v932 = vadd.f32 %v894, %v899
      %v933 = vsub.f32 0.0, %v901
      %v934 = vsub.f32 0.0, %v902
      %v935 = vsub.f32 0.0, %v903
      %v936 = vsub.f32 0.0, %v904
      %v937 = vsub.f32 0.0, %v905
      %v938 = vsub.f32 0.0, %v906
      %v939 = vsub.f32 0.0, %v907
      %v940 = vsub.f32 0.0, %v908
      %v941 = vsub.f32 0.0, %v909
      %v942 = vsub.f32 0.0, %v910
      %v943 = vsub.f32 0.0, %v911
      %v944 = vsub.f32 0.0, %v912
      %v945 = vsub.f32 0.0, %v913
      %v946 = vsub.f32 0.0, %v914
      %v947 = vsub.f32 0.0, %v915
      %v948 = vsub.f32 0.0, %v916
      %v949 = vsub.f32 0.0, %v917
      %v950 = vsub.f32 0.0, %v918
      %v951 = vsub.f32 0.0, %v919
      %v952 = vsub.f32 0.0, %v920
      %v953 = vsub.f32 0.0, %v921
      %v954 = vsub.f32 0.0, %v922
      %v955 = vsub.f32 0.0, %v923
      %v956 = vsub.f32 0.0, %v924
      %v957 = vsub.f32 0.0, %v925
      %v958 = vsub.f32 0.0, %v926
      %v959 = vsub.f32 0.0, %v927
      %v960 = vsub.f32 0.0, %v928
      %v961 = vsub.f32 0.0, %v929
      %v962 = vsub.f32 0.0, %v930
      %v963 = vsub.f32 0.0, %v931
      %v964 = vsub.f32 0.0, %v932
      %v965 = vmul.f32 %v933, 1.442695
      %v966 = vpow.pop %v965
      %v967 = vmul.f32 %v934, 1.442695
      %v968 = vpow.pop %v967
      %v969 = vmul.f32 %v935, 1.442695
      %v970 = vpow.pop %v969
      %v971 = vmul.f32 %v936, 1.442695
      %v972 = vpow.pop %v971
      %v973 = vmul.f32 %v937, 1.442695
      %v974 = vpow.pop %v973
      %v975 = vmul.f32 %v938, 1.442695
      %v976 = vpow.pop %v975
      %v977 = vmul.f32 %v939, 1.442695
      %v978 = vpow.pop %v977
      %v979 = vmul.f32 %v940, 1.442695
      %v980 = vpow.pop %v979
      %v981 = vmul.f32 %v941, 1.442695
      %v982 = vpow.pop %v981
      %v983 = vmul.f32 %v942, 1.442695
      %v984 = vpow.pop %v983
      %v985 = vmul.f32 %v943, 1.442695
      %v986 = vpow.pop %v985
      %v987 = vmul.f32 %v944, 1.442695
      %v988 = vpow.pop %v987
      %v989 = vmul.f32 %v945, 1.442695
      %v990 = vpow.pop %v989
      %v991 = vmul.f32 %v946, 1.442695
      %v992 = vpow.pop %v991
      %v993 = vmul.f32 %v947, 1.442695
      %v994 = vpow.pop %v993
      %v995 = vmul.f32 %v948, 1.442695
      %v996 = vpow.pop %v995
      %v997 = vmul.f32 %v949, 1.442695
      %v998 = vpow.pop %v997
      %v999 = vmul.f32 %v950, 1.442695
      %v1000 = vpow.pop %v999
      %v1001 = vmul.f32 %v951, 1.442695
      %v1002 = vpow.pop %v1001
      %v1003 = vmul.f32 %v952, 1.442695
      %v1004 = vpow.pop %v1003
      %v1005 = vmul.f32 %v953, 1.442695
      %v1006 = vpow.pop %v1005
      %v1007 = vmul.f32 %v954, 1.442695
      %v1008 = vpow.pop %v1007
      %v1009 = vmul.f32 %v955, 1.442695
      %v1010 = vpow.pop %v1009
      %v1011 = vmul.f32 %v956, 1.442695
      %v1012 = vpow.pop %v1011
      %v1013 = vmul.f32 %v957, 1.442695
      %v1014 = vpow.pop %v1013
      %v1015 = vmul.f32 %v958, 1.442695
      %v1016 = vpow.pop %v1015
      %v1017 = vmul.f32 %v959, 1.442695
      %v1018 = vpow.pop %v1017
      %v1019 = vmul.f32 %v960, 1.442695
      %v1020 = vpow.pop %v1019
      %v1021 = vmul.f32 %v961, 1.442695
      %v1022 = vpow.pop %v1021
      %v1023 = vmul.f32 %v962, 1.442695
      %v1024 = vpow.pop %v1023
      %v1025 = vmul.f32 %v963, 1.442695
      %v1026 = vpow.pop %v1025
      %v1027 = vmul.f32 %v964, 1.442695
      %v1028 = vpow.pop %v1027
      %v1029 = vadd.f32 %v966, 1.0
      %v1030 = vadd.f32 %v968, 1.0
      %v1031 = vadd.f32 %v970, 1.0
      %v1032 = vadd.f32 %v972, 1.0
      %v1033 = vadd.f32 %v974, 1.0
      %v1034 = vadd.f32 %v976, 1.0
      %v1035 = vadd.f32 %v978, 1.0
      %v1036 = vadd.f32 %v980, 1.0
      %v1037 = vadd.f32 %v982, 1.0
      %v1038 = vadd.f32 %v984, 1.0
      %v1039 = vadd.f32 %v986, 1.0
      %v1040 = vadd.f32 %v988, 1.0
      %v1041 = vadd.f32 %v990, 1.0
      %v1042 = vadd.f32 %v992, 1.0
      %v1043 = vadd.f32 %v994, 1.0
      %v1044 = vadd.f32 %v996, 1.0
      %v1045 = vadd.f32 %v998, 1.0
      %v1046 = vadd.f32 %v1000, 1.0
      %v1047 = vadd.f32 %v1002, 1.0
      %v1048 = vadd.f32 %v1004, 1.0
      %v1049 = vadd.f32 %v1006, 1.0
      %v1050 = vadd.f32 %v1008, 1.0
      %v1051 = vadd.f32 %v1010, 1.0
      %v1052 = vadd.f32 %v1012, 1.0
      %v1053 = vadd.f32 %v1014, 1.0
      %v1054 = vadd.f32 %v1016, 1.0
      %v1055 = vadd.f32 %v1018, 1.0
      %v1056 = vadd.f32 %v1020, 1.0
      %v1057 = vadd.f32 %v1022, 1.0
      %v1058 = vadd.f32 %v1024, 1.0
      %v1059 = vadd.f32 %v1026, 1.0
      %v1060 = vadd.f32 %v1028, 1.0
      %v1061 = vrcp.pop %v1029
      %v1062 = vrcp.pop %v1030
      %v1063 = vrcp.pop %v1031
      %v1064 = vrcp.pop %v1032
      %v1065 = vrcp.pop %v1033
      %v1066 = vrcp.pop %v1034
      %v1067 = vrcp.pop %v1035
      %v1068 = vrcp.pop %v1036
      %v1069 = vrcp.pop %v1037
      %v1070 = vrcp.pop %v1038
      %v1071 = vrcp.pop %v1039
      %v1072 = vrcp.pop %v1040
      %v1073 = vrcp.pop %v1041
      %v1074 = vrcp.pop %v1042
      %v1075 = vrcp.pop %v1043
      %v1076 = vrcp.pop %v1044
      %v1077 = vrcp.pop %v1045
      %v1078 = vrcp.pop %v1046
      %v1079 = vrcp.pop %v1047
      %v1080 = vrcp.pop %v1048
      %v1081 = vrcp.pop %v1049
      %v1082 = vrcp.pop %v1050
      %v1083 = vrcp.pop %v1051
      %v1084 = vrcp.pop %v1052
      %v1085 = vrcp.pop %v1053
      %v1086 = vrcp.pop %v1054
      %v1087 = vrcp.pop %v1055
      %v1088 = vrcp.pop %v1056
      %v1089 = vrcp.pop %v1057
      %v1090 = vrcp.pop %v1058
      %v1091 = vrcp.pop %v1059
      %v1092 = vrcp.pop %v1060
      %v1093 = vmul.f32 %v901, %v1061
      %v1094 = vmul.f32 %v902, %v1062
      %v1095 = vmul.f32 %v903, %v1063
      %v1096 = vmul.f32 %v904, %v1064
      %v1097 = vmul.f32 %v905, %v1065
      %v1098 = vmul.f32 %v906, %v1066
      %v1099 = vmul.f32 %v907, %v1067
      %v1100 = vmul.f32 %v908, %v1068
      %v1101 = vmul.f32 %v909, %v1069
      %v1102 = vmul.f32 %v910, %v1070
      %v1103 = vmul.f32 %v911, %v1071
      %v1104 = vmul.f32 %v912, %v1072
      %v1105 = vmul.f32 %v913, %v1073
      %v1106 = vmul.f32 %v914, %v1074
      %v1107 = vmul.f32 %v915, %v1075
      %v1108 = vmul.f32 %v916, %v1076
      %v1109 = vmul.f32 %v917, %v1077
      %v1110 = vmul.f32 %v918, %v1078
      %v1111 = vmul.f32 %v919, %v1079
      %v1112 = vmul.f32 %v920, %v1080
      %v1113 = vmul.f32 %v921, %v1081
      %v1114 = vmul.f32 %v922, %v1082
      %v1115 = vmul.f32 %v923, %v1083
      %v1116 = vmul.f32 %v924, %v1084
      %v1117 = vmul.f32 %v925, %v1085
      %v1118 = vmul.f32 %v926, %v1086
      %v1119 = vmul.f32 %v927, %v1087
      %v1120 = vmul.f32 %v928, %v1088
      %v1121 = vmul.f32 %v929, %v1089
      %v1122 = vmul.f32 %v930, %v1090
      %v1123 = vmul.f32 %v931, %v1091
      %v1124 = vmul.f32 %v932, %v1092
      %v1125 = vld [vmem:[%s468] sm:$0xf]
      %v1126 = vld [vmem:[%s468 + $0x4] sm:$0xf]
      %v1129 = vunpack.c.l.b16 %v1125
      %v1130 = vunpack.c.l.b16 %v1126
      %v1131 = vpack.c.b16 %v1130, %v1129
      %1133 = vmatprep.subr.bf16.mxu0 0
      %1134 = vmatpush1.bf16.msra.mxu0 %v680
      %1135 = vmatprep.subr.bf16.mxu0 0
      %1136 = vmatpush1.bf16.msra.mxu0 %v681
      %1137 = vmatprep.subr.bf16.mxu0 0
      %1138 = vmatpush1.bf16.msra.mxu0 %v682
      %1139 = vmatprep.subr.bf16.mxu0 0
      %1140 = vmatpush1.bf16.msra.mxu0 %v683
      %1141 = vmatprep.subr.bf16.mxu0 0
      %1142 = vmatpush1.bf16.msra.mxu0 %v684
      %1143 = vmatprep.subr.bf16.mxu0 0
      %1144 = vmatpush1.bf16.msra.mxu0 %v685
      %1145 = vmatprep.subr.bf16.mxu0 0
      %1146 = vmatpush1.bf16.msra.mxu0 %v686
      %1147 = vmatprep.subr.bf16.mxu0 0
      %1148 = vmatpush1.bf16.msra.mxu0 %v687
      %1149 = vmatprep.subr.bf16.mxu0 0
      %1150 = vmatpush1.bf16.msra.mxu0 0
      %1151 = vmatprep.subr.bf16.mxu0 0
      %1152 = vmatpush1.bf16.msra.mxu0 0
      %1153 = vmatprep.subr.bf16.mxu0 0
      %1154 = vmatpush1.bf16.msra.mxu0 0
      %1155 = vmatprep.subr.bf16.mxu0 0
      %1156 = vmatpush1.bf16.msra.mxu0 0
      %1157 = vmatprep.subr.bf16.mxu0 0
      %1158 = vmatpush1.bf16.msra.mxu0 0
      %1159 = vmatprep.subr.bf16.mxu0 0
      %1160 = vmatpush1.bf16.msra.mxu0 0
      %1161 = vmatprep.subr.bf16.mxu0 0
      %1162 = vmatpush1.bf16.msra.mxu0 0
      %1163 = vmatprep.subr.bf16.mxu0 0
      %1164 = vmatpush1.bf16.msra.mxu0 0
      %1165 = vmatprep.mubr.bf16.mxu0 0
      %1166 = vmatmul.mubr.bf16.gmra.mrb[0].mxu0 %v1131
      %v1167 = vpop.f32.mrb[0].mxu0
      %v1168 = vadd.f32 0.0, %v1167
      %v1169 = vpop.f32.mrb[0].mxu0
      %v1170 = vpop.f32.mrb[0].mxu0
      %v1171 = vadd.f32 0.0, %v1170
      %v1172 = vpop.f32.mrb[0].mxu0
      %1173 = vdwg.mxu0
      %v1174 = vmul.f32 %v1168, %v861
      %v1175 = vmul.f32 %v1171, %v861
      %v1176 = vadd.f32 %v1174, %v899
      %v1177 = vadd.f32 %v1175, %v899
      %v1178 = vsub.f32 0.0, %v1176
      %v1179 = vsub.f32 0.0, %v1177
      %v1180 = vmul.f32 %v1178, 1.442695
      %v1181 = vpow.pop %v1180
      %v1182 = vmul.f32 %v1179, 1.442695
      %v1183 = vpow.pop %v1182
      %v1184 = vadd.f32 %v1181, 1.0
      %v1185 = vadd.f32 %v1183, 1.0
      %v1186 = vrcp.pop %v1184
      %v1187 = vrcp.pop %v1185
      %v1188 = vmul.f32 %v1176, %v1186
      %v1189 = vmul.f32 %v1177, %v1187
      %v1190 = vld [vmem:[%s485] sm:$0xf]
      %v1191 = vld [vmem:[%s485 + $0x4] sm:$0xf]
      %v1194 = vunpack.c.l.b16 %v1190
      %v1195 = vunpack.c.l.b16 %v1191
      %v1196 = vpack.c.b16 %v1195, %v1194
      %1198 = vmatprep.subr.bf16.mxu0 0
      %1199 = vmatpush1.bf16.msra.mxu0 %v680
      %1200 = vmatprep.subr.bf16.mxu0 0
      %1201 = vmatpush1.bf16.msra.mxu0 %v681
      %1202 = vmatprep.subr.bf16.mxu0 0
      %1203 = vmatpush1.bf16.msra.mxu0 %v682
      %1204 = vmatprep.subr.bf16.mxu0 0
      %1205 = vmatpush1.bf16.msra.mxu0 %v683
      %1206 = vmatprep.subr.bf16.mxu0 0
      %1207 = vmatpush1.bf16.msra.mxu0 %v684
      %1208 = vmatprep.subr.bf16.mxu0 0
      %1209 = vmatpush1.bf16.msra.mxu0 %v685
      %1210 = vmatprep.subr.bf16.mxu0 0
      %1211 = vmatpush1.bf16.msra.mxu0 %v686
      %1212 = vmatprep.subr.bf16.mxu0 0
      %1213 = vmatpush1.bf16.msra.mxu0 %v687
      %1214 = vmatprep.subr.bf16.mxu0 0
      %1215 = vmatpush1.bf16.msra.mxu0 0
      %1216 = vmatprep.subr.bf16.mxu0 0
      %1217 = vmatpush1.bf16.msra.mxu0 0
      %1218 = vmatprep.subr.bf16.mxu0 0
      %1219 = vmatpush1.bf16.msra.mxu0 0
      %1220 = vmatprep.subr.bf16.mxu0 0
      %1221 = vmatpush1.bf16.msra.mxu0 0
      %1222 = vmatprep.subr.bf16.mxu0 0
      %1223 = vmatpush1.bf16.msra.mxu0 0
      %1224 = vmatprep.subr.bf16.mxu0 0
      %1225 = vmatpush1.bf16.msra.mxu0 0
      %1226 = vmatprep.subr.bf16.mxu0 0
      %1227 = vmatpush1.bf16.msra.mxu0 0
      %1228 = vmatprep.subr.bf16.mxu0 0
      %1229 = vmatpush1.bf16.msra.mxu0 0
      %1230 = vmatprep.mubr.bf16.mxu0 0
      %1231 = vmatmul.mubr.bf16.gmra.mrb[0].mxu0 %v1196
      %v1232 = vpop.f32.mrb[0].mxu0
      %v1233 = vadd.f32 0.0, %v1232
      %v1234 = vpop.f32.mrb[0].mxu0
      %v1235 = vpop.f32.mrb[0].mxu0
      %v1236 = vadd.f32 0.0, %v1235
      %v1237 = vpop.f32.mrb[0].mxu0
      %1238 = vdwg.mxu0
      %v1239 = vmul.f32 %v1233, %v861
      %v1240 = vmul.f32 %v1236, %v861
      %v1241 = vadd.f32 %v1239, %v899
      %v1242 = vadd.f32 %v1240, %v899
      %v1243 = vsub.f32 0.0, %v1241
      %v1244 = vsub.f32 0.0, %v1242
      %v1245 = vmul.f32 %v1243, 1.442695
      %v1246 = vpow.pop %v1245
      %v1247 = vmul.f32 %v1244, 1.442695
      %v1248 = vpow.pop %v1247
      %v1249 = vadd.f32 %v1246, 1.0
      %v1250 = vadd.f32 %v1248, 1.0
      %v1251 = vrcp.pop %v1249
      %v1252 = vrcp.pop %v1250
      %v1253 = vmul.f32 %v1241, %v1251
      %v1254 = vmul.f32 %v1242, %v1252
      %p1255 = scmp.gt.s32.totalorder %s25, 0
      %s1256 = scalar_select %p1255, 1, 0
      %s1257 = scvt.s32.f32 %s1256
      %v1258 = vstv %s1257
      %v1259 = vmul.f32 %v1188, %v1258
      %v1260 = vmul.f32 %v1189, %v1258
      %p1261 = scmp.lt.s32.totalorder %s25, 0
      %s1262 = scalar_select %p1261, 1, 0
      %s1263 = scvt.s32.f32 %s1262
      %v1264 = vstv %s1263
      %v1265 = vmul.f32 %v1253, %v1264
      %v1266 = vmul.f32 %v1254, %v1264
      %v1267 = vlaneseq
      %v1268 = vshrl.u32 %v1267, 7
      %v1269 = vadd.s32 %v1268, 8
      %v1270 = vadd.s32 %v1268, 16
      %v1271 = vadd.s32 %v1268, 24
      %v1272 = vadd.s32 %v1268, 32
      %v1273 = vadd.s32 %v1268, 40
      %v1274 = vadd.s32 %v1268, 48
      %v1275 = vadd.s32 %v1268, 56
      %v1276 = vadd.s32 %v1268, 64
      %v1277 = vadd.s32 %v1268, 72
      %v1278 = vadd.s32 %v1268, 80
      %v1279 = vadd.s32 %v1268, 88
      %v1280 = vadd.s32 %v1268, 96
      %v1281 = vadd.s32 %v1268, 104
      %v1282 = vadd.s32 %v1268, 112
      %v1283 = vadd.s32 %v1268, 120
      %v1284 = vadd.s32 %v1268, 128
      %v1285 = vadd.s32 %v1268, 136
      %v1286 = vadd.s32 %v1268, 144
      %v1287 = vadd.s32 %v1268, 152
      %v1288 = vadd.s32 %v1268, 160
      %v1289 = vadd.s32 %v1268, 168
      %v1290 = vadd.s32 %v1268, 176
      %v1291 = vadd.s32 %v1268, 184
      %v1292 = vadd.s32 %v1268, 192
      %v1293 = vadd.s32 %v1268, 200
      %v1294 = vadd.s32 %v1268, 208
      %v1295 = vadd.s32 %v1268, 216
      %v1296 = vadd.s32 %v1268, 224
      %v1297 = vadd.s32 %v1268, 232
      %v1298 = vadd.s32 %v1268, 240
      %v1299 = vadd.s32 %v1268, 248
      %vm1300 = vcmp.lt.s32.totalorder %v1268, 0
      %v1301 = vsub.s32 0, %v1268
      %v1302 = vsel %vm1300, %v1301, %v1268
      %v1303 = vshrl.u32 %v1302, 4
      %v1304 = vand.u32 %v1302, 15
      %v1305 = vsub.s32 0, %v1304
      %v1306 = vsel %vm1300, %v1305, %v1304
      %vm1307 = vcmp.lt.s32.totalorder %v1269, 0
      %v1308 = vsub.s32 0, %v1269
      %v1309 = vsel %vm1307, %v1308, %v1269
      %v1310 = vshrl.u32 %v1309, 4
      %v1311 = vand.u32 %v1309, 15
      %v1312 = vsub.s32 0, %v1311
      %v1313 = vsel %vm1307, %v1312, %v1311
      %vm1314 = vcmp.lt.s32.totalorder %v1270, 0
      %v1315 = vsub.s32 0, %v1270
      %v1316 = vsel %vm1314, %v1315, %v1270
      %v1317 = vshrl.u32 %v1316, 4
      %v1318 = vand.u32 %v1316, 15
      %v1319 = vsub.s32 0, %v1318
      %v1320 = vsel %vm1314, %v1319, %v1318
      %vm1321 = vcmp.lt.s32.totalorder %v1271, 0
      %v1322 = vsub.s32 0, %v1271
      %v1323 = vsel %vm1321, %v1322, %v1271
      %v1324 = vshrl.u32 %v1323, 4
      %v1325 = vand.u32 %v1323, 15
      %v1326 = vsub.s32 0, %v1325
      %v1327 = vsel %vm1321, %v1326, %v1325
      %vm1328 = vcmp.lt.s32.totalorder %v1272, 0
      %v1329 = vsub.s32 0, %v1272
      %v1330 = vsel %vm1328, %v1329, %v1272
      %v1331 = vshrl.u32 %v1330, 4
      %v1332 = vand.u32 %v1330, 15
      %v1333 = vsub.s32 0, %v1332
      %v1334 = vsel %vm1328, %v1333, %v1332
      %vm1335 = vcmp.lt.s32.totalorder %v1273, 0
      %v1336 = vsub.s32 0, %v1273
      %v1337 = vsel %vm1335, %v1336, %v1273
      %v1338 = vshrl.u32 %v1337, 4
      %v1339 = vand.u32 %v1337, 15
      %v1340 = vsub.s32 0, %v1339
      %v1341 = vsel %vm1335, %v1340, %v1339
      %vm1342 = vcmp.lt.s32.totalorder %v1274, 0
      %v1343 = vsub.s32 0, %v1274
      %v1344 = vsel %vm1342, %v1343, %v1274
      %v1345 = vshrl.u32 %v1344, 4
      %v1346 = vand.u32 %v1344, 15
      %v1347 = vsub.s32 0, %v1346
      %v1348 = vsel %vm1342, %v1347, %v1346
      %vm1349 = vcmp.lt.s32.totalorder %v1275, 0
      %v1350 = vsub.s32 0, %v1275
      %v1351 = vsel %vm1349, %v1350, %v1275
      %v1352 = vshrl.u32 %v1351, 4
      %v1353 = vand.u32 %v1351, 15
      %v1354 = vsub.s32 0, %v1353
      %v1355 = vsel %vm1349, %v1354, %v1353
      %vm1356 = vcmp.lt.s32.totalorder %v1276, 0
      %v1357 = vsub.s32 0, %v1276
      %v1358 = vsel %vm1356, %v1357, %v1276
      %v1359 = vshrl.u32 %v1358, 4
      %v1360 = vand.u32 %v1358, 15
      %v1361 = vsub.s32 0, %v1360
      %v1362 = vsel %vm1356, %v1361, %v1360
      %vm1363 = vcmp.lt.s32.totalorder %v1277, 0
      %v1364 = vsub.s32 0, %v1277
      %v1365 = vsel %vm1363, %v1364, %v1277
      %v1366 = vshrl.u32 %v1365, 4
      %v1367 = vand.u32 %v1365, 15
      %v1368 = vsub.s32 0, %v1367
      %v1369 = vsel %vm1363, %v1368, %v1367
      %vm1370 = vcmp.lt.s32.totalorder %v1278, 0
      %v1371 = vsub.s32 0, %v1278
      %v1372 = vsel %vm1370, %v1371, %v1278
      %v1373 = vshrl.u32 %v1372, 4
      %v1374 = vand.u32 %v1372, 15
      %v1375 = vsub.s32 0, %v1374
      %v1376 = vsel %vm1370, %v1375, %v1374
      %vm1377 = vcmp.lt.s32.totalorder %v1279, 0
      %v1378 = vsub.s32 0, %v1279
      %v1379 = vsel %vm1377, %v1378, %v1279
      %v1380 = vshrl.u32 %v1379, 4
      %v1381 = vand.u32 %v1379, 15
      %v1382 = vsub.s32 0, %v1381
      %v1383 = vsel %vm1377, %v1382, %v1381
      %vm1384 = vcmp.lt.s32.totalorder %v1280, 0
      %v1385 = vsub.s32 0, %v1280
      %v1386 = vsel %vm1384, %v1385, %v1280
      %v1387 = vshrl.u32 %v1386, 4
      %v1388 = vand.u32 %v1386, 15
      %v1389 = vsub.s32 0, %v1388
      %v1390 = vsel %vm1384, %v1389, %v1388
      %vm1391 = vcmp.lt.s32.totalorder %v1281, 0
      %v1392 = vsub.s32 0, %v1281
      %v1393 = vsel %vm1391, %v1392, %v1281
      %v1394 = vshrl.u32 %v1393, 4
      %v1395 = vand.u32 %v1393, 15
      %v1396 = vsub.s32 0, %v1395
      %v1397 = vsel %vm1391, %v1396, %v1395
      %vm1398 = vcmp.lt.s32.totalorder %v1282, 0
      %v1399 = vsub.s32 0, %v1282
      %v1400 = vsel %vm1398, %v1399, %v1282
      %v1401 = vshrl.u32 %v1400, 4
      %v1402 = vand.u32 %v1400, 15
      %v1403 = vsub.s32 0, %v1402
      %v1404 = vsel %vm1398, %v1403, %v1402
      %vm1405 = vcmp.lt.s32.totalorder %v1283, 0
      %v1406 = vsub.s32 0, %v1283
      %v1407 = vsel %vm1405, %v1406, %v1283
      %v1408 = vshrl.u32 %v1407, 4
      %v1409 = vand.u32 %v1407, 15
      %v1410 = vsub.s32 0, %v1409
      %v1411 = vsel %vm1405, %v1410, %v1409
      %vm1412 = vcmp.lt.s32.totalorder %v1284, 0
      %v1413 = vsub.s32 0, %v1284
      %v1414 = vsel %vm1412, %v1413, %v1284
      %v1415 = vshrl.u32 %v1414, 4
      %v1416 = vand.u32 %v1414, 15
      %v1417 = vsub.s32 0, %v1416
      %v1418 = vsel %vm1412, %v1417, %v1416
      %vm1419 = vcmp.lt.s32.totalorder %v1285, 0
      %v1420 = vsub.s32 0, %v1285
      %v1421 = vsel %vm1419, %v1420, %v1285
      %v1422 = vshrl.u32 %v1421, 4
      %v1423 = vand.u32 %v1421, 15
      %v1424 = vsub.s32 0, %v1423
      %v1425 = vsel %vm1419, %v1424, %v1423
      %vm1426 = vcmp.lt.s32.totalorder %v1286, 0
      %v1427 = vsub.s32 0, %v1286
      %v1428 = vsel %vm1426, %v1427, %v1286
      %v1429 = vshrl.u32 %v1428, 4
      %v1430 = vand.u32 %v1428, 15
      %v1431 = vsub.s32 0, %v1430
      %v1432 = vsel %vm1426, %v1431, %v1430
      %vm1433 = vcmp.lt.s32.totalorder %v1287, 0
      %v1434 = vsub.s32 0, %v1287
      %v1435 = vsel %vm1433, %v1434, %v1287
      %v1436 = vshrl.u32 %v1435, 4
      %v1437 = vand.u32 %v1435, 15
      %v1438 = vsub.s32 0, %v1437
      %v1439 = vsel %vm1433, %v1438, %v1437
      %vm1440 = vcmp.lt.s32.totalorder %v1288, 0
      %v1441 = vsub.s32 0, %v1288
      %v1442 = vsel %vm1440, %v1441, %v1288
      %v1443 = vshrl.u32 %v1442, 4
      %v1444 = vand.u32 %v1442, 15
      %v1445 = vsub.s32 0, %v1444
      %v1446 = vsel %vm1440, %v1445, %v1444
      %vm1447 = vcmp.lt.s32.totalorder %v1289, 0
      %v1448 = vsub.s32 0, %v1289
      %v1449 = vsel %vm1447, %v1448, %v1289
      %v1450 = vshrl.u32 %v1449, 4
      %v1451 = vand.u32 %v1449, 15
      %v1452 = vsub.s32 0, %v1451
      %v1453 = vsel %vm1447, %v1452, %v1451
      %vm1454 = vcmp.lt.s32.totalorder %v1290, 0
      %v1455 = vsub.s32 0, %v1290
      %v1456 = vsel %vm1454, %v1455, %v1290
      %v1457 = vshrl.u32 %v1456, 4
      %v1458 = vand.u32 %v1456, 15
      %v1459 = vsub.s32 0, %v1458
      %v1460 = vsel %vm1454, %v1459, %v1458
      %vm1461 = vcmp.lt.s32.totalorder %v1291, 0
      %v1462 = vsub.s32 0, %v1291
      %v1463 = vsel %vm1461, %v1462, %v1291
      %v1464 = vshrl.u32 %v1463, 4
      %v1465 = vand.u32 %v1463, 15
      %v1466 = vsub.s32 0, %v1465
      %v1467 = vsel %vm1461, %v1466, %v1465
      %vm1468 = vcmp.lt.s32.totalorder %v1292, 0
      %v1469 = vsub.s32 0, %v1292
      %v1470 = vsel %vm1468, %v1469, %v1292
      %v1471 = vshrl.u32 %v1470, 4
      %v1472 = vand.u32 %v1470, 15
      %v1473 = vsub.s32 0, %v1472
      %v1474 = vsel %vm1468, %v1473, %v1472
      %vm1475 = vcmp.lt.s32.totalorder %v1293, 0
      %v1476 = vsub.s32 0, %v1293
      %v1477 = vsel %vm1475, %v1476, %v1293
      %v1478 = vshrl.u32 %v1477, 4
      %v1479 = vand.u32 %v1477, 15
      %v1480 = vsub.s32 0, %v1479
      %v1481 = vsel %vm1475, %v1480, %v1479
      %vm1482 = vcmp.lt.s32.totalorder %v1294, 0
      %v1483 = vsub.s32 0, %v1294
      %v1484 = vsel %vm1482, %v1483, %v1294
      %v1485 = vshrl.u32 %v1484, 4
      %v1486 = vand.u32 %v1484, 15
      %v1487 = vsub.s32 0, %v1486
      %v1488 = vsel %vm1482, %v1487, %v1486
      %vm1489 = vcmp.lt.s32.totalorder %v1295, 0
      %v1490 = vsub.s32 0, %v1295
      %v1491 = vsel %vm1489, %v1490, %v1295
      %v1492 = vshrl.u32 %v1491, 4
      %v1493 = vand.u32 %v1491, 15
      %v1494 = vsub.s32 0, %v1493
      %v1495 = vsel %vm1489, %v1494, %v1493
      %vm1496 = vcmp.lt.s32.totalorder %v1296, 0
      %v1497 = vsub.s32 0, %v1296
      %v1498 = vsel %vm1496, %v1497, %v1296
      %v1499 = vshrl.u32 %v1498, 4
      %v1500 = vand.u32 %v1498, 15
      %v1501 = vsub.s32 0, %v1500
      %v1502 = vsel %vm1496, %v1501, %v1500
      %vm1503 = vcmp.lt.s32.totalorder %v1297, 0
      %v1504 = vsub.s32 0, %v1297
      %v1505 = vsel %vm1503, %v1504, %v1297
      %v1506 = vshrl.u32 %v1505, 4
      %v1507 = vand.u32 %v1505, 15
      %v1508 = vsub.s32 0, %v1507
      %v1509 = vsel %vm1503, %v1508, %v1507
      %vm1510 = vcmp.lt.s32.totalorder %v1298, 0
      %v1511 = vsub.s32 0, %v1298
      %v1512 = vsel %vm1510, %v1511, %v1298
      %v1513 = vshrl.u32 %v1512, 4
      %v1514 = vand.u32 %v1512, 15
      %v1515 = vsub.s32 0, %v1514
      %v1516 = vsel %vm1510, %v1515, %v1514
      %vm1517 = vcmp.lt.s32.totalorder %v1299, 0
      %v1518 = vsub.s32 0, %v1299
      %v1519 = vsel %vm1517, %v1518, %v1299
      %v1520 = vshrl.u32 %v1519, 4
      %v1521 = vand.u32 %v1519, 15
      %v1522 = vsub.s32 0, %v1521
      %v1523 = vsel %vm1517, %v1522, %v1521
      %vm1524 = vcmp.ne.s32.totalorder %v1306, 0
      %vm1525 = vcmp.ne.s32.totalorder %v1313, 0
      %vm1526 = vcmp.ne.s32.totalorder %v1320, 0
      %vm1527 = vcmp.ne.s32.totalorder %v1327, 0
      %vm1528 = vcmp.ne.s32.totalorder %v1334, 0
      %vm1529 = vcmp.ne.s32.totalorder %v1341, 0
      %vm1530 = vcmp.ne.s32.totalorder %v1348, 0
      %vm1531 = vcmp.ne.s32.totalorder %v1355, 0
      %vm1532 = vcmp.ne.s32.totalorder %v1362, 0
      %vm1533 = vcmp.ne.s32.totalorder %v1369, 0
      %vm1534 = vcmp.ne.s32.totalorder %v1376, 0
      %vm1535 = vcmp.ne.s32.totalorder %v1383, 0
      %vm1536 = vcmp.ne.s32.totalorder %v1390, 0
      %vm1537 = vcmp.ne.s32.totalorder %v1397, 0
      %vm1538 = vcmp.ne.s32.totalorder %v1404, 0
      %vm1539 = vcmp.ne.s32.totalorder %v1411, 0
      %vm1540 = vcmp.ne.s32.totalorder %v1418, 0
      %vm1541 = vcmp.ne.s32.totalorder %v1425, 0
      %vm1542 = vcmp.ne.s32.totalorder %v1432, 0
      %vm1543 = vcmp.ne.s32.totalorder %v1439, 0
      %vm1544 = vcmp.ne.s32.totalorder %v1446, 0
      %vm1545 = vcmp.ne.s32.totalorder %v1453, 0
      %vm1546 = vcmp.ne.s32.totalorder %v1460, 0
      %vm1547 = vcmp.ne.s32.totalorder %v1467, 0
      %vm1548 = vcmp.ne.s32.totalorder %v1474, 0
      %vm1549 = vcmp.ne.s32.totalorder %v1481, 0
      %vm1550 = vcmp.ne.s32.totalorder %v1488, 0
      %vm1551 = vcmp.ne.s32.totalorder %v1495, 0
      %vm1552 = vcmp.ne.s32.totalorder %v1502, 0
      %vm1553 = vcmp.ne.s32.totalorder %v1509, 0
      %vm1554 = vcmp.ne.s32.totalorder %v1516, 0
      %vm1555 = vcmp.ne.s32.totalorder %v1523, 0
      %vm1556 = vcmp.lt.s32.totalorder %v1306, 0
      %vm1557 = vcmp.lt.s32.totalorder %v1313, 0
      %vm1558 = vcmp.lt.s32.totalorder %v1320, 0
      %vm1559 = vcmp.lt.s32.totalorder %v1327, 0
      %vm1560 = vcmp.lt.s32.totalorder %v1334, 0
      %vm1561 = vcmp.lt.s32.totalorder %v1341, 0
      %vm1562 = vcmp.lt.s32.totalorder %v1348, 0
      %vm1563 = vcmp.lt.s32.totalorder %v1355, 0
      %vm1564 = vcmp.lt.s32.totalorder %v1362, 0
      %vm1565 = vcmp.lt.s32.totalorder %v1369, 0
      %vm1566 = vcmp.lt.s32.totalorder %v1376, 0
      %vm1567 = vcmp.lt.s32.totalorder %v1383, 0
      %vm1568 = vcmp.lt.s32.totalorder %v1390, 0
      %vm1569 = vcmp.lt.s32.totalorder %v1397, 0
      %vm1570 = vcmp.lt.s32.totalorder %v1404, 0
      %vm1571 = vcmp.lt.s32.totalorder %v1411, 0
      %vm1572 = vcmp.lt.s32.totalorder %v1418, 0
      %vm1573 = vcmp.lt.s32.totalorder %v1425, 0
      %vm1574 = vcmp.lt.s32.totalorder %v1432, 0
      %vm1575 = vcmp.lt.s32.totalorder %v1439, 0
      %vm1576 = vcmp.lt.s32.totalorder %v1446, 0
      %vm1577 = vcmp.lt.s32.totalorder %v1453, 0
      %vm1578 = vcmp.lt.s32.totalorder %v1460, 0
      %vm1579 = vcmp.lt.s32.totalorder %v1467, 0
      %vm1580 = vcmp.lt.s32.totalorder %v1474, 0
      %vm1581 = vcmp.lt.s32.totalorder %v1481, 0
      %vm1582 = vcmp.lt.s32.totalorder %v1488, 0
      %vm1583 = vcmp.lt.s32.totalorder %v1495, 0
      %vm1584 = vcmp.lt.s32.totalorder %v1502, 0
      %vm1585 = vcmp.lt.s32.totalorder %v1509, 0
      %vm1586 = vcmp.lt.s32.totalorder %v1516, 0
      %vm1587 = vcmp.lt.s32.totalorder %v1523, 0
      %vm1588 = vmand %vm1556, %vm1524
      %vm1589 = vmand %vm1557, %vm1525
      %vm1590 = vmand %vm1558, %vm1526
      %vm1591 = vmand %vm1559, %vm1527
      %vm1592 = vmand %vm1560, %vm1528
      %vm1593 = vmand %vm1561, %vm1529
      %vm1594 = vmand %vm1562, %vm1530
      %vm1595 = vmand %vm1563, %vm1531
      %vm1596 = vmand %vm1564, %vm1532
      %vm1597 = vmand %vm1565, %vm1533
      %vm1598 = vmand %vm1566, %vm1534
      %vm1599 = vmand %vm1567, %vm1535
      %vm1600 = vmand %vm1568, %vm1536
      %vm1601 = vmand %vm1569, %vm1537
      %vm1602 = vmand %vm1570, %vm1538
      %vm1603 = vmand %vm1571, %vm1539
      %vm1604 = vmand %vm1572, %vm1540
      %vm1605 = vmand %vm1573, %vm1541
      %vm1606 = vmand %vm1574, %vm1542
      %vm1607 = vmand %vm1575, %vm1543
      %vm1608 = vmand %vm1576, %vm1544
      %vm1609 = vmand %vm1577, %vm1545
      %vm1610 = vmand %vm1578, %vm1546
      %vm1611 = vmand %vm1579, %vm1547
      %vm1612 = vmand %vm1580, %vm1548
      %vm1613 = vmand %vm1581, %vm1549
      %vm1614 = vmand %vm1582, %vm1550
      %vm1615 = vmand %vm1583, %vm1551
      %vm1616 = vmand %vm1584, %vm1552
      %vm1617 = vmand %vm1585, %vm1553
      %vm1618 = vmand %vm1586, %vm1554
      %vm1619 = vmand %vm1587, %vm1555
      %v1620 = vadd.s32 %v1306, 16
      %v1621 = vadd.s32 %v1313, 16
      %v1622 = vadd.s32 %v1320, 16
      %v1623 = vadd.s32 %v1327, 16
      %v1624 = vadd.s32 %v1334, 16
      %v1625 = vadd.s32 %v1341, 16
      %v1626 = vadd.s32 %v1348, 16
      %v1627 = vadd.s32 %v1355, 16
      %v1628 = vadd.s32 %v1362, 16
      %v1629 = vadd.s32 %v1369, 16
      %v1630 = vadd.s32 %v1376, 16
      %v1631 = vadd.s32 %v1383, 16
      %v1632 = vadd.s32 %v1390, 16
      %v1633 = vadd.s32 %v1397, 16
      %v1634 = vadd.s32 %v1404, 16
      %v1635 = vadd.s32 %v1411, 16
      %v1636 = vadd.s32 %v1418, 16
      %v1637 = vadd.s32 %v1425, 16
      %v1638 = vadd.s32 %v1432, 16
      %v1639 = vadd.s32 %v1439, 16
      %v1640 = vadd.s32 %v1446, 16
      %v1641 = vadd.s32 %v1453, 16
      %v1642 = vadd.s32 %v1460, 16
      %v1643 = vadd.s32 %v1467, 16
      %v1644 = vadd.s32 %v1474, 16
      %v1645 = vadd.s32 %v1481, 16
      %v1646 = vadd.s32 %v1488, 16
      %v1647 = vadd.s32 %v1495, 16
      %v1648 = vadd.s32 %v1502, 16
      %v1649 = vadd.s32 %v1509, 16
      %v1650 = vadd.s32 %v1516, 16
      %v1651 = vadd.s32 %v1523, 16
      %v1652 = vsel %vm1588, %v1620, %v1306
      %v1653 = vsel %vm1589, %v1621, %v1313
      %v1654 = vsel %vm1590, %v1622, %v1320
      %v1655 = vsel %vm1591, %v1623, %v1327
      %v1656 = vsel %vm1592, %v1624, %v1334
      %v1657 = vsel %vm1593, %v1625, %v1341
      %v1658 = vsel %vm1594, %v1626, %v1348
      %v1659 = vsel %vm1595, %v1627, %v1355
      %v1660 = vsel %vm1596, %v1628, %v1362
      %v1661 = vsel %vm1597, %v1629, %v1369
      %v1662 = vsel %vm1598, %v1630, %v1376
      %v1663 = vsel %vm1599, %v1631, %v1383
      %v1664 = vsel %vm1600, %v1632, %v1390
      %v1665 = vsel %vm1601, %v1633, %v1397
      %v1666 = vsel %vm1602, %v1634, %v1404
      %v1667 = vsel %vm1603, %v1635, %v1411
      %v1668 = vsel %vm1604, %v1636, %v1418
      %v1669 = vsel %vm1605, %v1637, %v1425
      %v1670 = vsel %vm1606, %v1638, %v1432
      %v1671 = vsel %vm1607, %v1639, %v1439
      %v1672 = vsel %vm1608, %v1640, %v1446
      %v1673 = vsel %vm1609, %v1641, %v1453
      %v1674 = vsel %vm1610, %v1642, %v1460
      %v1675 = vsel %vm1611, %v1643, %v1467
      %v1676 = vsel %vm1612, %v1644, %v1474
      %v1677 = vsel %vm1613, %v1645, %v1481
      %v1678 = vsel %vm1614, %v1646, %v1488
      %v1679 = vsel %vm1615, %v1647, %v1495
      %v1680 = vsel %vm1616, %v1648, %v1502
      %v1681 = vsel %vm1617, %v1649, %v1509
      %v1682 = vsel %vm1618, %v1650, %v1516
      %v1683 = vsel %vm1619, %v1651, %v1523
      %vm1684 = vcmp.ne.s32.totalorder %v1652, 0
      %vm1685 = vcmp.ne.s32.totalorder %v1653, 0
      %vm1686 = vcmp.ne.s32.totalorder %v1654, 0
      %vm1687 = vcmp.ne.s32.totalorder %v1655, 0
      %vm1688 = vcmp.ne.s32.totalorder %v1656, 0
      %vm1689 = vcmp.ne.s32.totalorder %v1657, 0
      %vm1690 = vcmp.ne.s32.totalorder %v1658, 0
      %vm1691 = vcmp.ne.s32.totalorder %v1659, 0
      %vm1692 = vcmp.ne.s32.totalorder %v1660, 0
      %vm1693 = vcmp.ne.s32.totalorder %v1661, 0
      %vm1694 = vcmp.ne.s32.totalorder %v1662, 0
      %vm1695 = vcmp.ne.s32.totalorder %v1663, 0
      %vm1696 = vcmp.ne.s32.totalorder %v1664, 0
      %vm1697 = vcmp.ne.s32.totalorder %v1665, 0
      %vm1698 = vcmp.ne.s32.totalorder %v1666, 0
      %vm1699 = vcmp.ne.s32.totalorder %v1667, 0
      %vm1700 = vcmp.ne.s32.totalorder %v1668, 0
      %vm1701 = vcmp.ne.s32.totalorder %v1669, 0
      %vm1702 = vcmp.ne.s32.totalorder %v1670, 0
      %vm1703 = vcmp.ne.s32.totalorder %v1671, 0
      %vm1704 = vcmp.ne.s32.totalorder %v1672, 0
      %vm1705 = vcmp.ne.s32.totalorder %v1673, 0
      %vm1706 = vcmp.ne.s32.totalorder %v1674, 0
      %vm1707 = vcmp.ne.s32.totalorder %v1675, 0
      %vm1708 = vcmp.ne.s32.totalorder %v1676, 0
      %vm1709 = vcmp.ne.s32.totalorder %v1677, 0
      %vm1710 = vcmp.ne.s32.totalorder %v1678, 0
      %vm1711 = vcmp.ne.s32.totalorder %v1679, 0
      %vm1712 = vcmp.ne.s32.totalorder %v1680, 0
      %vm1713 = vcmp.ne.s32.totalorder %v1681, 0
      %vm1714 = vcmp.ne.s32.totalorder %v1682, 0
      %vm1715 = vcmp.ne.s32.totalorder %v1683, 0
      %v1716 = vsel %vm1684, 1, 0
      %v1717 = vsel %vm1685, 1, 0
      %v1718 = vsel %vm1686, 1, 0
      %v1719 = vsel %vm1687, 1, 0
      %v1720 = vsel %vm1688, 1, 0
      %v1721 = vsel %vm1689, 1, 0
      %v1722 = vsel %vm1690, 1, 0
      %v1723 = vsel %vm1691, 1, 0
      %v1724 = vsel %vm1692, 1, 0
      %v1725 = vsel %vm1693, 1, 0
      %v1726 = vsel %vm1694, 1, 0
      %v1727 = vsel %vm1695, 1, 0
      %v1728 = vsel %vm1696, 1, 0
      %v1729 = vsel %vm1697, 1, 0
      %v1730 = vsel %vm1698, 1, 0
      %v1731 = vsel %vm1699, 1, 0
      %v1732 = vsel %vm1700, 1, 0
      %v1733 = vsel %vm1701, 1, 0
      %v1734 = vsel %vm1702, 1, 0
      %v1735 = vsel %vm1703, 1, 0
      %v1736 = vsel %vm1704, 1, 0
      %v1737 = vsel %vm1705, 1, 0
      %v1738 = vsel %vm1706, 1, 0
      %v1739 = vsel %vm1707, 1, 0
      %v1740 = vsel %vm1708, 1, 0
      %v1741 = vsel %vm1709, 1, 0
      %v1742 = vsel %vm1710, 1, 0
      %v1743 = vsel %vm1711, 1, 0
      %v1744 = vsel %vm1712, 1, 0
      %v1745 = vsel %vm1713, 1, 0
      %v1746 = vsel %vm1714, 1, 0
      %v1747 = vsel %vm1715, 1, 0
      %v1748 = vcvt.s32.f32 %v1716
      %v1749 = vcvt.s32.f32 %v1717
      %v1750 = vcvt.s32.f32 %v1718
      %v1751 = vcvt.s32.f32 %v1719
      %v1752 = vcvt.s32.f32 %v1720
      %v1753 = vcvt.s32.f32 %v1721
      %v1754 = vcvt.s32.f32 %v1722
      %v1755 = vcvt.s32.f32 %v1723
      %v1756 = vcvt.s32.f32 %v1724
      %v1757 = vcvt.s32.f32 %v1725
      %v1758 = vcvt.s32.f32 %v1726
      %v1759 = vcvt.s32.f32 %v1727
      %v1760 = vcvt.s32.f32 %v1728
      %v1761 = vcvt.s32.f32 %v1729
      %v1762 = vcvt.s32.f32 %v1730
      %v1763 = vcvt.s32.f32 %v1731
      %v1764 = vcvt.s32.f32 %v1732
      %v1765 = vcvt.s32.f32 %v1733
      %v1766 = vcvt.s32.f32 %v1734
      %v1767 = vcvt.s32.f32 %v1735
      %v1768 = vcvt.s32.f32 %v1736
      %v1769 = vcvt.s32.f32 %v1737
      %v1770 = vcvt.s32.f32 %v1738
      %v1771 = vcvt.s32.f32 %v1739
      %v1772 = vcvt.s32.f32 %v1740
      %v1773 = vcvt.s32.f32 %v1741
      %v1774 = vcvt.s32.f32 %v1742
      %v1775 = vcvt.s32.f32 %v1743
      %v1776 = vcvt.s32.f32 %v1744
      %v1777 = vcvt.s32.f32 %v1745
      %v1778 = vcvt.s32.f32 %v1746
      %v1779 = vcvt.s32.f32 %v1747
      %vm1780 = vcmp.ne.s32.totalorder %v1652, 15
      %vm1781 = vcmp.ne.s32.totalorder %v1653, 15
      %vm1782 = vcmp.ne.s32.totalorder %v1654, 15
      %vm1783 = vcmp.ne.s32.totalorder %v1655, 15
      %vm1784 = vcmp.ne.s32.totalorder %v1656, 15
      %vm1785 = vcmp.ne.s32.totalorder %v1657, 15
      %vm1786 = vcmp.ne.s32.totalorder %v1658, 15
      %vm1787 = vcmp.ne.s32.totalorder %v1659, 15
      %vm1788 = vcmp.ne.s32.totalorder %v1660, 15
      %vm1789 = vcmp.ne.s32.totalorder %v1661, 15
      %vm1790 = vcmp.ne.s32.totalorder %v1662, 15
      %vm1791 = vcmp.ne.s32.totalorder %v1663, 15
      %vm1792 = vcmp.ne.s32.totalorder %v1664, 15
      %vm1793 = vcmp.ne.s32.totalorder %v1665, 15
      %vm1794 = vcmp.ne.s32.totalorder %v1666, 15
      %vm1795 = vcmp.ne.s32.totalorder %v1667, 15
      %vm1796 = vcmp.ne.s32.totalorder %v1668, 15
      %vm1797 = vcmp.ne.s32.totalorder %v1669, 15
      %vm1798 = vcmp.ne.s32.totalorder %v1670, 15
      %vm1799 = vcmp.ne.s32.totalorder %v1671, 15
      %vm1800 = vcmp.ne.s32.totalorder %v1672, 15
      %vm1801 = vcmp.ne.s32.totalorder %v1673, 15
      %vm1802 = vcmp.ne.s32.totalorder %v1674, 15
      %vm1803 = vcmp.ne.s32.totalorder %v1675, 15
      %vm1804 = vcmp.ne.s32.totalorder %v1676, 15
      %vm1805 = vcmp.ne.s32.totalorder %v1677, 15
      %vm1806 = vcmp.ne.s32.totalorder %v1678, 15
      %vm1807 = vcmp.ne.s32.totalorder %v1679, 15
      %vm1808 = vcmp.ne.s32.totalorder %v1680, 15
      %vm1809 = vcmp.ne.s32.totalorder %v1681, 15
      %vm1810 = vcmp.ne.s32.totalorder %v1682, 15
      %vm1811 = vcmp.ne.s32.totalorder %v1683, 15
      %v1812 = vsel %vm1780, 1, 0
      %v1813 = vsel %vm1781, 1, 0
      %v1814 = vsel %vm1782, 1, 0
      %v1815 = vsel %vm1783, 1, 0
      %v1816 = vsel %vm1784, 1, 0
      %v1817 = vsel %vm1785, 1, 0
      %v1818 = vsel %vm1786, 1, 0
      %v1819 = vsel %vm1787, 1, 0
      %v1820 = vsel %vm1788, 1, 0
      %v1821 = vsel %vm1789, 1, 0
      %v1822 = vsel %vm1790, 1, 0
      %v1823 = vsel %vm1791, 1, 0
      %v1824 = vsel %vm1792, 1, 0
      %v1825 = vsel %vm1793, 1, 0
      %v1826 = vsel %vm1794, 1, 0
      %v1827 = vsel %vm1795, 1, 0
      %v1828 = vsel %vm1796, 1, 0
      %v1829 = vsel %vm1797, 1, 0
      %v1830 = vsel %vm1798, 1, 0
      %v1831 = vsel %vm1799, 1, 0
      %v1832 = vsel %vm1800, 1, 0
      %v1833 = vsel %vm1801, 1, 0
      %v1834 = vsel %vm1802, 1, 0
      %v1835 = vsel %vm1803, 1, 0
      %v1836 = vsel %vm1804, 1, 0
      %v1837 = vsel %vm1805, 1, 0
      %v1838 = vsel %vm1806, 1, 0
      %v1839 = vsel %vm1807, 1, 0
      %v1840 = vsel %vm1808, 1, 0
      %v1841 = vsel %vm1809, 1, 0
      %v1842 = vsel %vm1810, 1, 0
      %v1843 = vsel %vm1811, 1, 0
      %v1844 = vcvt.s32.f32 %v1812
      %v1845 = vcvt.s32.f32 %v1813
      %v1846 = vcvt.s32.f32 %v1814
      %v1847 = vcvt.s32.f32 %v1815
      %v1848 = vcvt.s32.f32 %v1816
      %v1849 = vcvt.s32.f32 %v1817
      %v1850 = vcvt.s32.f32 %v1818
      %v1851 = vcvt.s32.f32 %v1819
      %v1852 = vcvt.s32.f32 %v1820
      %v1853 = vcvt.s32.f32 %v1821
      %v1854 = vcvt.s32.f32 %v1822
      %v1855 = vcvt.s32.f32 %v1823
      %v1856 = vcvt.s32.f32 %v1824
      %v1857 = vcvt.s32.f32 %v1825
      %v1858 = vcvt.s32.f32 %v1826
      %v1859 = vcvt.s32.f32 %v1827
      %v1860 = vcvt.s32.f32 %v1828
      %v1861 = vcvt.s32.f32 %v1829
      %v1862 = vcvt.s32.f32 %v1830
      %v1863 = vcvt.s32.f32 %v1831
      %v1864 = vcvt.s32.f32 %v1832
      %v1865 = vcvt.s32.f32 %v1833
      %v1866 = vcvt.s32.f32 %v1834
      %v1867 = vcvt.s32.f32 %v1835
      %v1868 = vcvt.s32.f32 %v1836
      %v1869 = vcvt.s32.f32 %v1837
      %v1870 = vcvt.s32.f32 %v1838
      %v1871 = vcvt.s32.f32 %v1839
      %v1872 = vcvt.s32.f32 %v1840
      %v1873 = vcvt.s32.f32 %v1841
      %v1874 = vcvt.s32.f32 %v1842
      %v1875 = vcvt.s32.f32 %v1843
      %v1876 = vrot.slane %v1259, 7
      %v1877 = vrot.slane %v1260, 7
      %v1878 = vrot.slane %v1093, 7
      %v1879 = vrot.slane %v1094, 7
      %v1880 = vrot.slane %v1095, 7
      %v1881 = vrot.slane %v1096, 7
      %v1882 = vrot.slane %v1097, 7
      %v1883 = vrot.slane %v1098, 7
      %v1884 = vrot.slane %v1099, 7
      %v1885 = vrot.slane %v1100, 7
      %v1886 = vrot.slane %v1101, 7
      %v1887 = vrot.slane %v1102, 7
      %v1888 = vrot.slane %v1103, 7
      %v1889 = vrot.slane %v1104, 7
      %v1890 = vrot.slane %v1105, 7
      %v1891 = vrot.slane %v1106, 7
      %v1892 = vrot.slane %v1107, 7
      %v1893 = vrot.slane %v1108, 7
      %v1894 = vrot.slane %v1109, 7
      %v1895 = vrot.slane %v1110, 7
      %v1896 = vrot.slane %v1111, 7
      %v1897 = vrot.slane %v1112, 7
      %v1898 = vrot.slane %v1113, 7
      %v1899 = vrot.slane %v1114, 7
      %v1900 = vrot.slane %v1115, 7
      %v1901 = vrot.slane %v1116, 7
      %v1902 = vrot.slane %v1117, 7
      %v1903 = vrot.slane %v1118, 7
      %v1904 = vrot.slane %v1119, 7
      %v1905 = vrot.slane %v1120, 7
      %v1906 = vrot.slane %v1121, 7
      %v1907 = vrot.slane %v1122, 7
      %v1908 = vrot.slane %v1123, 7
      %v1909 = vrot.slane %v1124, 7
      %v1910 = vrot.slane %v1265, 7
      %v1911 = vrot.slane %v1266, 7
      %vm1912 = vcmp.lt.s32.totalorder %v1268, 1
      %v1913 = vsel %vm1912, %v1910, %v1911
      %v1914 = vsel %vm1912, %v1909, %v1910
      %v1915 = vsel %vm1912, %v1908, %v1909
      %v1916 = vsel %vm1912, %v1907, %v1908
      %v1917 = vsel %vm1912, %v1906, %v1907
      %v1918 = vsel %vm1912, %v1905, %v1906
      %v1919 = vsel %vm1912, %v1904, %v1905
      %v1920 = vsel %vm1912, %v1903, %v1904
      %v1921 = vsel %vm1912, %v1902, %v1903
      %v1922 = vsel %vm1912, %v1901, %v1902
      %v1923 = vsel %vm1912, %v1900, %v1901
      %v1924 = vsel %vm1912, %v1899, %v1900
      %v1925 = vsel %vm1912, %v1898, %v1899
      %v1926 = vsel %vm1912, %v1897, %v1898
      %v1927 = vsel %vm1912, %v1896, %v1897
      %v1928 = vsel %vm1912, %v1895, %v1896
      %v1929 = vsel %vm1912, %v1894, %v1895
      %v1930 = vsel %vm1912, %v1893, %v1894
      %v1931 = vsel %vm1912, %v1892, %v1893
      %v1932 = vsel %vm1912, %v1891, %v1892
      %v1933 = vsel %vm1912, %v1890, %v1891
      %v1934 = vsel %vm1912, %v1889, %v1890
      %v1935 = vsel %vm1912, %v1888, %v1889
      %v1936 = vsel %vm1912, %v1887, %v1888
      %v1937 = vsel %vm1912, %v1886, %v1887
      %v1938 = vsel %vm1912, %v1885, %v1886
      %v1939 = vsel %vm1912, %v1884, %v1885
      %v1940 = vsel %vm1912, %v1883, %v1884
      %v1941 = vsel %vm1912, %v1882, %v1883
      %v1942 = vsel %vm1912, %v1881, %v1882
      %v1943 = vsel %vm1912, %v1880, %v1881
      %v1944 = vsel %vm1912, %v1879, %v1880
      %v1945 = vsel %vm1912, %v1878, %v1879
      %v1946 = vsel %vm1912, %v1877, %v1878
      %v1947 = vsel %vm1912, %v1876, %v1877
      %v1948 = vsel %vm1912, %v1911, %v1876
      %v1949 = vrot.slane %v1259, 1
      %v1950 = vrot.slane %v1260, 1
      %v1951 = vrot.slane %v1093, 1
      %v1952 = vrot.slane %v1094, 1
      %v1953 = vrot.slane %v1095, 1
      %v1954 = vrot.slane %v1096, 1
      %v1955 = vrot.slane %v1097, 1
      %v1956 = vrot.slane %v1098, 1
      %v1957 = vrot.slane %v1099, 1
      %v1958 = vrot.slane %v1100, 1
      %v1959 = vrot.slane %v1101, 1
      %v1960 = vrot.slane %v1102, 1
      %v1961 = vrot.slane %v1103, 1
      %v1962 = vrot.slane %v1104, 1
      %v1963 = vrot.slane %v1105, 1
      %v1964 = vrot.slane %v1106, 1
      %v1965 = vrot.slane %v1107, 1
      %v1966 = vrot.slane %v1108, 1
      %v1967 = vrot.slane %v1109, 1
      %v1968 = vrot.slane %v1110, 1
      %v1969 = vrot.slane %v1111, 1
      %v1970 = vrot.slane %v1112, 1
      %v1971 = vrot.slane %v1113, 1
      %v1972 = vrot.slane %v1114, 1
      %v1973 = vrot.slane %v1115, 1
      %v1974 = vrot.slane %v1116, 1
      %v1975 = vrot.slane %v1117, 1
      %v1976 = vrot.slane %v1118, 1
      %v1977 = vrot.slane %v1119, 1
      %v1978 = vrot.slane %v1120, 1
      %v1979 = vrot.slane %v1121, 1
      %v1980 = vrot.slane %v1122, 1
      %v1981 = vrot.slane %v1123, 1
      %v1982 = vrot.slane %v1124, 1
      %v1983 = vrot.slane %v1265, 1
      %v1984 = vrot.slane %v1266, 1
      %vm1985 = vcmp.lt.s32.totalorder %v1268, 7
      %v1986 = vsel %vm1985, %v1983, %v1984
      %v1987 = vsel %vm1985, %v1982, %v1983
      %v1988 = vsel %vm1985, %v1981, %v1982
      %v1989 = vsel %vm1985, %v1980, %v1981
      %v1990 = vsel %vm1985, %v1979, %v1980
      %v1991 = vsel %vm1985, %v1978, %v1979
      %v1992 = vsel %vm1985, %v1977, %v1978
      %v1993 = vsel %vm1985, %v1976, %v1977
      %v1994 = vsel %vm1985, %v1975, %v1976
      %v1995 = vsel %vm1985, %v1974, %v1975
      %v1996 = vsel %vm1985, %v1973, %v1974
      %v1997 = vsel %vm1985, %v1972, %v1973
      %v1998 = vsel %vm1985, %v1971, %v1972
      %v1999 = vsel %vm1985, %v1970, %v1971
      %v2000 = vsel %vm1985, %v1969, %v1970
      %v2001 = vsel %vm1985, %v1968, %v1969
      %v2002 = vsel %vm1985, %v1967, %v1968
      %v2003 = vsel %vm1985, %v1966, %v1967
      %v2004 = vsel %vm1985, %v1965, %v1966
      %v2005 = vsel %vm1985, %v1964, %v1965
      %v2006 = vsel %vm1985, %v1963, %v1964
      %v2007 = vsel %vm1985, %v1962, %v1963
      %v2008 = vsel %vm1985, %v1961, %v1962
      %v2009 = vsel %vm1985, %v1960, %v1961
      %v2010 = vsel %vm1985, %v1959, %v1960
      %v2011 = vsel %vm1985, %v1958, %v1959
      %v2012 = vsel %vm1985, %v1957, %v1958
      %v2013 = vsel %vm1985, %v1956, %v1957
      %v2014 = vsel %vm1985, %v1955, %v1956
      %v2015 = vsel %vm1985, %v1954, %v1955
      %v2016 = vsel %vm1985, %v1953, %v1954
      %v2017 = vsel %vm1985, %v1952, %v1953
      %v2018 = vsel %vm1985, %v1951, %v1952
      %v2019 = vsel %vm1985, %v1950, %v1951
      %v2020 = vsel %vm1985, %v1949, %v1950
      %v2021 = vsel %vm1985, %v1984, %v1949
      %v2022 = vmul.f32 %v1948, %v1748
      %v2023 = vmul.f32 %v1947, %v1749
      %v2024 = vmul.f32 %v1946, %v1750
      %v2025 = vmul.f32 %v1945, %v1751
      %v2026 = vmul.f32 %v1944, %v1752
      %v2027 = vmul.f32 %v1943, %v1753
      %v2028 = vmul.f32 %v1942, %v1754
      %v2029 = vmul.f32 %v1941, %v1755
      %v2030 = vmul.f32 %v1940, %v1756
      %v2031 = vmul.f32 %v1939, %v1757
      %v2032 = vmul.f32 %v1938, %v1758
      %v2033 = vmul.f32 %v1937, %v1759
      %v2034 = vmul.f32 %v1936, %v1760
      %v2035 = vmul.f32 %v1935, %v1761
      %v2036 = vmul.f32 %v1934, %v1762
      %v2037 = vmul.f32 %v1933, %v1763
      %v2038 = vmul.f32 %v1932, %v1764
      %v2039 = vmul.f32 %v1931, %v1765
      %v2040 = vmul.f32 %v1930, %v1766
      %v2041 = vmul.f32 %v1929, %v1767
      %v2042 = vmul.f32 %v1928, %v1768
      %v2043 = vmul.f32 %v1927, %v1769
      %v2044 = vmul.f32 %v1926, %v1770
      %v2045 = vmul.f32 %v1925, %v1771
      %v2046 = vmul.f32 %v1924, %v1772
      %v2047 = vmul.f32 %v1923, %v1773
      %v2048 = vmul.f32 %v1922, %v1774
      %v2049 = vmul.f32 %v1921, %v1775
      %v2050 = vmul.f32 %v1920, %v1776
      %v2051 = vmul.f32 %v1919, %v1777
      %v2052 = vmul.f32 %v1918, %v1778
      %v2053 = vmul.f32 %v1917, %v1779
      %v2054 = vpack.c.bf16 %v2023, %v2022
      %v2055 = vpack.c.bf16 %v2025, %v2024
      %v2056 = vpack.c.bf16 %v2027, %v2026
      %v2057 = vpack.c.bf16 %v2029, %v2028
      %v2058 = vpack.c.bf16 %v2031, %v2030
      %v2059 = vpack.c.bf16 %v2033, %v2032
      %v2060 = vpack.c.bf16 %v2035, %v2034
      %v2061 = vpack.c.bf16 %v2037, %v2036
      %v2062 = vpack.c.bf16 %v2039, %v2038
      %v2063 = vpack.c.bf16 %v2041, %v2040
      %v2064 = vpack.c.bf16 %v2043, %v2042
      %v2065 = vpack.c.bf16 %v2045, %v2044
      %v2066 = vpack.c.bf16 %v2047, %v2046
      %v2067 = vpack.c.bf16 %v2049, %v2048
      %v2068 = vpack.c.bf16 %v2051, %v2050
      %v2069 = vpack.c.bf16 %v2053, %v2052
      %v2070 = vpack.c.bf16 %v1260, %v1259
      %v2071 = vpack.c.bf16 %v1094, %v1093
      %v2072 = vpack.c.bf16 %v1096, %v1095
      %v2073 = vpack.c.bf16 %v1098, %v1097
      %v2074 = vpack.c.bf16 %v1100, %v1099
      %v2075 = vpack.c.bf16 %v1102, %v1101
      %v2076 = vpack.c.bf16 %v1104, %v1103
      %v2077 = vpack.c.bf16 %v1106, %v1105
      %v2078 = vpack.c.bf16 %v1108, %v1107
      %v2079 = vpack.c.bf16 %v1110, %v1109
      %v2080 = vpack.c.bf16 %v1112, %v1111
      %v2081 = vpack.c.bf16 %v1114, %v1113
      %v2082 = vpack.c.bf16 %v1116, %v1115
      %v2083 = vpack.c.bf16 %v1118, %v1117
      %v2084 = vpack.c.bf16 %v1120, %v1119
      %v2085 = vpack.c.bf16 %v1122, %v1121
      %v2086 = vmul.f32 %v2020, %v1844
      %v2087 = vmul.f32 %v2019, %v1845
      %v2088 = vmul.f32 %v2018, %v1846
      %v2089 = vmul.f32 %v2017, %v1847
      %v2090 = vmul.f32 %v2016, %v1848
      %v2091 = vmul.f32 %v2015, %v1849
      %v2092 = vmul.f32 %v2014, %v1850
      %v2093 = vmul.f32 %v2013, %v1851
      %v2094 = vmul.f32 %v2012, %v1852
      %v2095 = vmul.f32 %v2011, %v1853
      %v2096 = vmul.f32 %v2010, %v1854
      %v2097 = vmul.f32 %v2009, %v1855
      %v2098 = vmul.f32 %v2008, %v1856
      %v2099 = vmul.f32 %v2007, %v1857
      %v2100 = vmul.f32 %v2006, %v1858
      %v2101 = vmul.f32 %v2005, %v1859
      %v2102 = vmul.f32 %v2004, %v1860
      %v2103 = vmul.f32 %v2003, %v1861
      %v2104 = vmul.f32 %v2002, %v1862
      %v2105 = vmul.f32 %v2001, %v1863
      %v2106 = vmul.f32 %v2000, %v1864
      %v2107 = vmul.f32 %v1999, %v1865
      %v2108 = vmul.f32 %v1998, %v1866
      %v2109 = vmul.f32 %v1997, %v1867
      %v2110 = vmul.f32 %v1996, %v1868
      %v2111 = vmul.f32 %v1995, %v1869
      %v2112 = vmul.f32 %v1994, %v1870
      %v2113 = vmul.f32 %v1993, %v1871
      %v2114 = vmul.f32 %v1992, %v1872
      %v2115 = vmul.f32 %v1991, %v1873
      %v2116 = vmul.f32 %v1990, %v1874
      %v2117 = vmul.f32 %v1989, %v1875
      %v2118 = vpack.c.bf16 %v2087, %v2086
      %v2119 = vpack.c.bf16 %v2089, %v2088
      %v2120 = vpack.c.bf16 %v2091, %v2090
      %v2121 = vpack.c.bf16 %v2093, %v2092
      %v2122 = vpack.c.bf16 %v2095, %v2094
      %v2123 = vpack.c.bf16 %v2097, %v2096
      %v2124 = vpack.c.bf16 %v2099, %v2098
      %v2125 = vpack.c.bf16 %v2101, %v2100
      %v2126 = vpack.c.bf16 %v2103, %v2102
      %v2127 = vpack.c.bf16 %v2105, %v2104
      %v2128 = vpack.c.bf16 %v2107, %v2106
      %v2129 = vpack.c.bf16 %v2109, %v2108
      %v2130 = vpack.c.bf16 %v2111, %v2110
      %v2131 = vpack.c.bf16 %v2113, %v2112
      %v2132 = vpack.c.bf16 %v2115, %v2114
      %v2133 = vpack.c.bf16 %v2117, %v2116
      %v2134 = vmul.f32 %v1946, %v1748
      %v2135 = vmul.f32 %v1945, %v1749
      %v2136 = vmul.f32 %v1944, %v1750
      %v2137 = vmul.f32 %v1943, %v1751
      %v2138 = vmul.f32 %v1942, %v1752
      %v2139 = vmul.f32 %v1941, %v1753
      %v2140 = vmul.f32 %v1940, %v1754
      %v2141 = vmul.f32 %v1939, %v1755
      %v2142 = vmul.f32 %v1938, %v1756
      %v2143 = vmul.f32 %v1937, %v1757
      %v2144 = vmul.f32 %v1936, %v1758
      %v2145 = vmul.f32 %v1935, %v1759
      %v2146 = vmul.f32 %v1934, %v1760
      %v2147 = vmul.f32 %v1933, %v1761
      %v2148 = vmul.f32 %v1932, %v1762
      %v2149 = vmul.f32 %v1931, %v1763
      %v2150 = vmul.f32 %v1930, %v1764
      %v2151 = vmul.f32 %v1929, %v1765
      %v2152 = vmul.f32 %v1928, %v1766
      %v2153 = vmul.f32 %v1927, %v1767
      %v2154 = vmul.f32 %v1926, %v1768
      %v2155 = vmul.f32 %v1925, %v1769
      %v2156 = vmul.f32 %v1924, %v1770
      %v2157 = vmul.f32 %v1923, %v1771
      %v2158 = vmul.f32 %v1922, %v1772
      %v2159 = vmul.f32 %v1921, %v1773
      %v2160 = vmul.f32 %v1920, %v1774
      %v2161 = vmul.f32 %v1919, %v1775
      %v2162 = vmul.f32 %v1918, %v1776
      %v2163 = vmul.f32 %v1917, %v1777
      %v2164 = vmul.f32 %v1916, %v1778
      %v2165 = vmul.f32 %v1915, %v1779
      %v2166 = vpack.c.bf16 %v2135, %v2134
      %v2167 = vpack.c.bf16 %v2137, %v2136
      %v2168 = vpack.c.bf16 %v2139, %v2138
      %v2169 = vpack.c.bf16 %v2141, %v2140
      %v2170 = vpack.c.bf16 %v2143, %v2142
      %v2171 = vpack.c.bf16 %v2145, %v2144
      %v2172 = vpack.c.bf16 %v2147, %v2146
      %v2173 = vpack.c.bf16 %v2149, %v2148
      %v2174 = vpack.c.bf16 %v2151, %v2150
      %v2175 = vpack.c.bf16 %v2153, %v2152
      %v2176 = vpack.c.bf16 %v2155, %v2154
      %v2177 = vpack.c.bf16 %v2157, %v2156
      %v2178 = vpack.c.bf16 %v2159, %v2158
      %v2179 = vpack.c.bf16 %v2161, %v2160
      %v2180 = vpack.c.bf16 %v2163, %v2162
      %v2181 = vpack.c.bf16 %v2165, %v2164
      %v2182 = vpack.c.bf16 %v1124, %v1123
      %v2183 = vmul.f32 %v2018, %v1844
      %v2184 = vmul.f32 %v2017, %v1845
      %v2185 = vmul.f32 %v2016, %v1846
      %v2186 = vmul.f32 %v2015, %v1847
      %v2187 = vmul.f32 %v2014, %v1848
      %v2188 = vmul.f32 %v2013, %v1849
      %v2189 = vmul.f32 %v2012, %v1850
      %v2190 = vmul.f32 %v2011, %v1851
      %v2191 = vmul.f32 %v2010, %v1852
      %v2192 = vmul.f32 %v2009, %v1853
      %v2193 = vmul.f32 %v2008, %v1854
      %v2194 = vmul.f32 %v2007, %v1855
      %v2195 = vmul.f32 %v2006, %v1856
      %v2196 = vmul.f32 %v2005, %v1857
      %v2197 = vmul.f32 %v2004, %v1858
      %v2198 = vmul.f32 %v2003, %v1859
      %v2199 = vmul.f32 %v2002, %v1860
      %v2200 = vmul.f32 %v2001, %v1861
      %v2201 = vmul.f32 %v2000, %v1862
      %v2202 = vmul.f32 %v1999, %v1863
      %v2203 = vmul.f32 %v1998, %v1864
      %v2204 = vmul.f32 %v1997, %v1865
      %v2205 = vmul.f32 %v1996, %v1866
      %v2206 = vmul.f32 %v1995, %v1867
      %v2207 = vmul.f32 %v1994, %v1868
      %v2208 = vmul.f32 %v1993, %v1869
      %v2209 = vmul.f32 %v1992, %v1870
      %v2210 = vmul.f32 %v1991, %v1871
      %v2211 = vmul.f32 %v1990, %v1872
      %v2212 = vmul.f32 %v1989, %v1873
      %v2213 = vmul.f32 %v1988, %v1874
      %v2214 = vmul.f32 %v1987, %v1875
      %v2215 = vpack.c.bf16 %v2184, %v2183
      %v2216 = vpack.c.bf16 %v2186, %v2185
      %v2217 = vpack.c.bf16 %v2188, %v2187
      %v2218 = vpack.c.bf16 %v2190, %v2189
      %v2219 = vpack.c.bf16 %v2192, %v2191
      %v2220 = vpack.c.bf16 %v2194, %v2193
      %v2221 = vpack.c.bf16 %v2196, %v2195
      %v2222 = vpack.c.bf16 %v2198, %v2197
      %v2223 = vpack.c.bf16 %v2200, %v2199
      %v2224 = vpack.c.bf16 %v2202, %v2201
      %v2225 = vpack.c.bf16 %v2204, %v2203
      %v2226 = vpack.c.bf16 %v2206, %v2205
      %v2227 = vpack.c.bf16 %v2208, %v2207
      %v2228 = vpack.c.bf16 %v2210, %v2209
      %v2229 = vpack.c.bf16 %v2212, %v2211
      %v2230 = vpack.c.bf16 %v2214, %v2213
      %v2231 = vmul.f32 %v1944, %v1748
      %v2232 = vmul.f32 %v1943, %v1749
      %v2233 = vmul.f32 %v1942, %v1750
      %v2234 = vmul.f32 %v1941, %v1751
      %v2235 = vmul.f32 %v1940, %v1752
      %v2236 = vmul.f32 %v1939, %v1753
      %v2237 = vmul.f32 %v1938, %v1754
      %v2238 = vmul.f32 %v1937, %v1755
      %v2239 = vmul.f32 %v1936, %v1756
      %v2240 = vmul.f32 %v1935, %v1757
      %v2241 = vmul.f32 %v1934, %v1758
      %v2242 = vmul.f32 %v1933, %v1759
      %v2243 = vmul.f32 %v1932, %v1760
      %v2244 = vmul.f32 %v1931, %v1761
      %v2245 = vmul.f32 %v1930, %v1762
      %v2246 = vmul.f32 %v1929, %v1763
      %v2247 = vmul.f32 %v1928, %v1764
      %v2248 = vmul.f32 %v1927, %v1765
      %v2249 = vmul.f32 %v1926, %v1766
      %v2250 = vmul.f32 %v1925, %v1767
      %v2251 = vmul.f32 %v1924, %v1768
      %v2252 = vmul.f32 %v1923, %v1769
      %v2253 = vmul.f32 %v1922, %v1770
      %v2254 = vmul.f32 %v1921, %v1771
      %v2255 = vmul.f32 %v1920, %v1772
      %v2256 = vmul.f32 %v1919, %v1773
      %v2257 = vmul.f32 %v1918, %v1774
      %v2258 = vmul.f32 %v1917, %v1775
      %v2259 = vmul.f32 %v1916, %v1776
      %v2260 = vmul.f32 %v1915, %v1777
      %v2261 = vmul.f32 %v1914, %v1778
      %v2262 = vmul.f32 %v1913, %v1779
      %v2263 = vpack.c.bf16 %v2232, %v2231
      %v2264 = vpack.c.bf16 %v2234, %v2233
      %v2265 = vpack.c.bf16 %v2236, %v2235
      %v2266 = vpack.c.bf16 %v2238, %v2237
      %v2267 = vpack.c.bf16 %v2240, %v2239
      %v2268 = vpack.c.bf16 %v2242, %v2241
      %v2269 = vpack.c.bf16 %v2244, %v2243
      %v2270 = vpack.c.bf16 %v2246, %v2245
      %v2271 = vpack.c.bf16 %v2248, %v2247
      %v2272 = vpack.c.bf16 %v2250, %v2249
      %v2273 = vpack.c.bf16 %v2252, %v2251
      %v2274 = vpack.c.bf16 %v2254, %v2253
      %v2275 = vpack.c.bf16 %v2256, %v2255
      %v2276 = vpack.c.bf16 %v2258, %v2257
      %v2277 = vpack.c.bf16 %v2260, %v2259
      %v2278 = vpack.c.bf16 %v2262, %v2261
      %v2279 = vpack.c.bf16 %v1266, %v1265
      %v2280 = vmul.f32 %v2016, %v1844
      %v2281 = vmul.f32 %v2015, %v1845
      %v2282 = vmul.f32 %v2014, %v1846
      %v2283 = vmul.f32 %v2013, %v1847
      %v2284 = vmul.f32 %v2012, %v1848
      %v2285 = vmul.f32 %v2011, %v1849
      %v2286 = vmul.f32 %v2010, %v1850
      %v2287 = vmul.f32 %v2009, %v1851
      %v2288 = vmul.f32 %v2008, %v1852
      %v2289 = vmul.f32 %v2007, %v1853
      %v2290 = vmul.f32 %v2006, %v1854
      %v2291 = vmul.f32 %v2005, %v1855
      %v2292 = vmul.f32 %v2004, %v1856
      %v2293 = vmul.f32 %v2003, %v1857
      %v2294 = vmul.f32 %v2002, %v1858
      %v2295 = vmul.f32 %v2001, %v1859
      %v2296 = vmul.f32 %v2000, %v1860
      %v2297 = vmul.f32 %v1999, %v1861
      %v2298 = vmul.f32 %v1998, %v1862
      %v2299 = vmul.f32 %v1997, %v1863
      %v2300 = vmul.f32 %v1996, %v1864
      %v2301 = vmul.f32 %v1995, %v1865
      %v2302 = vmul.f32 %v1994, %v1866
      %v2303 = vmul.f32 %v1993, %v1867
      %v2304 = vmul.f32 %v1992, %v1868
      %v2305 = vmul.f32 %v1991, %v1869
      %v2306 = vmul.f32 %v1990, %v1870
      %v2307 = vmul.f32 %v1989, %v1871
      %v2308 = vmul.f32 %v1988, %v1872
      %v2309 = vmul.f32 %v1987, %v1873
      %v2310 = vmul.f32 %v1986, %v1874
      %v2311 = vmul.f32 %v2021, %v1875
      %v2312 = vpack.c.bf16 %v2281, %v2280
      %v2313 = vpack.c.bf16 %v2283, %v2282
      %v2314 = vpack.c.bf16 %v2285, %v2284
      %v2315 = vpack.c.bf16 %v2287, %v2286
      %v2316 = vpack.c.bf16 %v2289, %v2288
      %v2317 = vpack.c.bf16 %v2291, %v2290
      %v2318 = vpack.c.bf16 %v2293, %v2292
      %v2319 = vpack.c.bf16 %v2295, %v2294
      %v2320 = vpack.c.bf16 %v2297, %v2296
      %v2321 = vpack.c.bf16 %v2299, %v2298
      %v2322 = vpack.c.bf16 %v2301, %v2300
      %v2323 = vpack.c.bf16 %v2303, %v2302
      %v2324 = vpack.c.bf16 %v2305, %v2304
      %v2325 = vpack.c.bf16 %v2307, %v2306
      %v2326 = vpack.c.bf16 %v2309, %v2308
      %v2327 = vpack.c.bf16 %v2311, %v2310
      %v2328 = vld [vmem:[%s6] sm:$0xf]
      %v2329 = vld [vmem:[%s6 + $0x4] sm:$0xf]
      %v2330 = vld [vmem:[%s6 + $0x8] sm:$0xf]
      %v2331 = vld [vmem:[%s6 + $0xc] sm:$0xf]
      %v2332 = vld [vmem:[%s6 + $0x10] sm:$0xf]
      %v2333 = vld [vmem:[%s6 + $0x14] sm:$0xf]
      %v2334 = vld [vmem:[%s6 + $0x18] sm:$0xf]
      %v2335 = vld [vmem:[%s6 + $0x1c] sm:$0xf]
      %v2336 = vld [vmem:[%s6 + $0x20] sm:$0xf]
      %v2337 = vld [vmem:[%s6 + $0x24] sm:$0xf]
      %v2338 = vld [vmem:[%s6 + $0x28] sm:$0xf]
      %v2339 = vld [vmem:[%s6 + $0x2c] sm:$0xf]
      %v2340 = vld [vmem:[%s6 + $0x30] sm:$0xf]
      %v2341 = vld [vmem:[%s6 + $0x34] sm:$0xf]
      %v2342 = vld [vmem:[%s6 + $0x38] sm:$0xf]
      %v2343 = vld [vmem:[%s6 + $0x3c] sm:$0xf]
      %v2344 = vld [vmem:[%s6 + $0x40] sm:$0xf]
      %v2345 = vld [vmem:[%s6 + $0x44] sm:$0xf]
      %v2346 = vld [vmem:[%s6 + $0x48] sm:$0xf]
      %v2347 = vld [vmem:[%s6 + $0x4c] sm:$0xf]
      %v2348 = vld [vmem:[%s6 + $0x50] sm:$0xf]
      %v2349 = vld [vmem:[%s6 + $0x54] sm:$0xf]
      %v2350 = vld [vmem:[%s6 + $0x58] sm:$0xf]
      %v2351 = vld [vmem:[%s6 + $0x5c] sm:$0xf]
      %v2352 = vld [vmem:[%s6 + $0x60] sm:$0xf]
      %v2353 = vld [vmem:[%s6 + $0x64] sm:$0xf]
      %v2354 = vld [vmem:[%s6 + $0x68] sm:$0xf]
      %v2355 = vld [vmem:[%s6 + $0x6c] sm:$0xf]
      %v2356 = vld [vmem:[%s6 + $0x70] sm:$0xf]
      %v2357 = vld [vmem:[%s6 + $0x74] sm:$0xf]
      %v2358 = vld [vmem:[%s6 + $0x78] sm:$0xf]
      %v2359 = vld [vmem:[%s6 + $0x7c] sm:$0xf]
      %v2360 = vld [vmem:[%s6 + $0x80] sm:$0xf]
      %v2361 = vld [vmem:[%s6 + $0x84] sm:$0xf]
      %v2362 = vld [vmem:[%s6 + $0x88] sm:$0xf]
      %v2363 = vld [vmem:[%s6 + $0x8c] sm:$0xf]
      %v2364 = vld [vmem:[%s6 + $0x90] sm:$0xf]
      %v2365 = vld [vmem:[%s6 + $0x94] sm:$0xf]
      %v2366 = vld [vmem:[%s6 + $0x98] sm:$0xf]
      %v2367 = vld [vmem:[%s6 + $0x9c] sm:$0xf]
      %v2368 = vld [vmem:[%s6 + $0xa0] sm:$0xf]
      %v2369 = vld [vmem:[%s6 + $0xa4] sm:$0xf]
      %v2370 = vld [vmem:[%s6 + $0xa8] sm:$0xf]
      %v2371 = vld [vmem:[%s6 + $0xac] sm:$0xf]
      %v2372 = vld [vmem:[%s6 + $0xb0] sm:$0xf]
      %v2373 = vld [vmem:[%s6 + $0xb4] sm:$0xf]
      %v2374 = vld [vmem:[%s6 + $0xb8] sm:$0xf]
      %v2375 = vld [vmem:[%s6 + $0xbc] sm:$0xf]
      %v2376 = vld [vmem:[%s6 + $0xc0] sm:$0xf]
      %v2377 = vld [vmem:[%s6 + $0xc4] sm:$0xf]
      %v2378 = vld [vmem:[%s6 + $0xc8] sm:$0xf]
      %v2379 = vld [vmem:[%s6 + $0xcc] sm:$0xf]
      %v2380 = vld [vmem:[%s6 + $0xd0] sm:$0xf]
      %v2381 = vld [vmem:[%s6 + $0xd4] sm:$0xf]
      %v2382 = vld [vmem:[%s6 + $0xd8] sm:$0xf]
      %v2383 = vld [vmem:[%s6 + $0xdc] sm:$0xf]
      %v2384 = vld [vmem:[%s6 + $0xe0] sm:$0xf]
      %v2385 = vld [vmem:[%s6 + $0xe4] sm:$0xf]
      %v2386 = vld [vmem:[%s6 + $0xe8] sm:$0xf]
      %v2387 = vld [vmem:[%s6 + $0xec] sm:$0xf]
      %v2388 = vld [vmem:[%s6 + $0xf0] sm:$0xf]
      %v2389 = vld [vmem:[%s6 + $0xf4] sm:$0xf]
      %v2390 = vld [vmem:[%s6 + $0xf8] sm:$0xf]
      %v2391 = vld [vmem:[%s6 + $0xfc] sm:$0xf]
      %v2392 = vld [vmem:[%s6 + $0x100] sm:$0xf]
      %v2393 = vld [vmem:[%s6 + $0x104] sm:$0xf]
      %v2394 = vld [vmem:[%s6 + $0x108] sm:$0xf]
      %v2395 = vld [vmem:[%s6 + $0x10c] sm:$0xf]
      %v2396 = vld [vmem:[%s6 + $0x110] sm:$0xf]
      %v2397 = vld [vmem:[%s6 + $0x114] sm:$0xf]
      %v2398 = vld [vmem:[%s6 + $0x118] sm:$0xf]
      %v2399 = vld [vmem:[%s6 + $0x11c] sm:$0xf]
      %v2400 = vld [vmem:[%s6 + $0x120] sm:$0xf]
      %v2401 = vld [vmem:[%s6 + $0x124] sm:$0xf]
      %v2402 = vld [vmem:[%s6 + $0x128] sm:$0xf]
      %v2403 = vld [vmem:[%s6 + $0x12c] sm:$0xf]
      %v2404 = vld [vmem:[%s6 + $0x130] sm:$0xf]
      %v2405 = vld [vmem:[%s6 + $0x134] sm:$0xf]
      %v2406 = vld [vmem:[%s6 + $0x138] sm:$0xf]
      %v2407 = vld [vmem:[%s6 + $0x13c] sm:$0xf]
      %v2408 = vld [vmem:[%s6 + $0x140] sm:$0xf]
      %v2409 = vld [vmem:[%s6 + $0x144] sm:$0xf]
      %v2410 = vld [vmem:[%s6 + $0x148] sm:$0xf]
      %v2411 = vld [vmem:[%s6 + $0x14c] sm:$0xf]
      %v2412 = vld [vmem:[%s6 + $0x150] sm:$0xf]
      %v2413 = vld [vmem:[%s6 + $0x154] sm:$0xf]
      %v2414 = vld [vmem:[%s6 + $0x158] sm:$0xf]
      %v2415 = vld [vmem:[%s6 + $0x15c] sm:$0xf]
      %v2416 = vld [vmem:[%s6 + $0x160] sm:$0xf]
      %v2417 = vld [vmem:[%s6 + $0x164] sm:$0xf]
      %v2418 = vld [vmem:[%s6 + $0x168] sm:$0xf]
      %v2419 = vld [vmem:[%s6 + $0x16c] sm:$0xf]
      %v2420 = vld [vmem:[%s6 + $0x170] sm:$0xf]
      %v2421 = vld [vmem:[%s6 + $0x174] sm:$0xf]
      %v2422 = vld [vmem:[%s6 + $0x178] sm:$0xf]
      %v2423 = vld [vmem:[%s6 + $0x17c] sm:$0xf]
      %v2424 = vld [vmem:[%s6 + $0x180] sm:$0xf]
      %v2425 = vld [vmem:[%s6 + $0x184] sm:$0xf]
      %v2426 = vld [vmem:[%s6 + $0x188] sm:$0xf]
      %v2427 = vld [vmem:[%s6 + $0x18c] sm:$0xf]
      %v2428 = vld [vmem:[%s6 + $0x190] sm:$0xf]
      %v2429 = vld [vmem:[%s6 + $0x194] sm:$0xf]
      %v2430 = vld [vmem:[%s6 + $0x198] sm:$0xf]
      %v2431 = vld [vmem:[%s6 + $0x19c] sm:$0xf]
      %v2432 = vld [vmem:[%s6 + $0x1a0] sm:$0xf]
      %v2433 = vld [vmem:[%s6 + $0x1a4] sm:$0xf]
      %v2434 = vld [vmem:[%s6 + $0x1a8] sm:$0xf]
      %v2435 = vld [vmem:[%s6 + $0x1ac] sm:$0xf]
      %v2436 = vld [vmem:[%s6 + $0x1b0] sm:$0xf]
      %v2437 = vld [vmem:[%s6 + $0x1b4] sm:$0xf]
      %v2438 = vld [vmem:[%s6 + $0x1b8] sm:$0xf]
      %v2439 = vld [vmem:[%s6 + $0x1bc] sm:$0xf]
      %v2440 = vld [vmem:[%s6 + $0x1c0] sm:$0xf]
      %v2441 = vld [vmem:[%s6 + $0x1c4] sm:$0xf]
      %v2442 = vld [vmem:[%s6 + $0x1c8] sm:$0xf]
      %v2443 = vld [vmem:[%s6 + $0x1cc] sm:$0xf]
      %v2444 = vld [vmem:[%s6 + $0x1d0] sm:$0xf]
      %v2445 = vld [vmem:[%s6 + $0x1d4] sm:$0xf]
      %v2446 = vld [vmem:[%s6 + $0x1d8] sm:$0xf]
      %v2447 = vld [vmem:[%s6 + $0x1dc] sm:$0xf]
      %v2448 = vld [vmem:[%s6 + $0x1e0] sm:$0xf]
      %v2449 = vld [vmem:[%s6 + $0x1e4] sm:$0xf]
      %v2450 = vld [vmem:[%s6 + $0x1e8] sm:$0xf]
      %v2451 = vld [vmem:[%s6 + $0x1ec] sm:$0xf]
      %v2452 = vld [vmem:[%s6 + $0x1f0] sm:$0xf]
      %v2453 = vld [vmem:[%s6 + $0x1f4] sm:$0xf]
      %v2454 = vld [vmem:[%s6 + $0x1f8] sm:$0xf]
      %v2455 = vld [vmem:[%s6 + $0x1fc] sm:$0xf]
      %v2456 = vld [vmem:[%s6 + $0x200] sm:$0xf]
      %v2457 = vld [vmem:[%s6 + $0x204] sm:$0xf]
      %v2458 = vld [vmem:[%s6 + $0x208] sm:$0xf]
      %v2459 = vld [vmem:[%s6 + $0x20c] sm:$0xf]
      %v2460 = vld [vmem:[%s6 + $0x210] sm:$0xf]
      %v2461 = vld [vmem:[%s6 + $0x214] sm:$0xf]
      %v2462 = vld [vmem:[%s6 + $0x218] sm:$0xf]
      %v2463 = vld [vmem:[%s6 + $0x21c] sm:$0xf]
      %v2464 = vld [vmem:[%s6 + $0x220] sm:$0xf]
      %v2465 = vld [vmem:[%s6 + $0x224] sm:$0xf]
      %v2466 = vld [vmem:[%s6 + $0x228] sm:$0xf]
      %v2467 = vld [vmem:[%s6 + $0x22c] sm:$0xf]
      %v2468 = vld [vmem:[%s6 + $0x230] sm:$0xf]
      %v2469 = vld [vmem:[%s6 + $0x234] sm:$0xf]
      %v2470 = vld [vmem:[%s6 + $0x238] sm:$0xf]
      %v2471 = vld [vmem:[%s6 + $0x23c] sm:$0xf]
      %v2616 = vunpack.c.l.b16 %v2328
      %v2617 = vunpack.c.l.b16 %v2329
      %v2618 = vunpack.c.l.b16 %v2330
      %v2619 = vunpack.c.l.b16 %v2331
      %v2620 = vunpack.c.l.b16 %v2332
      %v2621 = vunpack.c.l.b16 %v2333
      %v2622 = vunpack.c.l.b16 %v2334
      %v2623 = vunpack.c.l.b16 %v2335
      %v2624 = vunpack.c.l.b16 %v2336
      %v2625 = vunpack.c.l.b16 %v2337
      %v2626 = vunpack.c.l.b16 %v2338
      %v2627 = vunpack.c.l.b16 %v2339
      %v2628 = vunpack.c.l.b16 %v2340
      %v2629 = vunpack.c.l.b16 %v2341
      %v2630 = vunpack.c.l.b16 %v2342
      %v2631 = vunpack.c.l.b16 %v2343
      %v2632 = vunpack.c.l.b16 %v2344
      %v2633 = vunpack.c.l.b16 %v2345
      %v2634 = vunpack.c.l.b16 %v2346
      %v2635 = vunpack.c.l.b16 %v2347
      %v2636 = vunpack.c.l.b16 %v2348
      %v2637 = vunpack.c.l.b16 %v2349
      %v2638 = vunpack.c.l.b16 %v2350
      %v2639 = vunpack.c.l.b16 %v2351
      %v2640 = vunpack.c.l.b16 %v2352
      %v2641 = vunpack.c.l.b16 %v2353
      %v2642 = vunpack.c.l.b16 %v2354
      %v2643 = vunpack.c.l.b16 %v2355
      %v2644 = vunpack.c.l.b16 %v2356
      %v2645 = vunpack.c.l.b16 %v2357
      %v2646 = vunpack.c.l.b16 %v2358
      %v2647 = vunpack.c.l.b16 %v2359
      %v2648 = vunpack.c.l.b16 %v2360
      %v2649 = vunpack.c.l.b16 %v2361
      %v2650 = vunpack.c.l.b16 %v2362
      %v2651 = vunpack.c.l.b16 %v2363
      %v2652 = vunpack.c.l.b16 %v2364
      %v2653 = vunpack.c.l.b16 %v2365
      %v2654 = vunpack.c.l.b16 %v2366
      %v2655 = vunpack.c.l.b16 %v2367
      %v2656 = vunpack.c.l.b16 %v2368
      %v2657 = vunpack.c.l.b16 %v2369
      %v2658 = vunpack.c.l.b16 %v2370
      %v2659 = vunpack.c.l.b16 %v2371
      %v2660 = vunpack.c.l.b16 %v2372
      %v2661 = vunpack.c.l.b16 %v2373
      %v2662 = vunpack.c.l.b16 %v2374
      %v2663 = vunpack.c.l.b16 %v2375
      %v2664 = vunpack.c.l.b16 %v2376
      %v2665 = vunpack.c.l.b16 %v2377
      %v2666 = vunpack.c.l.b16 %v2378
      %v2667 = vunpack.c.l.b16 %v2379
      %v2668 = vunpack.c.l.b16 %v2380
      %v2669 = vunpack.c.l.b16 %v2381
      %v2670 = vunpack.c.l.b16 %v2382
      %v2671 = vunpack.c.l.b16 %v2383
      %v2672 = vunpack.c.l.b16 %v2384
      %v2673 = vunpack.c.l.b16 %v2385
      %v2674 = vunpack.c.l.b16 %v2386
      %v2675 = vunpack.c.l.b16 %v2387
      %v2676 = vunpack.c.l.b16 %v2388
      %v2677 = vunpack.c.l.b16 %v2389
      %v2678 = vunpack.c.l.b16 %v2390
      %v2679 = vunpack.c.l.b16 %v2391
      %v2680 = vunpack.c.l.b16 %v2392
      %v2681 = vunpack.c.l.b16 %v2393
      %v2682 = vunpack.c.l.b16 %v2394
      %v2683 = vunpack.c.l.b16 %v2395
      %v2684 = vunpack.c.l.b16 %v2396
      %v2685 = vunpack.c.l.b16 %v2397
      %v2686 = vunpack.c.l.b16 %v2398
      %v2687 = vunpack.c.l.b16 %v2399
      %v2688 = vunpack.c.l.b16 %v2400
      %v2689 = vunpack.c.l.b16 %v2401
      %v2690 = vunpack.c.l.b16 %v2402
      %v2691 = vunpack.c.l.b16 %v2403
      %v2692 = vunpack.c.l.b16 %v2404
      %v2693 = vunpack.c.l.b16 %v2405
      %v2694 = vunpack.c.l.b16 %v2406
      %v2695 = vunpack.c.l.b16 %v2407
      %v2696 = vunpack.c.l.b16 %v2408
      %v2697 = vunpack.c.l.b16 %v2409
      %v2698 = vunpack.c.l.b16 %v2410
      %v2699 = vunpack.c.l.b16 %v2411
      %v2700 = vunpack.c.l.b16 %v2412
      %v2701 = vunpack.c.l.b16 %v2413
      %v2702 = vunpack.c.l.b16 %v2414
      %v2703 = vunpack.c.l.b16 %v2415
      %v2704 = vunpack.c.l.b16 %v2416
      %v2705 = vunpack.c.l.b16 %v2417
      %v2706 = vunpack.c.l.b16 %v2418
      %v2707 = vunpack.c.l.b16 %v2419
      %v2708 = vunpack.c.l.b16 %v2420
      %v2709 = vunpack.c.l.b16 %v2421
      %v2710 = vunpack.c.l.b16 %v2422
      %v2711 = vunpack.c.l.b16 %v2423
      %v2712 = vunpack.c.l.b16 %v2424
      %v2713 = vunpack.c.l.b16 %v2425
      %v2714 = vunpack.c.l.b16 %v2426
      %v2715 = vunpack.c.l.b16 %v2427
      %v2716 = vunpack.c.l.b16 %v2428
      %v2717 = vunpack.c.l.b16 %v2429
      %v2718 = vunpack.c.l.b16 %v2430
      %v2719 = vunpack.c.l.b16 %v2431
      %v2720 = vunpack.c.l.b16 %v2432
      %v2721 = vunpack.c.l.b16 %v2433
      %v2722 = vunpack.c.l.b16 %v2434
      %v2723 = vunpack.c.l.b16 %v2435
      %v2724 = vunpack.c.l.b16 %v2436
      %v2725 = vunpack.c.l.b16 %v2437
      %v2726 = vunpack.c.l.b16 %v2438
      %v2727 = vunpack.c.l.b16 %v2439
      %v2728 = vunpack.c.l.b16 %v2440
      %v2729 = vunpack.c.l.b16 %v2441
      %v2730 = vunpack.c.l.b16 %v2442
      %v2731 = vunpack.c.l.b16 %v2443
      %v2732 = vunpack.c.l.b16 %v2444
      %v2733 = vunpack.c.l.b16 %v2445
      %v2734 = vunpack.c.l.b16 %v2446
      %v2735 = vunpack.c.l.b16 %v2447
      %v2736 = vunpack.c.l.b16 %v2448
      %v2737 = vunpack.c.l.b16 %v2449
      %v2738 = vunpack.c.l.b16 %v2450
      %v2739 = vunpack.c.l.b16 %v2451
      %v2740 = vunpack.c.l.b16 %v2452
      %v2741 = vunpack.c.l.b16 %v2453
      %v2742 = vunpack.c.l.b16 %v2454
      %v2743 = vunpack.c.l.b16 %v2455
      %v2744 = vunpack.c.l.b16 %v2456
      %v2745 = vunpack.c.l.b16 %v2457
      %v2746 = vunpack.c.l.b16 %v2458
      %v2747 = vunpack.c.l.b16 %v2459
      %v2748 = vunpack.c.l.b16 %v2460
      %v2749 = vunpack.c.l.b16 %v2461
      %v2750 = vunpack.c.l.b16 %v2462
      %v2751 = vunpack.c.l.b16 %v2463
      %v2752 = vunpack.c.l.b16 %v2464
      %v2753 = vunpack.c.l.b16 %v2465
      %v2754 = vunpack.c.l.b16 %v2466
      %v2755 = vunpack.c.l.b16 %v2467
      %v2756 = vunpack.c.l.b16 %v2468
      %v2757 = vunpack.c.l.b16 %v2469
      %v2758 = vunpack.c.l.b16 %v2470
      %v2759 = vunpack.c.l.b16 %v2471
      %v2760 = vpack.c.b16 %v2617, %v2616
      %v2761 = vpack.c.b16 %v2619, %v2618
      %v2762 = vpack.c.b16 %v2621, %v2620
      %v2763 = vpack.c.b16 %v2623, %v2622
      %v2764 = vpack.c.b16 %v2625, %v2624
      %v2765 = vpack.c.b16 %v2627, %v2626
      %v2766 = vpack.c.b16 %v2629, %v2628
      %v2767 = vpack.c.b16 %v2631, %v2630
      %v2768 = vpack.c.b16 %v2633, %v2632
      %v2769 = vpack.c.b16 %v2635, %v2634
      %v2770 = vpack.c.b16 %v2637, %v2636
      %v2771 = vpack.c.b16 %v2639, %v2638
      %v2772 = vpack.c.b16 %v2641, %v2640
      %v2773 = vpack.c.b16 %v2643, %v2642
      %v2774 = vpack.c.b16 %v2645, %v2644
      %v2775 = vpack.c.b16 %v2647, %v2646
      %v2776 = vpack.c.b16 %v2649, %v2648
      %v2777 = vpack.c.b16 %v2651, %v2650
      %v2778 = vpack.c.b16 %v2653, %v2652
      %v2779 = vpack.c.b16 %v2655, %v2654
      %v2780 = vpack.c.b16 %v2657, %v2656
      %v2781 = vpack.c.b16 %v2659, %v2658
      %v2782 = vpack.c.b16 %v2661, %v2660
      %v2783 = vpack.c.b16 %v2663, %v2662
      %v2784 = vpack.c.b16 %v2665, %v2664
      %v2785 = vpack.c.b16 %v2667, %v2666
      %v2786 = vpack.c.b16 %v2669, %v2668
      %v2787 = vpack.c.b16 %v2671, %v2670
      %v2788 = vpack.c.b16 %v2673, %v2672
      %v2789 = vpack.c.b16 %v2675, %v2674
      %v2790 = vpack.c.b16 %v2677, %v2676
      %v2791 = vpack.c.b16 %v2679, %v2678
      %v2792 = vpack.c.b16 %v2681, %v2680
      %v2793 = vpack.c.b16 %v2683, %v2682
      %v2794 = vpack.c.b16 %v2685, %v2684
      %v2795 = vpack.c.b16 %v2687, %v2686
      %v2796 = vpack.c.b16 %v2689, %v2688
      %v2797 = vpack.c.b16 %v2691, %v2690
      %v2798 = vpack.c.b16 %v2693, %v2692
      %v2799 = vpack.c.b16 %v2695, %v2694
      %v2800 = vpack.c.b16 %v2697, %v2696
      %v2801 = vpack.c.b16 %v2699, %v2698
      %v2802 = vpack.c.b16 %v2701, %v2700
      %v2803 = vpack.c.b16 %v2703, %v2702
      %v2804 = vpack.c.b16 %v2705, %v2704
      %v2805 = vpack.c.b16 %v2707, %v2706
      %v2806 = vpack.c.b16 %v2709, %v2708
      %v2807 = vpack.c.b16 %v2711, %v2710
      %v2808 = vpack.c.b16 %v2713, %v2712
      %v2809 = vpack.c.b16 %v2715, %v2714
      %v2810 = vpack.c.b16 %v2717, %v2716
      %v2811 = vpack.c.b16 %v2719, %v2718
      %v2812 = vpack.c.b16 %v2721, %v2720
      %v2813 = vpack.c.b16 %v2723, %v2722
      %v2814 = vpack.c.b16 %v2725, %v2724
      %v2815 = vpack.c.b16 %v2727, %v2726
      %v2816 = vpack.c.b16 %v2729, %v2728
      %v2817 = vpack.c.b16 %v2731, %v2730
      %v2818 = vpack.c.b16 %v2733, %v2732
      %v2819 = vpack.c.b16 %v2735, %v2734
      %v2820 = vpack.c.b16 %v2737, %v2736
      %v2821 = vpack.c.b16 %v2739, %v2738
      %v2822 = vpack.c.b16 %v2741, %v2740
      %v2823 = vpack.c.b16 %v2743, %v2742
      %v2824 = vpack.c.b16 %v2745, %v2744
      %v2825 = vpack.c.b16 %v2747, %v2746
      %v2826 = vpack.c.b16 %v2749, %v2748
      %v2827 = vpack.c.b16 %v2751, %v2750
      %v2828 = vpack.c.b16 %v2753, %v2752
      %v2829 = vpack.c.b16 %v2755, %v2754
      %v2830 = vpack.c.b16 %v2757, %v2756
      %v2831 = vpack.c.b16 %v2759, %v2758
      %2904 = vmatprep.subr.bf16.mxu0 0
      %2905 = vmatpush1.bf16.msra.mxu0 %v2760
      %2906 = vmatprep.subr.bf16.mxu0 0
      %2907 = vmatpush1.bf16.msra.mxu0 %v2761
      %2908 = vmatprep.subr.bf16.mxu0 0
      %2909 = vmatpush1.bf16.msra.mxu0 %v2762
      %2910 = vmatprep.subr.bf16.mxu0 0
      %2911 = vmatpush1.bf16.msra.mxu0 %v2763
      %2912 = vmatprep.subr.bf16.mxu0 0
      %2913 = vmatpush1.bf16.msra.mxu0 %v2764
      %2914 = vmatprep.subr.bf16.mxu0 0
      %2915 = vmatpush1.bf16.msra.mxu0 %v2765
      %2916 = vmatprep.subr.bf16.mxu0 0
      %2917 = vmatpush1.bf16.msra.mxu0 %v2766
      %2918 = vmatprep.subr.bf16.mxu0 0
      %2919 = vmatpush1.bf16.msra.mxu0 %v2767
      %2920 = vmatprep.subr.bf16.mxu0 0
      %2921 = vmatpush1.bf16.msra.mxu0 %v2768
      %2922 = vmatprep.subr.bf16.mxu0 0
      %2923 = vmatpush1.bf16.msra.mxu0 %v2769
      %2924 = vmatprep.subr.bf16.mxu0 0
      %2925 = vmatpush1.bf16.msra.mxu0 %v2770
      %2926 = vmatprep.subr.bf16.mxu0 0
      %2927 = vmatpush1.bf16.msra.mxu0 %v2771
      %2928 = vmatprep.subr.bf16.mxu0 0
      %2929 = vmatpush1.bf16.msra.mxu0 %v2772
      %2930 = vmatprep.subr.bf16.mxu0 0
      %2931 = vmatpush1.bf16.msra.mxu0 %v2773
      %2932 = vmatprep.subr.bf16.mxu0 0
      %2933 = vmatpush1.bf16.msra.mxu0 %v2774
      %2934 = vmatprep.subr.bf16.mxu0 0
      %2935 = vmatpush1.bf16.msra.mxu0 %v2775
      %2936 = vmatprep.mubr.bf16.mxu0 %v2070
      %2937 = vmatmul.mubr.bf16.gmra.mrb[0].mxu0 %v2054
      %v2938 = vpop.f32.mrb[0].mxu0
      %v2939 = vadd.f32 0.0, %v2938
      %v2940 = vpop.f32.mrb[0].mxu0
      %v2941 = vpop.f32.mrb[0].mxu0
      %v2942 = vadd.f32 0.0, %v2941
      %v2943 = vpop.f32.mrb[0].mxu0
      %2944 = vmatprep.mubr.bf16.mxu0 %v2071
      %2945 = vmatmul.mubr.bf16.gmra.mrb[0].mxu0 %v2055
      %v2946 = vpop.f32.mrb[0].mxu0
      %v2947 = vadd.f32 0.0, %v2946
      %v2948 = vpop.f32.mrb[0].mxu0
      %v2949 = vpop.f32.mrb[0].mxu0
      %v2950 = vadd.f32 0.0, %v2949
      %v2951 = vpop.f32.mrb[0].mxu0
      %2952 = vmatprep.mubr.bf16.mxu0 %v2072
      %2953 = vmatmul.mubr.bf16.gmra.mrb[0].mxu0 %v2056
      %v2954 = vpop.f32.mrb[0].mxu0
      %v2955 = vadd.f32 0.0, %v2954
      %v2956 = vpop.f32.mrb[0].mxu0
      %v2957 = vpop.f32.mrb[0].mxu0
      %v2958 = vadd.f32 0.0, %v2957
      %v2959 = vpop.f32.mrb[0].mxu0
      %2960 = vmatprep.mubr.bf16.mxu0 %v2073
      %2961 = vmatmul.mubr.bf16.gmra.mrb[0].mxu0 %v2057
      %v2962 = vpop.f32.mrb[0].mxu0
      %v2963 = vadd.f32 0.0, %v2962
      %v2964 = vpop.f32.mrb[0].mxu0
      %v2965 = vpop.f32.mrb[0].mxu0
      %v2966 = vadd.f32 0.0, %v2965
      %v2967 = vpop.f32.mrb[0].mxu0
      %2968 = vmatprep.mubr.bf16.mxu0 %v2074
      %2969 = vmatmul.mubr.bf16.gmra.mrb[0].mxu0 %v2058
      %v2970 = vpop.f32.mrb[0].mxu0
      %v2971 = vadd.f32 0.0, %v2970
      %v2972 = vpop.f32.mrb[0].mxu0
      %v2973 = vpop.f32.mrb[0].mxu0
      %v2974 = vadd.f32 0.0, %v2973
      %v2975 = vpop.f32.mrb[0].mxu0
      %2976 = vmatprep.mubr.bf16.mxu0 %v2075
      %2977 = vmatmul.mubr.bf16.gmra.mrb[0].mxu0 %v2059
      %v2978 = vpop.f32.mrb[0].mxu0
      %v2979 = vadd.f32 0.0, %v2978
      %v2980 = vpop.f32.mrb[0].mxu0
      %v2981 = vpop.f32.mrb[0].mxu0
      %v2982 = vadd.f32 0.0, %v2981
      %v2983 = vpop.f32.mrb[0].mxu0
      %2984 = vmatprep.mubr.bf16.mxu0 %v2076
      %2985 = vmatmul.mubr.bf16.gmra.mrb[0].mxu0 %v2060
      %v2986 = vpop.f32.mrb[0].mxu0
      %v2987 = vadd.f32 0.0, %v2986
      %v2988 = vpop.f32.mrb[0].mxu0
      %v2989 = vpop.f32.mrb[0].mxu0
      %v2990 = vadd.f32 0.0, %v2989
      %v2991 = vpop.f32.mrb[0].mxu0
      %2992 = vmatprep.mubr.bf16.mxu0 %v2077
      %2993 = vmatmul.mubr.bf16.gmra.mrb[0].mxu0 %v2061
      %v2994 = vpop.f32.mrb[0].mxu0
      %v2995 = vadd.f32 0.0, %v2994
      %v2996 = vpop.f32.mrb[0].mxu0
      %v2997 = vpop.f32.mrb[0].mxu0
      %v2998 = vadd.f32 0.0, %v2997
      %v2999 = vpop.f32.mrb[0].mxu0
      %3000 = vmatprep.mubr.bf16.mxu0 %v2078
      %3001 = vmatmul.mubr.bf16.gmra.mrb[0].mxu0 %v2062
      %v3002 = vpop.f32.mrb[0].mxu0
      %v3003 = vadd.f32 0.0, %v3002
      %v3004 = vpop.f32.mrb[0].mxu0
      %v3005 = vpop.f32.mrb[0].mxu0
      %v3006 = vadd.f32 0.0, %v3005
      %v3007 = vpop.f32.mrb[0].mxu0
      %3008 = vmatprep.mubr.bf16.mxu0 %v2079
      %3009 = vmatmul.mubr.bf16.gmra.mrb[0].mxu0 %v2063
      %v3010 = vpop.f32.mrb[0].mxu0
      %v3011 = vadd.f32 0.0, %v3010
      %v3012 = vpop.f32.mrb[0].mxu0
      %v3013 = vpop.f32.mrb[0].mxu0
      %v3014 = vadd.f32 0.0, %v3013
      %v3015 = vpop.f32.mrb[0].mxu0
      %3016 = vmatprep.mubr.bf16.mxu0 %v2080
      %3017 = vmatmul.mubr.bf16.gmra.mrb[0].mxu0 %v2064
      %v3018 = vpop.f32.mrb[0].mxu0
      %v3019 = vadd.f32 0.0, %v3018
      %v3020 = vpop.f32.mrb[0].mxu0
      %v3021 = vpop.f32.mrb[0].mxu0
      %v3022 = vadd.f32 0.0, %v3021
      %v3023 = vpop.f32.mrb[0].mxu0
      %3024 = vmatprep.mubr.bf16.mxu0 %v2081
      %3025 = vmatmul.mubr.bf16.gmra.mrb[0].mxu0 %v2065
      %v3026 = vpop.f32.mrb[0].mxu0
      %v3027 = vadd.f32 0.0, %v3026
      %v3028 = vpop.f32.mrb[0].mxu0
      %v3029 = vpop.f32.mrb[0].mxu0
      %v3030 = vadd.f32 0.0, %v3029
      %v3031 = vpop.f32.mrb[0].mxu0
      %3032 = vmatprep.mubr.bf16.mxu0 %v2082
      %3033 = vmatmul.mubr.bf16.gmra.mrb[0].mxu0 %v2066
      %v3034 = vpop.f32.mrb[0].mxu0
      %v3035 = vadd.f32 0.0, %v3034
      %v3036 = vpop.f32.mrb[0].mxu0
      %v3037 = vpop.f32.mrb[0].mxu0
      %v3038 = vadd.f32 0.0, %v3037
      %v3039 = vpop.f32.mrb[0].mxu0
      %3040 = vmatprep.mubr.bf16.mxu0 %v2083
      %3041 = vmatmul.mubr.bf16.gmra.mrb[0].mxu0 %v2067
      %v3042 = vpop.f32.mrb[0].mxu0
      %v3043 = vadd.f32 0.0, %v3042
      %v3044 = vpop.f32.mrb[0].mxu0
      %v3045 = vpop.f32.mrb[0].mxu0
      %v3046 = vadd.f32 0.0, %v3045
      %v3047 = vpop.f32.mrb[0].mxu0
      %3048 = vmatprep.mubr.bf16.mxu0 %v2084
      %3049 = vmatmul.mubr.bf16.gmra.mrb[0].mxu0 %v2068
      %v3050 = vpop.f32.mrb[0].mxu0
      %v3051 = vadd.f32 0.0, %v3050
      %v3052 = vpop.f32.mrb[0].mxu0
      %v3053 = vpop.f32.mrb[0].mxu0
      %v3054 = vadd.f32 0.0, %v3053
      %v3055 = vpop.f32.mrb[0].mxu0
      %3056 = vmatprep.mubr.bf16.mxu0 %v2085
      %3057 = vmatmul.mubr.bf16.gmra.mrb[0].mxu0 %v2069
      %v3058 = vpop.f32.mrb[0].mxu0
      %v3059 = vadd.f32 0.0, %v3058
      %v3060 = vpop.f32.mrb[0].mxu0
      %v3061 = vpop.f32.mrb[0].mxu0
      %v3062 = vadd.f32 0.0, %v3061
      %v3063 = vpop.f32.mrb[0].mxu0
      %3064 = vdwg.mxu0
      %3065 = vmatprep.subr.bf16.mxu0 0
      %3066 = vmatpush1.bf16.msra.mxu0 %v2776
      %3067 = vmatprep.subr.bf16.mxu0 0
      %3068 = vmatpush1.bf16.msra.mxu0 %v2777
      %3069 = vmatprep.subr.bf16.mxu0 0
      %3070 = vmatpush1.bf16.msra.mxu0 %v2778
      %3071 = vmatprep.subr.bf16.mxu0 0
      %3072 = vmatpush1.bf16.msra.mxu0 %v2779
      %3073 = vmatprep.subr.bf16.mxu0 0
      %3074 = vmatpush1.bf16.msra.mxu0 %v2780
      %3075 = vmatprep.subr.bf16.mxu0 0
      %3076 = vmatpush1.bf16.msra.mxu0 %v2781
      %3077 = vmatprep.subr.bf16.mxu0 0
      %3078 = vmatpush1.bf16.msra.mxu0 %v2782
      %3079 = vmatprep.subr.bf16.mxu0 0
      %3080 = vmatpush1.bf16.msra.mxu0 %v2783
      %3081 = vmatprep.subr.bf16.mxu0 0
      %3082 = vmatpush1.bf16.msra.mxu0 %v2784
      %3083 = vmatprep.subr.bf16.mxu0 0
      %3084 = vmatpush1.bf16.msra.mxu0 %v2785
      %3085 = vmatprep.subr.bf16.mxu0 0
      %3086 = vmatpush1.bf16.msra.mxu0 %v2786
      %3087 = vmatprep.subr.bf16.mxu0 0
      %3088 = vmatpush1.bf16.msra.mxu0 %v2787
      %3089 = vmatprep.subr.bf16.mxu0 0
      %3090 = vmatpush1.bf16.msra.mxu0 %v2788
      %3091 = vmatprep.subr.bf16.mxu0 0
      %3092 = vmatpush1.bf16.msra.mxu0 %v2789
      %3093 = vmatprep.subr.bf16.mxu0 0
      %3094 = vmatpush1.bf16.msra.mxu0 %v2790
      %3095 = vmatprep.subr.bf16.mxu0 0
      %3096 = vmatpush1.bf16.msra.mxu0 %v2791
      %3097 = vmatprep.mubr.bf16.mxu0 %v2166
      %3098 = vmatmul.mubr.bf16.gmra.mrb[0].mxu0 %v2118
      %v3099 = vpop.f32.mrb[0].mxu0
      %v3100 = vadd.f32 %v2939, %v3099
      %v3101 = vpop.f32.mrb[0].mxu0
      %v3102 = vpop.f32.mrb[0].mxu0
      %v3103 = vadd.f32 %v2942, %v3102
      %v3104 = vpop.f32.mrb[0].mxu0
      %3105 = vmatprep.mubr.bf16.mxu0 %v2167
      %3106 = vmatmul.mubr.bf16.gmra.mrb[0].mxu0 %v2119
      %v3107 = vpop.f32.mrb[0].mxu0
      %v3108 = vadd.f32 %v2947, %v3107
      %v3109 = vpop.f32.mrb[0].mxu0
      %v3110 = vpop.f32.mrb[0].mxu0
      %v3111 = vadd.f32 %v2950, %v3110
      %v3112 = vpop.f32.mrb[0].mxu0
      %3113 = vmatprep.mubr.bf16.mxu0 %v2168
      %3114 = vmatmul.mubr.bf16.gmra.mrb[0].mxu0 %v2120
      %v3115 = vpop.f32.mrb[0].mxu0
      %v3116 = vadd.f32 %v2955, %v3115
      %v3117 = vpop.f32.mrb[0].mxu0
      %v3118 = vpop.f32.mrb[0].mxu0
      %v3119 = vadd.f32 %v2958, %v3118
      %v3120 = vpop.f32.mrb[0].mxu0
      %3121 = vmatprep.mubr.bf16.mxu0 %v2169
      %3122 = vmatmul.mubr.bf16.gmra.mrb[0].mxu0 %v2121
      %v3123 = vpop.f32.mrb[0].mxu0
      %v3124 = vadd.f32 %v2963, %v3123
      %v3125 = vpop.f32.mrb[0].mxu0
      %v3126 = vpop.f32.mrb[0].mxu0
      %v3127 = vadd.f32 %v2966, %v3126
      %v3128 = vpop.f32.mrb[0].mxu0
      %3129 = vmatprep.mubr.bf16.mxu0 %v2170
      %3130 = vmatmul.mubr.bf16.gmra.mrb[0].mxu0 %v2122
      %v3131 = vpop.f32.mrb[0].mxu0
      %v3132 = vadd.f32 %v2971, %v3131
      %v3133 = vpop.f32.mrb[0].mxu0
      %v3134 = vpop.f32.mrb[0].mxu0
      %v3135 = vadd.f32 %v2974, %v3134
      %v3136 = vpop.f32.mrb[0].mxu0
      %3137 = vmatprep.mubr.bf16.mxu0 %v2171
      %3138 = vmatmul.mubr.bf16.gmra.mrb[0].mxu0 %v2123
      %v3139 = vpop.f32.mrb[0].mxu0
      %v3140 = vadd.f32 %v2979, %v3139
      %v3141 = vpop.f32.mrb[0].mxu0
      %v3142 = vpop.f32.mrb[0].mxu0
      %v3143 = vadd.f32 %v2982, %v3142
      %v3144 = vpop.f32.mrb[0].mxu0
      %3145 = vmatprep.mubr.bf16.mxu0 %v2172
      %3146 = vmatmul.mubr.bf16.gmra.mrb[0].mxu0 %v2124
      %v3147 = vpop.f32.mrb[0].mxu0
      %v3148 = vadd.f32 %v2987, %v3147
      %v3149 = vpop.f32.mrb[0].mxu0
      %v3150 = vpop.f32.mrb[0].mxu0
      %v3151 = vadd.f32 %v2990, %v3150
      %v3152 = vpop.f32.mrb[0].mxu0
      %3153 = vmatprep.mubr.bf16.mxu0 %v2173
      %3154 = vmatmul.mubr.bf16.gmra.mrb[0].mxu0 %v2125
      %v3155 = vpop.f32.mrb[0].mxu0
      %v3156 = vadd.f32 %v2995, %v3155
      %v3157 = vpop.f32.mrb[0].mxu0
      %v3158 = vpop.f32.mrb[0].mxu0
      %v3159 = vadd.f32 %v2998, %v3158
      %v3160 = vpop.f32.mrb[0].mxu0
      %3161 = vmatprep.mubr.bf16.mxu0 %v2174
      %3162 = vmatmul.mubr.bf16.gmra.mrb[0].mxu0 %v2126
      %v3163 = vpop.f32.mrb[0].mxu0
      %v3164 = vadd.f32 %v3003, %v3163
      %v3165 = vpop.f32.mrb[0].mxu0
      %v3166 = vpop.f32.mrb[0].mxu0
      %v3167 = vadd.f32 %v3006, %v3166
      %v3168 = vpop.f32.mrb[0].mxu0
      %3169 = vmatprep.mubr.bf16.mxu0 %v2175
      %3170 = vmatmul.mubr.bf16.gmra.mrb[0].mxu0 %v2127
      %v3171 = vpop.f32.mrb[0].mxu0
      %v3172 = vadd.f32 %v3011, %v3171
      %v3173 = vpop.f32.mrb[0].mxu0
      %v3174 = vpop.f32.mrb[0].mxu0
      %v3175 = vadd.f32 %v3014, %v3174
      %v3176 = vpop.f32.mrb[0].mxu0
      %3177 = vmatprep.mubr.bf16.mxu0 %v2176
      %3178 = vmatmul.mubr.bf16.gmra.mrb[0].mxu0 %v2128
      %v3179 = vpop.f32.mrb[0].mxu0
      %v3180 = vadd.f32 %v3019, %v3179
      %v3181 = vpop.f32.mrb[0].mxu0
      %v3182 = vpop.f32.mrb[0].mxu0
      %v3183 = vadd.f32 %v3022, %v3182
      %v3184 = vpop.f32.mrb[0].mxu0
      %3185 = vmatprep.mubr.bf16.mxu0 %v2177
      %3186 = vmatmul.mubr.bf16.gmra.mrb[0].mxu0 %v2129
      %v3187 = vpop.f32.mrb[0].mxu0
      %v3188 = vadd.f32 %v3027, %v3187
      %v3189 = vpop.f32.mrb[0].mxu0
      %v3190 = vpop.f32.mrb[0].mxu0
      %v3191 = vadd.f32 %v3030, %v3190
      %v3192 = vpop.f32.mrb[0].mxu0
      %3193 = vmatprep.mubr.bf16.mxu0 %v2178
      %3194 = vmatmul.mubr.bf16.gmra.mrb[0].mxu0 %v2130
      %v3195 = vpop.f32.mrb[0].mxu0
      %v3196 = vadd.f32 %v3035, %v3195
      %v3197 = vpop.f32.mrb[0].mxu0
      %v3198 = vpop.f32.mrb[0].mxu0
      %v3199 = vadd.f32 %v3038, %v3198
      %v3200 = vpop.f32.mrb[0].mxu0
      %3201 = vmatprep.mubr.bf16.mxu0 %v2179
      %3202 = vmatmul.mubr.bf16.gmra.mrb[0].mxu0 %v2131
      %v3203 = vpop.f32.mrb[0].mxu0
      %v3204 = vadd.f32 %v3043, %v3203
      %v3205 = vpop.f32.mrb[0].mxu0
      %v3206 = vpop.f32.mrb[0].mxu0
      %v3207 = vadd.f32 %v3046, %v3206
      %v3208 = vpop.f32.mrb[0].mxu0
      %3209 = vmatprep.mubr.bf16.mxu0 %v2180
      %3210 = vmatmul.mubr.bf16.gmra.mrb[0].mxu0 %v2132
      %v3211 = vpop.f32.mrb[0].mxu0
      %v3212 = vadd.f32 %v3051, %v3211
      %v3213 = vpop.f32.mrb[0].mxu0
      %v3214 = vpop.f32.mrb[0].mxu0
      %v3215 = vadd.f32 %v3054, %v3214
      %v3216 = vpop.f32.mrb[0].mxu0
      %3217 = vmatprep.mubr.bf16.mxu0 %v2181
      %3218 = vmatmul.mubr.bf16.gmra.mrb[0].mxu0 %v2133
      %v3219 = vpop.f32.mrb[0].mxu0
      %v3220 = vadd.f32 %v3059, %v3219
      %v3221 = vpop.f32.mrb[0].mxu0
      %v3222 = vpop.f32.mrb[0].mxu0
      %v3223 = vadd.f32 %v3062, %v3222
      %v3224 = vpop.f32.mrb[0].mxu0
      %3225 = vdwg.mxu0
      %3226 = vmatprep.subr.bf16.mxu0 0
      %3227 = vmatpush1.bf16.msra.mxu0 %v2792
      %3228 = vmatprep.subr.bf16.mxu0 0
      %3229 = vmatpush1.bf16.msra.mxu0 %v2793
      %3230 = vmatprep.subr.bf16.mxu0 0
      %3231 = vmatpush1.bf16.msra.mxu0 %v2794
      %3232 = vmatprep.subr.bf16.mxu0 0
      %3233 = vmatpush1.bf16.msra.mxu0 %v2795
      %3234 = vmatprep.subr.bf16.mxu0 0
      %3235 = vmatpush1.bf16.msra.mxu0 %v2796
      %3236 = vmatprep.subr.bf16.mxu0 0
      %3237 = vmatpush1.bf16.msra.mxu0 %v2797
      %3238 = vmatprep.subr.bf16.mxu0 0
      %3239 = vmatpush1.bf16.msra.mxu0 %v2798
      %3240 = vmatprep.subr.bf16.mxu0 0
      %3241 = vmatpush1.bf16.msra.mxu0 %v2799
      %3242 = vmatprep.subr.bf16.mxu0 0
      %3243 = vmatpush1.bf16.msra.mxu0 %v2800
      %3244 = vmatprep.subr.bf16.mxu0 0
      %3245 = vmatpush1.bf16.msra.mxu0 %v2801
      %3246 = vmatprep.subr.bf16.mxu0 0
      %3247 = vmatpush1.bf16.msra.mxu0 %v2802
      %3248 = vmatprep.subr.bf16.mxu0 0
      %3249 = vmatpush1.bf16.msra.mxu0 %v2803
      %3250 = vmatprep.subr.bf16.mxu0 0
      %3251 = vmatpush1.bf16.msra.mxu0 %v2804
      %3252 = vmatprep.subr.bf16.mxu0 0
      %3253 = vmatpush1.bf16.msra.mxu0 %v2805
      %3254 = vmatprep.subr.bf16.mxu0 0
      %3255 = vmatpush1.bf16.msra.mxu0 %v2806
      %3256 = vmatprep.subr.bf16.mxu0 0
      %3257 = vmatpush1.bf16.msra.mxu0 %v2807
      %3258 = vmatprep.mubr.bf16.mxu0 %v2215
      %3259 = vmatmul.mubr.bf16.gmra.mrb[0].mxu0 %v2071
      %v3260 = vpop.f32.mrb[0].mxu0
      %v3261 = vadd.f32 %v3100, %v3260
      %v3262 = vpop.f32.mrb[0].mxu0
      %v3263 = vpop.f32.mrb[0].mxu0
      %v3264 = vadd.f32 %v3103, %v3263
      %v3265 = vpop.f32.mrb[0].mxu0
      %3266 = vmatprep.mubr.bf16.mxu0 %v2216
      %3267 = vmatmul.mubr.bf16.gmra.mrb[0].mxu0 %v2072
      %v3268 = vpop.f32.mrb[0].mxu0
      %v3269 = vadd.f32 %v3108, %v3268
      %v3270 = vpop.f32.mrb[0].mxu0
      %v3271 = vpop.f32.mrb[0].mxu0
      %v3272 = vadd.f32 %v3111, %v3271
      %v3273 = vpop.f32.mrb[0].mxu0
      %3274 = vmatprep.mubr.bf16.mxu0 %v2217
      %3275 = vmatmul.mubr.bf16.gmra.mrb[0].mxu0 %v2073
      %v3276 = vpop.f32.mrb[0].mxu0
      %v3277 = vadd.f32 %v3116, %v3276
      %v3278 = vpop.f32.mrb[0].mxu0
      %v3279 = vpop.f32.mrb[0].mxu0
      %v3280 = vadd.f32 %v3119, %v3279
      %v3281 = vpop.f32.mrb[0].mxu0
      %3282 = vmatprep.mubr.bf16.mxu0 %v2218
      %3283 = vmatmul.mubr.bf16.gmra.mrb[0].mxu0 %v2074
      %v3284 = vpop.f32.mrb[0].mxu0
      %v3285 = vadd.f32 %v3124, %v3284
      %v3286 = vpop.f32.mrb[0].mxu0
      %v3287 = vpop.f32.mrb[0].mxu0
      %v3288 = vadd.f32 %v3127, %v3287
      %v3289 = vpop.f32.mrb[0].mxu0
      %3290 = vmatprep.mubr.bf16.mxu0 %v2219
      %3291 = vmatmul.mubr.bf16.gmra.mrb[0].mxu0 %v2075
      %v3292 = vpop.f32.mrb[0].mxu0
      %v3293 = vadd.f32 %v3132, %v3292
      %v3294 = vpop.f32.mrb[0].mxu0
      %v3295 = vpop.f32.mrb[0].mxu0
      %v3296 = vadd.f32 %v3135, %v3295
      %v3297 = vpop.f32.mrb[0].mxu0
      %3298 = vmatprep.mubr.bf16.mxu0 %v2220
      %3299 = vmatmul.mubr.bf16.gmra.mrb[0].mxu0 %v2076
      %v3300 = vpop.f32.mrb[0].mxu0
      %v3301 = vadd.f32 %v3140, %v3300
      %v3302 = vpop.f32.mrb[0].mxu0
      %v3303 = vpop.f32.mrb[0].mxu0
      %v3304 = vadd.f32 %v3143, %v3303
      %v3305 = vpop.f32.mrb[0].mxu0
      %3306 = vmatprep.mubr.bf16.mxu0 %v2221
      %3307 = vmatmul.mubr.bf16.gmra.mrb[0].mxu0 %v2077
      %v3308 = vpop.f32.mrb[0].mxu0
      %v3309 = vadd.f32 %v3148, %v3308
      %v3310 = vpop.f32.mrb[0].mxu0
      %v3311 = vpop.f32.mrb[0].mxu0
      %v3312 = vadd.f32 %v3151, %v3311
      %v3313 = vpop.f32.mrb[0].mxu0
      %3314 = vmatprep.mubr.bf16.mxu0 %v2222
      %3315 = vmatmul.mubr.bf16.gmra.mrb[0].mxu0 %v2078
      %v3316 = vpop.f32.mrb[0].mxu0
      %v3317 = vadd.f32 %v3156, %v3316
      %v3318 = vpop.f32.mrb[0].mxu0
      %v3319 = vpop.f32.mrb[0].mxu0
      %v3320 = vadd.f32 %v3159, %v3319
      %v3321 = vpop.f32.mrb[0].mxu0
      %3322 = vmatprep.mubr.bf16.mxu0 %v2223
      %3323 = vmatmul.mubr.bf16.gmra.mrb[0].mxu0 %v2079
      %v3324 = vpop.f32.mrb[0].mxu0
      %v3325 = vadd.f32 %v3164, %v3324
      %v3326 = vpop.f32.mrb[0].mxu0
      %v3327 = vpop.f32.mrb[0].mxu0
      %v3328 = vadd.f32 %v3167, %v3327
      %v3329 = vpop.f32.mrb[0].mxu0
      %3330 = vmatprep.mubr.bf16.mxu0 %v2224
      %3331 = vmatmul.mubr.bf16.gmra.mrb[0].mxu0 %v2080
      %v3332 = vpop.f32.mrb[0].mxu0
      %v3333 = vadd.f32 %v3172, %v3332
      %v3334 = vpop.f32.mrb[0].mxu0
      %v3335 = vpop.f32.mrb[0].mxu0
      %v3336 = vadd.f32 %v3175, %v3335
      %v3337 = vpop.f32.mrb[0].mxu0
      %3338 = vmatprep.mubr.bf16.mxu0 %v2225
      %3339 = vmatmul.mubr.bf16.gmra.mrb[0].mxu0 %v2081
      %v3340 = vpop.f32.mrb[0].mxu0
      %v3341 = vadd.f32 %v3180, %v3340
      %v3342 = vpop.f32.mrb[0].mxu0
      %v3343 = vpop.f32.mrb[0].mxu0
      %v3344 = vadd.f32 %v3183, %v3343
      %v3345 = vpop.f32.mrb[0].mxu0
      %3346 = vmatprep.mubr.bf16.mxu0 %v2226
      %3347 = vmatmul.mubr.bf16.gmra.mrb[0].mxu0 %v2082
      %v3348 = vpop.f32.mrb[0].mxu0
      %v3349 = vadd.f32 %v3188, %v3348
      %v3350 = vpop.f32.mrb[0].mxu0
      %v3351 = vpop.f32.mrb[0].mxu0
      %v3352 = vadd.f32 %v3191, %v3351
      %v3353 = vpop.f32.mrb[0].mxu0
      %3354 = vmatprep.mubr.bf16.mxu0 %v2227
      %3355 = vmatmul.mubr.bf16.gmra.mrb[0].mxu0 %v2083
      %v3356 = vpop.f32.mrb[0].mxu0
      %v3357 = vadd.f32 %v3196, %v3356
      %v3358 = vpop.f32.mrb[0].mxu0
      %v3359 = vpop.f32.mrb[0].mxu0
      %v3360 = vadd.f32 %v3199, %v3359
      %v3361 = vpop.f32.mrb[0].mxu0
      %3362 = vmatprep.mubr.bf16.mxu0 %v2228
      %3363 = vmatmul.mubr.bf16.gmra.mrb[0].mxu0 %v2084
      %v3364 = vpop.f32.mrb[0].mxu0
      %v3365 = vadd.f32 %v3204, %v3364
      %v3366 = vpop.f32.mrb[0].mxu0
      %v3367 = vpop.f32.mrb[0].mxu0
      %v3368 = vadd.f32 %v3207, %v3367
      %v3369 = vpop.f32.mrb[0].mxu0
      %3370 = vmatprep.mubr.bf16.mxu0 %v2229
      %3371 = vmatmul.mubr.bf16.gmra.mrb[0].mxu0 %v2085
      %v3372 = vpop.f32.mrb[0].mxu0
      %v3373 = vadd.f32 %v3212, %v3372
      %v3374 = vpop.f32.mrb[0].mxu0
      %v3375 = vpop.f32.mrb[0].mxu0
      %v3376 = vadd.f32 %v3215, %v3375
      %v3377 = vpop.f32.mrb[0].mxu0
      %3378 = vmatprep.mubr.bf16.mxu0 %v2230
      %3379 = vmatmul.mubr.bf16.gmra.mrb[0].mxu0 %v2182
      %v3380 = vpop.f32.mrb[0].mxu0
      %v3381 = vadd.f32 %v3220, %v3380
      %v3382 = vpop.f32.mrb[0].mxu0
      %v3383 = vpop.f32.mrb[0].mxu0
      %v3384 = vadd.f32 %v3223, %v3383
      %v3385 = vpop.f32.mrb[0].mxu0
      %3386 = vdwg.mxu0
      %3387 = vmatprep.subr.bf16.mxu0 0
      %3388 = vmatpush1.bf16.msra.mxu0 %v2808
      %3389 = vmatprep.subr.bf16.mxu0 0
      %3390 = vmatpush1.bf16.msra.mxu0 %v2809
      %3391 = vmatprep.subr.bf16.mxu0 0
      %3392 = vmatpush1.bf16.msra.mxu0 %v2810
      %3393 = vmatprep.subr.bf16.mxu0 0
      %3394 = vmatpush1.bf16.msra.mxu0 %v2811
      %3395 = vmatprep.subr.bf16.mxu0 0
      %3396 = vmatpush1.bf16.msra.mxu0 %v2812
      %3397 = vmatprep.subr.bf16.mxu0 0
      %3398 = vmatpush1.bf16.msra.mxu0 %v2813
      %3399 = vmatprep.subr.bf16.mxu0 0
      %3400 = vmatpush1.bf16.msra.mxu0 %v2814
      %3401 = vmatprep.subr.bf16.mxu0 0
      %3402 = vmatpush1.bf16.msra.mxu0 %v2815
      %3403 = vmatprep.subr.bf16.mxu0 0
      %3404 = vmatpush1.bf16.msra.mxu0 %v2816
      %3405 = vmatprep.subr.bf16.mxu0 0
      %3406 = vmatpush1.bf16.msra.mxu0 %v2817
      %3407 = vmatprep.subr.bf16.mxu0 0
      %3408 = vmatpush1.bf16.msra.mxu0 %v2818
      %3409 = vmatprep.subr.bf16.mxu0 0
      %3410 = vmatpush1.bf16.msra.mxu0 %v2819
      %3411 = vmatprep.subr.bf16.mxu0 0
      %3412 = vmatpush1.bf16.msra.mxu0 %v2820
      %3413 = vmatprep.subr.bf16.mxu0 0
      %3414 = vmatpush1.bf16.msra.mxu0 %v2821
      %3415 = vmatprep.subr.bf16.mxu0 0
      %3416 = vmatpush1.bf16.msra.mxu0 %v2822
      %3417 = vmatprep.subr.bf16.mxu0 0
      %3418 = vmatpush1.bf16.msra.mxu0 %v2823
      %3419 = vmatprep.mubr.bf16.mxu0 %v2072
      %3420 = vmatmul.mubr.bf16.gmra.mrb[0].mxu0 %v2263
      %v3421 = vpop.f32.mrb[0].mxu0
      %v3422 = vadd.f32 %v3261, %v3421
      %v3423 = vpop.f32.mrb[0].mxu0
      %v3424 = vpop.f32.mrb[0].mxu0
      %v3425 = vadd.f32 %v3264, %v3424
      %v3426 = vpop.f32.mrb[0].mxu0
      %3427 = vmatprep.mubr.bf16.mxu0 %v2073
      %3428 = vmatmul.mubr.bf16.gmra.mrb[0].mxu0 %v2264
      %v3429 = vpop.f32.mrb[0].mxu0
      %v3430 = vadd.f32 %v3269, %v3429
      %v3431 = vpop.f32.mrb[0].mxu0
      %v3432 = vpop.f32.mrb[0].mxu0
      %v3433 = vadd.f32 %v3272, %v3432
      %v3434 = vpop.f32.mrb[0].mxu0
      %3435 = vmatprep.mubr.bf16.mxu0 %v2074
      %3436 = vmatmul.mubr.bf16.gmra.mrb[0].mxu0 %v2265
      %v3437 = vpop.f32.mrb[0].mxu0
      %v3438 = vadd.f32 %v3277, %v3437
      %v3439 = vpop.f32.mrb[0].mxu0
      %v3440 = vpop.f32.mrb[0].mxu0
      %v3441 = vadd.f32 %v3280, %v3440
      %v3442 = vpop.f32.mrb[0].mxu0
      %3443 = vmatprep.mubr.bf16.mxu0 %v2075
      %3444 = vmatmul.mubr.bf16.gmra.mrb[0].mxu0 %v2266
      %v3445 = vpop.f32.mrb[0].mxu0
      %v3446 = vadd.f32 %v3285, %v3445
      %v3447 = vpop.f32.mrb[0].mxu0
      %v3448 = vpop.f32.mrb[0].mxu0
      %v3449 = vadd.f32 %v3288, %v3448
      %v3450 = vpop.f32.mrb[0].mxu0
      %3451 = vmatprep.mubr.bf16.mxu0 %v2076
      %3452 = vmatmul.mubr.bf16.gmra.mrb[0].mxu0 %v2267
      %v3453 = vpop.f32.mrb[0].mxu0
      %v3454 = vadd.f32 %v3293, %v3453
      %v3455 = vpop.f32.mrb[0].mxu0
      %v3456 = vpop.f32.mrb[0].mxu0
      %v3457 = vadd.f32 %v3296, %v3456
      %v3458 = vpop.f32.mrb[0].mxu0
      %3459 = vmatprep.mubr.bf16.mxu0 %v2077
      %3460 = vmatmul.mubr.bf16.gmra.mrb[0].mxu0 %v2268
      %v3461 = vpop.f32.mrb[0].mxu0
      %v3462 = vadd.f32 %v3301, %v3461
      %v3463 = vpop.f32.mrb[0].mxu0
      %v3464 = vpop.f32.mrb[0].mxu0
      %v3465 = vadd.f32 %v3304, %v3464
      %v3466 = vpop.f32.mrb[0].mxu0
      %3467 = vmatprep.mubr.bf16.mxu0 %v2078
      %3468 = vmatmul.mubr.bf16.gmra.mrb[0].mxu0 %v2269
      %v3469 = vpop.f32.mrb[0].mxu0
      %v3470 = vadd.f32 %v3309, %v3469
      %v3471 = vpop.f32.mrb[0].mxu0
      %v3472 = vpop.f32.mrb[0].mxu0
      %v3473 = vadd.f32 %v3312, %v3472
      %v3474 = vpop.f32.mrb[0].mxu0
      %3475 = vmatprep.mubr.bf16.mxu0 %v2079
      %3476 = vmatmul.mubr.bf16.gmra.mrb[0].mxu0 %v2270
      %v3477 = vpop.f32.mrb[0].mxu0
      %v3478 = vadd.f32 %v3317, %v3477
      %v3479 = vpop.f32.mrb[0].mxu0
      %v3480 = vpop.f32.mrb[0].mxu0
      %v3481 = vadd.f32 %v3320, %v3480
      %v3482 = vpop.f32.mrb[0].mxu0
      %3483 = vmatprep.mubr.bf16.mxu0 %v2080
      %3484 = vmatmul.mubr.bf16.gmra.mrb[0].mxu0 %v2271
      %v3485 = vpop.f32.mrb[0].mxu0
      %v3486 = vadd.f32 %v3325, %v3485
      %v3487 = vpop.f32.mrb[0].mxu0
      %v3488 = vpop.f32.mrb[0].mxu0
      %v3489 = vadd.f32 %v3328, %v3488
      %v3490 = vpop.f32.mrb[0].mxu0
      %3491 = vmatprep.mubr.bf16.mxu0 %v2081
      %3492 = vmatmul.mubr.bf16.gmra.mrb[0].mxu0 %v2272
      %v3493 = vpop.f32.mrb[0].mxu0
      %v3494 = vadd.f32 %v3333, %v3493
      %v3495 = vpop.f32.mrb[0].mxu0
      %v3496 = vpop.f32.mrb[0].mxu0
      %v3497 = vadd.f32 %v3336, %v3496
      %v3498 = vpop.f32.mrb[0].mxu0
      %3499 = vmatprep.mubr.bf16.mxu0 %v2082
      %3500 = vmatmul.mubr.bf16.gmra.mrb[0].mxu0 %v2273
      %v3501 = vpop.f32.mrb[0].mxu0
      %v3502 = vadd.f32 %v3341, %v3501
      %v3503 = vpop.f32.mrb[0].mxu0
      %v3504 = vpop.f32.mrb[0].mxu0
      %v3505 = vadd.f32 %v3344, %v3504
      %v3506 = vpop.f32.mrb[0].mxu0
      %3507 = vmatprep.mubr.bf16.mxu0 %v2083
      %3508 = vmatmul.mubr.bf16.gmra.mrb[0].mxu0 %v2274
      %v3509 = vpop.f32.mrb[0].mxu0
      %v3510 = vadd.f32 %v3349, %v3509
      %v3511 = vpop.f32.mrb[0].mxu0
      %v3512 = vpop.f32.mrb[0].mxu0
      %v3513 = vadd.f32 %v3352, %v3512
      %v3514 = vpop.f32.mrb[0].mxu0
      %3515 = vmatprep.mubr.bf16.mxu0 %v2084
      %3516 = vmatmul.mubr.bf16.gmra.mrb[0].mxu0 %v2275
      %v3517 = vpop.f32.mrb[0].mxu0
      %v3518 = vadd.f32 %v3357, %v3517
      %v3519 = vpop.f32.mrb[0].mxu0
      %v3520 = vpop.f32.mrb[0].mxu0
      %v3521 = vadd.f32 %v3360, %v3520
      %v3522 = vpop.f32.mrb[0].mxu0
      %3523 = vmatprep.mubr.bf16.mxu0 %v2085
      %3524 = vmatmul.mubr.bf16.gmra.mrb[0].mxu0 %v2276
      %v3525 = vpop.f32.mrb[0].mxu0
      %v3526 = vadd.f32 %v3365, %v3525
      %v3527 = vpop.f32.mrb[0].mxu0
      %v3528 = vpop.f32.mrb[0].mxu0
      %v3529 = vadd.f32 %v3368, %v3528
      %v3530 = vpop.f32.mrb[0].mxu0
      %3531 = vmatprep.mubr.bf16.mxu0 %v2182
      %3532 = vmatmul.mubr.bf16.gmra.mrb[0].mxu0 %v2277
      %v3533 = vpop.f32.mrb[0].mxu0
      %v3534 = vadd.f32 %v3373, %v3533
      %v3535 = vpop.f32.mrb[0].mxu0
      %v3536 = vpop.f32.mrb[0].mxu0
      %v3537 = vadd.f32 %v3376, %v3536
      %v3538 = vpop.f32.mrb[0].mxu0
      %3539 = vmatprep.mubr.bf16.mxu0 %v2279
      %3540 = vmatmul.mubr.bf16.gmra.mrb[0].mxu0 %v2278
      %v3541 = vpop.f32.mrb[0].mxu0
      %v3542 = vadd.f32 %v3381, %v3541
      %v3543 = vpop.f32.mrb[0].mxu0
      %v3544 = vpop.f32.mrb[0].mxu0
      %v3545 = vadd.f32 %v3384, %v3544
      %v3546 = vpop.f32.mrb[0].mxu0
      %3547 = vdwg.mxu0
      %3548 = vmatprep.subr.bf16.mxu0 0
      %3549 = vmatpush1.bf16.msra.mxu0 %v2824
      %3550 = vmatprep.subr.bf16.mxu0 0
      %3551 = vmatpush1.bf16.msra.mxu0 %v2825
      %3552 = vmatprep.subr.bf16.mxu0 0
      %3553 = vmatpush1.bf16.msra.mxu0 %v2826
      %3554 = vmatprep.subr.bf16.mxu0 0
      %3555 = vmatpush1.bf16.msra.mxu0 %v2827
      %3556 = vmatprep.subr.bf16.mxu0 0
      %3557 = vmatpush1.bf16.msra.mxu0 %v2828
      %3558 = vmatprep.subr.bf16.mxu0 0
      %3559 = vmatpush1.bf16.msra.mxu0 %v2829
      %3560 = vmatprep.subr.bf16.mxu0 0
      %3561 = vmatpush1.bf16.msra.mxu0 %v2830
      %3562 = vmatprep.subr.bf16.mxu0 0
      %3563 = vmatpush1.bf16.msra.mxu0 %v2831
      %3564 = vmatprep.subr.bf16.mxu0 0
      %3565 = vmatpush1.bf16.msra.mxu0 0
      %3566 = vmatprep.subr.bf16.mxu0 0
      %3567 = vmatpush1.bf16.msra.mxu0 0
      %3568 = vmatprep.subr.bf16.mxu0 0
      %3569 = vmatpush1.bf16.msra.mxu0 0
      %3570 = vmatprep.subr.bf16.mxu0 0
      %3571 = vmatpush1.bf16.msra.mxu0 0
      %3572 = vmatprep.subr.bf16.mxu0 0
      %3573 = vmatpush1.bf16.msra.mxu0 0
      %3574 = vmatprep.subr.bf16.mxu0 0
      %3575 = vmatpush1.bf16.msra.mxu0 0
      %3576 = vmatprep.subr.bf16.mxu0 0
      %3577 = vmatpush1.bf16.msra.mxu0 0
      %3578 = vmatprep.subr.bf16.mxu0 0
      %3579 = vmatpush1.bf16.msra.mxu0 0
      %3580 = vmatprep.mubr.bf16.mxu0 0
      %3581 = vmatmul.mubr.bf16.gmra.mrb[0].mxu0 %v2312
      %v3582 = vpop.f32.mrb[0].mxu0
      %v3583 = vadd.f32 %v3422, %v3582
      %v3584 = vpop.f32.mrb[0].mxu0
      %v3585 = vpop.f32.mrb[0].mxu0
      %v3586 = vadd.f32 %v3425, %v3585
      %v3587 = vpop.f32.mrb[0].mxu0
      %3588 = vmatprep.mubr.bf16.mxu0 0
      %3589 = vmatmul.mubr.bf16.gmra.mrb[0].mxu0 %v2313
      %v3590 = vpop.f32.mrb[0].mxu0
      %v3591 = vadd.f32 %v3430, %v3590
      %v3592 = vpop.f32.mrb[0].mxu0
      %v3593 = vpop.f32.mrb[0].mxu0
      %v3594 = vadd.f32 %v3433, %v3593
      %v3595 = vpop.f32.mrb[0].mxu0
      %3596 = vmatprep.mubr.bf16.mxu0 0
      %3597 = vmatmul.mubr.bf16.gmra.mrb[0].mxu0 %v2314
      %v3598 = vpop.f32.mrb[0].mxu0
      %v3599 = vadd.f32 %v3438, %v3598
      %v3600 = vpop.f32.mrb[0].mxu0
      %v3601 = vpop.f32.mrb[0].mxu0
      %v3602 = vadd.f32 %v3441, %v3601
      %v3603 = vpop.f32.mrb[0].mxu0
      %3604 = vmatprep.mubr.bf16.mxu0 0
      %3605 = vmatmul.mubr.bf16.gmra.mrb[0].mxu0 %v2315
      %v3606 = vpop.f32.mrb[0].mxu0
      %v3607 = vadd.f32 %v3446, %v3606
      %v3608 = vpop.f32.mrb[0].mxu0
      %v3609 = vpop.f32.mrb[0].mxu0
      %v3610 = vadd.f32 %v3449, %v3609
      %v3611 = vpop.f32.mrb[0].mxu0
      %3612 = vmatprep.mubr.bf16.mxu0 0
      %3613 = vmatmul.mubr.bf16.gmra.mrb[0].mxu0 %v2316
      %v3614 = vpop.f32.mrb[0].mxu0
      %v3615 = vadd.f32 %v3454, %v3614
      %v3616 = vpop.f32.mrb[0].mxu0
      %v3617 = vpop.f32.mrb[0].mxu0
      %v3618 = vadd.f32 %v3457, %v3617
      %v3619 = vpop.f32.mrb[0].mxu0
      %3620 = vmatprep.mubr.bf16.mxu0 0
      %3621 = vmatmul.mubr.bf16.gmra.mrb[0].mxu0 %v2317
      %v3622 = vpop.f32.mrb[0].mxu0
      %v3623 = vadd.f32 %v3462, %v3622
      %v3624 = vpop.f32.mrb[0].mxu0
      %v3625 = vpop.f32.mrb[0].mxu0
      %v3626 = vadd.f32 %v3465, %v3625
      %v3627 = vpop.f32.mrb[0].mxu0
      %3628 = vmatprep.mubr.bf16.mxu0 0
      %3629 = vmatmul.mubr.bf16.gmra.mrb[0].mxu0 %v2318
      %v3630 = vpop.f32.mrb[0].mxu0
      %v3631 = vadd.f32 %v3470, %v3630
      %v3632 = vpop.f32.mrb[0].mxu0
      %v3633 = vpop.f32.mrb[0].mxu0
      %v3634 = vadd.f32 %v3473, %v3633
      %v3635 = vpop.f32.mrb[0].mxu0
      %3636 = vmatprep.mubr.bf16.mxu0 0
      %3637 = vmatmul.mubr.bf16.gmra.mrb[0].mxu0 %v2319
      %v3638 = vpop.f32.mrb[0].mxu0
      %v3639 = vadd.f32 %v3478, %v3638
      %v3640 = vpop.f32.mrb[0].mxu0
      %v3641 = vpop.f32.mrb[0].mxu0
      %v3642 = vadd.f32 %v3481, %v3641
      %v3643 = vpop.f32.mrb[0].mxu0
      %3644 = vmatprep.mubr.bf16.mxu0 0
      %3645 = vmatmul.mubr.bf16.gmra.mrb[0].mxu0 %v2320
      %v3646 = vpop.f32.mrb[0].mxu0
      %v3647 = vadd.f32 %v3486, %v3646
      %v3648 = vpop.f32.mrb[0].mxu0
      %v3649 = vpop.f32.mrb[0].mxu0
      %v3650 = vadd.f32 %v3489, %v3649
      %v3651 = vpop.f32.mrb[0].mxu0
      %3652 = vmatprep.mubr.bf16.mxu0 0
      %3653 = vmatmul.mubr.bf16.gmra.mrb[0].mxu0 %v2321
      %v3654 = vpop.f32.mrb[0].mxu0
      %v3655 = vadd.f32 %v3494, %v3654
      %v3656 = vpop.f32.mrb[0].mxu0
      %v3657 = vpop.f32.mrb[0].mxu0
      %v3658 = vadd.f32 %v3497, %v3657
      %v3659 = vpop.f32.mrb[0].mxu0
      %3660 = vmatprep.mubr.bf16.mxu0 0
      %3661 = vmatmul.mubr.bf16.gmra.mrb[0].mxu0 %v2322
      %v3662 = vpop.f32.mrb[0].mxu0
      %v3663 = vadd.f32 %v3502, %v3662
      %v3664 = vpop.f32.mrb[0].mxu0
      %v3665 = vpop.f32.mrb[0].mxu0
      %v3666 = vadd.f32 %v3505, %v3665
      %v3667 = vpop.f32.mrb[0].mxu0
      %3668 = vmatprep.mubr.bf16.mxu0 0
      %3669 = vmatmul.mubr.bf16.gmra.mrb[0].mxu0 %v2323
      %v3670 = vpop.f32.mrb[0].mxu0
      %v3671 = vadd.f32 %v3510, %v3670
      %v3672 = vpop.f32.mrb[0].mxu0
      %v3673 = vpop.f32.mrb[0].mxu0
      %v3674 = vadd.f32 %v3513, %v3673
      %v3675 = vpop.f32.mrb[0].mxu0
      %3676 = vmatprep.mubr.bf16.mxu0 0
      %3677 = vmatmul.mubr.bf16.gmra.mrb[0].mxu0 %v2324
      %v3678 = vpop.f32.mrb[0].mxu0
      %v3679 = vadd.f32 %v3518, %v3678
      %v3680 = vpop.f32.mrb[0].mxu0
      %v3681 = vpop.f32.mrb[0].mxu0
      %v3682 = vadd.f32 %v3521, %v3681
      %v3683 = vpop.f32.mrb[0].mxu0
      %3684 = vmatprep.mubr.bf16.mxu0 0
      %3685 = vmatmul.mubr.bf16.gmra.mrb[0].mxu0 %v2325
      %v3686 = vpop.f32.mrb[0].mxu0
      %v3687 = vadd.f32 %v3526, %v3686
      %v3688 = vpop.f32.mrb[0].mxu0
      %v3689 = vpop.f32.mrb[0].mxu0
      %v3690 = vadd.f32 %v3529, %v3689
      %v3691 = vpop.f32.mrb[0].mxu0
      %3692 = vmatprep.mubr.bf16.mxu0 0
      %3693 = vmatmul.mubr.bf16.gmra.mrb[0].mxu0 %v2326
      %v3694 = vpop.f32.mrb[0].mxu0
      %v3695 = vadd.f32 %v3534, %v3694
      %v3696 = vpop.f32.mrb[0].mxu0
      %v3697 = vpop.f32.mrb[0].mxu0
      %v3698 = vadd.f32 %v3537, %v3697
      %v3699 = vpop.f32.mrb[0].mxu0
      %3700 = vmatprep.mubr.bf16.mxu0 0
      %3701 = vmatmul.mubr.bf16.gmra.mrb[0].mxu0 %v2327
      %v3702 = vpop.f32.mrb[0].mxu0
      %v3703 = vadd.f32 %v3542, %v3702
      %v3704 = vpop.f32.mrb[0].mxu0
      %v3705 = vpop.f32.mrb[0].mxu0
      %v3706 = vadd.f32 %v3545, %v3705
      %v3707 = vpop.f32.mrb[0].mxu0
      %3708 = vdwg.mxu0
      %v3709 = vld [vmem:[%s7] sm:$0x1]
      %v3711 = vlaneseq
      %v3712 = vshrl.u32 %v3711, 7
      %v3713 = vsub.s32 0, %v3712
      %v3714 = vrot.slane %v3709, %v3713
      %v3716 = vmul.f32 %v3583, %v3714
      %v3717 = vmul.f32 %v3586, %v3714
      %v3718 = vmul.f32 %v3591, %v3714
      %v3719 = vmul.f32 %v3594, %v3714
      %v3720 = vmul.f32 %v3599, %v3714
      %v3721 = vmul.f32 %v3602, %v3714
      %v3722 = vmul.f32 %v3607, %v3714
      %v3723 = vmul.f32 %v3610, %v3714
      %v3724 = vmul.f32 %v3615, %v3714
      %v3725 = vmul.f32 %v3618, %v3714
      %v3726 = vmul.f32 %v3623, %v3714
      %v3727 = vmul.f32 %v3626, %v3714
      %v3728 = vmul.f32 %v3631, %v3714
      %v3729 = vmul.f32 %v3634, %v3714
      %v3730 = vmul.f32 %v3639, %v3714
      %v3731 = vmul.f32 %v3642, %v3714
      %v3732 = vmul.f32 %v3647, %v3714
      %v3733 = vmul.f32 %v3650, %v3714
      %v3734 = vmul.f32 %v3655, %v3714
      %v3735 = vmul.f32 %v3658, %v3714
      %v3736 = vmul.f32 %v3663, %v3714
      %v3737 = vmul.f32 %v3666, %v3714
      %v3738 = vmul.f32 %v3671, %v3714
      %v3739 = vmul.f32 %v3674, %v3714
      %v3740 = vmul.f32 %v3679, %v3714
      %v3741 = vmul.f32 %v3682, %v3714
      %v3742 = vmul.f32 %v3687, %v3714
      %v3743 = vmul.f32 %v3690, %v3714
      %v3744 = vmul.f32 %v3695, %v3714
      %v3745 = vmul.f32 %v3698, %v3714
      %v3746 = vmul.f32 %v3703, %v3714
      %v3747 = vmul.f32 %v3706, %v3714
      %v3748 = vld [vmem:[%s8] sm:$0x1]
      %v3750 = vlaneseq
      %v3751 = vshrl.u32 %v3750, 7
      %v3752 = vsub.s32 0, %v3751
      %v3753 = vrot.slane %v3748, %v3752
      %v3755 = vadd.f32 %v3716, %v3753
      %v3756 = vadd.f32 %v3717, %v3753
      %v3757 = vadd.f32 %v3718, %v3753
      %v3758 = vadd.f32 %v3719, %v3753
      %v3759 = vadd.f32 %v3720, %v3753
      %v3760 = vadd.f32 %v3721, %v3753
      %v3761 = vadd.f32 %v3722, %v3753
      %v3762 = vadd.f32 %v3723, %v3753
      %v3763 = vadd.f32 %v3724, %v3753
      %v3764 = vadd.f32 %v3725, %v3753
      %v3765 = vadd.f32 %v3726, %v3753
      %v3766 = vadd.f32 %v3727, %v3753
      %v3767 = vadd.f32 %v3728, %v3753
      %v3768 = vadd.f32 %v3729, %v3753
      %v3769 = vadd.f32 %v3730, %v3753
      %v3770 = vadd.f32 %v3731, %v3753
      %v3771 = vadd.f32 %v3732, %v3753
      %v3772 = vadd.f32 %v3733, %v3753
      %v3773 = vadd.f32 %v3734, %v3753
      %v3774 = vadd.f32 %v3735, %v3753
      %v3775 = vadd.f32 %v3736, %v3753
      %v3776 = vadd.f32 %v3737, %v3753
      %v3777 = vadd.f32 %v3738, %v3753
      %v3778 = vadd.f32 %v3739, %v3753
      %v3779 = vadd.f32 %v3740, %v3753
      %v3780 = vadd.f32 %v3741, %v3753
      %v3781 = vadd.f32 %v3742, %v3753
      %v3782 = vadd.f32 %v3743, %v3753
      %v3783 = vadd.f32 %v3744, %v3753
      %v3784 = vadd.f32 %v3745, %v3753
      %v3785 = vadd.f32 %v3746, %v3753
      %v3786 = vadd.f32 %v3747, %v3753
      %v3787 = vsub.f32 0.0, %v3755
      %v3788 = vsub.f32 0.0, %v3756
      %v3789 = vsub.f32 0.0, %v3757
      %v3790 = vsub.f32 0.0, %v3758
      %v3791 = vsub.f32 0.0, %v3759
      %v3792 = vsub.f32 0.0, %v3760
      %v3793 = vsub.f32 0.0, %v3761
      %v3794 = vsub.f32 0.0, %v3762
      %v3795 = vsub.f32 0.0, %v3763
      %v3796 = vsub.f32 0.0, %v3764
      %v3797 = vsub.f32 0.0, %v3765
      %v3798 = vsub.f32 0.0, %v3766
      %v3799 = vsub.f32 0.0, %v3767
      %v3800 = vsub.f32 0.0, %v3768
      %v3801 = vsub.f32 0.0, %v3769
      %v3802 = vsub.f32 0.0, %v3770
      %v3803 = vsub.f32 0.0, %v3771
      %v3804 = vsub.f32 0.0, %v3772
      %v3805 = vsub.f32 0.0, %v3773
      %v3806 = vsub.f32 0.0, %v3774
      %v3807 = vsub.f32 0.0, %v3775
      %v3808 = vsub.f32 0.0, %v3776
      %v3809 = vsub.f32 0.0, %v3777
      %v3810 = vsub.f32 0.0, %v3778
      %v3811 = vsub.f32 0.0, %v3779
      %v3812 = vsub.f32 0.0, %v3780
      %v3813 = vsub.f32 0.0, %v3781
      %v3814 = vsub.f32 0.0, %v3782
      %v3815 = vsub.f32 0.0, %v3783
      %v3816 = vsub.f32 0.0, %v3784
      %v3817 = vsub.f32 0.0, %v3785
      %v3818 = vsub.f32 0.0, %v3786
      %v3819 = vmul.f32 %v3787, 1.442695
      %v3820 = vpow.pop %v3819
      %v3821 = vmul.f32 %v3788, 1.442695
      %v3822 = vpow.pop %v3821
      %v3823 = vmul.f32 %v3789, 1.442695
      %v3824 = vpow.pop %v3823
      %v3825 = vmul.f32 %v3790, 1.442695
      %v3826 = vpow.pop %v3825
      %v3827 = vmul.f32 %v3791, 1.442695
      %v3828 = vpow.pop %v3827
      %v3829 = vmul.f32 %v3792, 1.442695
      %v3830 = vpow.pop %v3829
      %v3831 = vmul.f32 %v3793, 1.442695
      %v3832 = vpow.pop %v3831
      %v3833 = vmul.f32 %v3794, 1.442695
      %v3834 = vpow.pop %v3833
      %v3835 = vmul.f32 %v3795, 1.442695
      %v3836 = vpow.pop %v3835
      %v3837 = vmul.f32 %v3796, 1.442695
      %v3838 = vpow.pop %v3837
      %v3839 = vmul.f32 %v3797, 1.442695
      %v3840 = vpow.pop %v3839
      %v3841 = vmul.f32 %v3798, 1.442695
      %v3842 = vpow.pop %v3841
      %v3843 = vmul.f32 %v3799, 1.442695
      %v3844 = vpow.pop %v3843
      %v3845 = vmul.f32 %v3800, 1.442695
      %v3846 = vpow.pop %v3845
      %v3847 = vmul.f32 %v3801, 1.442695
      %v3848 = vpow.pop %v3847
      %v3849 = vmul.f32 %v3802, 1.442695
      %v3850 = vpow.pop %v3849
      %v3851 = vmul.f32 %v3803, 1.442695
      %v3852 = vpow.pop %v3851
      %v3853 = vmul.f32 %v3804, 1.442695
      %v3854 = vpow.pop %v3853
      %v3855 = vmul.f32 %v3805, 1.442695
      %v3856 = vpow.pop %v3855
      %v3857 = vmul.f32 %v3806, 1.442695
      %v3858 = vpow.pop %v3857
      %v3859 = vmul.f32 %v3807, 1.442695
      %v3860 = vpow.pop %v3859
      %v3861 = vmul.f32 %v3808, 1.442695
      %v3862 = vpow.pop %v3861
      %v3863 = vmul.f32 %v3809, 1.442695
      %v3864 = vpow.pop %v3863
      %v3865 = vmul.f32 %v3810, 1.442695
      %v3866 = vpow.pop %v3865
      %v3867 = vmul.f32 %v3811, 1.442695
      %v3868 = vpow.pop %v3867
      %v3869 = vmul.f32 %v3812, 1.442695
      %v3870 = vpow.pop %v3869
      %v3871 = vmul.f32 %v3813, 1.442695
      %v3872 = vpow.pop %v3871
      %v3873 = vmul.f32 %v3814, 1.442695
      %v3874 = vpow.pop %v3873
      %v3875 = vmul.f32 %v3815, 1.442695
      %v3876 = vpow.pop %v3875
      %v3877 = vmul.f32 %v3816, 1.442695
      %v3878 = vpow.pop %v3877
      %v3879 = vmul.f32 %v3817, 1.442695
      %v3880 = vpow.pop %v3879
      %v3881 = vmul.f32 %v3818, 1.442695
      %v3882 = vpow.pop %v3881
      %v3883 = vadd.f32 %v3820, 1.0
      %v3884 = vadd.f32 %v3822, 1.0
      %v3885 = vadd.f32 %v3824, 1.0
      %v3886 = vadd.f32 %v3826, 1.0
      %v3887 = vadd.f32 %v3828, 1.0
      %v3888 = vadd.f32 %v3830, 1.0
      %v3889 = vadd.f32 %v3832, 1.0
      %v3890 = vadd.f32 %v3834, 1.0
      %v3891 = vadd.f32 %v3836, 1.0
      %v3892 = vadd.f32 %v3838, 1.0
      %v3893 = vadd.f32 %v3840, 1.0
      %v3894 = vadd.f32 %v3842, 1.0
      %v3895 = vadd.f32 %v3844, 1.0
      %v3896 = vadd.f32 %v3846, 1.0
      %v3897 = vadd.f32 %v3848, 1.0
      %v3898 = vadd.f32 %v3850, 1.0
      %v3899 = vadd.f32 %v3852, 1.0
      %v3900 = vadd.f32 %v3854, 1.0
      %v3901 = vadd.f32 %v3856, 1.0
      %v3902 = vadd.f32 %v3858, 1.0
      %v3903 = vadd.f32 %v3860, 1.0
      %v3904 = vadd.f32 %v3862, 1.0
      %v3905 = vadd.f32 %v3864, 1.0
      %v3906 = vadd.f32 %v3866, 1.0
      %v3907 = vadd.f32 %v3868, 1.0
      %v3908 = vadd.f32 %v3870, 1.0
      %v3909 = vadd.f32 %v3872, 1.0
      %v3910 = vadd.f32 %v3874, 1.0
      %v3911 = vadd.f32 %v3876, 1.0
      %v3912 = vadd.f32 %v3878, 1.0
      %v3913 = vadd.f32 %v3880, 1.0
      %v3914 = vadd.f32 %v3882, 1.0
      %v3915 = vrcp.pop %v3883
      %v3916 = vrcp.pop %v3884
      %v3917 = vrcp.pop %v3885
      %v3918 = vrcp.pop %v3886
      %v3919 = vrcp.pop %v3887
      %v3920 = vrcp.pop %v3888
      %v3921 = vrcp.pop %v3889
      %v3922 = vrcp.pop %v3890
      %v3923 = vrcp.pop %v3891
      %v3924 = vrcp.pop %v3892
      %v3925 = vrcp.pop %v3893
      %v3926 = vrcp.pop %v3894
      %v3927 = vrcp.pop %v3895
      %v3928 = vrcp.pop %v3896
      %v3929 = vrcp.pop %v3897
      %v3930 = vrcp.pop %v3898
      %v3931 = vrcp.pop %v3899
      %v3932 = vrcp.pop %v3900
      %v3933 = vrcp.pop %v3901
      %v3934 = vrcp.pop %v3902
      %v3935 = vrcp.pop %v3903
      %v3936 = vrcp.pop %v3904
      %v3937 = vrcp.pop %v3905
      %v3938 = vrcp.pop %v3906
      %v3939 = vrcp.pop %v3907
      %v3940 = vrcp.pop %v3908
      %v3941 = vrcp.pop %v3909
      %v3942 = vrcp.pop %v3910
      %v3943 = vrcp.pop %v3911
      %v3944 = vrcp.pop %v3912
      %v3945 = vrcp.pop %v3913
      %v3946 = vrcp.pop %v3914
      %v3947 = vmul.f32 %v3755, %v3915
      %v3948 = vmul.f32 %v3756, %v3916
      %v3949 = vmul.f32 %v3757, %v3917
      %v3950 = vmul.f32 %v3758, %v3918
      %v3951 = vmul.f32 %v3759, %v3919
      %v3952 = vmul.f32 %v3760, %v3920
      %v3953 = vmul.f32 %v3761, %v3921
      %v3954 = vmul.f32 %v3762, %v3922
      %v3955 = vmul.f32 %v3763, %v3923
      %v3956 = vmul.f32 %v3764, %v3924
      %v3957 = vmul.f32 %v3765, %v3925
      %v3958 = vmul.f32 %v3766, %v3926
      %v3959 = vmul.f32 %v3767, %v3927
      %v3960 = vmul.f32 %v3768, %v3928
      %v3961 = vmul.f32 %v3769, %v3929
      %v3962 = vmul.f32 %v3770, %v3930
      %v3963 = vmul.f32 %v3771, %v3931
      %v3964 = vmul.f32 %v3772, %v3932
      %v3965 = vmul.f32 %v3773, %v3933
      %v3966 = vmul.f32 %v3774, %v3934
      %v3967 = vmul.f32 %v3775, %v3935
      %v3968 = vmul.f32 %v3776, %v3936
      %v3969 = vmul.f32 %v3777, %v3937
      %v3970 = vmul.f32 %v3778, %v3938
      %v3971 = vmul.f32 %v3779, %v3939
      %v3972 = vmul.f32 %v3780, %v3940
      %v3973 = vmul.f32 %v3781, %v3941
      %v3974 = vmul.f32 %v3782, %v3942
      %v3975 = vmul.f32 %v3783, %v3943
      %v3976 = vmul.f32 %v3784, %v3944
      %v3977 = vmul.f32 %v3785, %v3945
      %v3978 = vmul.f32 %v3786, %v3946
      %v3979 = vunpack.c.l.bf16 %v520
      %v3980 = vunpack.c.l.bf16 %v521
      %v3981 = vunpack.c.l.bf16 %v522
      %v3982 = vunpack.c.l.bf16 %v523
      %v3983 = vunpack.c.l.bf16 %v524
      %v3984 = vunpack.c.l.bf16 %v525
      %v3985 = vunpack.c.l.bf16 %v526
      %v3986 = vunpack.c.l.bf16 %v527
      %v3987 = vunpack.c.l.bf16 %v528
      %v3988 = vunpack.c.l.bf16 %v529
      %v3989 = vunpack.c.l.bf16 %v530
      %v3990 = vunpack.c.l.bf16 %v531
      %v3991 = vunpack.c.l.bf16 %v532
      %v3992 = vunpack.c.l.bf16 %v533
      %v3993 = vunpack.c.l.bf16 %v534
      %v3994 = vunpack.c.l.bf16 %v535
      %v3995 = vunpack.c.l.bf16 %v536
      %v3996 = vunpack.c.l.bf16 %v537
      %v3997 = vunpack.c.l.bf16 %v538
      %v3998 = vunpack.c.l.bf16 %v539
      %v3999 = vunpack.c.l.bf16 %v540
      %v4000 = vunpack.c.l.bf16 %v541
      %v4001 = vunpack.c.l.bf16 %v542
      %v4002 = vunpack.c.l.bf16 %v543
      %v4003 = vunpack.c.l.bf16 %v544
      %v4004 = vunpack.c.l.bf16 %v545
      %v4005 = vunpack.c.l.bf16 %v546
      %v4006 = vunpack.c.l.bf16 %v547
      %v4007 = vunpack.c.l.bf16 %v548
      %v4008 = vunpack.c.l.bf16 %v549
      %v4009 = vunpack.c.l.bf16 %v550
      %v4010 = vunpack.c.l.bf16 %v551
      %v4011 = vadd.f32 %v3947, %v3979
      %v4012 = vadd.f32 %v3948, %v3980
      %v4013 = vadd.f32 %v3949, %v3981
      %v4014 = vadd.f32 %v3950, %v3982
      %v4015 = vadd.f32 %v3951, %v3983
      %v4016 = vadd.f32 %v3952, %v3984
      %v4017 = vadd.f32 %v3953, %v3985
      %v4018 = vadd.f32 %v3954, %v3986
      %v4019 = vadd.f32 %v3955, %v3987
      %v4020 = vadd.f32 %v3956, %v3988
      %v4021 = vadd.f32 %v3957, %v3989
      %v4022 = vadd.f32 %v3958, %v3990
      %v4023 = vadd.f32 %v3959, %v3991
      %v4024 = vadd.f32 %v3960, %v3992
      %v4025 = vadd.f32 %v3961, %v3993
      %v4026 = vadd.f32 %v3962, %v3994
      %v4027 = vadd.f32 %v3963, %v3995
      %v4028 = vadd.f32 %v3964, %v3996
      %v4029 = vadd.f32 %v3965, %v3997
      %v4030 = vadd.f32 %v3966, %v3998
      %v4031 = vadd.f32 %v3967, %v3999
      %v4032 = vadd.f32 %v3968, %v4000
      %v4033 = vadd.f32 %v3969, %v4001
      %v4034 = vadd.f32 %v3970, %v4002
      %v4035 = vadd.f32 %v3971, %v4003
      %v4036 = vadd.f32 %v3972, %v4004
      %v4037 = vadd.f32 %v3973, %v4005
      %v4038 = vadd.f32 %v3974, %v4006
      %v4039 = vadd.f32 %v3975, %v4007
      %v4040 = vadd.f32 %v3976, %v4008
      %v4041 = vadd.f32 %v3977, %v4009
      %v4042 = vadd.f32 %v3978, %v4010
      %v4043 = vpack.c.bf16 %v4012, %v4011
      %v4044 = vpack.c.bf16 %v4014, %v4013
      %v4045 = vpack.c.bf16 %v4016, %v4015
      %v4046 = vpack.c.bf16 %v4018, %v4017
      %v4047 = vpack.c.bf16 %v4020, %v4019
      %v4048 = vpack.c.bf16 %v4022, %v4021
      %v4049 = vpack.c.bf16 %v4024, %v4023
      %v4050 = vpack.c.bf16 %v4026, %v4025
      %v4051 = vpack.c.bf16 %v4028, %v4027
      %v4052 = vpack.c.bf16 %v4030, %v4029
      %v4053 = vpack.c.bf16 %v4032, %v4031
      %v4054 = vpack.c.bf16 %v4034, %v4033
      %v4055 = vpack.c.bf16 %v4036, %v4035
      %v4056 = vpack.c.bf16 %v4038, %v4037
      %v4057 = vpack.c.bf16 %v4040, %v4039
      %v4058 = vpack.c.bf16 %v4042, %v4041
      %v4075 = vunpack.c.l.b16 %v4043
      %v4076 = vunpack.c.h.b16 %v4043
      %v4077 = vunpack.c.l.b16 %v4044
      %v4078 = vunpack.c.h.b16 %v4044
      %v4079 = vunpack.c.l.b16 %v4045
      %v4080 = vunpack.c.h.b16 %v4045
      %v4081 = vunpack.c.l.b16 %v4046
      %v4082 = vunpack.c.h.b16 %v4046
      %v4083 = vunpack.c.l.b16 %v4047
      %v4084 = vunpack.c.h.b16 %v4047
      %v4085 = vunpack.c.l.b16 %v4048
      %v4086 = vunpack.c.h.b16 %v4048
      %v4087 = vunpack.c.l.b16 %v4049
      %v4088 = vunpack.c.h.b16 %v4049
      %v4089 = vunpack.c.l.b16 %v4050
      %v4090 = vunpack.c.h.b16 %v4050
      %v4091 = vunpack.c.l.b16 %v4051
      %v4092 = vunpack.c.h.b16 %v4051
      %v4093 = vunpack.c.l.b16 %v4052
      %v4094 = vunpack.c.h.b16 %v4052
      %v4095 = vunpack.c.l.b16 %v4053
      %v4096 = vunpack.c.h.b16 %v4053
      %v4097 = vunpack.c.l.b16 %v4054
      %v4098 = vunpack.c.h.b16 %v4054
      %v4099 = vunpack.c.l.b16 %v4055
      %v4100 = vunpack.c.h.b16 %v4055
      %v4101 = vunpack.c.l.b16 %v4056
      %v4102 = vunpack.c.h.b16 %v4056
      %v4103 = vunpack.c.l.b16 %v4057
      %v4104 = vunpack.c.h.b16 %v4057
      %v4105 = vunpack.c.l.b16 %v4058
      %v4106 = vunpack.c.h.b16 %v4058
      %v4107 = vpack.c.b16 %v4075, %v4075
      %v4108 = vpack.c.b16 %v4076, %v4076
      %v4109 = vpack.c.b16 %v4077, %v4077
      %v4110 = vpack.c.b16 %v4078, %v4078
      %v4111 = vpack.c.b16 %v4079, %v4079
      %v4112 = vpack.c.b16 %v4080, %v4080
      %v4113 = vpack.c.b16 %v4081, %v4081
      %v4114 = vpack.c.b16 %v4082, %v4082
      %v4115 = vpack.c.b16 %v4083, %v4083
      %v4116 = vpack.c.b16 %v4084, %v4084
      %v4117 = vpack.c.b16 %v4085, %v4085
      %v4118 = vpack.c.b16 %v4086, %v4086
      %v4119 = vpack.c.b16 %v4087, %v4087
      %v4120 = vpack.c.b16 %v4088, %v4088
      %v4121 = vpack.c.b16 %v4089, %v4089
      %v4122 = vpack.c.b16 %v4090, %v4090
      %v4123 = vpack.c.b16 %v4091, %v4091
      %v4124 = vpack.c.b16 %v4092, %v4092
      %v4125 = vpack.c.b16 %v4093, %v4093
      %v4126 = vpack.c.b16 %v4094, %v4094
      %v4127 = vpack.c.b16 %v4095, %v4095
      %v4128 = vpack.c.b16 %v4096, %v4096
      %v4129 = vpack.c.b16 %v4097, %v4097
      %v4130 = vpack.c.b16 %v4098, %v4098
      %v4131 = vpack.c.b16 %v4099, %v4099
      %v4132 = vpack.c.b16 %v4100, %v4100
      %v4133 = vpack.c.b16 %v4101, %v4101
      %v4134 = vpack.c.b16 %v4102, %v4102
      %v4135 = vpack.c.b16 %v4103, %v4103
      %v4136 = vpack.c.b16 %v4104, %v4104
      %v4137 = vpack.c.b16 %v4105, %v4105
      %v4138 = vpack.c.b16 %v4106, %v4106
      %4171 = vst [vmem:[%s499] sm:$0xf] %v4107
      %4172 = vst [vmem:[%s499 + $0x4] sm:$0xf] %v4108
      %4173 = vst [vmem:[%s499 + $0x8] sm:$0xf] %v4109
      %4174 = vst [vmem:[%s499 + $0xc] sm:$0xf] %v4110
      %4175 = vst [vmem:[%s499 + $0x10] sm:$0xf] %v4111
      %4176 = vst [vmem:[%s499 + $0x14] sm:$0xf] %v4112
      %4177 = vst [vmem:[%s499 + $0x18] sm:$0xf] %v4113
      %4178 = vst [vmem:[%s499 + $0x1c] sm:$0xf] %v4114
      %4179 = vst [vmem:[%s499 + $0x20] sm:$0xf] %v4115
      %4180 = vst [vmem:[%s499 + $0x24] sm:$0xf] %v4116
      %4181 = vst [vmem:[%s499 + $0x28] sm:$0xf] %v4117
      %4182 = vst [vmem:[%s499 + $0x2c] sm:$0xf] %v4118
      %4183 = vst [vmem:[%s499 + $0x30] sm:$0xf] %v4119
      %4184 = vst [vmem:[%s499 + $0x34] sm:$0xf] %v4120
      %4185 = vst [vmem:[%s499 + $0x38] sm:$0xf] %v4121
      %4186 = vst [vmem:[%s499 + $0x3c] sm:$0xf] %v4122
      %4187 = vst [vmem:[%s499 + $0x40] sm:$0xf] %v4123
      %4188 = vst [vmem:[%s499 + $0x44] sm:$0xf] %v4124
      %4189 = vst [vmem:[%s499 + $0x48] sm:$0xf] %v4125
      %4190 = vst [vmem:[%s499 + $0x4c] sm:$0xf] %v4126
      %4191 = vst [vmem:[%s499 + $0x50] sm:$0xf] %v4127
      %4192 = vst [vmem:[%s499 + $0x54] sm:$0xf] %v4128
      %4193 = vst [vmem:[%s499 + $0x58] sm:$0xf] %v4129
      %4194 = vst [vmem:[%s499 + $0x5c] sm:$0xf] %v4130
      %4195 = vst [vmem:[%s499 + $0x60] sm:$0xf] %v4131
      %4196 = vst [vmem:[%s499 + $0x64] sm:$0xf] %v4132
      %4197 = vst [vmem:[%s499 + $0x68] sm:$0xf] %v4133
      %4198 = vst [vmem:[%s499 + $0x6c] sm:$0xf] %v4134
      %4199 = vst [vmem:[%s499 + $0x70] sm:$0xf] %v4135
      %4200 = vst [vmem:[%s499 + $0x74] sm:$0xf] %v4136
      %4201 = vst [vmem:[%s499 + $0x78] sm:$0xf] %v4137
      %4202 = vst [vmem:[%s499 + $0x7c] sm:$0xf] %v4138
      %s4203 = smul.u32 16, %s25
      %p4204 = scmp.lt.s32.totalorder %s24, 1
      %s4205 = scalar_select %p4204, %s24, 1
      %p4206 = scmp.lt.s32.totalorder %s4203, 15
      %s4207 = scalar_select %p4206, %s4203, 15
      %s4208 = smul.addr %s4207, 2
      %s4209 = smul.addr %s4205, 32
      %s4210 = sadd.s32 %s4208, %s4209
      %s4211 = smul.addr %s4210, 4
      %s4212 = scalar_lea.vmem %s9, %s4211
      // Predicated region
      $region57: #{_forward_impl.1} parent=55 // pred_check
        %p4213 = pneg %p278
      $region58: #{_forward_impl.1} parent=55 // pred_check_branch
        %4215 = sbr.rel (%p4213) target = $region60
      $region59: #{_forward_impl.1} parent=55 // pred_region
        %s4216 = smul.u32 16, %s25
      $region60: #{_forward_impl.1} parent=55 // pred_fallthru
        _
    $region56: #{_forward_impl.1} parent=5 // pred_fallthru
      _
    %p4217 = scmp.le.s32.totalorder 2, %s15
    // Predicated region
    $region61: #{_forward_impl.1} parent=5 // pred_check
      %p4218 = pneg %p4217
    $region62: #{_forward_impl.1} parent=5 // pred_check_branch
      %4220 = sbr.rel (%p4218) target = $region64
    $region63: #{_forward_impl.1} parent=5 // pred_region
      %s4221 = ssub.s32 %s15, 2
      // Predicated region
      $region65: #{_forward_impl.1} parent=63 // pred_check
        %p4222 = pneg %p284
      $region66: #{_forward_impl.1} parent=63 // pred_check_branch
        %4224 = sbr.rel (%p4222) target = $region68
      $region67: #{_forward_impl.1} parent=63 // pred_region
        %s4225 = smul.u32 16, %s27
        %p4226 = scmp.lt.s32.totalorder %s26, 1
        %s4227 = scalar_select %p4226, %s26, 1
        %p4228 = scmp.lt.s32.totalorder %s4225, 15
        %s4229 = scalar_select %p4228, %s4225, 15
        %s4230 = smul.addr %s4229, 2
        %s4231 = smul.addr %s4227, 32
        %s4232 = sadd.s32 %s4230, %s4231
        %s4233 = smul.addr %s4232, 4
        %s4234 = scalar_lea.vmem %s9, %s4233
      $region68: #{_forward_impl.1} parent=63 // pred_fallthru
        _
    $region64: #{_forward_impl.1} parent=5 // pred_fallthru
      _
  $region6: #{_forward_impl.1} parent=0 // loop_footer
    %s19 = sadd.s32 1, %s15
  $region7: #{_forward_impl.1} parent=0 // loop_footer_branch
    %14 = sbr.rel target = $region3
  $region8: #{_forward_impl.1} parent=0 // loop_exit
    _

// kernel: _forward_impl.1
$region0: #{_forward_impl.1}
  #allocation0 [shape = 'u32[]', space=smem, size = 0x4, offset = 0x4, fixed_abs, tag = 'smem constant byte address 0x4 - core index']
  #allocation1 [shape = 'u32[144,128]{1,0:T(1,128)}', space=vmem, size = 0x12000, scoped, tag = 'internal scratch']
  %s0 = inlined_call_operand.vmem [shape: bf16[2,16,16,128], index: 0, kind: input, shape index: {}, may-alias: {0,1,2}]
  %s1 = inlined_call_operand.vmem [shape: bf16[2,16,16,128], index: 1, kind: input, shape index: {}, may-alias: {0,1,2}]
  %s2 = inlined_call_operand.vmem [shape: bf16[2,16,16,128], index: 2, kind: input, shape index: {}, may-alias: {0,1,2}]
  %s3 = inlined_call_operand.vmem [shape: bf16[128,128], index: 3, kind: input, shape index: {}]
  %s4 = inlined_call_operand.vmem [shape: f32[1,128], index: 4, kind: input, shape index: {}]
  %s5 = inlined_call_operand.vmem [shape: f32[1,128], index: 5, kind: input, shape index: {}]
  %s6 = inlined_call_operand.vmem [shape: bf16[1152,128], index: 6, kind: input, shape index: {}]
  %s7 = inlined_call_operand.vmem [shape: f32[1,128], index: 7, kind: input, shape index: {}]
  %s8 = inlined_call_operand.vmem [shape: f32[1,128], index: 8, kind: input, shape index: {}]
  %s9 = inlined_call_operand.vmem [shape: bf16[2,16,16,128], index: 9, kind: output, shape index: {}]
  %s10 = sld [smem:[#allocation0]]
  $region69: #{_forward_impl.1} parent=0
    _
  %s12 = ssub.s32 1, %s10
  %s13 = scalar_select 0, %s12, %s10
  loop: start=0, step=1, limit=4
  $region2: #{_forward_impl.1} parent=0 // loop_pre_header
    _
  $region3: #{_forward_impl.1} parent=0 // loop_header
    %s15 = sphi 0, %s19
    %p16 = scmp.ge.s32.totalorder %s15, 4
    %s22 = sphi 0, %s34
    %s23 = sphi 0, %s30
    %s24 = sphi 0, %s22
    %s25 = sphi 0, %s23
    %s26 = sphi 0, %s24
    %s27 = sphi 0, %s25
    %s39 = sphi 0, %s41
    %s42 = sphi 0, %s39
    %s43 = sphi 0, %s42
    %s59 = sphi 0, %s43
    %s75 = sphi 0, %s77
    %s78 = sphi 0, %s75
    %s79 = sphi 0, %s78
    %s95 = sphi 0, %s79
    %s111 = sphi 0, %s113
    %s114 = sphi 0, %s111
    %s115 = sphi 0, %s114
    %s131 = sphi 0, %s115
    %s135 = sphi 0, %s135
    %s137 = sphi 0, %s135
    %s138 = sphi 0, %s137
    %s152 = sphi 0, %s138
    %s156 = sphi 0, %s156
    %s158 = sphi 0, %s156
    %s159 = sphi 0, %s158
    %s173 = sphi 0, %s159
    %s177 = sphi 0, %s177
    %s179 = sphi 0, %s177
    %s180 = sphi 0, %s179
    %s194 = sphi 0, %s180
    %s198 = sphi 0, %s198
    %s200 = sphi 0, %s198
    %s201 = sphi 0, %s200
    %s215 = sphi 0, %s201
    %s219 = sphi 0, %s219
    %s221 = sphi 0, %s219
    %s222 = sphi 0, %s221
    %s236 = sphi 0, %s222
    %s240 = sphi 0, %s240
    %s242 = sphi 0, %s240
    %s243 = sphi 0, %s242
    %s257 = sphi 0, %s243
    %s265 = sphi 0, %s267
    %s268 = sphi 0, %s265
    %s269 = sphi 0, %s268
    %s285 = sphi 0, %s269
  $region4: #{_forward_impl.1} parent=0 // loop_header_branch
    %18 = sbr.rel (%p16) target = $region8
  $region5: #{_forward_impl.1} parent=0 // loop_body
    %s20 = ssub.s32 %s15, 1
    %s21 = ssub.s32 %s15, 2
    %s28 = sadd.s32 1, %s23
    %p29 = scmp.ge.s32.totalorder %s28, 1
    %s30 = scalar_select %p29, 0, %s28
    %s31 = sadd.s32 1, %s22
    %s32 = scalar_select %p29, %s31, %s22
    %p33 = scmp.ge.s32.totalorder %s32, 2
    %s34 = scalar_select %p33, 0, %s32
    %s35 = ssub.s32 %s22, %s34
    %s36 = ssub.s32 %s23, %s30
    %s37 = sor.u32 %s35, %s36
    %p38 = scmp.eq.s32.totalorder %s37, 0
    %s40 = sadd.s32 %s39, 1
    %s41 = scalar_select %p38, %s39, %s40
    %p44 = pneg %p38
    %p45 = scmp.eq.s32.totalorder %s15, 1
    %p46 = por %p44, %p45
    %p47 = scmp.ne.s32.totalorder %s39, %s42
    %p48 = scmp.eq.s32.totalorder %s15, 0
    %p49 = por %p47, %p48
    %p50 = scmp.ne.s32.totalorder %s39, %s42
    %p51 = scmp.eq.s32.totalorder %s20, 1
    %p52 = por %p50, %p51
    %p53 = scmp.ne.s32.totalorder %s42, %s43
    %p54 = scmp.eq.s32.totalorder %s20, 0
    %p55 = por %p53, %p54
    %p56 = scmp.ne.s32.totalorder %s42, %s43
    %p57 = scmp.eq.s32.totalorder %s21, 1
    %p58 = por %p56, %p57
    %p60 = scmp.ne.s32.totalorder %s43, %s59
    %p61 = scmp.eq.s32.totalorder %s21, 0
    %p62 = por %p60, %p61
    %s63 = smul.u32 %s23, 16
    %s64 = ssub.s32 %s63, 1
    %p65 = scmp.gt.s32.totalorder %s64, 0
    %s66 = scalar_select %p65, %s64, 0
    %s67 = smul.u32 %s30, 16
    %s68 = ssub.s32 %s67, 1
    %p69 = scmp.gt.s32.totalorder %s68, 0
    %s70 = scalar_select %p69, %s68, 0
    %s71 = ssub.s32 %s22, %s34
    %s72 = ssub.s32 %s66, %s70
    %s73 = sor.u32 %s71, %s72
    %p74 = scmp.eq.s32.totalorder %s73, 0
    %s76 = sadd.s32 %s75, 1
    %s77 = scalar_select %p74, %s75, %s76
    %p80 = pneg %p74
    %p81 = scmp.eq.s32.totalorder %s15, 1
    %p82 = por %p80, %p81
    %p83 = scmp.ne.s32.totalorder %s75, %s78
    %p84 = scmp.eq.s32.totalorder %s15, 0
    %p85 = por %p83, %p84
    %p86 = scmp.ne.s32.totalorder %s75, %s78
    %p87 = scmp.eq.s32.totalorder %s20, 1
    %p88 = por %p86, %p87
    %p89 = scmp.ne.s32.totalorder %s78, %s79
    %p90 = scmp.eq.s32.totalorder %s20, 0
    %p91 = por %p89, %p90
    %p92 = scmp.ne.s32.totalorder %s78, %s79
    %p93 = scmp.eq.s32.totalorder %s21, 1
    %p94 = por %p92, %p93
    %p96 = scmp.ne.s32.totalorder %s79, %s95
    %p97 = scmp.eq.s32.totalorder %s21, 0
    %p98 = por %p96, %p97
    %s99 = smul.u32 %s23, 16
    %s100 = sadd.s32 %s99, 16
    %p101 = scmp.lt.s32.totalorder %s100, 15
    %s102 = scalar_select %p101, %s100, 15
    %s103 = smul.u32 %s30, 16
    %s104 = sadd.s32 %s103, 16
    %p105 = scmp.lt.s32.totalorder %s104, 15
    %s106 = scalar_select %p105, %s104, 15
    %s107 = ssub.s32 %s22, %s34
    %s108 = ssub.s32 %s102, %s106
    %s109 = sor.u32 %s107, %s108
    %p110 = scmp.eq.s32.totalorder %s109, 0
    %s112 = sadd.s32 %s111, 1
    %s113 = scalar_select %p110, %s111, %s112
    %p116 = pneg %p110
    %p117 = scmp.eq.s32.totalorder %s15, 1
    %p118 = por %p116, %p117
    %p119 = scmp.ne.s32.totalorder %s111, %s114
    %p120 = scmp.eq.s32.totalorder %s15, 0
    %p121 = por %p119, %p120
    %p122 = scmp.ne.s32.totalorder %s111, %s114
    %p123 = scmp.eq.s32.totalorder %s20, 1
    %p124 = por %p122, %p123
    %p125 = scmp.ne.s32.totalorder %s114, %s115
    %p126 = scmp.eq.s32.totalorder %s20, 0
    %p127 = por %p125, %p126
    %p128 = scmp.ne.s32.totalorder %s114, %s115
    %p129 = scmp.eq.s32.totalorder %s21, 1
    %p130 = por %p128, %p129
    %p132 = scmp.ne.s32.totalorder %s115, %s131
    %p133 = scmp.eq.s32.totalorder %s21, 0
    %p134 = por %p132, %p133
    %s136 = sadd.s32 %s135, 1
    %p139 = scmp.eq.s32.totalorder %s15, 1
    %p140 = scmp.ne.s32.totalorder %s135, %s137
    %p141 = scmp.eq.s32.totalorder %s15, 0
    %p142 = por %p140, %p141
    %p143 = scmp.ne.s32.totalorder %s135, %s137
    %p144 = scmp.eq.s32.totalorder %s20, 1
    %p145 = por %p143, %p144
    %p146 = scmp.ne.s32.totalorder %s137, %s138
    %p147 = scmp.eq.s32.totalorder %s20, 0
    %p148 = por %p146, %p147
    %p149 = scmp.ne.s32.totalorder %s137, %s138
    %p150 = scmp.eq.s32.totalorder %s21, 1
    %p151 = por %p149, %p150
    %p153 = scmp.ne.s32.totalorder %s138, %s152
    %p154 = scmp.eq.s32.totalorder %s21, 0
    %p155 = por %p153, %p154
    %s157 = sadd.s32 %s156, 1
    %p160 = scmp.eq.s32.totalorder %s15, 1
    %p161 = scmp.ne.s32.totalorder %s156, %s158
    %p162 = scmp.eq.s32.totalorder %s15, 0
    %p163 = por %p161, %p162
    %p164 = scmp.ne.s32.totalorder %s156, %s158
    %p165 = scmp.eq.s32.totalorder %s20, 1
    %p166 = por %p164, %p165
    %p167 = scmp.ne.s32.totalorder %s158, %s159
    %p168 = scmp.eq.s32.totalorder %s20, 0
    %p169 = por %p167, %p168
    %p170 = scmp.ne.s32.totalorder %s158, %s159
    %p171 = scmp.eq.s32.totalorder %s21, 1
    %p172 = por %p170, %p171
    %p174 = scmp.ne.s32.totalorder %s159, %s173
    %p175 = scmp.eq.s32.totalorder %s21, 0
    %p176 = por %p174, %p175
    %s178 = sadd.s32 %s177, 1
    %p181 = scmp.eq.s32.totalorder %s15, 1
    %p182 = scmp.ne.s32.totalorder %s177, %s179
    %p183 = scmp.eq.s32.totalorder %s15, 0
    %p184 = por %p182, %p183
    %p185 = scmp.ne.s32.totalorder %s177, %s179
    %p186 = scmp.eq.s32.totalorder %s20, 1
    %p187 = por %p185, %p186
    %p188 = scmp.ne.s32.totalorder %s179, %s180
    %p189 = scmp.eq.s32.totalorder %s20, 0
    %p190 = por %p188, %p189
    %p191 = scmp.ne.s32.totalorder %s179, %s180
    %p192 = scmp.eq.s32.totalorder %s21, 1
    %p193 = por %p191, %p192
    %p195 = scmp.ne.s32.totalorder %s180, %s194
    %p196 = scmp.eq.s32.totalorder %s21, 0
    %p197 = por %p195, %p196
    %s199 = sadd.s32 %s198, 1
    %p202 = scmp.eq.s32.totalorder %s15, 1
    %p203 = scmp.ne.s32.totalorder %s198, %s200
    %p204 = scmp.eq.s32.totalorder %s15, 0
    %p205 = por %p203, %p204
    %p206 = scmp.ne.s32.totalorder %s198, %s200
    %p207 = scmp.eq.s32.totalorder %s20, 1
    %p208 = por %p206, %p207
    %p209 = scmp.ne.s32.totalorder %s200, %s201
    %p210 = scmp.eq.s32.totalorder %s20, 0
    %p211 = por %p209, %p210
    %p212 = scmp.ne.s32.totalorder %s200, %s201
    %p213 = scmp.eq.s32.totalorder %s21, 1
    %p214 = por %p212, %p213
    %p216 = scmp.ne.s32.totalorder %s201, %s215
    %p217 = scmp.eq.s32.totalorder %s21, 0
    %p218 = por %p216, %p217
    %s220 = sadd.s32 %s219, 1
    %p223 = scmp.eq.s32.totalorder %s15, 1
    %p224 = scmp.ne.s32.totalorder %s219, %s221
    %p225 = scmp.eq.s32.totalorder %s15, 0
    %p226 = por %p224, %p225
    %p227 = scmp.ne.s32.totalorder %s219, %s221
    %p228 = scmp.eq.s32.totalorder %s20, 1
    %p229 = por %p227, %p228
    %p230 = scmp.ne.s32.totalorder %s221, %s222
    %p231 = scmp.eq.s32.totalorder %s20, 0
    %p232 = por %p230, %p231
    %p233 = scmp.ne.s32.totalorder %s221, %s222
    %p234 = scmp.eq.s32.totalorder %s21, 1
    %p235 = por %p233, %p234
    %p237 = scmp.ne.s32.totalorder %s222, %s236
    %p238 = scmp.eq.s32.totalorder %s21, 0
    %p239 = por %p237, %p238
    %s241 = sadd.s32 %s240, 1
    %p244 = scmp.eq.s32.totalorder %s15, 1
    %p245 = scmp.ne.s32.totalorder %s240, %s242
    %p246 = scmp.eq.s32.totalorder %s15, 0
    %p247 = por %p245, %p246
    %p248 = scmp.ne.s32.totalorder %s240, %s242
    %p249 = scmp.eq.s32.totalorder %s20, 1
    %p250 = por %p248, %p249
    %p251 = scmp.ne.s32.totalorder %s242, %s243
    %p252 = scmp.eq.s32.totalorder %s20, 0
    %p253 = por %p251, %p252
    %p254 = scmp.ne.s32.totalorder %s242, %s243
    %p255 = scmp.eq.s32.totalorder %s21, 1
    %p256 = por %p254, %p255
    %p258 = scmp.ne.s32.totalorder %s243, %s257
    %p259 = scmp.eq.s32.totalorder %s21, 0
    %p260 = por %p258, %p259
    %s261 = ssub.s32 %s22, %s34
    %s262 = ssub.s32 %s23, %s30
    %s263 = sor.u32 %s261, %s262
    %p264 = scmp.eq.s32.totalorder %s263, 0
    %s266 = sadd.s32 %s265, 1
    %s267 = scalar_select %p264, %s265, %s266
    %p270 = pneg %p264
    %p271 = scmp.eq.s32.totalorder %s15, 1
    %p272 = por %p270, %p271
    %p273 = scmp.ne.s32.totalorder %s265, %s268
    %p274 = scmp.eq.s32.totalorder %s15, 0
    %p275 = por %p273, %p274
    %p276 = scmp.ne.s32.totalorder %s265, %s268
    %p277 = scmp.eq.s32.totalorder %s20, 1
    %p278 = por %p276, %p277
    %p279 = scmp.ne.s32.totalorder %s268, %s269
    %p280 = scmp.eq.s32.totalorder %s20, 0
    %p281 = por %p279, %p280
    %p282 = scmp.ne.s32.totalorder %s268, %s269
    %p283 = scmp.eq.s32.totalorder %s21, 1
    %p284 = por %p282, %p283
    %p286 = scmp.ne.s32.totalorder %s269, %s285
    %p287 = scmp.eq.s32.totalorder %s21, 0
    %p288 = por %p286, %p287
    %p289 = scmp.le.s32.totalorder 1, %s15
    %p290 = scmp.lt.s32.totalorder %s15, 3
    %p291 = pnand %p289, %p290
    %p292 = pneg %p291
    // Predicated region
    $region9: #{_forward_impl.1} parent=5 // pred_check
      _
    $region10: #{_forward_impl.1} parent=5 // pred_check_branch
      %294 = sbr.rel (%p291) target = $region12
    $region11: #{_forward_impl.1} parent=5 // pred_region
      %s295 = ssub.s32 %s15, 1
      // Predicated region
      $region13: #{_forward_impl.1} parent=11 // pred_check
        %p296 = pneg %p148
      $region14: #{_forward_impl.1} parent=11 // pred_check_branch
        %298 = sbr.rel (%p296) target = $region16
      $region15: #{_forward_impl.1} parent=11 // pred_region
        _
      $region16: #{_forward_impl.1} parent=11 // pred_fallthru
        _
      // Predicated region
      $region17: #{_forward_impl.1} parent=11 // pred_check
        %p299 = pneg %p169
      $region18: #{_forward_impl.1} parent=11 // pred_check_branch
        %301 = sbr.rel (%p299) target = $region20
      $region19: #{_forward_impl.1} parent=11 // pred_region
        _
      $region20: #{_forward_impl.1} parent=11 // pred_fallthru
        _
      // Predicated region
      $region21: #{_forward_impl.1} parent=11 // pred_check
        %p302 = pneg %p190
      $region22: #{_forward_impl.1} parent=11 // pred_check_branch
        %304 = sbr.rel (%p302) target = $region24
      $region23: #{_forward_impl.1} parent=11 // pred_region
        _
      $region24: #{_forward_impl.1} parent=11 // pred_fallthru
        _
      // Predicated region
      $region25: #{_forward_impl.1} parent=11 // pred_check
        %p305 = pneg %p211
      $region26: #{_forward_impl.1} parent=11 // pred_check_branch
        %307 = sbr.rel (%p305) target = $region28
      $region27: #{_forward_impl.1} parent=11 // pred_region
        _
      $region28: #{_forward_impl.1} parent=11 // pred_fallthru
        _
      // Predicated region
      $region29: #{_forward_impl.1} parent=11 // pred_check
        %p308 = pneg %p232
      $region30: #{_forward_impl.1} parent=11 // pred_check_branch
        %310 = sbr.rel (%p308) target = $region32
      $region31: #{_forward_impl.1} parent=11 // pred_region
        _
      $region32: #{_forward_impl.1} parent=11 // pred_fallthru
        _
      // Predicated region
      $region33: #{_forward_impl.1} parent=11 // pred_check
        %p311 = pneg %p253
      $region34: #{_forward_impl.1} parent=11 // pred_check_branch
        %313 = sbr.rel (%p311) target = $region36
      $region35: #{_forward_impl.1} parent=11 // pred_region
        _
      $region36: #{_forward_impl.1} parent=11 // pred_fallthru
        _
    $region12: #{_forward_impl.1} parent=5 // pred_fallthru
      _
    %p314 = scmp.lt.s32.totalorder %s15, 2
    // Predicated region
    $region37: #{_forward_impl.1} parent=5 // pred_check
      %p315 = pneg %p314
    $region38: #{_forward_impl.1} parent=5 // pred_check_branch
      %317 = sbr.rel (%p315) target = $region40
    $region39: #{_forward_impl.1} parent=5 // pred_region
      // Predicated region
      $region41: #{_forward_impl.1} parent=39 // pred_check
        %p318 = pneg %p49
      $region42: #{_forward_impl.1} parent=39 // pred_check_branch
        %320 = sbr.rel (%p318) target = $region44
      $region43: #{_forward_impl.1} parent=39 // pred_region
        %s321 = smul.u32 16, %s23
        %p322 = scmp.lt.s32.totalorder %s22, 1
        %s323 = scalar_select %p322, %s22, 1
        %p324 = scmp.lt.s32.totalorder %s321, 15
        %s325 = scalar_select %p324, %s321, 15
        %s326 = smul.addr %s325, 2
        %s327 = smul.addr %s323, 32
        %s328 = sadd.s32 %s326, %s327
        %s329 = smul.addr %s328, 4
        %s330 = scalar_lea.vmem %s0, %s329
        %s331 = smul.u32 16, %s23
      $region44: #{_forward_impl.1} parent=39 // pred_fallthru
        _
      // Predicated region
      $region45: #{_forward_impl.1} parent=39 // pred_check
        %p332 = pneg %p85
      $region46: #{_forward_impl.1} parent=39 // pred_check_branch
        %334 = sbr.rel (%p332) target = $region48
      $region47: #{_forward_impl.1} parent=39 // pred_region
        %s335 = smul.u32 %s23, 16
        %s336 = ssub.s32 %s335, 1
        %p337 = scmp.gt.s32.totalorder %s336, 0
        %s338 = scalar_select %p337, %s336, 0
        %p339 = scmp.lt.s32.totalorder %s22, 1
        %s340 = scalar_select %p339, %s22, 1
        %p341 = scmp.lt.s32.totalorder %s338, 15
        %s342 = scalar_select %p341, %s338, 15
        %s343 = smul.addr %s342, 2
        %s344 = smul.addr %s340, 32
        %s345 = sadd.s32 %s343, %s344
        %s346 = smul.addr %s345, 4
        %s347 = scalar_lea.vmem %s1, %s346
        %s348 = smul.u32 %s23, 16
        %s349 = ssub.s32 %s348, 1
        %p350 = scmp.gt.s32.totalorder %s349, 0
        %s351 = scalar_select %p350, %s349, 0
      $region48: #{_forward_impl.1} parent=39 // pred_fallthru
        _
      // Predicated region
      $region49: #{_forward_impl.1} parent=39 // pred_check
        %p352 = pneg %p121
      $region50: #{_forward_impl.1} parent=39 // pred_check_branch
        %354 = sbr.rel (%p352) target = $region52
      $region51: #{_forward_impl.1} parent=39 // pred_region
        %s355 = smul.u32 %s23, 16
        %s356 = sadd.s32 %s355, 16
        %p357 = scmp.lt.s32.totalorder %s356, 15
        %s358 = scalar_select %p357, %s356, 15
        %p359 = scmp.lt.s32.totalorder %s22, 1
        %s360 = scalar_select %p359, %s22, 1
        %p361 = scmp.lt.s32.totalorder %s358, 15
        %s362 = scalar_select %p361, %s358, 15
        %s363 = smul.addr %s362, 2
        %s364 = smul.addr %s360, 32
        %s365 = sadd.s32 %s363, %s364
        %s366 = smul.addr %s365, 4
        %s367 = scalar_lea.vmem %s2, %s366
        %s368 = smul.u32 %s23, 16
        %s369 = sadd.s32 %s368, 16
        %p370 = scmp.lt.s32.totalorder %s369, 15
        %s371 = scalar_select %p370, %s369, 15
      $region52: #{_forward_impl.1} parent=39 // pred_fallthru
        _
    $region40: #{_forward_impl.1} parent=5 // pred_fallthru
      _
    %p372 = scmp.le.s32.totalorder 1, %s15
    %p373 = scmp.lt.s32.totalorder %s15, 3
    %p374 = pnand %p372, %p373
    %p375 = pneg %p374
    // Predicated region
    $region53: #{_forward_impl.1} parent=5 // pred_check
      _
    $region54: #{_forward_impl.1} parent=5 // pred_check_branch
      %377 = sbr.rel (%p374) target = $region56
    $region55: #{_forward_impl.1} parent=5 // pred_region
      %s378 = ssub.s32 %s15, 1
      %s379 = smul.u32 16, %s25
      %p380 = scmp.lt.s32.totalorder %s24, 1
      %s381 = scalar_select %p380, %s24, 1
      %p382 = scmp.lt.s32.totalorder %s379, 15
      %s383 = scalar_select %p382, %s379, 15
      %s384 = smul.addr %s383, 2
      %s385 = smul.addr %s381, 32
      %s386 = sadd.s32 %s384, %s385
      %s387 = smul.addr %s386, 4
      %s388 = scalar_lea.vmem %s0, %s387
      %p389 = pneg %p55
      %p390 = pneg %p52
      %s391 = smul.u32 %s25, 16
      %s392 = ssub.s32 %s391, 1
      %p393 = scmp.gt.s32.totalorder %s392, 0
      %s394 = scalar_select %p393, %s392, 0
      %p395 = scmp.lt.s32.totalorder %s24, 1
      %s396 = scalar_select %p395, %s24, 1
      %p397 = scmp.lt.s32.totalorder %s394, 15
      %s398 = scalar_select %p397, %s394, 15
      %s399 = smul.addr %s398, 2
      %s400 = smul.addr %s396, 32
      %s401 = sadd.s32 %s399, %s400
      %s402 = smul.addr %s401, 4
      %s403 = scalar_lea.vmem %s1, %s402
      %p404 = pneg %p91
      %p405 = pneg %p88
      %s406 = smul.u32 %s25, 16
      %s407 = sadd.s32 %s406, 16
      %p408 = scmp.lt.s32.totalorder %s407, 15
      %s409 = scalar_select %p408, %s407, 15
      %p410 = scmp.lt.s32.totalorder %s24, 1
      %s411 = scalar_select %p410, %s24, 1
      %p412 = scmp.lt.s32.totalorder %s409, 15
      %s413 = scalar_select %p412, %s409, 15
      %s414 = smul.addr %s413, 2
      %s415 = smul.addr %s411, 32
      %s416 = sadd.s32 %s414, %s415
      %s417 = smul.addr %s416, 4
      %s418 = scalar_lea.vmem %s2, %s417
      %p419 = pneg %p127
      %p420 = pneg %p124
      %p421 = pneg %p148
      %p422 = pneg %p145
      %p423 = pneg %p169
      %p424 = pneg %p166
      %p425 = pneg %p190
      %p426 = pneg %p187
      %p427 = pneg %p211
      %p428 = pneg %p208
      %p429 = pneg %p232
      %p430 = pneg %p229
      %p431 = pneg %p253
      %p432 = pneg %p250
      %p433 = pneg %p281
      %p434 = pneg %p278
      %s435 = smul.u32 16, %s25
      %p436 = scmp.lt.s32.totalorder %s24, 1
      %s437 = scalar_select %p436, %s24, 1
      %p438 = scmp.lt.s32.totalorder %s435, 15
      %s439 = scalar_select %p438, %s435, 15
      %s440 = smul.addr %s439, 2
      %s441 = smul.addr %s437, 32
      %s442 = sadd.s32 %s440, %s441
      %s443 = smul.addr %s442, 4
      %s444 = scalar_lea.vmem %s9, %s443
      %s445 = smul.u32 16, %s25
      %p446 = scmp.lt.s32.totalorder %s24, 1
      %s447 = scalar_select %p446, %s24, 1
      %p448 = scmp.lt.s32.totalorder %s445, 15
      %s449 = scalar_select %p448, %s445, 15
      %s450 = smul.addr %s449, 2
      %s451 = smul.addr %s447, 32
      %s452 = sadd.s32 %s450, %s451
      %s453 = smul.addr %s452, 4
      %s454 = scalar_lea.vmem %s0, %s453
      %s455 = smul.u32 16, %s25
      %s456 = smul.u32 %s25, 16
      %s457 = ssub.s32 %s456, 1
      %p458 = scmp.gt.s32.totalorder %s457, 0
      %s459 = scalar_select %p458, %s457, 0
      %p460 = scmp.lt.s32.totalorder %s24, 1
      %s461 = scalar_select %p460, %s24, 1
      %p462 = scmp.lt.s32.totalorder %s459, 15
      %s463 = scalar_select %p462, %s459, 15
      %s464 = smul.addr %s463, 2
      %s465 = smul.addr %s461, 32
      %s466 = sadd.s32 %s464, %s465
      %s467 = smul.addr %s466, 4
      %s468 = scalar_lea.vmem %s1, %s467
      %s469 = smul.u32 %s25, 16
      %s470 = ssub.s32 %s469, 1
      %p471 = scmp.gt.s32.totalorder %s470, 0
      %s472 = scalar_select %p471, %s470, 0
      %s473 = smul.u32 %s25, 16
      %s474 = sadd.s32 %s473, 16
      %p475 = scmp.lt.s32.totalorder %s474, 15
      %s476 = scalar_select %p475, %s474, 15
      %p477 = scmp.lt.s32.totalorder %s24, 1
      %s478 = scalar_select %p477, %s24, 1
      %p479 = scmp.lt.s32.totalorder %s476, 15
      %s480 = scalar_select %p479, %s476, 15
      %s481 = smul.addr %s480, 2
      %s482 = smul.addr %s478, 32
      %s483 = sadd.s32 %s481, %s482
      %s484 = smul.addr %s483, 4
      %s485 = scalar_lea.vmem %s2, %s484
      %s486 = smul.u32 %s25, 16
      %s487 = sadd.s32 %s486, 16
      %p488 = scmp.lt.s32.totalorder %s487, 15
      %s489 = scalar_select %p488, %s487, 15
      %s490 = smul.u32 16, %s25
      %p491 = scmp.lt.s32.totalorder %s24, 1
      %s492 = scalar_select %p491, %s24, 1
      %p493 = scmp.lt.s32.totalorder %s490, 15
      %s494 = scalar_select %p493, %s490, 15
      %s495 = smul.addr %s494, 2
      %s496 = smul.addr %s492, 32
      %s497 = sadd.s32 %s495, %s496
      %s498 = smul.addr %s497, 4
      %s499 = scalar_lea.vmem %s9, %s498
      %s500 = smul.u32 16, %s25
      %v502 = vld [vmem:[%s3] sm:$0xf]
      %v503 = vld [vmem:[%s3 + $0x4] sm:$0xf]
      %v504 = vld [vmem:[%s3 + $0x8] sm:$0xf]
      %v505 = vld [vmem:[%s3 + $0xc] sm:$0xf]
      %v506 = vld [vmem:[%s3 + $0x10] sm:$0xf]
      %v507 = vld [vmem:[%s3 + $0x14] sm:$0xf]
      %v508 = vld [vmem:[%s3 + $0x18] sm:$0xf]
      %v509 = vld [vmem:[%s3 + $0x1c] sm:$0xf]
      %v510 = vld [vmem:[%s3 + $0x20] sm:$0xf]
      %v511 = vld [vmem:[%s3 + $0x24] sm:$0xf]
      %v512 = vld [vmem:[%s3 + $0x28] sm:$0xf]
      %v513 = vld [vmem:[%s3 + $0x2c] sm:$0xf]
      %v514 = vld [vmem:[%s3 + $0x30] sm:$0xf]
      %v515 = vld [vmem:[%s3 + $0x34] sm:$0xf]
      %v516 = vld [vmem:[%s3 + $0x38] sm:$0xf]
      %v517 = vld [vmem:[%s3 + $0x3c] sm:$0xf]
      %v518 = vld [vmem:[%s4] sm:$0x1]
      %v519 = vld [vmem:[%s5] sm:$0x1]
      %v520 = vld [vmem:[%s454] sm:$0xf]
      %v521 = vld [vmem:[%s454 + $0x4] sm:$0xf]
      %v522 = vld [vmem:[%s454 + $0x8] sm:$0xf]
      %v523 = vld [vmem:[%s454 + $0xc] sm:$0xf]
      %v524 = vld [vmem:[%s454 + $0x10] sm:$0xf]
      %v525 = vld [vmem:[%s454 + $0x14] sm:$0xf]
      %v526 = vld [vmem:[%s454 + $0x18] sm:$0xf]
      %v527 = vld [vmem:[%s454 + $0x1c] sm:$0xf]
      %v528 = vld [vmem:[%s454 + $0x20] sm:$0xf]
      %v529 = vld [vmem:[%s454 + $0x24] sm:$0xf]
      %v530 = vld [vmem:[%s454 + $0x28] sm:$0xf]
      %v531 = vld [vmem:[%s454 + $0x2c] sm:$0xf]
      %v532 = vld [vmem:[%s454 + $0x30] sm:$0xf]
      %v533 = vld [vmem:[%s454 + $0x34] sm:$0xf]
      %v534 = vld [vmem:[%s454 + $0x38] sm:$0xf]
      %v535 = vld [vmem:[%s454 + $0x3c] sm:$0xf]
      %v536 = vld [vmem:[%s454 + $0x40] sm:$0xf]
      %v537 = vld [vmem:[%s454 + $0x44] sm:$0xf]
      %v538 = vld [vmem:[%s454 + $0x48] sm:$0xf]
      %v539 = vld [vmem:[%s454 + $0x4c] sm:$0xf]
      %v540 = vld [vmem:[%s454 + $0x50] sm:$0xf]
      %v541 = vld [vmem:[%s454 + $0x54] sm:$0xf]
      %v542 = vld [vmem:[%s454 + $0x58] sm:$0xf]
      %v543 = vld [vmem:[%s454 + $0x5c] sm:$0xf]
      %v544 = vld [vmem:[%s454 + $0x60] sm:$0xf]
      %v545 = vld [vmem:[%s454 + $0x64] sm:$0xf]
      %v546 = vld [vmem:[%s454 + $0x68] sm:$0xf]
      %v547 = vld [vmem:[%s454 + $0x6c] sm:$0xf]
      %v548 = vld [vmem:[%s454 + $0x70] sm:$0xf]
      %v549 = vld [vmem:[%s454 + $0x74] sm:$0xf]
      %v550 = vld [vmem:[%s454 + $0x78] sm:$0xf]
      %v551 = vld [vmem:[%s454 + $0x7c] sm:$0xf]
      %v584 = vunpack.c.l.b16 %v520
      %v585 = vunpack.c.l.b16 %v521
      %v586 = vunpack.c.l.b16 %v522
      %v587 = vunpack.c.l.b16 %v523
      %v588 = vunpack.c.l.b16 %v524
      %v589 = vunpack.c.l.b16 %v525
      %v590 = vunpack.c.l.b16 %v526
      %v591 = vunpack.c.l.b16 %v527
      %v592 = vunpack.c.l.b16 %v528
      %v593 = vunpack.c.l.b16 %v529
      %v594 = vunpack.c.l.b16 %v530
      %v595 = vunpack.c.l.b16 %v531
      %v596 = vunpack.c.l.b16 %v532
      %v597 = vunpack.c.l.b16 %v533
      %v598 = vunpack.c.l.b16 %v534
      %v599 = vunpack.c.l.b16 %v535
      %v600 = vunpack.c.l.b16 %v536
      %v601 = vunpack.c.l.b16 %v537
      %v602 = vunpack.c.l.b16 %v538
      %v603 = vunpack.c.l.b16 %v539
      %v604 = vunpack.c.l.b16 %v540
      %v605 = vunpack.c.l.b16 %v541
      %v606 = vunpack.c.l.b16 %v542
      %v607 = vunpack.c.l.b16 %v543
      %v608 = vunpack.c.l.b16 %v544
      %v609 = vunpack.c.l.b16 %v545
      %v610 = vunpack.c.l.b16 %v546
      %v611 = vunpack.c.l.b16 %v547
      %v612 = vunpack.c.l.b16 %v548
      %v613 = vunpack.c.l.b16 %v549
      %v614 = vunpack.c.l.b16 %v550
      %v615 = vunpack.c.l.b16 %v551
      %v616 = vpack.c.b16 %v585, %v584
      %v617 = vpack.c.b16 %v587, %v586
      %v618 = vpack.c.b16 %v589, %v588
      %v619 = vpack.c.b16 %v591, %v590
      %v620 = vpack.c.b16 %v593, %v592
      %v621 = vpack.c.b16 %v595, %v594
      %v622 = vpack.c.b16 %v597, %v596
      %v623 = vpack.c.b16 %v599, %v598
      %v624 = vpack.c.b16 %v601, %v600
      %v625 = vpack.c.b16 %v603, %v602
      %v626 = vpack.c.b16 %v605, %v604
      %v627 = vpack.c.b16 %v607, %v606
      %v628 = vpack.c.b16 %v609, %v608
      %v629 = vpack.c.b16 %v611, %v610
      %v630 = vpack.c.b16 %v613, %v612
      %v631 = vpack.c.b16 %v615, %v614
      %v664 = vunpack.c.l.b16 %v502
      %v665 = vunpack.c.l.b16 %v503
      %v666 = vunpack.c.l.b16 %v504
      %v667 = vunpack.c.l.b16 %v505
      %v668 = vunpack.c.l.b16 %v506
      %v669 = vunpack.c.l.b16 %v507
      %v670 = vunpack.c.l.b16 %v508
      %v671 = vunpack.c.l.b16 %v509
      %v672 = vunpack.c.l.b16 %v510
      %v673 = vunpack.c.l.b16 %v511
      %v674 = vunpack.c.l.b16 %v512
      %v675 = vunpack.c.l.b16 %v513
      %v676 = vunpack.c.l.b16 %v514
      %v677 = vunpack.c.l.b16 %v515
      %v678 = vunpack.c.l.b16 %v516
      %v679 = vunpack.c.l.b16 %v517
      %v680 = vpack.c.b16 %v665, %v664
      %v681 = vpack.c.b16 %v667, %v666
      %v682 = vpack.c.b16 %v669, %v668
      %v683 = vpack.c.b16 %v671, %v670
      %v684 = vpack.c.b16 %v673, %v672
      %v685 = vpack.c.b16 %v675, %v674
      %v686 = vpack.c.b16 %v677, %v676
      %v687 = vpack.c.b16 %v679, %v678
      %696 = vmatprep.subr.bf16.mxu0 0
      %697 = vmatpush1.bf16.msra.mxu0 %v680
      %698 = vmatprep.subr.bf16.mxu0 0
      %699 = vmatpush1.bf16.msra.mxu0 %v681
      %700 = vmatprep.subr.bf16.mxu0 0
      %701 = vmatpush1.bf16.msra.mxu0 %v682
      %702 = vmatprep.subr.bf16.mxu0 0
      %703 = vmatpush1.bf16.msra.mxu0 %v683
      %704 = vmatprep.subr.bf16.mxu0 0
      %705 = vmatpush1.bf16.msra.mxu0 %v684
      %706 = vmatprep.subr.bf16.mxu0 0
      %707 = vmatpush1.bf16.msra.mxu0 %v685
      %708 = vmatprep.subr.bf16.mxu0 0
      %709 = vmatpush1.bf16.msra.mxu0 %v686
      %710 = vmatprep.subr.bf16.mxu0 0
      %711 = vmatpush1.bf16.msra.mxu0 %v687
      %712 = vmatprep.subr.bf16.mxu0 0
      %713 = vmatpush1.bf16.msra.mxu0 0
      %714 = vmatprep.subr.bf16.mxu0 0
      %715 = vmatpush1.bf16.msra.mxu0 0
      %716 = vmatprep.subr.bf16.mxu0 0
      %717 = vmatpush1.bf16.msra.mxu0 0
      %718 = vmatprep.subr.bf16.mxu0 0
      %719 = vmatpush1.bf16.msra.mxu0 0
      %720 = vmatprep.subr.bf16.mxu0 0
      %721 = vmatpush1.bf16.msra.mxu0 0
      %722 = vmatprep.subr.bf16.mxu0 0
      %723 = vmatpush1.bf16.msra.mxu0 0
      %724 = vmatprep.subr.bf16.mxu0 0
      %725 = vmatpush1.bf16.msra.mxu0 0
      %726 = vmatprep.subr.bf16.mxu0 0
      %727 = vmatpush1.bf16.msra.mxu0 0
      %728 = vmatprep.mubr.bf16.mxu0 0
      %729 = vmatmul.mubr.bf16.gmra.mrb[0].mxu0 %v616
      %v730 = vpop.f32.mrb[0].mxu0
      %v731 = vadd.f32 0.0, %v730
      %v732 = vpop.f32.mrb[0].mxu0
      %v733 = vpop.f32.mrb[0].mxu0
      %v734 = vadd.f32 0.0, %v733
      %v735 = vpop.f32.mrb[0].mxu0
      %736 = vmatprep.mubr.bf16.mxu0 0
      %737 = vmatmul.mubr.bf16.gmra.mrb[0].mxu0 %v617
      %v738 = vpop.f32.mrb[0].mxu0
      %v739 = vadd.f32 0.0, %v738
      %v740 = vpop.f32.mrb[0].mxu0
      %v741 = vpop.f32.mrb[0].mxu0
      %v742 = vadd.f32 0.0, %v741
      %v743 = vpop.f32.mrb[0].mxu0
      %744 = vmatprep.mubr.bf16.mxu0 0
      %745 = vmatmul.mubr.bf16.gmra.mrb[0].mxu0 %v618
      %v746 = vpop.f32.mrb[0].mxu0
      %v747 = vadd.f32 0.0, %v746
      %v748 = vpop.f32.mrb[0].mxu0
      %v749 = vpop.f32.mrb[0].mxu0
      %v750 = vadd.f32 0.0, %v749
      %v751 = vpop.f32.mrb[0].mxu0
      %752 = vmatprep.mubr.bf16.mxu0 0
      %753 = vmatmul.mubr.bf16.gmra.mrb[0].mxu0 %v619
      %v754 = vpop.f32.mrb[0].mxu0
      %v755 = vadd.f32 0.0, %v754
      %v756 = vpop.f32.mrb[0].mxu0
      %v757 = vpop.f32.mrb[0].mxu0
      %v758 = vadd.f32 0.0, %v757
      %v759 = vpop.f32.mrb[0].mxu0
      %760 = vmatprep.mubr.bf16.mxu0 0
      %761 = vmatmul.mubr.bf16.gmra.mrb[0].mxu0 %v620
      %v762 = vpop.f32.mrb[0].mxu0
      %v763 = vadd.f32 0.0, %v762
      %v764 = vpop.f32.mrb[0].mxu0
      %v765 = vpop.f32.mrb[0].mxu0
      %v766 = vadd.f32 0.0, %v765
      %v767 = vpop.f32.mrb[0].mxu0
      %768 = vmatprep.mubr.bf16.mxu0 0
      %769 = vmatmul.mubr.bf16.gmra.mrb[0].mxu0 %v621
      %v770 = vpop.f32.mrb[0].mxu0
      %v771 = vadd.f32 0.0, %v770
      %v772 = vpop.f32.mrb[0].mxu0
      %v773 = vpop.f32.mrb[0].mxu0
      %v774 = vadd.f32 0.0, %v773
      %v775 = vpop.f32.mrb[0].mxu0
      %776 = vmatprep.mubr.bf16.mxu0 0
      %777 = vmatmul.mubr.bf16.gmra.mrb[0].mxu0 %v622
      %v778 = vpop.f32.mrb[0].mxu0
      %v779 = vadd.f32 0.0, %v778
      %v780 = vpop.f32.mrb[0].mxu0
      %v781 = vpop.f32.mrb[0].mxu0
      %v782 = vadd.f32 0.0, %v781
      %v783 = vpop.f32.mrb[0].mxu0
      %784 = vmatprep.mubr.bf16.mxu0 0
      %785 = vmatmul.mubr.bf16.gmra.mrb[0].mxu0 %v623
      %v786 = vpop.f32.mrb[0].mxu0
      %v787 = vadd.f32 0.0, %v786
      %v788 = vpop.f32.mrb[0].mxu0
      %v789 = vpop.f32.mrb[0].mxu0
      %v790 = vadd.f32 0.0, %v789
      %v791 = vpop.f32.mrb[0].mxu0
      %792 = vmatprep.mubr.bf16.mxu0 0
      %793 = vmatmul.mubr.bf16.gmra.mrb[0].mxu0 %v624
      %v794 = vpop.f32.mrb[0].mxu0
      %v795 = vadd.f32 0.0, %v794
      %v796 = vpop.f32.mrb[0].mxu0
      %v797 = vpop.f32.mrb[0].mxu0
      %v798 = vadd.f32 0.0, %v797
      %v799 = vpop.f32.mrb[0].mxu0
      %800 = vmatprep.mubr.bf16.mxu0 0
      %801 = vmatmul.mubr.bf16.gmra.mrb[0].mxu0 %v625
      %v802 = vpop.f32.mrb[0].mxu0
      %v803 = vadd.f32 0.0, %v802
      %v804 = vpop.f32.mrb[0].mxu0
      %v805 = vpop.f32.mrb[0].mxu0
      %v806 = vadd.f32 0.0, %v805
      %v807 = vpop.f32.mrb[0].mxu0
      %808 = vmatprep.mubr.bf16.mxu0 0
      %809 = vmatmul.mubr.bf16.gmra.mrb[0].mxu0 %v626
      %v810 = vpop.f32.mrb[0].mxu0
      %v811 = vadd.f32 0.0, %v810
      %v812 = vpop.f32.mrb[0].mxu0
      %v813 = vpop.f32.mrb[0].mxu0
      %v814 = vadd.f32 0.0, %v813
      %v815 = vpop.f32.mrb[0].mxu0
      %816 = vmatprep.mubr.bf16.mxu0 0
      %817 = vmatmul.mubr.bf16.gmra.mrb[0].mxu0 %v627
      %v818 = vpop.f32.mrb[0].mxu0
      %v819 = vadd.f32 0.0, %v818
      %v820 = vpop.f32.mrb[0].mxu0
      %v821 = vpop.f32.mrb[0].mxu0
      %v822 = vadd.f32 0.0, %v821
      %v823 = vpop.f32.mrb[0].mxu0
      %824 = vmatprep.mubr.bf16.mxu0 0
      %825 = vmatmul.mubr.bf16.gmra.mrb[0].mxu0 %v628
      %v826 = vpop.f32.mrb[0].mxu0
      %v827 = vadd.f32 0.0, %v826
      %v828 = vpop.f32.mrb[0].mxu0
      %v829 = vpop.f32.mrb[0].mxu0
      %v830 = vadd.f32 0.0, %v829
      %v831 = vpop.f32.mrb[0].mxu0
      %832 = vmatprep.mubr.bf16.mxu0 0
      %833 = vmatmul.mubr.bf16.gmra.mrb[0].mxu0 %v629
      %v834 = vpop.f32.mrb[0].mxu0
      %v835 = vadd.f32 0.0, %v834
      %v836 = vpop.f32.mrb[0].mxu0
      %v837 = vpop.f32.mrb[0].mxu0
      %v838 = vadd.f32 0.0, %v837
      %v839 = vpop.f32.mrb[0].mxu0
      %840 = vmatprep.mubr.bf16.mxu0 0
      %841 = vmatmul.mubr.bf16.gmra.mrb[0].mxu0 %v630
      %v842 = vpop.f32.mrb[0].mxu0
      %v843 = vadd.f32 0.0, %v842
      %v844 = vpop.f32.mrb[0].mxu0
      %v845 = vpop.f32.mrb[0].mxu0
      %v846 = vadd.f32 0.0, %v845
      %v847 = vpop.f32.mrb[0].mxu0
      %848 = vmatprep.mubr.bf16.mxu0 0
      %849 = vmatmul.mubr.bf16.gmra.mrb[0].mxu0 %v631
      %v850 = vpop.f32.mrb[0].mxu0
      %v851 = vadd.f32 0.0, %v850
      %v852 = vpop.f32.mrb[0].mxu0
      %v853 = vpop.f32.mrb[0].mxu0
      %v854 = vadd.f32 0.0, %v853
      %v855 = vpop.f32.mrb[0].mxu0
      %856 = vdwg.mxu0
      %v858 = vlaneseq
      %v859 = vshrl.u32 %v858, 7
      %v860 = vsub.s32 0, %v859
      %v861 = vrot.slane %v518, %v860
      %v863 = vmul.f32 %v731, %v861
      %v864 = vmul.f32 %v734, %v861
      %v865 = vmul.f32 %v739, %v861
      %v866 = vmul.f32 %v742, %v861
      %v867 = vmul.f32 %v747, %v861
      %v868 = vmul.f32 %v750, %v861
      %v869 = vmul.f32 %v755, %v861
      %v870 = vmul.f32 %v758, %v861
      %v871 = vmul.f32 %v763, %v861
      %v872 = vmul.f32 %v766, %v861
      %v873 = vmul.f32 %v771, %v861
      %v874 = vmul.f32 %v774, %v861
      %v875 = vmul.f32 %v779, %v861
      %v876 = vmul.f32 %v782, %v861
      %v877 = vmul.f32 %v787, %v861
      %v878 = vmul.f32 %v790, %v861
      %v879 = vmul.f32 %v795, %v861
      %v880 = vmul.f32 %v798, %v861
      %v881 = vmul.f32 %v803, %v861
      %v882 = vmul.f32 %v806, %v861
      %v883 = vmul.f32 %v811, %v861
      %v884 = vmul.f32 %v814, %v861
      %v885 = vmul.f32 %v819, %v861
      %v886 = vmul.f32 %v822, %v861
      %v887 = vmul.f32 %v827, %v861
      %v888 = vmul.f32 %v830, %v861
      %v889 = vmul.f32 %v835, %v861
      %v890 = vmul.f32 %v838, %v861
      %v891 = vmul.f32 %v843, %v861
      %v892 = vmul.f32 %v846, %v861
      %v893 = vmul.f32 %v851, %v861
      %v894 = vmul.f32 %v854, %v861
      %v896 = vlaneseq
      %v897 = vshrl.u32 %v896, 7
      %v898 = vsub.s32 0, %v897
      %v899 = vrot.slane %v519, %v898
      %v901 = vadd.f32 %v863, %v899
      %v902 = vadd.f32 %v864, %v899
      %v903 = vadd.f32 %v865, %v899
      %v904 = vadd.f32 %v866, %v899
      %v905 = vadd.f32 %v867, %v899
      %v906 = vadd.f32 %v868, %v899
      %v907 = vadd.f32 %v869, %v899
      %v908 = vadd.f32 %v870, %v899
      %v909 = vadd.f32 %v871, %v899
      %v910 = vadd.f32 %v872, %v899
      %v911 = vadd.f32 %v873, %v899
      %v912 = vadd.f32 %v874, %v899
      %v913 = vadd.f32 %v875, %v899
      %v914 = vadd.f32 %v876, %v899
      %v915 = vadd.f32 %v877, %v899
      %v916 = vadd.f32 %v878, %v899
      %v917 = vadd.f32 %v879, %v899
      %v918 = vadd.f32 %v880, %v899
      %v919 = vadd.f32 %v881, %v899
      %v920 = vadd.f32 %v882, %v899
      %v921 = vadd.f32 %v883, %v899
      %v922 = vadd.f32 %v884, %v899
      %v923 = vadd.f32 %v885, %v899
      %v924 = vadd.f32 %v886, %v899
      %v925 = vadd.f32 %v887, %v899
      %v926 = vadd.f32 %v888, %v899
      %v927 = vadd.f32 %v889, %v899
      %v928 = vadd.f32 %v890, %v899
      %v929 = vadd.f32 %v891, %v899
      %v930 = vadd.f32 %v892, %v899
      %v931 = vadd.f32 %v893, %v899
      %v932 = vadd.f32 %v894, %v899
      %v933 = vsub.f32 0.0, %v901
      %v934 = vsub.f32 0.0, %v902
      %v935 = vsub.f32 0.0, %v903
      %v936 = vsub.f32 0.0, %v904
      %v937 = vsub.f32 0.0, %v905
      %v938 = vsub.f32 0.0, %v906
      %v939 = vsub.f32 0.0, %v907
      %v940 = vsub.f32 0.0, %v908
      %v941 = vsub.f32 0.0, %v909
      %v942 = vsub.f32 0.0, %v910
      %v943 = vsub.f32 0.0, %v911
      %v944 = vsub.f32 0.0, %v912
      %v945 = vsub.f32 0.0, %v913
      %v946 = vsub.f32 0.0, %v914
      %v947 = vsub.f32 0.0, %v915
      %v948 = vsub.f32 0.0, %v916
      %v949 = vsub.f32 0.0, %v917
      %v950 = vsub.f32 0.0, %v918
      %v951 = vsub.f32 0.0, %v919
      %v952 = vsub.f32 0.0, %v920
      %v953 = vsub.f32 0.0, %v921
      %v954 = vsub.f32 0.0, %v922
      %v955 = vsub.f32 0.0, %v923
      %v956 = vsub.f32 0.0, %v924
      %v957 = vsub.f32 0.0, %v925
      %v958 = vsub.f32 0.0, %v926
      %v959 = vsub.f32 0.0, %v927
      %v960 = vsub.f32 0.0, %v928
      %v961 = vsub.f32 0.0, %v929
      %v962 = vsub.f32 0.0, %v930
      %v963 = vsub.f32 0.0, %v931
      %v964 = vsub.f32 0.0, %v932
      %v965 = vmul.f32 %v933, 1.442695
      %v966 = vpow.pop %v965
      %v967 = vmul.f32 %v934, 1.442695
      %v968 = vpow.pop %v967
      %v969 = vmul.f32 %v935, 1.442695
      %v970 = vpow.pop %v969
      %v971 = vmul.f32 %v936, 1.442695
      %v972 = vpow.pop %v971
      %v973 = vmul.f32 %v937, 1.442695
      %v974 = vpow.pop %v973
      %v975 = vmul.f32 %v938, 1.442695
      %v976 = vpow.pop %v975
      %v977 = vmul.f32 %v939, 1.442695
      %v978 = vpow.pop %v977
      %v979 = vmul.f32 %v940, 1.442695
      %v980 = vpow.pop %v979
      %v981 = vmul.f32 %v941, 1.442695
      %v982 = vpow.pop %v981
      %v983 = vmul.f32 %v942, 1.442695
      %v984 = vpow.pop %v983
      %v985 = vmul.f32 %v943, 1.442695
      %v986 = vpow.pop %v985
      %v987 = vmul.f32 %v944, 1.442695
      %v988 = vpow.pop %v987
      %v989 = vmul.f32 %v945, 1.442695
      %v990 = vpow.pop %v989
      %v991 = vmul.f32 %v946, 1.442695
      %v992 = vpow.pop %v991
      %v993 = vmul.f32 %v947, 1.442695
      %v994 = vpow.pop %v993
      %v995 = vmul.f32 %v948, 1.442695
      %v996 = vpow.pop %v995
      %v997 = vmul.f32 %v949, 1.442695
      %v998 = vpow.pop %v997
      %v999 = vmul.f32 %v950, 1.442695
      %v1000 = vpow.pop %v999
      %v1001 = vmul.f32 %v951, 1.442695
      %v1002 = vpow.pop %v1001
      %v1003 = vmul.f32 %v952, 1.442695
      %v1004 = vpow.pop %v1003
      %v1005 = vmul.f32 %v953, 1.442695
      %v1006 = vpow.pop %v1005
      %v1007 = vmul.f32 %v954, 1.442695
      %v1008 = vpow.pop %v1007
      %v1009 = vmul.f32 %v955, 1.442695
      %v1010 = vpow.pop %v1009
      %v1011 = vmul.f32 %v956, 1.442695
      %v1012 = vpow.pop %v1011
      %v1013 = vmul.f32 %v957, 1.442695
      %v1014 = vpow.pop %v1013
      %v1015 = vmul.f32 %v958, 1.442695
      %v1016 = vpow.pop %v1015
      %v1017 = vmul.f32 %v959, 1.442695
      %v1018 = vpow.pop %v1017
      %v1019 = vmul.f32 %v960, 1.442695
      %v1020 = vpow.pop %v1019
      %v1021 = vmul.f32 %v961, 1.442695
      %v1022 = vpow.pop %v1021
      %v1023 = vmul.f32 %v962, 1.442695
      %v1024 = vpow.pop %v1023
      %v1025 = vmul.f32 %v963, 1.442695
      %v1026 = vpow.pop %v1025
      %v1027 = vmul.f32 %v964, 1.442695
      %v1028 = vpow.pop %v1027
      %v1029 = vadd.f32 %v966, 1.0
      %v1030 = vadd.f32 %v968, 1.0
      %v1031 = vadd.f32 %v970, 1.0
      %v1032 = vadd.f32 %v972, 1.0
      %v1033 = vadd.f32 %v974, 1.0
      %v1034 = vadd.f32 %v976, 1.0
      %v1035 = vadd.f32 %v978, 1.0
      %v1036 = vadd.f32 %v980, 1.0
      %v1037 = vadd.f32 %v982, 1.0
      %v1038 = vadd.f32 %v984, 1.0
      %v1039 = vadd.f32 %v986, 1.0
      %v1040 = vadd.f32 %v988, 1.0
      %v1041 = vadd.f32 %v990, 1.0
      %v1042 = vadd.f32 %v992, 1.0
      %v1043 = vadd.f32 %v994, 1.0
      %v1044 = vadd.f32 %v996, 1.0
      %v1045 = vadd.f32 %v998, 1.0
      %v1046 = vadd.f32 %v1000, 1.0
      %v1047 = vadd.f32 %v1002, 1.0
      %v1048 = vadd.f32 %v1004, 1.0
      %v1049 = vadd.f32 %v1006, 1.0
      %v1050 = vadd.f32 %v1008, 1.0
      %v1051 = vadd.f32 %v1010, 1.0
      %v1052 = vadd.f32 %v1012, 1.0
      %v1053 = vadd.f32 %v1014, 1.0
      %v1054 = vadd.f32 %v1016, 1.0
      %v1055 = vadd.f32 %v1018, 1.0
      %v1056 = vadd.f32 %v1020, 1.0
      %v1057 = vadd.f32 %v1022, 1.0
      %v1058 = vadd.f32 %v1024, 1.0
      %v1059 = vadd.f32 %v1026, 1.0
      %v1060 = vadd.f32 %v1028, 1.0
      %v1061 = vrcp.pop %v1029
      %v1062 = vrcp.pop %v1030
      %v1063 = vrcp.pop %v1031
      %v1064 = vrcp.pop %v1032
      %v1065 = vrcp.pop %v1033
      %v1066 = vrcp.pop %v1034
      %v1067 = vrcp.pop %v1035
      %v1068 = vrcp.pop %v1036
      %v1069 = vrcp.pop %v1037
      %v1070 = vrcp.pop %v1038
      %v1071 = vrcp.pop %v1039
      %v1072 = vrcp.pop %v1040
      %v1073 = vrcp.pop %v1041
      %v1074 = vrcp.pop %v1042
      %v1075 = vrcp.pop %v1043
      %v1076 = vrcp.pop %v1044
      %v1077 = vrcp.pop %v1045
      %v1078 = vrcp.pop %v1046
      %v1079 = vrcp.pop %v1047
      %v1080 = vrcp.pop %v1048
      %v1081 = vrcp.pop %v1049
      %v1082 = vrcp.pop %v1050
      %v1083 = vrcp.pop %v1051
      %v1084 = vrcp.pop %v1052
      %v1085 = vrcp.pop %v1053
      %v1086 = vrcp.pop %v1054
      %v1087 = vrcp.pop %v1055
      %v1088 = vrcp.pop %v1056
      %v1089 = vrcp.pop %v1057
      %v1090 = vrcp.pop %v1058
      %v1091 = vrcp.pop %v1059
      %v1092 = vrcp.pop %v1060
      %v1093 = vmul.f32 %v901, %v1061
      %v1094 = vmul.f32 %v902, %v1062
      %v1095 = vmul.f32 %v903, %v1063
      %v1096 = vmul.f32 %v904, %v1064
      %v1097 = vmul.f32 %v905, %v1065
      %v1098 = vmul.f32 %v906, %v1066
      %v1099 = vmul.f32 %v907, %v1067
      %v1100 = vmul.f32 %v908, %v1068
      %v1101 = vmul.f32 %v909, %v1069
      %v1102 = vmul.f32 %v910, %v1070
      %v1103 = vmul.f32 %v911, %v1071
      %v1104 = vmul.f32 %v912, %v1072
      %v1105 = vmul.f32 %v913, %v1073
      %v1106 = vmul.f32 %v914, %v1074
      %v1107 = vmul.f32 %v915, %v1075
      %v1108 = vmul.f32 %v916, %v1076
      %v1109 = vmul.f32 %v917, %v1077
      %v1110 = vmul.f32 %v918, %v1078
      %v1111 = vmul.f32 %v919, %v1079
      %v1112 = vmul.f32 %v920, %v1080
      %v1113 = vmul.f32 %v921, %v1081
      %v1114 = vmul.f32 %v922, %v1082
      %v1115 = vmul.f32 %v923, %v1083
      %v1116 = vmul.f32 %v924, %v1084
      %v1117 = vmul.f32 %v925, %v1085
      %v1118 = vmul.f32 %v926, %v1086
      %v1119 = vmul.f32 %v927, %v1087
      %v1120 = vmul.f32 %v928, %v1088
      %v1121 = vmul.f32 %v929, %v1089
      %v1122 = vmul.f32 %v930, %v1090
      %v1123 = vmul.f32 %v931, %v1091
      %v1124 = vmul.f32 %v932, %v1092
      %v1125 = vld [vmem:[%s468] sm:$0xf]
      %v1126 = vld [vmem:[%s468 + $0x4] sm:$0xf]
      %v1129 = vunpack.c.l.b16 %v1125
      %v1130 = vunpack.c.l.b16 %v1126
      %v1131 = vpack.c.b16 %v1130, %v1129
      %1133 = vmatprep.subr.bf16.mxu0 0
      %1134 = vmatpush1.bf16.msra.mxu0 %v680
      %1135 = vmatprep.subr.bf16.mxu0 0
      %1136 = vmatpush1.bf16.msra.mxu0 %v681
      %1137 = vmatprep.subr.bf16.mxu0 0
      %1138 = vmatpush1.bf16.msra.mxu0 %v682
      %1139 = vmatprep.subr.bf16.mxu0 0
      %1140 = vmatpush1.bf16.msra.mxu0 %v683
      %1141 = vmatprep.subr.bf16.mxu0 0
      %1142 = vmatpush1.bf16.msra.mxu0 %v684
      %1143 = vmatprep.subr.bf16.mxu0 0
      %1144 = vmatpush1.bf16.msra.mxu0 %v685
      %1145 = vmatprep.subr.bf16.mxu0 0
      %1146 = vmatpush1.bf16.msra.mxu0 %v686
      %1147 = vmatprep.subr.bf16.mxu0 0
      %1148 = vmatpush1.bf16.msra.mxu0 %v687
      %1149 = vmatprep.subr.bf16.mxu0 0
      %1150 = vmatpush1.bf16.msra.mxu0 0
      %1151 = vmatprep.subr.bf16.mxu0 0
      %1152 = vmatpush1.bf16.msra.mxu0 0
      %1153 = vmatprep.subr.bf16.mxu0 0
      %1154 = vmatpush1.bf16.msra.mxu0 0
      %1155 = vmatprep.subr.bf16.mxu0 0
      %1156 = vmatpush1.bf16.msra.mxu0 0
      %1157 = vmatprep.subr.bf16.mxu0 0
      %1158 = vmatpush1.bf16.msra.mxu0 0
      %1159 = vmatprep.subr.bf16.mxu0 0
      %1160 = vmatpush1.bf16.msra.mxu0 0
      %1161 = vmatprep.subr.bf16.mxu0 0
      %1162 = vmatpush1.bf16.msra.mxu0 0
      %1163 = vmatprep.subr.bf16.mxu0 0
      %1164 = vmatpush1.bf16.msra.mxu0 0
      %1165 = vmatprep.mubr.bf16.mxu0 0
      %1166 = vmatmul.mubr.bf16.gmra.mrb[0].mxu0 %v1131
      %v1167 = vpop.f32.mrb[0].mxu0
      %v1168 = vadd.f32 0.0, %v1167
      %v1169 = vpop.f32.mrb[0].mxu0
      %v1170 = vpop.f32.mrb[0].mxu0
      %v1171 = vadd.f32 0.0, %v1170
      %v1172 = vpop.f32.mrb[0].mxu0
      %1173 = vdwg.mxu0
      %v1174 = vmul.f32 %v1168, %v861
      %v1175 = vmul.f32 %v1171, %v861
      %v1176 = vadd.f32 %v1174, %v899
      %v1177 = vadd.f32 %v1175, %v899
      %v1178 = vsub.f32 0.0, %v1176
      %v1179 = vsub.f32 0.0, %v1177
      %v1180 = vmul.f32 %v1178, 1.442695
      %v1181 = vpow.pop %v1180
      %v1182 = vmul.f32 %v1179, 1.442695
      %v1183 = vpow.pop %v1182
      %v1184 = vadd.f32 %v1181, 1.0
      %v1185 = vadd.f32 %v1183, 1.0
      %v1186 = vrcp.pop %v1184
      %v1187 = vrcp.pop %v1185
      %v1188 = vmul.f32 %v1176, %v1186
      %v1189 = vmul.f32 %v1177, %v1187
      %v1190 = vld [vmem:[%s485] sm:$0xf]
      %v1191 = vld [vmem:[%s485 + $0x4] sm:$0xf]
      %v1194 = vunpack.c.l.b16 %v1190
      %v1195 = vunpack.c.l.b16 %v1191
      %v1196 = vpack.c.b16 %v1195, %v1194
      %1198 = vmatprep.subr.bf16.mxu0 0
      %1199 = vmatpush1.bf16.msra.mxu0 %v680
      %1200 = vmatprep.subr.bf16.mxu0 0
      %1201 = vmatpush1.bf16.msra.mxu0 %v681
      %1202 = vmatprep.subr.bf16.mxu0 0
      %1203 = vmatpush1.bf16.msra.mxu0 %v682
      %1204 = vmatprep.subr.bf16.mxu0 0
      %1205 = vmatpush1.bf16.msra.mxu0 %v683
      %1206 = vmatprep.subr.bf16.mxu0 0
      %1207 = vmatpush1.bf16.msra.mxu0 %v684
      %1208 = vmatprep.subr.bf16.mxu0 0
      %1209 = vmatpush1.bf16.msra.mxu0 %v685
      %1210 = vmatprep.subr.bf16.mxu0 0
      %1211 = vmatpush1.bf16.msra.mxu0 %v686
      %1212 = vmatprep.subr.bf16.mxu0 0
      %1213 = vmatpush1.bf16.msra.mxu0 %v687
      %1214 = vmatprep.subr.bf16.mxu0 0
      %1215 = vmatpush1.bf16.msra.mxu0 0
      %1216 = vmatprep.subr.bf16.mxu0 0
      %1217 = vmatpush1.bf16.msra.mxu0 0
      %1218 = vmatprep.subr.bf16.mxu0 0
      %1219 = vmatpush1.bf16.msra.mxu0 0
      %1220 = vmatprep.subr.bf16.mxu0 0
      %1221 = vmatpush1.bf16.msra.mxu0 0
      %1222 = vmatprep.subr.bf16.mxu0 0
      %1223 = vmatpush1.bf16.msra.mxu0 0
      %1224 = vmatprep.subr.bf16.mxu0 0
      %1225 = vmatpush1.bf16.msra.mxu0 0
      %1226 = vmatprep.subr.bf16.mxu0 0
      %1227 = vmatpush1.bf16.msra.mxu0 0
      %1228 = vmatprep.subr.bf16.mxu0 0
      %1229 = vmatpush1.bf16.msra.mxu0 0
      %1230 = vmatprep.mubr.bf16.mxu0 0
      %1231 = vmatmul.mubr.bf16.gmra.mrb[0].mxu0 %v1196
      %v1232 = vpop.f32.mrb[0].mxu0
      %v1233 = vadd.f32 0.0, %v1232
      %v1234 = vpop.f32.mrb[0].mxu0
      %v1235 = vpop.f32.mrb[0].mxu0
      %v1236 = vadd.f32 0.0, %v1235
      %v1237 = vpop.f32.mrb[0].mxu0
      %1238 = vdwg.mxu0
      %v1239 = vmul.f32 %v1233, %v861
      %v1240 = vmul.f32 %v1236, %v861
      %v1241 = vadd.f32 %v1239, %v899
      %v1242 = vadd.f32 %v1240, %v899
      %v1243 = vsub.f32 0.0, %v1241
      %v1244 = vsub.f32 0.0, %v1242
      %v1245 = vmul.f32 %v1243, 1.442695
      %v1246 = vpow.pop %v1245
      %v1247 = vmul.f32 %v1244, 1.442695
      %v1248 = vpow.pop %v1247
      %v1249 = vadd.f32 %v1246, 1.0
      %v1250 = vadd.f32 %v1248, 1.0
      %v1251 = vrcp.pop %v1249
      %v1252 = vrcp.pop %v1250
      %v1253 = vmul.f32 %v1241, %v1251
      %v1254 = vmul.f32 %v1242, %v1252
      %p1255 = scmp.gt.s32.totalorder %s25, 0
      %s1256 = scalar_select %p1255, 1, 0
      %s1257 = scvt.s32.f32 %s1256
      %v1258 = vstv %s1257
      %v1259 = vmul.f32 %v1188, %v1258
      %v1260 = vmul.f32 %v1189, %v1258
      %p1261 = scmp.lt.s32.totalorder %s25, 0
      %s1262 = scalar_select %p1261, 1, 0
      %s1263 = scvt.s32.f32 %s1262
      %v1264 = vstv %s1263
      %v1265 = vmul.f32 %v1253, %v1264
      %v1266 = vmul.f32 %v1254, %v1264
      %v1267 = vlaneseq
      %v1268 = vshrl.u32 %v1267, 7
      %v1269 = vadd.s32 %v1268, 8
      %v1270 = vadd.s32 %v1268, 16
      %v1271 = vadd.s32 %v1268, 24
      %v1272 = vadd.s32 %v1268, 32
      %v1273 = vadd.s32 %v1268, 40
      %v1274 = vadd.s32 %v1268, 48
      %v1275 = vadd.s32 %v1268, 56
      %v1276 = vadd.s32 %v1268, 64
      %v1277 = vadd.s32 %v1268, 72
      %v1278 = vadd.s32 %v1268, 80
      %v1279 = vadd.s32 %v1268, 88
      %v1280 = vadd.s32 %v1268, 96
      %v1281 = vadd.s32 %v1268, 104
      %v1282 = vadd.s32 %v1268, 112
      %v1283 = vadd.s32 %v1268, 120
      %v1284 = vadd.s32 %v1268, 128
      %v1285 = vadd.s32 %v1268, 136
      %v1286 = vadd.s32 %v1268, 144
      %v1287 = vadd.s32 %v1268, 152
      %v1288 = vadd.s32 %v1268, 160
      %v1289 = vadd.s32 %v1268, 168
      %v1290 = vadd.s32 %v1268, 176
      %v1291 = vadd.s32 %v1268, 184
      %v1292 = vadd.s32 %v1268, 192
      %v1293 = vadd.s32 %v1268, 200
      %v1294 = vadd.s32 %v1268, 208
      %v1295 = vadd.s32 %v1268, 216
      %v1296 = vadd.s32 %v1268, 224
      %v1297 = vadd.s32 %v1268, 232
      %v1298 = vadd.s32 %v1268, 240
      %v1299 = vadd.s32 %v1268, 248
      %vm1300 = vcmp.lt.s32.totalorder %v1268, 0
      %v1301 = vsub.s32 0, %v1268
      %v1302 = vsel %vm1300, %v1301, %v1268
      %v1303 = vshrl.u32 %v1302, 4
      %v1304 = vand.u32 %v1302, 15
      %v1305 = vsub.s32 0, %v1304
      %v1306 = vsel %vm1300, %v1305, %v1304
      %vm1307 = vcmp.lt.s32.totalorder %v1269, 0
      %v1308 = vsub.s32 0, %v1269
      %v1309 = vsel %vm1307, %v1308, %v1269
      %v1310 = vshrl.u32 %v1309, 4
      %v1311 = vand.u32 %v1309, 15
      %v1312 = vsub.s32 0, %v1311
      %v1313 = vsel %vm1307, %v1312, %v1311
      %vm1314 = vcmp.lt.s32.totalorder %v1270, 0
      %v1315 = vsub.s32 0, %v1270
      %v1316 = vsel %vm1314, %v1315, %v1270
      %v1317 = vshrl.u32 %v1316, 4
      %v1318 = vand.u32 %v1316, 15
      %v1319 = vsub.s32 0, %v1318
      %v1320 = vsel %vm1314, %v1319, %v1318
      %vm1321 = vcmp.lt.s32.totalorder %v1271, 0
      %v1322 = vsub.s32 0, %v1271
      %v1323 = vsel %vm1321, %v1322, %v1271
      %v1324 = vshrl.u32 %v1323, 4
      %v1325 = vand.u32 %v1323, 15
      %v1326 = vsub.s32 0, %v1325
      %v1327 = vsel %vm1321, %v1326, %v1325
      %vm1328 = vcmp.lt.s32.totalorder %v1272, 0
      %v1329 = vsub.s32 0, %v1272
      %v1330 = vsel %vm1328, %v1329, %v1272
      %v1331 = vshrl.u32 %v1330, 4
      %v1332 = vand.u32 %v1330, 15
      %v1333 = vsub.s32 0, %v1332
      %v1334 = vsel %vm1328, %v1333, %v1332
      %vm1335 = vcmp.lt.s32.totalorder %v1273, 0
      %v1336 = vsub.s32 0, %v1273
      %v1337 = vsel %vm1335, %v1336, %v1273
      %v1338 = vshrl.u32 %v1337, 4
      %v1339 = vand.u32 %v1337, 15
      %v1340 = vsub.s32 0, %v1339
      %v1341 = vsel %vm1335, %v1340, %v1339
      %vm1342 = vcmp.lt.s32.totalorder %v1274, 0
      %v1343 = vsub.s32 0, %v1274
      %v1344 = vsel %vm1342, %v1343, %v1274
      %v1345 = vshrl.u32 %v1344, 4
      %v1346 = vand.u32 %v1344, 15
      %v1347 = vsub.s32 0, %v1346
      %v1348 = vsel %vm1342, %v1347, %v1346
      %vm1349 = vcmp.lt.s32.totalorder %v1275, 0
      %v1350 = vsub.s32 0, %v1275
      %v1351 = vsel %vm1349, %v1350, %v1275
      %v1352 = vshrl.u32 %v1351, 4
      %v1353 = vand.u32 %v1351, 15
      %v1354 = vsub.s32 0, %v1353
      %v1355 = vsel %vm1349, %v1354, %v1353
      %vm1356 = vcmp.lt.s32.totalorder %v1276, 0
      %v1357 = vsub.s32 0, %v1276
      %v1358 = vsel %vm1356, %v1357, %v1276
      %v1359 = vshrl.u32 %v1358, 4
      %v1360 = vand.u32 %v1358, 15
      %v1361 = vsub.s32 0, %v1360
      %v1362 = vsel %vm1356, %v1361, %v1360
      %vm1363 = vcmp.lt.s32.totalorder %v1277, 0
      %v1364 = vsub.s32 0, %v1277
      %v1365 = vsel %vm1363, %v1364, %v1277
      %v1366 = vshrl.u32 %v1365, 4
      %v1367 = vand.u32 %v1365, 15
      %v1368 = vsub.s32 0, %v1367
      %v1369 = vsel %vm1363, %v1368, %v1367
      %vm1370 = vcmp.lt.s32.totalorder %v1278, 0
      %v1371 = vsub.s32 0, %v1278
      %v1372 = vsel %vm1370, %v1371, %v1278
      %v1373 = vshrl.u32 %v1372, 4
      %v1374 = vand.u32 %v1372, 15
      %v1375 = vsub.s32 0, %v1374
      %v1376 = vsel %vm1370, %v1375, %v1374
      %vm1377 = vcmp.lt.s32.totalorder %v1279, 0
      %v1378 = vsub.s32 0, %v1279
      %v1379 = vsel %vm1377, %v1378, %v1279
      %v1380 = vshrl.u32 %v1379, 4
      %v1381 = vand.u32 %v1379, 15
      %v1382 = vsub.s32 0, %v1381
      %v1383 = vsel %vm1377, %v1382, %v1381
      %vm1384 = vcmp.lt.s32.totalorder %v1280, 0
      %v1385 = vsub.s32 0, %v1280
      %v1386 = vsel %vm1384, %v1385, %v1280
      %v1387 = vshrl.u32 %v1386, 4
      %v1388 = vand.u32 %v1386, 15
      %v1389 = vsub.s32 0, %v1388
      %v1390 = vsel %vm1384, %v1389, %v1388
      %vm1391 = vcmp.lt.s32.totalorder %v1281, 0
      %v1392 = vsub.s32 0, %v1281
      %v1393 = vsel %vm1391, %v1392, %v1281
      %v1394 = vshrl.u32 %v1393, 4
      %v1395 = vand.u32 %v1393, 15
      %v1396 = vsub.s32 0, %v1395
      %v1397 = vsel %vm1391, %v1396, %v1395
      %vm1398 = vcmp.lt.s32.totalorder %v1282, 0
      %v1399 = vsub.s32 0, %v1282
      %v1400 = vsel %vm1398, %v1399, %v1282
      %v1401 = vshrl.u32 %v1400, 4
      %v1402 = vand.u32 %v1400, 15
      %v1403 = vsub.s32 0, %v1402
      %v1404 = vsel %vm1398, %v1403, %v1402
      %vm1405 = vcmp.lt.s32.totalorder %v1283, 0
      %v1406 = vsub.s32 0, %v1283
      %v1407 = vsel %vm1405, %v1406, %v1283
      %v1408 = vshrl.u32 %v1407, 4
      %v1409 = vand.u32 %v1407, 15
      %v1410 = vsub.s32 0, %v1409
      %v1411 = vsel %vm1405, %v1410, %v1409
      %vm1412 = vcmp.lt.s32.totalorder %v1284, 0
      %v1413 = vsub.s32 0, %v1284
      %v1414 = vsel %vm1412, %v1413, %v1284
      %v1415 = vshrl.u32 %v1414, 4
      %v1416 = vand.u32 %v1414, 15
      %v1417 = vsub.s32 0, %v1416
      %v1418 = vsel %vm1412, %v1417, %v1416
      %vm1419 = vcmp.lt.s32.totalorder %v1285, 0
      %v1420 = vsub.s32 0, %v1285
      %v1421 = vsel %vm1419, %v1420, %v1285
      %v1422 = vshrl.u32 %v1421, 4
      %v1423 = vand.u32 %v1421, 15
      %v1424 = vsub.s32 0, %v1423
      %v1425 = vsel %vm1419, %v1424, %v1423
      %vm1426 = vcmp.lt.s32.totalorder %v1286, 0
      %v1427 = vsub.s32 0, %v1286
      %v1428 = vsel %vm1426, %v1427, %v1286
      %v1429 = vshrl.u32 %v1428, 4
      %v1430 = vand.u32 %v1428, 15
      %v1431 = vsub.s32 0, %v1430
      %v1432 = vsel %vm1426, %v1431, %v1430
      %vm1433 = vcmp.lt.s32.totalorder %v1287, 0
      %v1434 = vsub.s32 0, %v1287
      %v1435 = vsel %vm1433, %v1434, %v1287
      %v1436 = vshrl.u32 %v1435, 4
      %v1437 = vand.u32 %v1435, 15
      %v1438 = vsub.s32 0, %v1437
      %v1439 = vsel %vm1433, %v1438, %v1437
      %vm1440 = vcmp.lt.s32.totalorder %v1288, 0
      %v1441 = vsub.s32 0, %v1288
      %v1442 = vsel %vm1440, %v1441, %v1288
      %v1443 = vshrl.u32 %v1442, 4
      %v1444 = vand.u32 %v1442, 15
      %v1445 = vsub.s32 0, %v1444
      %v1446 = vsel %vm1440, %v1445, %v1444
      %vm1447 = vcmp.lt.s32.totalorder %v1289, 0
      %v1448 = vsub.s32 0, %v1289
      %v1449 = vsel %vm1447, %v1448, %v1289
      %v1450 = vshrl.u32 %v1449, 4
      %v1451 = vand.u32 %v1449, 15
      %v1452 = vsub.s32 0, %v1451
      %v1453 = vsel %vm1447, %v1452, %v1451
      %vm1454 = vcmp.lt.s32.totalorder %v1290, 0
      %v1455 = vsub.s32 0, %v1290
      %v1456 = vsel %vm1454, %v1455, %v1290
      %v1457 = vshrl.u32 %v1456, 4
      %v1458 = vand.u32 %v1456, 15
      %v1459 = vsub.s32 0, %v1458
      %v1460 = vsel %vm1454, %v1459, %v1458
      %vm1461 = vcmp.lt.s32.totalorder %v1291, 0
      %v1462 = vsub.s32 0, %v1291
      %v1463 = vsel %vm1461, %v1462, %v1291
      %v1464 = vshrl.u32 %v1463, 4
      %v1465 = vand.u32 %v1463, 15
      %v1466 = vsub.s32 0, %v1465
      %v1467 = vsel %vm1461, %v1466, %v1465
      %vm1468 = vcmp.lt.s32.totalorder %v1292, 0
      %v1469 = vsub.s32 0, %v1292
      %v1470 = vsel %vm1468, %v1469, %v1292
      %v1471 = vshrl.u32 %v1470, 4
      %v1472 = vand.u32 %v1470, 15
      %v1473 = vsub.s32 0, %v1472
      %v1474 = vsel %vm1468, %v1473, %v1472
      %vm1475 = vcmp.lt.s32.totalorder %v1293, 0
      %v1476 = vsub.s32 0, %v1293
      %v1477 = vsel %vm1475, %v1476, %v1293
      %v1478 = vshrl.u32 %v1477, 4
      %v1479 = vand.u32 %v1477, 15
      %v1480 = vsub.s32 0, %v1479
      %v1481 = vsel %vm1475, %v1480, %v1479
      %vm1482 = vcmp.lt.s32.totalorder %v1294, 0
      %v1483 = vsub.s32 0, %v1294
      %v1484 = vsel %vm1482, %v1483, %v1294
      %v1485 = vshrl.u32 %v1484, 4
      %v1486 = vand.u32 %v1484, 15
      %v1487 = vsub.s32 0, %v1486
      %v1488 = vsel %vm1482, %v1487, %v1486
      %vm1489 = vcmp.lt.s32.totalorder %v1295, 0
      %v1490 = vsub.s32 0, %v1295
      %v1491 = vsel %vm1489, %v1490, %v1295
      %v1492 = vshrl.u32 %v1491, 4
      %v1493 = vand.u32 %v1491, 15
      %v1494 = vsub.s32 0, %v1493
      %v1495 = vsel %vm1489, %v1494, %v1493
      %vm1496 = vcmp.lt.s32.totalorder %v1296, 0
      %v1497 = vsub.s32 0, %v1296
      %v1498 = vsel %vm1496, %v1497, %v1296
      %v1499 = vshrl.u32 %v1498, 4
      %v1500 = vand.u32 %v1498, 15
      %v1501 = vsub.s32 0, %v1500
      %v1502 = vsel %vm1496, %v1501, %v1500
      %vm1503 = vcmp.lt.s32.totalorder %v1297, 0
      %v1504 = vsub.s32 0, %v1297
      %v1505 = vsel %vm1503, %v1504, %v1297
      %v1506 = vshrl.u32 %v1505, 4
      %v1507 = vand.u32 %v1505, 15
      %v1508 = vsub.s32 0, %v1507
      %v1509 = vsel %vm1503, %v1508, %v1507
      %vm1510 = vcmp.lt.s32.totalorder %v1298, 0
      %v1511 = vsub.s32 0, %v1298
      %v1512 = vsel %vm1510, %v1511, %v1298
      %v1513 = vshrl.u32 %v1512, 4
      %v1514 = vand.u32 %v1512, 15
      %v1515 = vsub.s32 0, %v1514
      %v1516 = vsel %vm1510, %v1515, %v1514
      %vm1517 = vcmp.lt.s32.totalorder %v1299, 0
      %v1518 = vsub.s32 0, %v1299
      %v1519 = vsel %vm1517, %v1518, %v1299
      %v1520 = vshrl.u32 %v1519, 4
      %v1521 = vand.u32 %v1519, 15
      %v1522 = vsub.s32 0, %v1521
      %v1523 = vsel %vm1517, %v1522, %v1521
      %vm1524 = vcmp.ne.s32.totalorder %v1306, 0
      %vm1525 = vcmp.ne.s32.totalorder %v1313, 0
      %vm1526 = vcmp.ne.s32.totalorder %v1320, 0
      %vm1527 = vcmp.ne.s32.totalorder %v1327, 0
      %vm1528 = vcmp.ne.s32.totalorder %v1334, 0
      %vm1529 = vcmp.ne.s32.totalorder %v1341, 0
      %vm1530 = vcmp.ne.s32.totalorder %v1348, 0
      %vm1531 = vcmp.ne.s32.totalorder %v1355, 0
      %vm1532 = vcmp.ne.s32.totalorder %v1362, 0
      %vm1533 = vcmp.ne.s32.totalorder %v1369, 0
      %vm1534 = vcmp.ne.s32.totalorder %v1376, 0
      %vm1535 = vcmp.ne.s32.totalorder %v1383, 0
      %vm1536 = vcmp.ne.s32.totalorder %v1390, 0
      %vm1537 = vcmp.ne.s32.totalorder %v1397, 0
      %vm1538 = vcmp.ne.s32.totalorder %v1404, 0
      %vm1539 = vcmp.ne.s32.totalorder %v1411, 0
      %vm1540 = vcmp.ne.s32.totalorder %v1418, 0
      %vm1541 = vcmp.ne.s32.totalorder %v1425, 0
      %vm1542 = vcmp.ne.s32.totalorder %v1432, 0
      %vm1543 = vcmp.ne.s32.totalorder %v1439, 0
      %vm1544 = vcmp.ne.s32.totalorder %v1446, 0
      %vm1545 = vcmp.ne.s32.totalorder %v1453, 0
      %vm1546 = vcmp.ne.s32.totalorder %v1460, 0
      %vm1547 = vcmp.ne.s32.totalorder %v1467, 0
      %vm1548 = vcmp.ne.s32.totalorder %v1474, 0
      %vm1549 = vcmp.ne.s32.totalorder %v1481, 0
      %vm1550 = vcmp.ne.s32.totalorder %v1488, 0
      %vm1551 = vcmp.ne.s32.totalorder %v1495, 0
      %vm1552 = vcmp.ne.s32.totalorder %v1502, 0
      %vm1553 = vcmp.ne.s32.totalorder %v1509, 0
      %vm1554 = vcmp.ne.s32.totalorder %v1516, 0
      %vm1555 = vcmp.ne.s32.totalorder %v1523, 0
      %vm1556 = vcmp.lt.s32.totalorder %v1306, 0
      %vm1557 = vcmp.lt.s32.totalorder %v1313, 0
      %vm1558 = vcmp.lt.s32.totalorder %v1320, 0
      %vm1559 = vcmp.lt.s32.totalorder %v1327, 0
      %vm1560 = vcmp.lt.s32.totalorder %v1334, 0
      %vm1561 = vcmp.lt.s32.totalorder %v1341, 0
      %vm1562 = vcmp.lt.s32.totalorder %v1348, 0
      %vm1563 = vcmp.lt.s32.totalorder %v1355, 0
      %vm1564 = vcmp.lt.s32.totalorder %v1362, 0
      %vm1565 = vcmp.lt.s32.totalorder %v1369, 0
      %vm1566 = vcmp.lt.s32.totalorder %v1376, 0
      %vm1567 = vcmp.lt.s32.totalorder %v1383, 0
      %vm1568 = vcmp.lt.s32.totalorder %v1390, 0
      %vm1569 = vcmp.lt.s32.totalorder %v1397, 0
      %vm1570 = vcmp.lt.s32.totalorder %v1404, 0
      %vm1571 = vcmp.lt.s32.totalorder %v1411, 0
      %vm1572 = vcmp.lt.s32.totalorder %v1418, 0
      %vm1573 = vcmp.lt.s32.totalorder %v1425, 0
      %vm1574 = vcmp.lt.s32.totalorder %v1432, 0
      %vm1575 = vcmp.lt.s32.totalorder %v1439, 0
      %vm1576 = vcmp.lt.s32.totalorder %v1446, 0
      %vm1577 = vcmp.lt.s32.totalorder %v1453, 0
      %vm1578 = vcmp.lt.s32.totalorder %v1460, 0
      %vm1579 = vcmp.lt.s32.totalorder %v1467, 0
      %vm1580 = vcmp.lt.s32.totalorder %v1474, 0
      %vm1581 = vcmp.lt.s32.totalorder %v1481, 0
      %vm1582 = vcmp.lt.s32.totalorder %v1488, 0
      %vm1583 = vcmp.lt.s32.totalorder %v1495, 0
      %vm1584 = vcmp.lt.s32.totalorder %v1502, 0
      %vm1585 = vcmp.lt.s32.totalorder %v1509, 0
      %vm1586 = vcmp.lt.s32.totalorder %v1516, 0
      %vm1587 = vcmp.lt.s32.totalorder %v1523, 0
      %vm1588 = vmand %vm1556, %vm1524
      %vm1589 = vmand %vm1557, %vm1525
      %vm1590 = vmand %vm1558, %vm1526
      %vm1591 = vmand %vm1559, %vm1527
      %vm1592 = vmand %vm1560, %vm1528
      %vm1593 = vmand %vm1561, %vm1529
      %vm1594 = vmand %vm1562, %vm1530
      %vm1595 = vmand %vm1563, %vm1531
      %vm1596 = vmand %vm1564, %vm1532
      %vm1597 = vmand %vm1565, %vm1533
      %vm1598 = vmand %vm1566, %vm1534
      %vm1599 = vmand %vm1567, %vm1535
      %vm1600 = vmand %vm1568, %vm1536
      %vm1601 = vmand %vm1569, %vm1537
      %vm1602 = vmand %vm1570, %vm1538
      %vm1603 = vmand %vm1571, %vm1539
      %vm1604 = vmand %vm1572, %vm1540
      %vm1605 = vmand %vm1573, %vm1541
      %vm1606 = vmand %vm1574, %vm1542
      %vm1607 = vmand %vm1575, %vm1543
      %vm1608 = vmand %vm1576, %vm1544
      %vm1609 = vmand %vm1577, %vm1545
      %vm1610 = vmand %vm1578, %vm1546
      %vm1611 = vmand %vm1579, %vm1547
      %vm1612 = vmand %vm1580, %vm1548
      %vm1613 = vmand %vm1581, %vm1549
      %vm1614 = vmand %vm1582, %vm1550
      %vm1615 = vmand %vm1583, %vm1551
      %vm1616 = vmand %vm1584, %vm1552
      %vm1617 = vmand %vm1585, %vm1553
      %vm1618 = vmand %vm1586, %vm1554
      %vm1619 = vmand %vm1587, %vm1555
      %v1620 = vadd.s32 %v1306, 16
      %v1621 = vadd.s32 %v1313, 16
      %v1622 = vadd.s32 %v1320, 16
      %v1623 = vadd.s32 %v1327, 16
      %v1624 = vadd.s32 %v1334, 16
      %v1625 = vadd.s32 %v1341, 16
      %v1626 = vadd.s32 %v1348, 16
      %v1627 = vadd.s32 %v1355, 16
      %v1628 = vadd.s32 %v1362, 16
      %v1629 = vadd.s32 %v1369, 16
      %v1630 = vadd.s32 %v1376, 16
      %v1631 = vadd.s32 %v1383, 16
      %v1632 = vadd.s32 %v1390, 16
      %v1633 = vadd.s32 %v1397, 16
      %v1634 = vadd.s32 %v1404, 16
      %v1635 = vadd.s32 %v1411, 16
      %v1636 = vadd.s32 %v1418, 16
      %v1637 = vadd.s32 %v1425, 16
      %v1638 = vadd.s32 %v1432, 16
      %v1639 = vadd.s32 %v1439, 16
      %v1640 = vadd.s32 %v1446, 16
      %v1641 = vadd.s32 %v1453, 16
      %v1642 = vadd.s32 %v1460, 16
      %v1643 = vadd.s32 %v1467, 16
      %v1644 = vadd.s32 %v1474, 16
      %v1645 = vadd.s32 %v1481, 16
      %v1646 = vadd.s32 %v1488, 16
      %v1647 = vadd.s32 %v1495, 16
      %v1648 = vadd.s32 %v1502, 16
      %v1649 = vadd.s32 %v1509, 16
      %v1650 = vadd.s32 %v1516, 16
      %v1651 = vadd.s32 %v1523, 16
      %v1652 = vsel %vm1588, %v1620, %v1306
      %v1653 = vsel %vm1589, %v1621, %v1313
      %v1654 = vsel %vm1590, %v1622, %v1320
      %v1655 = vsel %vm1591, %v1623, %v1327
      %v1656 = vsel %vm1592, %v1624, %v1334
      %v1657 = vsel %vm1593, %v1625, %v1341
      %v1658 = vsel %vm1594, %v1626, %v1348
      %v1659 = vsel %vm1595, %v1627, %v1355
      %v1660 = vsel %vm1596, %v1628, %v1362
      %v1661 = vsel %vm1597, %v1629, %v1369
      %v1662 = vsel %vm1598, %v1630, %v1376
      %v1663 = vsel %vm1599, %v1631, %v1383
      %v1664 = vsel %vm1600, %v1632, %v1390
      %v1665 = vsel %vm1601, %v1633, %v1397
      %v1666 = vsel %vm1602, %v1634, %v1404
      %v1667 = vsel %vm1603, %v1635, %v1411
      %v1668 = vsel %vm1604, %v1636, %v1418
      %v1669 = vsel %vm1605, %v1637, %v1425
      %v1670 = vsel %vm1606, %v1638, %v1432
      %v1671 = vsel %vm1607, %v1639, %v1439
      %v1672 = vsel %vm1608, %v1640, %v1446
      %v1673 = vsel %vm1609, %v1641, %v1453
      %v1674 = vsel %vm1610, %v1642, %v1460
      %v1675 = vsel %vm1611, %v1643, %v1467
      %v1676 = vsel %vm1612, %v1644, %v1474
      %v1677 = vsel %vm1613, %v1645, %v1481
      %v1678 = vsel %vm1614, %v1646, %v1488
      %v1679 = vsel %vm1615, %v1647, %v1495
      %v1680 = vsel %vm1616, %v1648, %v1502
      %v1681 = vsel %vm1617, %v1649, %v1509
      %v1682 = vsel %vm1618, %v1650, %v1516
      %v1683 = vsel %vm1619, %v1651, %v1523
      %vm1684 = vcmp.ne.s32.totalorder %v1652, 0
      %vm1685 = vcmp.ne.s32.totalorder %v1653, 0
      %vm1686 = vcmp.ne.s32.totalorder %v1654, 0
      %vm1687 = vcmp.ne.s32.totalorder %v1655, 0
      %vm1688 = vcmp.ne.s32.totalorder %v1656, 0
      %vm1689 = vcmp.ne.s32.totalorder %v1657, 0
      %vm1690 = vcmp.ne.s32.totalorder %v1658, 0
      %vm1691 = vcmp.ne.s32.totalorder %v1659, 0
      %vm1692 = vcmp.ne.s32.totalorder %v1660, 0
      %vm1693 = vcmp.ne.s32.totalorder %v1661, 0
      %vm1694 = vcmp.ne.s32.totalorder %v1662, 0
      %vm1695 = vcmp.ne.s32.totalorder %v1663, 0
      %vm1696 = vcmp.ne.s32.totalorder %v1664, 0
      %vm1697 = vcmp.ne.s32.totalorder %v1665, 0
      %vm1698 = vcmp.ne.s32.totalorder %v1666, 0
      %vm1699 = vcmp.ne.s32.totalorder %v1667, 0
      %vm1700 = vcmp.ne.s32.totalorder %v1668, 0
      %vm1701 = vcmp.ne.s32.totalorder %v1669, 0
      %vm1702 = vcmp.ne.s32.totalorder %v1670, 0
      %vm1703 = vcmp.ne.s32.totalorder %v1671, 0
      %vm1704 = vcmp.ne.s32.totalorder %v1672, 0
      %vm1705 = vcmp.ne.s32.totalorder %v1673, 0
      %vm1706 = vcmp.ne.s32.totalorder %v1674, 0
      %vm1707 = vcmp.ne.s32.totalorder %v1675, 0
      %vm1708 = vcmp.ne.s32.totalorder %v1676, 0
      %vm1709 = vcmp.ne.s32.totalorder %v1677, 0
      %vm1710 = vcmp.ne.s32.totalorder %v1678, 0
      %vm1711 = vcmp.ne.s32.totalorder %v1679, 0
      %vm1712 = vcmp.ne.s32.totalorder %v1680, 0
      %vm1713 = vcmp.ne.s32.totalorder %v1681, 0
      %vm1714 = vcmp.ne.s32.totalorder %v1682, 0
      %vm1715 = vcmp.ne.s32.totalorder %v1683, 0
      %v1716 = vsel %vm1684, 1, 0
      %v1717 = vsel %vm1685, 1, 0
      %v1718 = vsel %vm1686, 1, 0
      %v1719 = vsel %vm1687, 1, 0
      %v1720 = vsel %vm1688, 1, 0
      %v1721 = vsel %vm1689, 1, 0
      %v1722 = vsel %vm1690, 1, 0
      %v1723 = vsel %vm1691, 1, 0
      %v1724 = vsel %vm1692, 1, 0
      %v1725 = vsel %vm1693, 1, 0
      %v1726 = vsel %vm1694, 1, 0
      %v1727 = vsel %vm1695, 1, 0
      %v1728 = vsel %vm1696, 1, 0
      %v1729 = vsel %vm1697, 1, 0
      %v1730 = vsel %vm1698, 1, 0
      %v1731 = vsel %vm1699, 1, 0
      %v1732 = vsel %vm1700, 1, 0
      %v1733 = vsel %vm1701, 1, 0
      %v1734 = vsel %vm1702, 1, 0
      %v1735 = vsel %vm1703, 1, 0
      %v1736 = vsel %vm1704, 1, 0
      %v1737 = vsel %vm1705, 1, 0
      %v1738 = vsel %vm1706, 1, 0
      %v1739 = vsel %vm1707, 1, 0
      %v1740 = vsel %vm1708, 1, 0
      %v1741 = vsel %vm1709, 1, 0
      %v1742 = vsel %vm1710, 1, 0
      %v1743 = vsel %vm1711, 1, 0
      %v1744 = vsel %vm1712, 1, 0
      %v1745 = vsel %vm1713, 1, 0
      %v1746 = vsel %vm1714, 1, 0
      %v1747 = vsel %vm1715, 1, 0
      %v1748 = vcvt.s32.f32 %v1716
      %v1749 = vcvt.s32.f32 %v1717
      %v1750 = vcvt.s32.f32 %v1718
      %v1751 = vcvt.s32.f32 %v1719
      %v1752 = vcvt.s32.f32 %v1720
      %v1753 = vcvt.s32.f32 %v1721
      %v1754 = vcvt.s32.f32 %v1722
      %v1755 = vcvt.s32.f32 %v1723
      %v1756 = vcvt.s32.f32 %v1724
      %v1757 = vcvt.s32.f32 %v1725
      %v1758 = vcvt.s32.f32 %v1726
      %v1759 = vcvt.s32.f32 %v1727
      %v1760 = vcvt.s32.f32 %v1728
      %v1761 = vcvt.s32.f32 %v1729
      %v1762 = vcvt.s32.f32 %v1730
      %v1763 = vcvt.s32.f32 %v1731
      %v1764 = vcvt.s32.f32 %v1732
      %v1765 = vcvt.s32.f32 %v1733
      %v1766 = vcvt.s32.f32 %v1734
      %v1767 = vcvt.s32.f32 %v1735
      %v1768 = vcvt.s32.f32 %v1736
      %v1769 = vcvt.s32.f32 %v1737
      %v1770 = vcvt.s32.f32 %v1738
      %v1771 = vcvt.s32.f32 %v1739
      %v1772 = vcvt.s32.f32 %v1740
      %v1773 = vcvt.s32.f32 %v1741
      %v1774 = vcvt.s32.f32 %v1742
      %v1775 = vcvt.s32.f32 %v1743
      %v1776 = vcvt.s32.f32 %v1744
      %v1777 = vcvt.s32.f32 %v1745
      %v1778 = vcvt.s32.f32 %v1746
      %v1779 = vcvt.s32.f32 %v1747
      %vm1780 = vcmp.ne.s32.totalorder %v1652, 15
      %vm1781 = vcmp.ne.s32.totalorder %v1653, 15
      %vm1782 = vcmp.ne.s32.totalorder %v1654, 15
      %vm1783 = vcmp.ne.s32.totalorder %v1655, 15
      %vm1784 = vcmp.ne.s32.totalorder %v1656, 15
      %vm1785 = vcmp.ne.s32.totalorder %v1657, 15
      %vm1786 = vcmp.ne.s32.totalorder %v1658, 15
      %vm1787 = vcmp.ne.s32.totalorder %v1659, 15
      %vm1788 = vcmp.ne.s32.totalorder %v1660, 15
      %vm1789 = vcmp.ne.s32.totalorder %v1661, 15
      %vm1790 = vcmp.ne.s32.totalorder %v1662, 15
      %vm1791 = vcmp.ne.s32.totalorder %v1663, 15
      %vm1792 = vcmp.ne.s32.totalorder %v1664, 15
      %vm1793 = vcmp.ne.s32.totalorder %v1665, 15
      %vm1794 = vcmp.ne.s32.totalorder %v1666, 15
      %vm1795 = vcmp.ne.s32.totalorder %v1667, 15
      %vm1796 = vcmp.ne.s32.totalorder %v1668, 15
      %vm1797 = vcmp.ne.s32.totalorder %v1669, 15
      %vm1798 = vcmp.ne.s32.totalorder %v1670, 15
      %vm1799 = vcmp.ne.s32.totalorder %v1671, 15
      %vm1800 = vcmp.ne.s32.totalorder %v1672, 15
      %vm1801 = vcmp.ne.s32.totalorder %v1673, 15
      %vm1802 = vcmp.ne.s32.totalorder %v1674, 15
      %vm1803 = vcmp.ne.s32.totalorder %v1675, 15
      %vm1804 = vcmp.ne.s32.totalorder %v1676, 15
      %vm1805 = vcmp.ne.s32.totalorder %v1677, 15
      %vm1806 = vcmp.ne.s32.totalorder %v1678, 15
      %vm1807 = vcmp.ne.s32.totalorder %v1679, 15
      %vm1808 = vcmp.ne.s32.totalorder %v1680, 15
      %vm1809 = vcmp.ne.s32.totalorder %v1681, 15
      %vm1810 = vcmp.ne.s32.totalorder %v1682, 15
      %vm1811 = vcmp.ne.s32.totalorder %v1683, 15
      %v1812 = vsel %vm1780, 1, 0
      %v1813 = vsel %vm1781, 1, 0
      %v1814 = vsel %vm1782, 1, 0
      %v1815 = vsel %vm1783, 1, 0
      %v1816 = vsel %vm1784, 1, 0
      %v1817 = vsel %vm1785, 1, 0
      %v1818 = vsel %vm1786, 1, 0
      %v1819 = vsel %vm1787, 1, 0
      %v1820 = vsel %vm1788, 1, 0
      %v1821 = vsel %vm1789, 1, 0
      %v1822 = vsel %vm1790, 1, 0
      %v1823 = vsel %vm1791, 1, 0
      %v1824 = vsel %vm1792, 1, 0
      %v1825 = vsel %vm1793, 1, 0
      %v1826 = vsel %vm1794, 1, 0
      %v1827 = vsel %vm1795, 1, 0
      %v1828 = vsel %vm1796, 1, 0
      %v1829 = vsel %vm1797, 1, 0
      %v1830 = vsel %vm1798, 1, 0
      %v1831 = vsel %vm1799, 1, 0
      %v1832 = vsel %vm1800, 1, 0
      %v1833 = vsel %vm1801, 1, 0
      %v1834 = vsel %vm1802, 1, 0
      %v1835 = vsel %vm1803, 1, 0
      %v1836 = vsel %vm1804, 1, 0
      %v1837 = vsel %vm1805, 1, 0
      %v1838 = vsel %vm1806, 1, 0
      %v1839 = vsel %vm1807, 1, 0
      %v1840 = vsel %vm1808, 1, 0
      %v1841 = vsel %vm1809, 1, 0
      %v1842 = vsel %vm1810, 1, 0
      %v1843 = vsel %vm1811, 1, 0
      %v1844 = vcvt.s32.f32 %v1812
      %v1845 = vcvt.s32.f32 %v1813
      %v1846 = vcvt.s32.f32 %v1814
      %v1847 = vcvt.s32.f32 %v1815
      %v1848 = vcvt.s32.f32 %v1816
      %v1849 = vcvt.s32.f32 %v1817
      %v1850 = vcvt.s32.f32 %v1818
      %v1851 = vcvt.s32.f32 %v1819
      %v1852 = vcvt.s32.f32 %v1820
      %v1853 = vcvt.s32.f32 %v1821
      %v1854 = vcvt.s32.f32 %v1822
      %v1855 = vcvt.s32.f32 %v1823
      %v1856 = vcvt.s32.f32 %v1824
      %v1857 = vcvt.s32.f32 %v1825
      %v1858 = vcvt.s32.f32 %v1826
      %v1859 = vcvt.s32.f32 %v1827
      %v1860 = vcvt.s32.f32 %v1828
      %v1861 = vcvt.s32.f32 %v1829
      %v1862 = vcvt.s32.f32 %v1830
      %v1863 = vcvt.s32.f32 %v1831
      %v1864 = vcvt.s32.f32 %v1832
      %v1865 = vcvt.s32.f32 %v1833
      %v1866 = vcvt.s32.f32 %v1834
      %v1867 = vcvt.s32.f32 %v1835
      %v1868 = vcvt.s32.f32 %v1836
      %v1869 = vcvt.s32.f32 %v1837
      %v1870 = vcvt.s32.f32 %v1838
      %v1871 = vcvt.s32.f32 %v1839
      %v1872 = vcvt.s32.f32 %v1840
      %v1873 = vcvt.s32.f32 %v1841
      %v1874 = vcvt.s32.f32 %v1842
      %v1875 = vcvt.s32.f32 %v1843
      %v1876 = vrot.slane %v1259, 7
      %v1877 = vrot.slane %v1260, 7
      %v1878 = vrot.slane %v1093, 7
      %v1879 = vrot.slane %v1094, 7
      %v1880 = vrot.slane %v1095, 7
      %v1881 = vrot.slane %v1096, 7
      %v1882 = vrot.slane %v1097, 7
      %v1883 = vrot.slane %v1098, 7
      %v1884 = vrot.slane %v1099, 7
      %v1885 = vrot.slane %v1100, 7
      %v1886 = vrot.slane %v1101, 7
      %v1887 = vrot.slane %v1102, 7
      %v1888 = vrot.slane %v1103, 7
      %v1889 = vrot.slane %v1104, 7
      %v1890 = vrot.slane %v1105, 7
      %v1891 = vrot.slane %v1106, 7
      %v1892 = vrot.slane %v1107, 7
      %v1893 = vrot.slane %v1108, 7
      %v1894 = vrot.slane %v1109, 7
      %v1895 = vrot.slane %v1110, 7
      %v1896 = vrot.slane %v1111, 7
      %v1897 = vrot.slane %v1112, 7
      %v1898 = vrot.slane %v1113, 7
      %v1899 = vrot.slane %v1114, 7
      %v1900 = vrot.slane %v1115, 7
      %v1901 = vrot.slane %v1116, 7
      %v1902 = vrot.slane %v1117, 7
      %v1903 = vrot.slane %v1118, 7
      %v1904 = vrot.slane %v1119, 7
      %v1905 = vrot.slane %v1120, 7
      %v1906 = vrot.slane %v1121, 7
      %v1907 = vrot.slane %v1122, 7
      %v1908 = vrot.slane %v1123, 7
      %v1909 = vrot.slane %v1124, 7
      %v1910 = vrot.slane %v1265, 7
      %v1911 = vrot.slane %v1266, 7
      %vm1912 = vcmp.lt.s32.totalorder %v1268, 1
      %v1913 = vsel %vm1912, %v1910, %v1911
      %v1914 = vsel %vm1912, %v1909, %v1910
      %v1915 = vsel %vm1912, %v1908, %v1909
      %v1916 = vsel %vm1912, %v1907, %v1908
      %v1917 = vsel %vm1912, %v1906, %v1907
      %v1918 = vsel %vm1912, %v1905, %v1906
      %v1919 = vsel %vm1912, %v1904, %v1905
      %v1920 = vsel %vm1912, %v1903, %v1904
      %v1921 = vsel %vm1912, %v1902, %v1903
      %v1922 = vsel %vm1912, %v1901, %v1902
      %v1923 = vsel %vm1912, %v1900, %v1901
      %v1924 = vsel %vm1912, %v1899, %v1900
      %v1925 = vsel %vm1912, %v1898, %v1899
      %v1926 = vsel %vm1912, %v1897, %v1898
      %v1927 = vsel %vm1912, %v1896, %v1897
      %v1928 = vsel %vm1912, %v1895, %v1896
      %v1929 = vsel %vm1912, %v1894, %v1895
      %v1930 = vsel %vm1912, %v1893, %v1894
      %v1931 = vsel %vm1912, %v1892, %v1893
      %v1932 = vsel %vm1912, %v1891, %v1892
      %v1933 = vsel %vm1912, %v1890, %v1891
      %v1934 = vsel %vm1912, %v1889, %v1890
      %v1935 = vsel %vm1912, %v1888, %v1889
      %v1936 = vsel %vm1912, %v1887, %v1888
      %v1937 = vsel %vm1912, %v1886, %v1887
      %v1938 = vsel %vm1912, %v1885, %v1886
      %v1939 = vsel %vm1912, %v1884, %v1885
      %v1940 = vsel %vm1912, %v1883, %v1884
      %v1941 = vsel %vm1912, %v1882, %v1883
      %v1942 = vsel %vm1912, %v1881, %v1882
      %v1943 = vsel %vm1912, %v1880, %v1881
      %v1944 = vsel %vm1912, %v1879, %v1880
      %v1945 = vsel %vm1912, %v1878, %v1879
      %v1946 = vsel %vm1912, %v1877, %v1878
      %v1947 = vsel %vm1912, %v1876, %v1877
      %v1948 = vsel %vm1912, %v1911, %v1876
      %v1949 = vrot.slane %v1259, 1
      %v1950 = vrot.slane %v1260, 1
      %v1951 = vrot.slane %v1093, 1
      %v1952 = vrot.slane %v1094, 1
      %v1953 = vrot.slane %v1095, 1
      %v1954 = vrot.slane %v1096, 1
      %v1955 = vrot.slane %v1097, 1
      %v1956 = vrot.slane %v1098, 1
      %v1957 = vrot.slane %v1099, 1
      %v1958 = vrot.slane %v1100, 1
      %v1959 = vrot.slane %v1101, 1
      %v1960 = vrot.slane %v1102, 1
      %v1961 = vrot.slane %v1103, 1
      %v1962 = vrot.slane %v1104, 1
      %v1963 = vrot.slane %v1105, 1
      %v1964 = vrot.slane %v1106, 1
      %v1965 = vrot.slane %v1107, 1
      %v1966 = vrot.slane %v1108, 1
      %v1967 = vrot.slane %v1109, 1
      %v1968 = vrot.slane %v1110, 1
      %v1969 = vrot.slane %v1111, 1
      %v1970 = vrot.slane %v1112, 1
      %v1971 = vrot.slane %v1113, 1
      %v1972 = vrot.slane %v1114, 1
      %v1973 = vrot.slane %v1115, 1
      %v1974 = vrot.slane %v1116, 1
      %v1975 = vrot.slane %v1117, 1
      %v1976 = vrot.slane %v1118, 1
      %v1977 = vrot.slane %v1119, 1
      %v1978 = vrot.slane %v1120, 1
      %v1979 = vrot.slane %v1121, 1
      %v1980 = vrot.slane %v1122, 1
      %v1981 = vrot.slane %v1123, 1
      %v1982 = vrot.slane %v1124, 1
      %v1983 = vrot.slane %v1265, 1
      %v1984 = vrot.slane %v1266, 1
      %vm1985 = vcmp.lt.s32.totalorder %v1268, 7
      %v1986 = vsel %vm1985, %v1983, %v1984
      %v1987 = vsel %vm1985, %v1982, %v1983
      %v1988 = vsel %vm1985, %v1981, %v1982
      %v1989 = vsel %vm1985, %v1980, %v1981
      %v1990 = vsel %vm1985, %v1979, %v1980
      %v1991 = vsel %vm1985, %v1978, %v1979
      %v1992 = vsel %vm1985, %v1977, %v1978
      %v1993 = vsel %vm1985, %v1976, %v1977
      %v1994 = vsel %vm1985, %v1975, %v1976
      %v1995 = vsel %vm1985, %v1974, %v1975
      %v1996 = vsel %vm1985, %v1973, %v1974
      %v1997 = vsel %vm1985, %v1972, %v1973
      %v1998 = vsel %vm1985, %v1971, %v1972
      %v1999 = vsel %vm1985, %v1970, %v1971
      %v2000 = vsel %vm1985, %v1969, %v1970
      %v2001 = vsel %vm1985, %v1968, %v1969
      %v2002 = vsel %vm1985, %v1967, %v1968
      %v2003 = vsel %vm1985, %v1966, %v1967
      %v2004 = vsel %vm1985, %v1965, %v1966
      %v2005 = vsel %vm1985, %v1964, %v1965
      %v2006 = vsel %vm1985, %v1963, %v1964
      %v2007 = vsel %vm1985, %v1962, %v1963
      %v2008 = vsel %vm1985, %v1961, %v1962
      %v2009 = vsel %vm1985, %v1960, %v1961
      %v2010 = vsel %vm1985, %v1959, %v1960
      %v2011 = vsel %vm1985, %v1958, %v1959
      %v2012 = vsel %vm1985, %v1957, %v1958
      %v2013 = vsel %vm1985, %v1956, %v1957
      %v2014 = vsel %vm1985, %v1955, %v1956
      %v2015 = vsel %vm1985, %v1954, %v1955
      %v2016 = vsel %vm1985, %v1953, %v1954
      %v2017 = vsel %vm1985, %v1952, %v1953
      %v2018 = vsel %vm1985, %v1951, %v1952
      %v2019 = vsel %vm1985, %v1950, %v1951
      %v2020 = vsel %vm1985, %v1949, %v1950
      %v2021 = vsel %vm1985, %v1984, %v1949
      %v2022 = vmul.f32 %v1948, %v1748
      %v2023 = vmul.f32 %v1947, %v1749
      %v2024 = vmul.f32 %v1946, %v1750
      %v2025 = vmul.f32 %v1945, %v1751
      %v2026 = vmul.f32 %v1944, %v1752
      %v2027 = vmul.f32 %v1943, %v1753
      %v2028 = vmul.f32 %v1942, %v1754
      %v2029 = vmul.f32 %v1941, %v1755
      %v2030 = vmul.f32 %v1940, %v1756
      %v2031 = vmul.f32 %v1939, %v1757
      %v2032 = vmul.f32 %v1938, %v1758
      %v2033 = vmul.f32 %v1937, %v1759
      %v2034 = vmul.f32 %v1936, %v1760
      %v2035 = vmul.f32 %v1935, %v1761
      %v2036 = vmul.f32 %v1934, %v1762
      %v2037 = vmul.f32 %v1933, %v1763
      %v2038 = vmul.f32 %v1932, %v1764
      %v2039 = vmul.f32 %v1931, %v1765
      %v2040 = vmul.f32 %v1930, %v1766
      %v2041 = vmul.f32 %v1929, %v1767
      %v2042 = vmul.f32 %v1928, %v1768
      %v2043 = vmul.f32 %v1927, %v1769
      %v2044 = vmul.f32 %v1926, %v1770
      %v2045 = vmul.f32 %v1925, %v1771
      %v2046 = vmul.f32 %v1924, %v1772
      %v2047 = vmul.f32 %v1923, %v1773
      %v2048 = vmul.f32 %v1922, %v1774
      %v2049 = vmul.f32 %v1921, %v1775
      %v2050 = vmul.f32 %v1920, %v1776
      %v2051 = vmul.f32 %v1919, %v1777
      %v2052 = vmul.f32 %v1918, %v1778
      %v2053 = vmul.f32 %v1917, %v1779
      %v2054 = vpack.c.bf16 %v2023, %v2022
      %v2055 = vpack.c.bf16 %v2025, %v2024
      %v2056 = vpack.c.bf16 %v2027, %v2026
      %v2057 = vpack.c.bf16 %v2029, %v2028
      %v2058 = vpack.c.bf16 %v2031, %v2030
      %v2059 = vpack.c.bf16 %v2033, %v2032
      %v2060 = vpack.c.bf16 %v2035, %v2034
      %v2061 = vpack.c.bf16 %v2037, %v2036
      %v2062 = vpack.c.bf16 %v2039, %v2038
      %v2063 = vpack.c.bf16 %v2041, %v2040
      %v2064 = vpack.c.bf16 %v2043, %v2042
      %v2065 = vpack.c.bf16 %v2045, %v2044
      %v2066 = vpack.c.bf16 %v2047, %v2046
      %v2067 = vpack.c.bf16 %v2049, %v2048
      %v2068 = vpack.c.bf16 %v2051, %v2050
      %v2069 = vpack.c.bf16 %v2053, %v2052
      %v2070 = vpack.c.bf16 %v1260, %v1259
      %v2071 = vpack.c.bf16 %v1094, %v1093
      %v2072 = vpack.c.bf16 %v1096, %v1095
      %v2073 = vpack.c.bf16 %v1098, %v1097
      %v2074 = vpack.c.bf16 %v1100, %v1099
      %v2075 = vpack.c.bf16 %v1102, %v1101
      %v2076 = vpack.c.bf16 %v1104, %v1103
      %v2077 = vpack.c.bf16 %v1106, %v1105
      %v2078 = vpack.c.bf16 %v1108, %v1107
      %v2079 = vpack.c.bf16 %v1110, %v1109
      %v2080 = vpack.c.bf16 %v1112, %v1111
      %v2081 = vpack.c.bf16 %v1114, %v1113
      %v2082 = vpack.c.bf16 %v1116, %v1115
      %v2083 = vpack.c.bf16 %v1118, %v1117
      %v2084 = vpack.c.bf16 %v1120, %v1119
      %v2085 = vpack.c.bf16 %v1122, %v1121
      %v2086 = vmul.f32 %v2020, %v1844
      %v2087 = vmul.f32 %v2019, %v1845
      %v2088 = vmul.f32 %v2018, %v1846
      %v2089 = vmul.f32 %v2017, %v1847
      %v2090 = vmul.f32 %v2016, %v1848
      %v2091 = vmul.f32 %v2015, %v1849
      %v2092 = vmul.f32 %v2014, %v1850
      %v2093 = vmul.f32 %v2013, %v1851
      %v2094 = vmul.f32 %v2012, %v1852
      %v2095 = vmul.f32 %v2011, %v1853
      %v2096 = vmul.f32 %v2010, %v1854
      %v2097 = vmul.f32 %v2009, %v1855
      %v2098 = vmul.f32 %v2008, %v1856
      %v2099 = vmul.f32 %v2007, %v1857
      %v2100 = vmul.f32 %v2006, %v1858
      %v2101 = vmul.f32 %v2005, %v1859
      %v2102 = vmul.f32 %v2004, %v1860
      %v2103 = vmul.f32 %v2003, %v1861
      %v2104 = vmul.f32 %v2002, %v1862
      %v2105 = vmul.f32 %v2001, %v1863
      %v2106 = vmul.f32 %v2000, %v1864
      %v2107 = vmul.f32 %v1999, %v1865
      %v2108 = vmul.f32 %v1998, %v1866
      %v2109 = vmul.f32 %v1997, %v1867
      %v2110 = vmul.f32 %v1996, %v1868
      %v2111 = vmul.f32 %v1995, %v1869
      %v2112 = vmul.f32 %v1994, %v1870
      %v2113 = vmul.f32 %v1993, %v1871
      %v2114 = vmul.f32 %v1992, %v1872
      %v2115 = vmul.f32 %v1991, %v1873
      %v2116 = vmul.f32 %v1990, %v1874
      %v2117 = vmul.f32 %v1989, %v1875
      %v2118 = vpack.c.bf16 %v2087, %v2086
      %v2119 = vpack.c.bf16 %v2089, %v2088
      %v2120 = vpack.c.bf16 %v2091, %v2090
      %v2121 = vpack.c.bf16 %v2093, %v2092
      %v2122 = vpack.c.bf16 %v2095, %v2094
      %v2123 = vpack.c.bf16 %v2097, %v2096
      %v2124 = vpack.c.bf16 %v2099, %v2098
      %v2125 = vpack.c.bf16 %v2101, %v2100
      %v2126 = vpack.c.bf16 %v2103, %v2102
      %v2127 = vpack.c.bf16 %v2105, %v2104
      %v2128 = vpack.c.bf16 %v2107, %v2106
      %v2129 = vpack.c.bf16 %v2109, %v2108
      %v2130 = vpack.c.bf16 %v2111, %v2110
      %v2131 = vpack.c.bf16 %v2113, %v2112
      %v2132 = vpack.c.bf16 %v2115, %v2114
      %v2133 = vpack.c.bf16 %v2117, %v2116
      %v2134 = vmul.f32 %v1946, %v1748
      %v2135 = vmul.f32 %v1945, %v1749
      %v2136 = vmul.f32 %v1944, %v1750
      %v2137 = vmul.f32 %v1943, %v1751
      %v2138 = vmul.f32 %v1942, %v1752
      %v2139 = vmul.f32 %v1941, %v1753
      %v2140 = vmul.f32 %v1940, %v1754
      %v2141 = vmul.f32 %v1939, %v1755
      %v2142 = vmul.f32 %v1938, %v1756
      %v2143 = vmul.f32 %v1937, %v1757
      %v2144 = vmul.f32 %v1936, %v1758
      %v2145 = vmul.f32 %v1935, %v1759
      %v2146 = vmul.f32 %v1934, %v1760
      %v2147 = vmul.f32 %v1933, %v1761
      %v2148 = vmul.f32 %v1932, %v1762
      %v2149 = vmul.f32 %v1931, %v1763
      %v2150 = vmul.f32 %v1930, %v1764
      %v2151 = vmul.f32 %v1929, %v1765
      %v2152 = vmul.f32 %v1928, %v1766
      %v2153 = vmul.f32 %v1927, %v1767
      %v2154 = vmul.f32 %v1926, %v1768
      %v2155 = vmul.f32 %v1925, %v1769
      %v2156 = vmul.f32 %v1924, %v1770
      %v2157 = vmul.f32 %v1923, %v1771
      %v2158 = vmul.f32 %v1922, %v1772
      %v2159 = vmul.f32 %v1921, %v1773
      %v2160 = vmul.f32 %v1920, %v1774
      %v2161 = vmul.f32 %v1919, %v1775
      %v2162 = vmul.f32 %v1918, %v1776
      %v2163 = vmul.f32 %v1917, %v1777
      %v2164 = vmul.f32 %v1916, %v1778
      %v2165 = vmul.f32 %v1915, %v1779
      %v2166 = vpack.c.bf16 %v2135, %v2134
      %v2167 = vpack.c.bf16 %v2137, %v2136
      %v2168 = vpack.c.bf16 %v2139, %v2138
      %v2169 = vpack.c.bf16 %v2141, %v2140
      %v2170 = vpack.c.bf16 %v2143, %v2142
      %v2171 = vpack.c.bf16 %v2145, %v2144
      %v2172 = vpack.c.bf16 %v2147, %v2146
      %v2173 = vpack.c.bf16 %v2149, %v2148
      %v2174 = vpack.c.bf16 %v2151, %v2150
      %v2175 = vpack.c.bf16 %v2153, %v2152
      %v2176 = vpack.c.bf16 %v2155, %v2154
      %v2177 = vpack.c.bf16 %v2157, %v2156
      %v2178 = vpack.c.bf16 %v2159, %v2158
      %v2179 = vpack.c.bf16 %v2161, %v2160
      %v2180 = vpack.c.bf16 %v2163, %v2162
      %v2181 = vpack.c.bf16 %v2165, %v2164
      %v2182 = vpack.c.bf16 %v1124, %v1123
      %v2183 = vmul.f32 %v2018, %v1844
      %v2184 = vmul.f32 %v2017, %v1845
      %v2185 = vmul.f32 %v2016, %v1846
      %v2186 = vmul.f32 %v2015, %v1847
      %v2187 = vmul.f32 %v2014, %v1848
      %v2188 = vmul.f32 %v2013, %v1849
      %v2189 = vmul.f32 %v2012, %v1850
      %v2190 = vmul.f32 %v2011, %v1851
      %v2191 = vmul.f32 %v2010, %v1852
      %v2192 = vmul.f32 %v2009, %v1853
      %v2193 = vmul.f32 %v2008, %v1854
      %v2194 = vmul.f32 %v2007, %v1855
      %v2195 = vmul.f32 %v2006, %v1856
      %v2196 = vmul.f32 %v2005, %v1857
      %v2197 = vmul.f32 %v2004, %v1858
      %v2198 = vmul.f32 %v2003, %v1859
      %v2199 = vmul.f32 %v2002, %v1860
      %v2200 = vmul.f32 %v2001, %v1861
      %v2201 = vmul.f32 %v2000, %v1862
      %v2202 = vmul.f32 %v1999, %v1863
      %v2203 = vmul.f32 %v1998, %v1864
      %v2204 = vmul.f32 %v1997, %v1865
      %v2205 = vmul.f32 %v1996, %v1866
      %v2206 = vmul.f32 %v1995, %v1867
      %v2207 = vmul.f32 %v1994, %v1868
      %v2208 = vmul.f32 %v1993, %v1869
      %v2209 = vmul.f32 %v1992, %v1870
      %v2210 = vmul.f32 %v1991, %v1871
      %v2211 = vmul.f32 %v1990, %v1872
      %v2212 = vmul.f32 %v1989, %v1873
      %v2213 = vmul.f32 %v1988, %v1874
      %v2214 = vmul.f32 %v1987, %v1875
      %v2215 = vpack.c.bf16 %v2184, %v2183
      %v2216 = vpack.c.bf16 %v2186, %v2185
      %v2217 = vpack.c.bf16 %v2188, %v2187
      %v2218 = vpack.c.bf16 %v2190, %v2189
      %v2219 = vpack.c.bf16 %v2192, %v2191
      %v2220 = vpack.c.bf16 %v2194, %v2193
      %v2221 = vpack.c.bf16 %v2196, %v2195
      %v2222 = vpack.c.bf16 %v2198, %v2197
      %v2223 = vpack.c.bf16 %v2200, %v2199
      %v2224 = vpack.c.bf16 %v2202, %v2201
      %v2225 = vpack.c.bf16 %v2204, %v2203
      %v2226 = vpack.c.bf16 %v2206, %v2205
      %v2227 = vpack.c.bf16 %v2208, %v2207
      %v2228 = vpack.c.bf16 %v2210, %v2209
      %v2229 = vpack.c.bf16 %v2212, %v2211
      %v2230 = vpack.c.bf16 %v2214, %v2213
      %v2231 = vmul.f32 %v1944, %v1748
      %v2232 = vmul.f32 %v1943, %v1749
      %v2233 = vmul.f32 %v1942, %v1750
      %v2234 = vmul.f32 %v1941, %v1751
      %v2235 = vmul.f32 %v1940, %v1752
      %v2236 = vmul.f32 %v1939, %v1753
      %v2237 = vmul.f32 %v1938, %v1754
      %v2238 = vmul.f32 %v1937, %v1755
      %v2239 = vmul.f32 %v1936, %v1756
      %v2240 = vmul.f32 %v1935, %v1757
      %v2241 = vmul.f32 %v1934, %v1758
      %v2242 = vmul.f32 %v1933, %v1759
      %v2243 = vmul.f32 %v1932, %v1760
      %v2244 = vmul.f32 %v1931, %v1761
      %v2245 = vmul.f32 %v1930, %v1762
      %v2246 = vmul.f32 %v1929, %v1763
      %v2247 = vmul.f32 %v1928, %v1764
      %v2248 = vmul.f32 %v1927, %v1765
      %v2249 = vmul.f32 %v1926, %v1766
      %v2250 = vmul.f32 %v1925, %v1767
      %v2251 = vmul.f32 %v1924, %v1768
      %v2252 = vmul.f32 %v1923, %v1769
      %v2253 = vmul.f32 %v1922, %v1770
      %v2254 = vmul.f32 %v1921, %v1771
      %v2255 = vmul.f32 %v1920, %v1772
      %v2256 = vmul.f32 %v1919, %v1773
      %v2257 = vmul.f32 %v1918, %v1774
      %v2258 = vmul.f32 %v1917, %v1775
      %v2259 = vmul.f32 %v1916, %v1776
      %v2260 = vmul.f32 %v1915, %v1777
      %v2261 = vmul.f32 %v1914, %v1778
      %v2262 = vmul.f32 %v1913, %v1779
      %v2263 = vpack.c.bf16 %v2232, %v2231
      %v2264 = vpack.c.bf16 %v2234, %v2233
      %v2265 = vpack.c.bf16 %v2236, %v2235
      %v2266 = vpack.c.bf16 %v2238, %v2237
      %v2267 = vpack.c.bf16 %v2240, %v2239
      %v2268 = vpack.c.bf16 %v2242, %v2241
      %v2269 = vpack.c.bf16 %v2244, %v2243
      %v2270 = vpack.c.bf16 %v2246, %v2245
      %v2271 = vpack.c.bf16 %v2248, %v2247
      %v2272 = vpack.c.bf16 %v2250, %v2249
      %v2273 = vpack.c.bf16 %v2252, %v2251
      %v2274 = vpack.c.bf16 %v2254, %v2253
      %v2275 = vpack.c.bf16 %v2256, %v2255
      %v2276 = vpack.c.bf16 %v2258, %v2257
      %v2277 = vpack.c.bf16 %v2260, %v2259
      %v2278 = vpack.c.bf16 %v2262, %v2261
      %v2279 = vpack.c.bf16 %v1266, %v1265
      %v2280 = vmul.f32 %v2016, %v1844
      %v2281 = vmul.f32 %v2015, %v1845
      %v2282 = vmul.f32 %v2014, %v1846
      %v2283 = vmul.f32 %v2013, %v1847
      %v2284 = vmul.f32 %v2012, %v1848
      %v2285 = vmul.f32 %v2011, %v1849
      %v2286 = vmul.f32 %v2010, %v1850
      %v2287 = vmul.f32 %v2009, %v1851
      %v2288 = vmul.f32 %v2008, %v1852
      %v2289 = vmul.f32 %v2007, %v1853
      %v2290 = vmul.f32 %v2006, %v1854
      %v2291 = vmul.f32 %v2005, %v1855
      %v2292 = vmul.f32 %v2004, %v1856
      %v2293 = vmul.f32 %v2003, %v1857
      %v2294 = vmul.f32 %v2002, %v1858
      %v2295 = vmul.f32 %v2001, %v1859
      %v2296 = vmul.f32 %v2000, %v1860
      %v2297 = vmul.f32 %v1999, %v1861
      %v2298 = vmul.f32 %v1998, %v1862
      %v2299 = vmul.f32 %v1997, %v1863
      %v2300 = vmul.f32 %v1996, %v1864
      %v2301 = vmul.f32 %v1995, %v1865
      %v2302 = vmul.f32 %v1994, %v1866
      %v2303 = vmul.f32 %v1993, %v1867
      %v2304 = vmul.f32 %v1992, %v1868
      %v2305 = vmul.f32 %v1991, %v1869
      %v2306 = vmul.f32 %v1990, %v1870
      %v2307 = vmul.f32 %v1989, %v1871
      %v2308 = vmul.f32 %v1988, %v1872
      %v2309 = vmul.f32 %v1987, %v1873
      %v2310 = vmul.f32 %v1986, %v1874
      %v2311 = vmul.f32 %v2021, %v1875
      %v2312 = vpack.c.bf16 %v2281, %v2280
      %v2313 = vpack.c.bf16 %v2283, %v2282
      %v2314 = vpack.c.bf16 %v2285, %v2284
      %v2315 = vpack.c.bf16 %v2287, %v2286
      %v2316 = vpack.c.bf16 %v2289, %v2288
      %v2317 = vpack.c.bf16 %v2291, %v2290
      %v2318 = vpack.c.bf16 %v2293, %v2292
      %v2319 = vpack.c.bf16 %v2295, %v2294
      %v2320 = vpack.c.bf16 %v2297, %v2296
      %v2321 = vpack.c.bf16 %v2299, %v2298
      %v2322 = vpack.c.bf16 %v2301, %v2300
      %v2323 = vpack.c.bf16 %v2303, %v2302
      %v2324 = vpack.c.bf16 %v2305, %v2304
      %v2325 = vpack.c.bf16 %v2307, %v2306
      %v2326 = vpack.c.bf16 %v2309, %v2308
      %v2327 = vpack.c.bf16 %v2311, %v2310
      %v2328 = vld [vmem:[%s6] sm:$0xf]
      %v2329 = vld [vmem:[%s6 + $0x4] sm:$0xf]
      %v2330 = vld [vmem:[%s6 + $0x8] sm:$0xf]
      %v2331 = vld [vmem:[%s6 + $0xc] sm:$0xf]
      %v2332 = vld [vmem:[%s6 + $0x10] sm:$0xf]
      %v2333 = vld [vmem:[%s6 + $0x14] sm:$0xf]
      %v2334 = vld [vmem:[%s6 + $0x18] sm:$0xf]
      %v2335 = vld [vmem:[%s6 + $0x1c] sm:$0xf]
      %v2336 = vld [vmem:[%s6 + $0x20] sm:$0xf]
      %v2337 = vld [vmem:[%s6 + $0x24] sm:$0xf]
      %v2338 = vld [vmem:[%s6 + $0x28] sm:$0xf]
      %v2339 = vld [vmem:[%s6 + $0x2c] sm:$0xf]
      %v2340 = vld [vmem:[%s6 + $0x30] sm:$0xf]
      %v2341 = vld [vmem:[%s6 + $0x34] sm:$0xf]
      %v2342 = vld [vmem:[%s6 + $0x38] sm:$0xf]
      %v2343 = vld [vmem:[%s6 + $0x3c] sm:$0xf]
      %v2344 = vld [vmem:[%s6 + $0x40] sm:$0xf]
      %v2345 = vld [vmem:[%s6 + $0x44] sm:$0xf]
      %v2346 = vld [vmem:[%s6 + $0x48] sm:$0xf]
      %v2347 = vld [vmem:[%s6 + $0x4c] sm:$0xf]
      %v2348 = vld [vmem:[%s6 + $0x50] sm:$0xf]
      %v2349 = vld [vmem:[%s6 + $0x54] sm:$0xf]
      %v2350 = vld [vmem:[%s6 + $0x58] sm:$0xf]
      %v2351 = vld [vmem:[%s6 + $0x5c] sm:$0xf]
      %v2352 = vld [vmem:[%s6 + $0x60] sm:$0xf]
      %v2353 = vld [vmem:[%s6 + $0x64] sm:$0xf]
      %v2354 = vld [vmem:[%s6 + $0x68] sm:$0xf]
      %v2355 = vld [vmem:[%s6 + $0x6c] sm:$0xf]
      %v2356 = vld [vmem:[%s6 + $0x70] sm:$0xf]
      %v2357 = vld [vmem:[%s6 + $0x74] sm:$0xf]
      %v2358 = vld [vmem:[%s6 + $0x78] sm:$0xf]
      %v2359 = vld [vmem:[%s6 + $0x7c] sm:$0xf]
      %v2360 = vld [vmem:[%s6 + $0x80] sm:$0xf]
      %v2361 = vld [vmem:[%s6 + $0x84] sm:$0xf]
      %v2362 = vld [vmem:[%s6 + $0x88] sm:$0xf]
      %v2363 = vld [vmem:[%s6 + $0x8c] sm:$0xf]
      %v2364 = vld [vmem:[%s6 + $0x90] sm:$0xf]
      %v2365 = vld [vmem:[%s6 + $0x94] sm:$0xf]
      %v2366 = vld [vmem:[%s6 + $0x98] sm:$0xf]
      %v2367 = vld [vmem:[%s6 + $0x9c] sm:$0xf]
      %v2368 = vld [vmem:[%s6 + $0xa0] sm:$0xf]
      %v2369 = vld [vmem:[%s6 + $0xa4] sm:$0xf]
      %v2370 = vld [vmem:[%s6 + $0xa8] sm:$0xf]
      %v2371 = vld [vmem:[%s6 + $0xac] sm:$0xf]
      %v2372 = vld [vmem:[%s6 + $0xb0] sm:$0xf]
      %v2373 = vld [vmem:[%s6 + $0xb4] sm:$0xf]
      %v2374 = vld [vmem:[%s6 + $0xb8] sm:$0xf]
      %v2375 = vld [vmem:[%s6 + $0xbc] sm:$0xf]
      %v2376 = vld [vmem:[%s6 + $0xc0] sm:$0xf]
      %v2377 = vld [vmem:[%s6 + $0xc4] sm:$0xf]
      %v2378 = vld [vmem:[%s6 + $0xc8] sm:$0xf]
      %v2379 = vld [vmem:[%s6 + $0xcc] sm:$0xf]
      %v2380 = vld [vmem:[%s6 + $0xd0] sm:$0xf]
      %v2381 = vld [vmem:[%s6 + $0xd4] sm:$0xf]
      %v2382 = vld [vmem:[%s6 + $0xd8] sm:$0xf]
      %v2383 = vld [vmem:[%s6 + $0xdc] sm:$0xf]
      %v2384 = vld [vmem:[%s6 + $0xe0] sm:$0xf]
      %v2385 = vld [vmem:[%s6 + $0xe4] sm:$0xf]
      %v2386 = vld [vmem:[%s6 + $0xe8] sm:$0xf]
      %v2387 = vld [vmem:[%s6 + $0xec] sm:$0xf]
      %v2388 = vld [vmem:[%s6 + $0xf0] sm:$0xf]
      %v2389 = vld [vmem:[%s6 + $0xf4] sm:$0xf]
      %v2390 = vld [vmem:[%s6 + $0xf8] sm:$0xf]
      %v2391 = vld [vmem:[%s6 + $0xfc] sm:$0xf]
      %v2392 = vld [vmem:[%s6 + $0x100] sm:$0xf]
      %v2393 = vld [vmem:[%s6 + $0x104] sm:$0xf]
      %v2394 = vld [vmem:[%s6 + $0x108] sm:$0xf]
      %v2395 = vld [vmem:[%s6 + $0x10c] sm:$0xf]
      %v2396 = vld [vmem:[%s6 + $0x110] sm:$0xf]
      %v2397 = vld [vmem:[%s6 + $0x114] sm:$0xf]
      %v2398 = vld [vmem:[%s6 + $0x118] sm:$0xf]
      %v2399 = vld [vmem:[%s6 + $0x11c] sm:$0xf]
      %v2400 = vld [vmem:[%s6 + $0x120] sm:$0xf]
      %v2401 = vld [vmem:[%s6 + $0x124] sm:$0xf]
      %v2402 = vld [vmem:[%s6 + $0x128] sm:$0xf]
      %v2403 = vld [vmem:[%s6 + $0x12c] sm:$0xf]
      %v2404 = vld [vmem:[%s6 + $0x130] sm:$0xf]
      %v2405 = vld [vmem:[%s6 + $0x134] sm:$0xf]
      %v2406 = vld [vmem:[%s6 + $0x138] sm:$0xf]
      %v2407 = vld [vmem:[%s6 + $0x13c] sm:$0xf]
      %v2408 = vld [vmem:[%s6 + $0x140] sm:$0xf]
      %v2409 = vld [vmem:[%s6 + $0x144] sm:$0xf]
      %v2410 = vld [vmem:[%s6 + $0x148] sm:$0xf]
      %v2411 = vld [vmem:[%s6 + $0x14c] sm:$0xf]
      %v2412 = vld [vmem:[%s6 + $0x150] sm:$0xf]
      %v2413 = vld [vmem:[%s6 + $0x154] sm:$0xf]
      %v2414 = vld [vmem:[%s6 + $0x158] sm:$0xf]
      %v2415 = vld [vmem:[%s6 + $0x15c] sm:$0xf]
      %v2416 = vld [vmem:[%s6 + $0x160] sm:$0xf]
      %v2417 = vld [vmem:[%s6 + $0x164] sm:$0xf]
      %v2418 = vld [vmem:[%s6 + $0x168] sm:$0xf]
      %v2419 = vld [vmem:[%s6 + $0x16c] sm:$0xf]
      %v2420 = vld [vmem:[%s6 + $0x170] sm:$0xf]
      %v2421 = vld [vmem:[%s6 + $0x174] sm:$0xf]
      %v2422 = vld [vmem:[%s6 + $0x178] sm:$0xf]
      %v2423 = vld [vmem:[%s6 + $0x17c] sm:$0xf]
      %v2424 = vld [vmem:[%s6 + $0x180] sm:$0xf]
      %v2425 = vld [vmem:[%s6 + $0x184] sm:$0xf]
      %v2426 = vld [vmem:[%s6 + $0x188] sm:$0xf]
      %v2427 = vld [vmem:[%s6 + $0x18c] sm:$0xf]
      %v2428 = vld [vmem:[%s6 + $0x190] sm:$0xf]
      %v2429 = vld [vmem:[%s6 + $0x194] sm:$0xf]
      %v2430 = vld [vmem:[%s6 + $0x198] sm:$0xf]
      %v2431 = vld [vmem:[%s6 + $0x19c] sm:$0xf]
      %v2432 = vld [vmem:[%s6 + $0x1a0] sm:$0xf]
      %v2433 = vld [vmem:[%s6 + $0x1a4] sm:$0xf]
      %v2434 = vld [vmem:[%s6 + $0x1a8] sm:$0xf]
      %v2435 = vld [vmem:[%s6 + $0x1ac] sm:$0xf]
      %v2436 = vld [vmem:[%s6 + $0x1b0] sm:$0xf]
      %v2437 = vld [vmem:[%s6 + $0x1b4] sm:$0xf]
      %v2438 = vld [vmem:[%s6 + $0x1b8] sm:$0xf]
      %v2439 = vld [vmem:[%s6 + $0x1bc] sm:$0xf]
      %v2440 = vld [vmem:[%s6 + $0x1c0] sm:$0xf]
      %v2441 = vld [vmem:[%s6 + $0x1c4] sm:$0xf]
      %v2442 = vld [vmem:[%s6 + $0x1c8] sm:$0xf]
      %v2443 = vld [vmem:[%s6 + $0x1cc] sm:$0xf]
      %v2444 = vld [vmem:[%s6 + $0x1d0] sm:$0xf]
      %v2445 = vld [vmem:[%s6 + $0x1d4] sm:$0xf]
      %v2446 = vld [vmem:[%s6 + $0x1d8] sm:$0xf]
      %v2447 = vld [vmem:[%s6 + $0x1dc] sm:$0xf]
      %v2448 = vld [vmem:[%s6 + $0x1e0] sm:$0xf]
      %v2449 = vld [vmem:[%s6 + $0x1e4] sm:$0xf]
      %v2450 = vld [vmem:[%s6 + $0x1e8] sm:$0xf]
      %v2451 = vld [vmem:[%s6 + $0x1ec] sm:$0xf]
      %v2452 = vld [vmem:[%s6 + $0x1f0] sm:$0xf]
      %v2453 = vld [vmem:[%s6 + $0x1f4] sm:$0xf]
      %v2454 = vld [vmem:[%s6 + $0x1f8] sm:$0xf]
      %v2455 = vld [vmem:[%s6 + $0x1fc] sm:$0xf]
      %v2456 = vld [vmem:[%s6 + $0x200] sm:$0xf]
      %v2457 = vld [vmem:[%s6 + $0x204] sm:$0xf]
      %v2458 = vld [vmem:[%s6 + $0x208] sm:$0xf]
      %v2459 = vld [vmem:[%s6 + $0x20c] sm:$0xf]
      %v2460 = vld [vmem:[%s6 + $0x210] sm:$0xf]
      %v2461 = vld [vmem:[%s6 + $0x214] sm:$0xf]
      %v2462 = vld [vmem:[%s6 + $0x218] sm:$0xf]
      %v2463 = vld [vmem:[%s6 + $0x21c] sm:$0xf]
      %v2464 = vld [vmem:[%s6 + $0x220] sm:$0xf]
      %v2465 = vld [vmem:[%s6 + $0x224] sm:$0xf]
      %v2466 = vld [vmem:[%s6 + $0x228] sm:$0xf]
      %v2467 = vld [vmem:[%s6 + $0x22c] sm:$0xf]
      %v2468 = vld [vmem:[%s6 + $0x230] sm:$0xf]
      %v2469 = vld [vmem:[%s6 + $0x234] sm:$0xf]
      %v2470 = vld [vmem:[%s6 + $0x238] sm:$0xf]
      %v2471 = vld [vmem:[%s6 + $0x23c] sm:$0xf]
      %v2616 = vunpack.c.l.b16 %v2328
      %v2617 = vunpack.c.l.b16 %v2329
      %v2618 = vunpack.c.l.b16 %v2330
      %v2619 = vunpack.c.l.b16 %v2331
      %v2620 = vunpack.c.l.b16 %v2332
      %v2621 = vunpack.c.l.b16 %v2333
      %v2622 = vunpack.c.l.b16 %v2334
      %v2623 = vunpack.c.l.b16 %v2335
      %v2624 = vunpack.c.l.b16 %v2336
      %v2625 = vunpack.c.l.b16 %v2337
      %v2626 = vunpack.c.l.b16 %v2338
      %v2627 = vunpack.c.l.b16 %v2339
      %v2628 = vunpack.c.l.b16 %v2340
      %v2629 = vunpack.c.l.b16 %v2341
      %v2630 = vunpack.c.l.b16 %v2342
      %v2631 = vunpack.c.l.b16 %v2343
      %v2632 = vunpack.c.l.b16 %v2344
      %v2633 = vunpack.c.l.b16 %v2345
      %v2634 = vunpack.c.l.b16 %v2346
      %v2635 = vunpack.c.l.b16 %v2347
      %v2636 = vunpack.c.l.b16 %v2348
      %v2637 = vunpack.c.l.b16 %v2349
      %v2638 = vunpack.c.l.b16 %v2350
      %v2639 = vunpack.c.l.b16 %v2351
      %v2640 = vunpack.c.l.b16 %v2352
      %v2641 = vunpack.c.l.b16 %v2353
      %v2642 = vunpack.c.l.b16 %v2354
      %v2643 = vunpack.c.l.b16 %v2355
      %v2644 = vunpack.c.l.b16 %v2356
      %v2645 = vunpack.c.l.b16 %v2357
      %v2646 = vunpack.c.l.b16 %v2358
      %v2647 = vunpack.c.l.b16 %v2359
      %v2648 = vunpack.c.l.b16 %v2360
      %v2649 = vunpack.c.l.b16 %v2361
      %v2650 = vunpack.c.l.b16 %v2362
      %v2651 = vunpack.c.l.b16 %v2363
      %v2652 = vunpack.c.l.b16 %v2364
      %v2653 = vunpack.c.l.b16 %v2365
      %v2654 = vunpack.c.l.b16 %v2366
      %v2655 = vunpack.c.l.b16 %v2367
      %v2656 = vunpack.c.l.b16 %v2368
      %v2657 = vunpack.c.l.b16 %v2369
      %v2658 = vunpack.c.l.b16 %v2370
      %v2659 = vunpack.c.l.b16 %v2371
      %v2660 = vunpack.c.l.b16 %v2372
      %v2661 = vunpack.c.l.b16 %v2373
      %v2662 = vunpack.c.l.b16 %v2374
      %v2663 = vunpack.c.l.b16 %v2375
      %v2664 = vunpack.c.l.b16 %v2376
      %v2665 = vunpack.c.l.b16 %v2377
      %v2666 = vunpack.c.l.b16 %v2378
      %v2667 = vunpack.c.l.b16 %v2379
      %v2668 = vunpack.c.l.b16 %v2380
      %v2669 = vunpack.c.l.b16 %v2381
      %v2670 = vunpack.c.l.b16 %v2382
      %v2671 = vunpack.c.l.b16 %v2383
      %v2672 = vunpack.c.l.b16 %v2384
      %v2673 = vunpack.c.l.b16 %v2385
      %v2674 = vunpack.c.l.b16 %v2386
      %v2675 = vunpack.c.l.b16 %v2387
      %v2676 = vunpack.c.l.b16 %v2388
      %v2677 = vunpack.c.l.b16 %v2389
      %v2678 = vunpack.c.l.b16 %v2390
      %v2679 = vunpack.c.l.b16 %v2391
      %v2680 = vunpack.c.l.b16 %v2392
      %v2681 = vunpack.c.l.b16 %v2393
      %v2682 = vunpack.c.l.b16 %v2394
      %v2683 = vunpack.c.l.b16 %v2395
      %v2684 = vunpack.c.l.b16 %v2396
      %v2685 = vunpack.c.l.b16 %v2397
      %v2686 = vunpack.c.l.b16 %v2398
      %v2687 = vunpack.c.l.b16 %v2399
      %v2688 = vunpack.c.l.b16 %v2400
      %v2689 = vunpack.c.l.b16 %v2401
      %v2690 = vunpack.c.l.b16 %v2402
      %v2691 = vunpack.c.l.b16 %v2403
      %v2692 = vunpack.c.l.b16 %v2404
      %v2693 = vunpack.c.l.b16 %v2405
      %v2694 = vunpack.c.l.b16 %v2406
      %v2695 = vunpack.c.l.b16 %v2407
      %v2696 = vunpack.c.l.b16 %v2408
      %v2697 = vunpack.c.l.b16 %v2409
      %v2698 = vunpack.c.l.b16 %v2410
      %v2699 = vunpack.c.l.b16 %v2411
      %v2700 = vunpack.c.l.b16 %v2412
      %v2701 = vunpack.c.l.b16 %v2413
      %v2702 = vunpack.c.l.b16 %v2414
      %v2703 = vunpack.c.l.b16 %v2415
      %v2704 = vunpack.c.l.b16 %v2416
      %v2705 = vunpack.c.l.b16 %v2417
      %v2706 = vunpack.c.l.b16 %v2418
      %v2707 = vunpack.c.l.b16 %v2419
      %v2708 = vunpack.c.l.b16 %v2420
      %v2709 = vunpack.c.l.b16 %v2421
      %v2710 = vunpack.c.l.b16 %v2422
      %v2711 = vunpack.c.l.b16 %v2423
      %v2712 = vunpack.c.l.b16 %v2424
      %v2713 = vunpack.c.l.b16 %v2425
      %v2714 = vunpack.c.l.b16 %v2426
      %v2715 = vunpack.c.l.b16 %v2427
      %v2716 = vunpack.c.l.b16 %v2428
      %v2717 = vunpack.c.l.b16 %v2429
      %v2718 = vunpack.c.l.b16 %v2430
      %v2719 = vunpack.c.l.b16 %v2431
      %v2720 = vunpack.c.l.b16 %v2432
      %v2721 = vunpack.c.l.b16 %v2433
      %v2722 = vunpack.c.l.b16 %v2434
      %v2723 = vunpack.c.l.b16 %v2435
      %v2724 = vunpack.c.l.b16 %v2436
      %v2725 = vunpack.c.l.b16 %v2437
      %v2726 = vunpack.c.l.b16 %v2438
      %v2727 = vunpack.c.l.b16 %v2439
      %v2728 = vunpack.c.l.b16 %v2440
      %v2729 = vunpack.c.l.b16 %v2441
      %v2730 = vunpack.c.l.b16 %v2442
      %v2731 = vunpack.c.l.b16 %v2443
      %v2732 = vunpack.c.l.b16 %v2444
      %v2733 = vunpack.c.l.b16 %v2445
      %v2734 = vunpack.c.l.b16 %v2446
      %v2735 = vunpack.c.l.b16 %v2447
      %v2736 = vunpack.c.l.b16 %v2448
      %v2737 = vunpack.c.l.b16 %v2449
      %v2738 = vunpack.c.l.b16 %v2450
      %v2739 = vunpack.c.l.b16 %v2451
      %v2740 = vunpack.c.l.b16 %v2452
      %v2741 = vunpack.c.l.b16 %v2453
      %v2742 = vunpack.c.l.b16 %v2454
      %v2743 = vunpack.c.l.b16 %v2455
      %v2744 = vunpack.c.l.b16 %v2456
      %v2745 = vunpack.c.l.b16 %v2457
      %v2746 = vunpack.c.l.b16 %v2458
      %v2747 = vunpack.c.l.b16 %v2459
      %v2748 = vunpack.c.l.b16 %v2460
      %v2749 = vunpack.c.l.b16 %v2461
      %v2750 = vunpack.c.l.b16 %v2462
      %v2751 = vunpack.c.l.b16 %v2463
      %v2752 = vunpack.c.l.b16 %v2464
      %v2753 = vunpack.c.l.b16 %v2465
      %v2754 = vunpack.c.l.b16 %v2466
      %v2755 = vunpack.c.l.b16 %v2467
      %v2756 = vunpack.c.l.b16 %v2468
      %v2757 = vunpack.c.l.b16 %v2469
      %v2758 = vunpack.c.l.b16 %v2470
      %v2759 = vunpack.c.l.b16 %v2471
      %v2760 = vpack.c.b16 %v2617, %v2616
      %v2761 = vpack.c.b16 %v2619, %v2618
      %v2762 = vpack.c.b16 %v2621, %v2620
      %v2763 = vpack.c.b16 %v2623, %v2622
      %v2764 = vpack.c.b16 %v2625, %v2624
      %v2765 = vpack.c.b16 %v2627, %v2626
      %v2766 = vpack.c.b16 %v2629, %v2628
      %v2767 = vpack.c.b16 %v2631, %v2630
      %v2768 = vpack.c.b16 %v2633, %v2632
      %v2769 = vpack.c.b16 %v2635, %v2634
      %v2770 = vpack.c.b16 %v2637, %v2636
      %v2771 = vpack.c.b16 %v2639, %v2638
      %v2772 = vpack.c.b16 %v2641, %v2640
      %v2773 = vpack.c.b16 %v2643, %v2642
      %v2774 = vpack.c.b16 %v2645, %v2644
      %v2775 = vpack.c.b16 %v2647, %v2646
      %v2776 = vpack.c.b16 %v2649, %v2648
      %v2777 = vpack.c.b16 %v2651, %v2650
      %v2778 = vpack.c.b16 %v2653, %v2652
      %v2779 = vpack.c.b16 %v2655, %v2654
      %v2780 = vpack.c.b16 %v2657, %v2656
      %v2781 = vpack.c.b16 %v2659, %v2658
      %v2782 = vpack.c.b16 %v2661, %v2660
      %v2783 = vpack.c.b16 %v2663, %v2662
      %v2784 = vpack.c.b16 %v2665, %v2664
      %v2785 = vpack.c.b16 %v2667, %v2666
      %v2786 = vpack.c.b16 %v2669, %v2668
      %v2787 = vpack.c.b16 %v2671, %v2670
      %v2788 = vpack.c.b16 %v2673, %v2672
      %v2789 = vpack.c.b16 %v2675, %v2674
      %v2790 = vpack.c.b16 %v2677, %v2676
      %v2791 = vpack.c.b16 %v2679, %v2678
      %v2792 = vpack.c.b16 %v2681, %v2680
      %v2793 = vpack.c.b16 %v2683, %v2682
      %v2794 = vpack.c.b16 %v2685, %v2684
      %v2795 = vpack.c.b16 %v2687, %v2686
      %v2796 = vpack.c.b16 %v2689, %v2688
      %v2797 = vpack.c.b16 %v2691, %v2690
      %v2798 = vpack.c.b16 %v2693, %v2692
      %v2799 = vpack.c.b16 %v2695, %v2694
      %v2800 = vpack.c.b16 %v2697, %v2696
      %v2801 = vpack.c.b16 %v2699, %v2698
      %v2802 = vpack.c.b16 %v2701, %v2700
      %v2803 = vpack.c.b16 %v2703, %v2702
      %v2804 = vpack.c.b16 %v2705, %v2704
      %v2805 = vpack.c.b16 %v2707, %v2706
      %v2806 = vpack.c.b16 %v2709, %v2708
      %v2807 = vpack.c.b16 %v2711, %v2710
      %v2808 = vpack.c.b16 %v2713, %v2712
      %v2809 = vpack.c.b16 %v2715, %v2714
      %v2810 = vpack.c.b16 %v2717, %v2716
      %v2811 = vpack.c.b16 %v2719, %v2718
      %v2812 = vpack.c.b16 %v2721, %v2720
      %v2813 = vpack.c.b16 %v2723, %v2722
      %v2814 = vpack.c.b16 %v2725, %v2724
      %v2815 = vpack.c.b16 %v2727, %v2726
      %v2816 = vpack.c.b16 %v2729, %v2728
      %v2817 = vpack.c.b16 %v2731, %v2730
      %v2818 = vpack.c.b16 %v2733, %v2732
      %v2819 = vpack.c.b16 %v2735, %v2734
      %v2820 = vpack.c.b16 %v2737, %v2736
      %v2821 = vpack.c.b16 %v2739, %v2738
      %v2822 = vpack.c.b16 %v2741, %v2740
      %v2823 = vpack.c.b16 %v2743, %v2742
      %v2824 = vpack.c.b16 %v2745, %v2744
      %v2825 = vpack.c.b16 %v2747, %v2746
      %v2826 = vpack.c.b16 %v2749, %v2748
      %v2827 = vpack.c.b16 %v2751, %v2750
      %v2828 = vpack.c.b16 %v2753, %v2752
      %v2829 = vpack.c.b16 %v2755, %v2754
      %v2830 = vpack.c.b16 %v2757, %v2756
      %v2831 = vpack.c.b16 %v2759, %v2758
      %2904 = vmatprep.subr.bf16.mxu0 0
      %2905 = vmatpush1.bf16.msra.mxu0 %v2760
      %2906 = vmatprep.subr.bf16.mxu0 0
      %2907 = vmatpush1.bf16.msra.mxu0 %v2761
      %2908 = vmatprep.subr.bf16.mxu0 0
      %2909 = vmatpush1.bf16.msra.mxu0 %v2762
      %2910 = vmatprep.subr.bf16.mxu0 0
      %2911 = vmatpush1.bf16.msra.mxu0 %v2763
      %2912 = vmatprep.subr.bf16.mxu0 0
      %2913 = vmatpush1.bf16.msra.mxu0 %v2764
      %2914 = vmatprep.subr.bf16.mxu0 0
      %2915 = vmatpush1.bf16.msra.mxu0 %v2765
      %2916 = vmatprep.subr.bf16.mxu0 0
      %2917 = vmatpush1.bf16.msra.mxu0 %v2766
      %2918 = vmatprep.subr.bf16.mxu0 0
      %2919 = vmatpush1.bf16.msra.mxu0 %v2767
      %2920 = vmatprep.subr.bf16.mxu0 0
      %2921 = vmatpush1.bf16.msra.mxu0 %v2768
      %2922 = vmatprep.subr.bf16.mxu0 0
      %2923 = vmatpush1.bf16.msra.mxu0 %v2769
      %2924 = vmatprep.subr.bf16.mxu0 0
      %2925 = vmatpush1.bf16.msra.mxu0 %v2770
      %2926 = vmatprep.subr.bf16.mxu0 0
      %2927 = vmatpush1.bf16.msra.mxu0 %v2771
      %2928 = vmatprep.subr.bf16.mxu0 0
      %2929 = vmatpush1.bf16.msra.mxu0 %v2772
      %2930 = vmatprep.subr.bf16.mxu0 0
      %2931 = vmatpush1.bf16.msra.mxu0 %v2773
      %2932 = vmatprep.subr.bf16.mxu0 0
      %2933 = vmatpush1.bf16.msra.mxu0 %v2774
      %2934 = vmatprep.subr.bf16.mxu0 0
      %2935 = vmatpush1.bf16.msra.mxu0 %v2775
      %2936 = vmatprep.mubr.bf16.mxu0 %v2070
      %2937 = vmatmul.mubr.bf16.gmra.mrb[0].mxu0 %v2054
      %v2938 = vpop.f32.mrb[0].mxu0
      %v2939 = vadd.f32 0.0, %v2938
      %v2940 = vpop.f32.mrb[0].mxu0
      %v2941 = vpop.f32.mrb[0].mxu0
      %v2942 = vadd.f32 0.0, %v2941
      %v2943 = vpop.f32.mrb[0].mxu0
      %2944 = vmatprep.mubr.bf16.mxu0 %v2071
      %2945 = vmatmul.mubr.bf16.gmra.mrb[0].mxu0 %v2055
      %v2946 = vpop.f32.mrb[0].mxu0
      %v2947 = vadd.f32 0.0, %v2946
      %v2948 = vpop.f32.mrb[0].mxu0
      %v2949 = vpop.f32.mrb[0].mxu0
      %v2950 = vadd.f32 0.0, %v2949
      %v2951 = vpop.f32.mrb[0].mxu0
      %2952 = vmatprep.mubr.bf16.mxu0 %v2072
      %2953 = vmatmul.mubr.bf16.gmra.mrb[0].mxu0 %v2056
      %v2954 = vpop.f32.mrb[0].mxu0
      %v2955 = vadd.f32 0.0, %v2954
      %v2956 = vpop.f32.mrb[0].mxu0
      %v2957 = vpop.f32.mrb[0].mxu0
      %v2958 = vadd.f32 0.0, %v2957
      %v2959 = vpop.f32.mrb[0].mxu0
      %2960 = vmatprep.mubr.bf16.mxu0 %v2073
      %2961 = vmatmul.mubr.bf16.gmra.mrb[0].mxu0 %v2057
      %v2962 = vpop.f32.mrb[0].mxu0
      %v2963 = vadd.f32 0.0, %v2962
      %v2964 = vpop.f32.mrb[0].mxu0
      %v2965 = vpop.f32.mrb[0].mxu0
      %v2966 = vadd.f32 0.0, %v2965
      %v2967 = vpop.f32.mrb[0].mxu0
      %2968 = vmatprep.mubr.bf16.mxu0 %v2074
      %2969 = vmatmul.mubr.bf16.gmra.mrb[0].mxu0 %v2058
      %v2970 = vpop.f32.mrb[0].mxu0
      %v2971 = vadd.f32 0.0, %v2970
      %v2972 = vpop.f32.mrb[0].mxu0
      %v2973 = vpop.f32.mrb[0].mxu0
      %v2974 = vadd.f32 0.0, %v2973
      %v2975 = vpop.f32.mrb[0].mxu0
      %2976 = vmatprep.mubr.bf16.mxu0 %v2075
      %2977 = vmatmul.mubr.bf16.gmra.mrb[0].mxu0 %v2059
      %v2978 = vpop.f32.mrb[0].mxu0
      %v2979 = vadd.f32 0.0, %v2978
      %v2980 = vpop.f32.mrb[0].mxu0
      %v2981 = vpop.f32.mrb[0].mxu0
      %v2982 = vadd.f32 0.0, %v2981
      %v2983 = vpop.f32.mrb[0].mxu0
      %2984 = vmatprep.mubr.bf16.mxu0 %v2076
      %2985 = vmatmul.mubr.bf16.gmra.mrb[0].mxu0 %v2060
      %v2986 = vpop.f32.mrb[0].mxu0
      %v2987 = vadd.f32 0.0, %v2986
      %v2988 = vpop.f32.mrb[0].mxu0
      %v2989 = vpop.f32.mrb[0].mxu0
      %v2990 = vadd.f32 0.0, %v2989
      %v2991 = vpop.f32.mrb[0].mxu0
      %2992 = vmatprep.mubr.bf16.mxu0 %v2077
      %2993 = vmatmul.mubr.bf16.gmra.mrb[0].mxu0 %v2061
      %v2994 = vpop.f32.mrb[0].mxu0
      %v2995 = vadd.f32 0.0, %v2994
      %v2996 = vpop.f32.mrb[0].mxu0
      %v2997 = vpop.f32.mrb[0].mxu0
      %v2998 = vadd.f32 0.0, %v2997
      %v2999 = vpop.f32.mrb[0].mxu0
      %3000 = vmatprep.mubr.bf16.mxu0 %v2078
      %3001 = vmatmul.mubr.bf16.gmra.mrb[0].mxu0 %v2062
      %v3002 = vpop.f32.mrb[0].mxu0
      %v3003 = vadd.f32 0.0, %v3002
      %v3004 = vpop.f32.mrb[0].mxu0
      %v3005 = vpop.f32.mrb[0].mxu0
      %v3006 = vadd.f32 0.0, %v3005
      %v3007 = vpop.f32.mrb[0].mxu0
      %3008 = vmatprep.mubr.bf16.mxu0 %v2079
      %3009 = vmatmul.mubr.bf16.gmra.mrb[0].mxu0 %v2063
      %v3010 = vpop.f32.mrb[0].mxu0
      %v3011 = vadd.f32 0.0, %v3010
      %v3012 = vpop.f32.mrb[0].mxu0
      %v3013 = vpop.f32.mrb[0].mxu0
      %v3014 = vadd.f32 0.0, %v3013
      %v3015 = vpop.f32.mrb[0].mxu0
      %3016 = vmatprep.mubr.bf16.mxu0 %v2080
      %3017 = vmatmul.mubr.bf16.gmra.mrb[0].mxu0 %v2064
      %v3018 = vpop.f32.mrb[0].mxu0
      %v3019 = vadd.f32 0.0, %v3018
      %v3020 = vpop.f32.mrb[0].mxu0
      %v3021 = vpop.f32.mrb[0].mxu0
      %v3022 = vadd.f32 0.0, %v3021
      %v3023 = vpop.f32.mrb[0].mxu0
      %3024 = vmatprep.mubr.bf16.mxu0 %v2081
      %3025 = vmatmul.mubr.bf16.gmra.mrb[0].mxu0 %v2065
      %v3026 = vpop.f32.mrb[0].mxu0
      %v3027 = vadd.f32 0.0, %v3026
      %v3028 = vpop.f32.mrb[0].mxu0
      %v3029 = vpop.f32.mrb[0].mxu0
      %v3030 = vadd.f32 0.0, %v3029
      %v3031 = vpop.f32.mrb[0].mxu0
      %3032 = vmatprep.mubr.bf16.mxu0 %v2082
      %3033 = vmatmul.mubr.bf16.gmra.mrb[0].mxu0 %v2066
      %v3034 = vpop.f32.mrb[0].mxu0
      %v3035 = vadd.f32 0.0, %v3034
      %v3036 = vpop.f32.mrb[0].mxu0
      %v3037 = vpop.f32.mrb[0].mxu0
      %v3038 = vadd.f32 0.0, %v3037
      %v3039 = vpop.f32.mrb[0].mxu0
      %3040 = vmatprep.mubr.bf16.mxu0 %v2083
      %3041 = vmatmul.mubr.bf16.gmra.mrb[0].mxu0 %v2067
      %v3042 = vpop.f32.mrb[0].mxu0
      %v3043 = vadd.f32 0.0, %v3042
      %v3044 = vpop.f32.mrb[0].mxu0
      %v3045 = vpop.f32.mrb[0].mxu0
      %v3046 = vadd.f32 0.0, %v3045
      %v3047 = vpop.f32.mrb[0].mxu0
      %3048 = vmatprep.mubr.bf16.mxu0 %v2084
      %3049 = vmatmul.mubr.bf16.gmra.mrb[0].mxu0 %v2068
      %v3050 = vpop.f32.mrb[0].mxu0
      %v3051 = vadd.f32 0.0, %v3050
      %v3052 = vpop.f32.mrb[0].mxu0
      %v3053 = vpop.f32.mrb[0].mxu0
      %v3054 = vadd.f32 0.0, %v3053
      %v3055 = vpop.f32.mrb[0].mxu0
      %3056 = vmatprep.mubr.bf16.mxu0 %v2085
      %3057 = vmatmul.mubr.bf16.gmra.mrb[0].mxu0 %v2069
      %v3058 = vpop.f32.mrb[0].mxu0
      %v3059 = vadd.f32 0.0, %v3058
      %v3060 = vpop.f32.mrb[0].mxu0
      %v3061 = vpop.f32.mrb[0].mxu0
      %v3062 = vadd.f32 0.0, %v3061
      %v3063 = vpop.f32.mrb[0].mxu0
      %3064 = vdwg.mxu0
      %3065 = vmatprep.subr.bf16.mxu0 0
      %3066 = vmatpush1.bf16.msra.mxu0 %v2776
      %3067 = vmatprep.subr.bf16.mxu0 0
      %3068 = vmatpush1.bf16.msra.mxu0 %v2777
      %3069 = vmatprep.subr.bf16.mxu0 0
      %3070 = vmatpush1.bf16.msra.mxu0 %v2778
      %3071 = vmatprep.subr.bf16.mxu0 0
      %3072 = vmatpush1.bf16.msra.mxu0 %v2779
      %3073 = vmatprep.subr.bf16.mxu0 0
      %3074 = vmatpush1.bf16.msra.mxu0 %v2780
      %3075 = vmatprep.subr.bf16.mxu0 0
      %3076 = vmatpush1.bf16.msra.mxu0 %v2781
      %3077 = vmatprep.subr.bf16.mxu0 0
      %3078 = vmatpush1.bf16.msra.mxu0 %v2782
      %3079 = vmatprep.subr.bf16.mxu0 0
      %3080 = vmatpush1.bf16.msra.mxu0 %v2783
      %3081 = vmatprep.subr.bf16.mxu0 0
      %3082 = vmatpush1.bf16.msra.mxu0 %v2784
      %3083 = vmatprep.subr.bf16.mxu0 0
      %3084 = vmatpush1.bf16.msra.mxu0 %v2785
      %3085 = vmatprep.subr.bf16.mxu0 0
      %3086 = vmatpush1.bf16.msra.mxu0 %v2786
      %3087 = vmatprep.subr.bf16.mxu0 0
      %3088 = vmatpush1.bf16.msra.mxu0 %v2787
      %3089 = vmatprep.subr.bf16.mxu0 0
      %3090 = vmatpush1.bf16.msra.mxu0 %v2788
      %3091 = vmatprep.subr.bf16.mxu0 0
      %3092 = vmatpush1.bf16.msra.mxu0 %v2789
      %3093 = vmatprep.subr.bf16.mxu0 0
      %3094 = vmatpush1.bf16.msra.mxu0 %v2790
      %3095 = vmatprep.subr.bf16.mxu0 0
      %3096 = vmatpush1.bf16.msra.mxu0 %v2791
      %3097 = vmatprep.mubr.bf16.mxu0 %v2166
      %3098 = vmatmul.mubr.bf16.gmra.mrb[0].mxu0 %v2118
      %v3099 = vpop.f32.mrb[0].mxu0
      %v3100 = vadd.f32 %v2939, %v3099
      %v3101 = vpop.f32.mrb[0].mxu0
      %v3102 = vpop.f32.mrb[0].mxu0
      %v3103 = vadd.f32 %v2942, %v3102
      %v3104 = vpop.f32.mrb[0].mxu0
      %3105 = vmatprep.mubr.bf16.mxu0 %v2167
      %3106 = vmatmul.mubr.bf16.gmra.mrb[0].mxu0 %v2119
      %v3107 = vpop.f32.mrb[0].mxu0
      %v3108 = vadd.f32 %v2947, %v3107
      %v3109 = vpop.f32.mrb[0].mxu0
      %v3110 = vpop.f32.mrb[0].mxu0
      %v3111 = vadd.f32 %v2950, %v3110
      %v3112 = vpop.f32.mrb[0].mxu0
      %3113 = vmatprep.mubr.bf16.mxu0 %v2168
      %3114 = vmatmul.mubr.bf16.gmra.mrb[0].mxu0 %v2120
      %v3115 = vpop.f32.mrb[0].mxu0
      %v3116 = vadd.f32 %v2955, %v3115
      %v3117 = vpop.f32.mrb[0].mxu0
      %v3118 = vpop.f32.mrb[0].mxu0
      %v3119 = vadd.f32 %v2958, %v3118
      %v3120 = vpop.f32.mrb[0].mxu0
      %3121 = vmatprep.mubr.bf16.mxu0 %v2169
      %3122 = vmatmul.mubr.bf16.gmra.mrb[0].mxu0 %v2121
      %v3123 = vpop.f32.mrb[0].mxu0
      %v3124 = vadd.f32 %v2963, %v3123
      %v3125 = vpop.f32.mrb[0].mxu0
      %v3126 = vpop.f32.mrb[0].mxu0
      %v3127 = vadd.f32 %v2966, %v3126
      %v3128 = vpop.f32.mrb[0].mxu0
      %3129 = vmatprep.mubr.bf16.mxu0 %v2170
      %3130 = vmatmul.mubr.bf16.gmra.mrb[0].mxu0 %v2122
      %v3131 = vpop.f32.mrb[0].mxu0
      %v3132 = vadd.f32 %v2971, %v3131
      %v3133 = vpop.f32.mrb[0].mxu0
      %v3134 = vpop.f32.mrb[0].mxu0
      %v3135 = vadd.f32 %v2974, %v3134
      %v3136 = vpop.f32.mrb[0].mxu0
      %3137 = vmatprep.mubr.bf16.mxu0 %v2171
      %3138 = vmatmul.mubr.bf16.gmra.mrb[0].mxu0 %v2123
      %v3139 = vpop.f32.mrb[0].mxu0
      %v3140 = vadd.f32 %v2979, %v3139
      %v3141 = vpop.f32.mrb[0].mxu0
      %v3142 = vpop.f32.mrb[0].mxu0
      %v3143 = vadd.f32 %v2982, %v3142
      %v3144 = vpop.f32.mrb[0].mxu0
      %3145 = vmatprep.mubr.bf16.mxu0 %v2172
      %3146 = vmatmul.mubr.bf16.gmra.mrb[0].mxu0 %v2124
      %v3147 = vpop.f32.mrb[0].mxu0
      %v3148 = vadd.f32 %v2987, %v3147
      %v3149 = vpop.f32.mrb[0].mxu0
      %v3150 = vpop.f32.mrb[0].mxu0
      %v3151 = vadd.f32 %v2990, %v3150
      %v3152 = vpop.f32.mrb[0].mxu0
      %3153 = vmatprep.mubr.bf16.mxu0 %v2173
      %3154 = vmatmul.mubr.bf16.gmra.mrb[0].mxu0 %v2125
      %v3155 = vpop.f32.mrb[0].mxu0
      %v3156 = vadd.f32 %v2995, %v3155
      %v3157 = vpop.f32.mrb[0].mxu0
      %v3158 = vpop.f32.mrb[0].mxu0
      %v3159 = vadd.f32 %v2998, %v3158
      %v3160 = vpop.f32.mrb[0].mxu0
      %3161 = vmatprep.mubr.bf16.mxu0 %v2174
      %3162 = vmatmul.mubr.bf16.gmra.mrb[0].mxu0 %v2126
      %v3163 = vpop.f32.mrb[0].mxu0
      %v3164 = vadd.f32 %v3003, %v3163
      %v3165 = vpop.f32.mrb[0].mxu0
      %v3166 = vpop.f32.mrb[0].mxu0
      %v3167 = vadd.f32 %v3006, %v3166
      %v3168 = vpop.f32.mrb[0].mxu0
      %3169 = vmatprep.mubr.bf16.mxu0 %v2175
      %3170 = vmatmul.mubr.bf16.gmra.mrb[0].mxu0 %v2127
      %v3171 = vpop.f32.mrb[0].mxu0
      %v3172 = vadd.f32 %v3011, %v3171
      %v3173 = vpop.f32.mrb[0].mxu0
      %v3174 = vpop.f32.mrb[0].mxu0
      %v3175 = vadd.f32 %v3014, %v3174
      %v3176 = vpop.f32.mrb[0].mxu0
      %3177 = vmatprep.mubr.bf16.mxu0 %v2176
      %3178 = vmatmul.mubr.bf16.gmra.mrb[0].mxu0 %v2128
      %v3179 = vpop.f32.mrb[0].mxu0
      %v3180 = vadd.f32 %v3019, %v3179
      %v3181 = vpop.f32.mrb[0].mxu0
      %v3182 = vpop.f32.mrb[0].mxu0
      %v3183 = vadd.f32 %v3022, %v3182
      %v3184 = vpop.f32.mrb[0].mxu0
      %3185 = vmatprep.mubr.bf16.mxu0 %v2177
      %3186 = vmatmul.mubr.bf16.gmra.mrb[0].mxu0 %v2129
      %v3187 = vpop.f32.mrb[0].mxu0
      %v3188 = vadd.f32 %v3027, %v3187
      %v3189 = vpop.f32.mrb[0].mxu0
      %v3190 = vpop.f32.mrb[0].mxu0
      %v3191 = vadd.f32 %v3030, %v3190
      %v3192 = vpop.f32.mrb[0].mxu0
      %3193 = vmatprep.mubr.bf16.mxu0 %v2178
      %3194 = vmatmul.mubr.bf16.gmra.mrb[0].mxu0 %v2130
      %v3195 = vpop.f32.mrb[0].mxu0
      %v3196 = vadd.f32 %v3035, %v3195
      %v3197 = vpop.f32.mrb[0].mxu0
      %v3198 = vpop.f32.mrb[0].mxu0
      %v3199 = vadd.f32 %v3038, %v3198
      %v3200 = vpop.f32.mrb[0].mxu0
      %3201 = vmatprep.mubr.bf16.mxu0 %v2179
      %3202 = vmatmul.mubr.bf16.gmra.mrb[0].mxu0 %v2131
      %v3203 = vpop.f32.mrb[0].mxu0
      %v3204 = vadd.f32 %v3043, %v3203
      %v3205 = vpop.f32.mrb[0].mxu0
      %v3206 = vpop.f32.mrb[0].mxu0
      %v3207 = vadd.f32 %v3046, %v3206
      %v3208 = vpop.f32.mrb[0].mxu0
      %3209 = vmatprep.mubr.bf16.mxu0 %v2180
      %3210 = vmatmul.mubr.bf16.gmra.mrb[0].mxu0 %v2132
      %v3211 = vpop.f32.mrb[0].mxu0
      %v3212 = vadd.f32 %v3051, %v3211
      %v3213 = vpop.f32.mrb[0].mxu0
      %v3214 = vpop.f32.mrb[0].mxu0
      %v3215 = vadd.f32 %v3054, %v3214
      %v3216 = vpop.f32.mrb[0].mxu0
      %3217 = vmatprep.mubr.bf16.mxu0 %v2181
      %3218 = vmatmul.mubr.bf16.gmra.mrb[0].mxu0 %v2133
      %v3219 = vpop.f32.mrb[0].mxu0
      %v3220 = vadd.f32 %v3059, %v3219
      %v3221 = vpop.f32.mrb[0].mxu0
      %v3222 = vpop.f32.mrb[0].mxu0
      %v3223 = vadd.f32 %v3062, %v3222
      %v3224 = vpop.f32.mrb[0].mxu0
      %3225 = vdwg.mxu0
      %3226 = vmatprep.subr.bf16.mxu0 0
      %3227 = vmatpush1.bf16.msra.mxu0 %v2792
      %3228 = vmatprep.subr.bf16.mxu0 0
      %3229 = vmatpush1.bf16.msra.mxu0 %v2793
      %3230 = vmatprep.subr.bf16.mxu0 0
      %3231 = vmatpush1.bf16.msra.mxu0 %v2794
      %3232 = vmatprep.subr.bf16.mxu0 0
      %3233 = vmatpush1.bf16.msra.mxu0 %v2795
      %3234 = vmatprep.subr.bf16.mxu0 0
      %3235 = vmatpush1.bf16.msra.mxu0 %v2796
      %3236 = vmatprep.subr.bf16.mxu0 0
      %3237 = vmatpush1.bf16.msra.mxu0 %v2797
      %3238 = vmatprep.subr.bf16.mxu0 0
      %3239 = vmatpush1.bf16.msra.mxu0 %v2798
      %3240 = vmatprep.subr.bf16.mxu0 0
      %3241 = vmatpush1.bf16.msra.mxu0 %v2799
      %3242 = vmatprep.subr.bf16.mxu0 0
      %3243 = vmatpush1.bf16.msra.mxu0 %v2800
      %3244 = vmatprep.subr.bf16.mxu0 0
      %3245 = vmatpush1.bf16.msra.mxu0 %v2801
      %3246 = vmatprep.subr.bf16.mxu0 0
      %3247 = vmatpush1.bf16.msra.mxu0 %v2802
      %3248 = vmatprep.subr.bf16.mxu0 0
      %3249 = vmatpush1.bf16.msra.mxu0 %v2803
      %3250 = vmatprep.subr.bf16.mxu0 0
      %3251 = vmatpush1.bf16.msra.mxu0 %v2804
      %3252 = vmatprep.subr.bf16.mxu0 0
      %3253 = vmatpush1.bf16.msra.mxu0 %v2805
      %3254 = vmatprep.subr.bf16.mxu0 0
      %3255 = vmatpush1.bf16.msra.mxu0 %v2806
      %3256 = vmatprep.subr.bf16.mxu0 0
      %3257 = vmatpush1.bf16.msra.mxu0 %v2807
      %3258 = vmatprep.mubr.bf16.mxu0 %v2215
      %3259 = vmatmul.mubr.bf16.gmra.mrb[0].mxu0 %v2071
      %v3260 = vpop.f32.mrb[0].mxu0
      %v3261 = vadd.f32 %v3100, %v3260
      %v3262 = vpop.f32.mrb[0].mxu0
      %v3263 = vpop.f32.mrb[0].mxu0
      %v3264 = vadd.f32 %v3103, %v3263
      %v3265 = vpop.f32.mrb[0].mxu0
      %3266 = vmatprep.mubr.bf16.mxu0 %v2216
      %3267 = vmatmul.mubr.bf16.gmra.mrb[0].mxu0 %v2072
      %v3268 = vpop.f32.mrb[0].mxu0
      %v3269 = vadd.f32 %v3108, %v3268
      %v3270 = vpop.f32.mrb[0].mxu0
      %v3271 = vpop.f32.mrb[0].mxu0
      %v3272 = vadd.f32 %v3111, %v3271
      %v3273 = vpop.f32.mrb[0].mxu0
      %3274 = vmatprep.mubr.bf16.mxu0 %v2217
      %3275 = vmatmul.mubr.bf16.gmra.mrb[0].mxu0 %v2073
      %v3276 = vpop.f32.mrb[0].mxu0
      %v3277 = vadd.f32 %v3116, %v3276
      %v3278 = vpop.f32.mrb[0].mxu0
      %v3279 = vpop.f32.mrb[0].mxu0
      %v3280 = vadd.f32 %v3119, %v3279
      %v3281 = vpop.f32.mrb[0].mxu0
      %3282 = vmatprep.mubr.bf16.mxu0 %v2218
      %3283 = vmatmul.mubr.bf16.gmra.mrb[0].mxu0 %v2074
      %v3284 = vpop.f32.mrb[0].mxu0
      %v3285 = vadd.f32 %v3124, %v3284
      %v3286 = vpop.f32.mrb[0].mxu0
      %v3287 = vpop.f32.mrb[0].mxu0
      %v3288 = vadd.f32 %v3127, %v3287
      %v3289 = vpop.f32.mrb[0].mxu0
      %3290 = vmatprep.mubr.bf16.mxu0 %v2219
      %3291 = vmatmul.mubr.bf16.gmra.mrb[0].mxu0 %v2075
      %v3292 = vpop.f32.mrb[0].mxu0
      %v3293 = vadd.f32 %v3132, %v3292
      %v3294 = vpop.f32.mrb[0].mxu0
      %v3295 = vpop.f32.mrb[0].mxu0
      %v3296 = vadd.f32 %v3135, %v3295
      %v3297 = vpop.f32.mrb[0].mxu0
      %3298 = vmatprep.mubr.bf16.mxu0 %v2220
      %3299 = vmatmul.mubr.bf16.gmra.mrb[0].mxu0 %v2076
      %v3300 = vpop.f32.mrb[0].mxu0
      %v3301 = vadd.f32 %v3140, %v3300
      %v3302 = vpop.f32.mrb[0].mxu0
      %v3303 = vpop.f32.mrb[0].mxu0
      %v3304 = vadd.f32 %v3143, %v3303
      %v3305 = vpop.f32.mrb[0].mxu0
      %3306 = vmatprep.mubr.bf16.mxu0 %v2221
      %3307 = vmatmul.mubr.bf16.gmra.mrb[0].mxu0 %v2077
      %v3308 = vpop.f32.mrb[0].mxu0
      %v3309 = vadd.f32 %v3148, %v3308
      %v3310 = vpop.f32.mrb[0].mxu0
      %v3311 = vpop.f32.mrb[0].mxu0
      %v3312 = vadd.f32 %v3151, %v3311
      %v3313 = vpop.f32.mrb[0].mxu0
      %3314 = vmatprep.mubr.bf16.mxu0 %v2222
      %3315 = vmatmul.mubr.bf16.gmra.mrb[0].mxu0 %v2078
      %v3316 = vpop.f32.mrb[0].mxu0
      %v3317 = vadd.f32 %v3156, %v3316
      %v3318 = vpop.f32.mrb[0].mxu0
      %v3319 = vpop.f32.mrb[0].mxu0
      %v3320 = vadd.f32 %v3159, %v3319
      %v3321 = vpop.f32.mrb[0].mxu0
      %3322 = vmatprep.mubr.bf16.mxu0 %v2223
      %3323 = vmatmul.mubr.bf16.gmra.mrb[0].mxu0 %v2079
      %v3324 = vpop.f32.mrb[0].mxu0
      %v3325 = vadd.f32 %v3164, %v3324
      %v3326 = vpop.f32.mrb[0].mxu0
      %v3327 = vpop.f32.mrb[0].mxu0
      %v3328 = vadd.f32 %v3167, %v3327
      %v3329 = vpop.f32.mrb[0].mxu0
      %3330 = vmatprep.mubr.bf16.mxu0 %v2224
      %3331 = vmatmul.mubr.bf16.gmra.mrb[0].mxu0 %v2080
      %v3332 = vpop.f32.mrb[0].mxu0
      %v3333 = vadd.f32 %v3172, %v3332
      %v3334 = vpop.f32.mrb[0].mxu0
      %v3335 = vpop.f32.mrb[0].mxu0
      %v3336 = vadd.f32 %v3175, %v3335
      %v3337 = vpop.f32.mrb[0].mxu0
      %3338 = vmatprep.mubr.bf16.mxu0 %v2225
      %3339 = vmatmul.mubr.bf16.gmra.mrb[0].mxu0 %v2081
      %v3340 = vpop.f32.mrb[0].mxu0
      %v3341 = vadd.f32 %v3180, %v3340
      %v3342 = vpop.f32.mrb[0].mxu0
      %v3343 = vpop.f32.mrb[0].mxu0
      %v3344 = vadd.f32 %v3183, %v3343
      %v3345 = vpop.f32.mrb[0].mxu0
      %3346 = vmatprep.mubr.bf16.mxu0 %v2226
      %3347 = vmatmul.mubr.bf16.gmra.mrb[0].mxu0 %v2082
      %v3348 = vpop.f32.mrb[0].mxu0
      %v3349 = vadd.f32 %v3188, %v3348
      %v3350 = vpop.f32.mrb[0].mxu0
      %v3351 = vpop.f32.mrb[0].mxu0
      %v3352 = vadd.f32 %v3191, %v3351
      %v3353 = vpop.f32.mrb[0].mxu0
      %3354 = vmatprep.mubr.bf16.mxu0 %v2227
      %3355 = vmatmul.mubr.bf16.gmra.mrb[0].mxu0 %v2083
      %v3356 = vpop.f32.mrb[0].mxu0
      %v3357 = vadd.f32 %v3196, %v3356
      %v3358 = vpop.f32.mrb[0].mxu0
      %v3359 = vpop.f32.mrb[0].mxu0
      %v3360 = vadd.f32 %v3199, %v3359
      %v3361 = vpop.f32.mrb[0].mxu0
      %3362 = vmatprep.mubr.bf16.mxu0 %v2228
      %3363 = vmatmul.mubr.bf16.gmra.mrb[0].mxu0 %v2084
      %v3364 = vpop.f32.mrb[0].mxu0
      %v3365 = vadd.f32 %v3204, %v3364
      %v3366 = vpop.f32.mrb[0].mxu0
      %v3367 = vpop.f32.mrb[0].mxu0
      %v3368 = vadd.f32 %v3207, %v3367
      %v3369 = vpop.f32.mrb[0].mxu0
      %3370 = vmatprep.mubr.bf16.mxu0 %v2229
      %3371 = vmatmul.mubr.bf16.gmra.mrb[0].mxu0 %v2085
      %v3372 = vpop.f32.mrb[0].mxu0
      %v3373 = vadd.f32 %v3212, %v3372
      %v3374 = vpop.f32.mrb[0].mxu0
      %v3375 = vpop.f32.mrb[0].mxu0
      %v3376 = vadd.f32 %v3215, %v3375
      %v3377 = vpop.f32.mrb[0].mxu0
      %3378 = vmatprep.mubr.bf16.mxu0 %v2230
      %3379 = vmatmul.mubr.bf16.gmra.mrb[0].mxu0 %v2182
      %v3380 = vpop.f32.mrb[0].mxu0
      %v3381 = vadd.f32 %v3220, %v3380
      %v3382 = vpop.f32.mrb[0].mxu0
      %v3383 = vpop.f32.mrb[0].mxu0
      %v3384 = vadd.f32 %v3223, %v3383
      %v3385 = vpop.f32.mrb[0].mxu0
      %3386 = vdwg.mxu0
      %3387 = vmatprep.subr.bf16.mxu0 0
      %3388 = vmatpush1.bf16.msra.mxu0 %v2808
      %3389 = vmatprep.subr.bf16.mxu0 0
      %3390 = vmatpush1.bf16.msra.mxu0 %v2809
      %3391 = vmatprep.subr.bf16.mxu0 0
      %3392 = vmatpush1.bf16.msra.mxu0 %v2810
      %3393 = vmatprep.subr.bf16.mxu0 0
      %3394 = vmatpush1.bf16.msra.mxu0 %v2811
      %3395 = vmatprep.subr.bf16.mxu0 0
      %3396 = vmatpush1.bf16.msra.mxu0 %v2812
      %3397 = vmatprep.subr.bf16.mxu0 0
      %3398 = vmatpush1.bf16.msra.mxu0 %v2813
      %3399 = vmatprep.subr.bf16.mxu0 0
      %3400 = vmatpush1.bf16.msra.mxu0 %v2814
      %3401 = vmatprep.subr.bf16.mxu0 0
      %3402 = vmatpush1.bf16.msra.mxu0 %v2815
      %3403 = vmatprep.subr.bf16.mxu0 0
      %3404 = vmatpush1.bf16.msra.mxu0 %v2816
      %3405 = vmatprep.subr.bf16.mxu0 0
      %3406 = vmatpush1.bf16.msra.mxu0 %v2817
      %3407 = vmatprep.subr.bf16.mxu0 0
      %3408 = vmatpush1.bf16.msra.mxu0 %v2818
      %3409 = vmatprep.subr.bf16.mxu0 0
      %3410 = vmatpush1.bf16.msra.mxu0 %v2819
      %3411 = vmatprep.subr.bf16.mxu0 0
      %3412 = vmatpush1.bf16.msra.mxu0 %v2820
      %3413 = vmatprep.subr.bf16.mxu0 0
      %3414 = vmatpush1.bf16.msra.mxu0 %v2821
      %3415 = vmatprep.subr.bf16.mxu0 0
      %3416 = vmatpush1.bf16.msra.mxu0 %v2822
      %3417 = vmatprep.subr.bf16.mxu0 0
      %3418 = vmatpush1.bf16.msra.mxu0 %v2823
      %3419 = vmatprep.mubr.bf16.mxu0 %v2072
      %3420 = vmatmul.mubr.bf16.gmra.mrb[0].mxu0 %v2263
      %v3421 = vpop.f32.mrb[0].mxu0
      %v3422 = vadd.f32 %v3261, %v3421
      %v3423 = vpop.f32.mrb[0].mxu0
      %v3424 = vpop.f32.mrb[0].mxu0
      %v3425 = vadd.f32 %v3264, %v3424
      %v3426 = vpop.f32.mrb[0].mxu0
      %3427 = vmatprep.mubr.bf16.mxu0 %v2073
      %3428 = vmatmul.mubr.bf16.gmra.mrb[0].mxu0 %v2264
      %v3429 = vpop.f32.mrb[0].mxu0
      %v3430 = vadd.f32 %v3269, %v3429
      %v3431 = vpop.f32.mrb[0].mxu0
      %v3432 = vpop.f32.mrb[0].mxu0
      %v3433 = vadd.f32 %v3272, %v3432
      %v3434 = vpop.f32.mrb[0].mxu0
      %3435 = vmatprep.mubr.bf16.mxu0 %v2074
      %3436 = vmatmul.mubr.bf16.gmra.mrb[0].mxu0 %v2265
      %v3437 = vpop.f32.mrb[0].mxu0
      %v3438 = vadd.f32 %v3277, %v3437
      %v3439 = vpop.f32.mrb[0].mxu0
      %v3440 = vpop.f32.mrb[0].mxu0
      %v3441 = vadd.f32 %v3280, %v3440
      %v3442 = vpop.f32.mrb[0].mxu0
      %3443 = vmatprep.mubr.bf16.mxu0 %v2075
      %3444 = vmatmul.mubr.bf16.gmra.mrb[0].mxu0 %v2266
      %v3445 = vpop.f32.mrb[0].mxu0
      %v3446 = vadd.f32 %v3285, %v3445
      %v3447 = vpop.f32.mrb[0].mxu0
      %v3448 = vpop.f32.mrb[0].mxu0
      %v3449 = vadd.f32 %v3288, %v3448
      %v3450 = vpop.f32.mrb[0].mxu0
      %3451 = vmatprep.mubr.bf16.mxu0 %v2076
      %3452 = vmatmul.mubr.bf16.gmra.mrb[0].mxu0 %v2267
      %v3453 = vpop.f32.mrb[0].mxu0
      %v3454 = vadd.f32 %v3293, %v3453
      %v3455 = vpop.f32.mrb[0].mxu0
      %v3456 = vpop.f32.mrb[0].mxu0
      %v3457 = vadd.f32 %v3296, %v3456
      %v3458 = vpop.f32.mrb[0].mxu0
      %3459 = vmatprep.mubr.bf16.mxu0 %v2077
      %3460 = vmatmul.mubr.bf16.gmra.mrb[0].mxu0 %v2268
      %v3461 = vpop.f32.mrb[0].mxu0
      %v3462 = vadd.f32 %v3301, %v3461
      %v3463 = vpop.f32.mrb[0].mxu0
      %v3464 = vpop.f32.mrb[0].mxu0
      %v3465 = vadd.f32 %v3304, %v3464
      %v3466 = vpop.f32.mrb[0].mxu0
      %3467 = vmatprep.mubr.bf16.mxu0 %v2078
      %3468 = vmatmul.mubr.bf16.gmra.mrb[0].mxu0 %v2269
      %v3469 = vpop.f32.mrb[0].mxu0
      %v3470 = vadd.f32 %v3309, %v3469
      %v3471 = vpop.f32.mrb[0].mxu0
      %v3472 = vpop.f32.mrb[0].mxu0
      %v3473 = vadd.f32 %v3312, %v3472
      %v3474 = vpop.f32.mrb[0].mxu0
      %3475 = vmatprep.mubr.bf16.mxu0 %v2079
      %3476 = vmatmul.mubr.bf16.gmra.mrb[0].mxu0 %v2270
      %v3477 = vpop.f32.mrb[0].mxu0
      %v3478 = vadd.f32 %v3317, %v3477
      %v3479 = vpop.f32.mrb[0].mxu0
      %v3480 = vpop.f32.mrb[0].mxu0
      %v3481 = vadd.f32 %v3320, %v3480
      %v3482 = vpop.f32.mrb[0].mxu0
      %3483 = vmatprep.mubr.bf16.mxu0 %v2080
      %3484 = vmatmul.mubr.bf16.gmra.mrb[0].mxu0 %v2271
      %v3485 = vpop.f32.mrb[0].mxu0
      %v3486 = vadd.f32 %v3325, %v3485
      %v3487 = vpop.f32.mrb[0].mxu0
      %v3488 = vpop.f32.mrb[0].mxu0
      %v3489 = vadd.f32 %v3328, %v3488
      %v3490 = vpop.f32.mrb[0].mxu0
      %3491 = vmatprep.mubr.bf16.mxu0 %v2081
      %3492 = vmatmul.mubr.bf16.gmra.mrb[0].mxu0 %v2272
      %v3493 = vpop.f32.mrb[0].mxu0
      %v3494 = vadd.f32 %v3333, %v3493
      %v3495 = vpop.f32.mrb[0].mxu0
      %v3496 = vpop.f32.mrb[0].mxu0
      %v3497 = vadd.f32 %v3336, %v3496
      %v3498 = vpop.f32.mrb[0].mxu0
      %3499 = vmatprep.mubr.bf16.mxu0 %v2082
      %3500 = vmatmul.mubr.bf16.gmra.mrb[0].mxu0 %v2273
      %v3501 = vpop.f32.mrb[0].mxu0
      %v3502 = vadd.f32 %v3341, %v3501
      %v3503 = vpop.f32.mrb[0].mxu0
      %v3504 = vpop.f32.mrb[0].mxu0
      %v3505 = vadd.f32 %v3344, %v3504
      %v3506 = vpop.f32.mrb[0].mxu0
      %3507 = vmatprep.mubr.bf16.mxu0 %v2083
      %3508 = vmatmul.mubr.bf16.gmra.mrb[0].mxu0 %v2274
      %v3509 = vpop.f32.mrb[0].mxu0
      %v3510 = vadd.f32 %v3349, %v3509
      %v3511 = vpop.f32.mrb[0].mxu0
      %v3512 = vpop.f32.mrb[0].mxu0
      %v3513 = vadd.f32 %v3352, %v3512
      %v3514 = vpop.f32.mrb[0].mxu0
      %3515 = vmatprep.mubr.bf16.mxu0 %v2084
      %3516 = vmatmul.mubr.bf16.gmra.mrb[0].mxu0 %v2275
      %v3517 = vpop.f32.mrb[0].mxu0
      %v3518 = vadd.f32 %v3357, %v3517
      %v3519 = vpop.f32.mrb[0].mxu0
      %v3520 = vpop.f32.mrb[0].mxu0
      %v3521 = vadd.f32 %v3360, %v3520
      %v3522 = vpop.f32.mrb[0].mxu0
      %3523 = vmatprep.mubr.bf16.mxu0 %v2085
      %3524 = vmatmul.mubr.bf16.gmra.mrb[0].mxu0 %v2276
      %v3525 = vpop.f32.mrb[0].mxu0
      %v3526 = vadd.f32 %v3365, %v3525
      %v3527 = vpop.f32.mrb[0].mxu0
      %v3528 = vpop.f32.mrb[0].mxu0
      %v3529 = vadd.f32 %v3368, %v3528
      %v3530 = vpop.f32.mrb[0].mxu0
      %3531 = vmatprep.mubr.bf16.mxu0 %v2182
      %3532 = vmatmul.mubr.bf16.gmra.mrb[0].mxu0 %v2277
      %v3533 = vpop.f32.mrb[0].mxu0
      %v3534 = vadd.f32 %v3373, %v3533
      %v3535 = vpop.f32.mrb[0].mxu0
      %v3536 = vpop.f32.mrb[0].mxu0
      %v3537 = vadd.f32 %v3376, %v3536
      %v3538 = vpop.f32.mrb[0].mxu0
      %3539 = vmatprep.mubr.bf16.mxu0 %v2279
      %3540 = vmatmul.mubr.bf16.gmra.mrb[0].mxu0 %v2278
      %v3541 = vpop.f32.mrb[0].mxu0
      %v3542 = vadd.f32 %v3381, %v3541
      %v3543 = vpop.f32.mrb[0].mxu0
      %v3544 = vpop.f32.mrb[0].mxu0
      %v3545 = vadd.f32 %v3384, %v3544
      %v3546 = vpop.f32.mrb[0].mxu0
      %3547 = vdwg.mxu0
      %3548 = vmatprep.subr.bf16.mxu0 0
      %3549 = vmatpush1.bf16.msra.mxu0 %v2824
      %3550 = vmatprep.subr.bf16.mxu0 0
      %3551 = vmatpush1.bf16.msra.mxu0 %v2825
      %3552 = vmatprep.subr.bf16.mxu0 0
      %3553 = vmatpush1.bf16.msra.mxu0 %v2826
      %3554 = vmatprep.subr.bf16.mxu0 0
      %3555 = vmatpush1.bf16.msra.mxu0 %v2827
      %3556 = vmatprep.subr.bf16.mxu0 0
      %3557 = vmatpush1.bf16.msra.mxu0 %v2828
      %3558 = vmatprep.subr.bf16.mxu0 0
      %3559 = vmatpush1.bf16.msra.mxu0 %v2829
      %3560 = vmatprep.subr.bf16.mxu0 0
      %3561 = vmatpush1.bf16.msra.mxu0 %v2830
      %3562 = vmatprep.subr.bf16.mxu0 0
      %3563 = vmatpush1.bf16.msra.mxu0 %v2831
      %3564 = vmatprep.subr.bf16.mxu0 0
      %3565 = vmatpush1.bf16.msra.mxu0 0
      %3566 = vmatprep.subr.bf16.mxu0 0
      %3567 = vmatpush1.bf16.msra.mxu0 0
      %3568 = vmatprep.subr.bf16.mxu0 0
      %3569 = vmatpush1.bf16.msra.mxu0 0
      %3570 = vmatprep.subr.bf16.mxu0 0
      %3571 = vmatpush1.bf16.msra.mxu0 0
      %3572 = vmatprep.subr.bf16.mxu0 0
      %3573 = vmatpush1.bf16.msra.mxu0 0
      %3574 = vmatprep.subr.bf16.mxu0 0
      %3575 = vmatpush1.bf16.msra.mxu0 0
      %3576 = vmatprep.subr.bf16.mxu0 0
      %3577 = vmatpush1.bf16.msra.mxu0 0
      %3578 = vmatprep.subr.bf16.mxu0 0
      %3579 = vmatpush1.bf16.msra.mxu0 0
      %3580 = vmatprep.mubr.bf16.mxu0 0
      %3581 = vmatmul.mubr.bf16.gmra.mrb[0].mxu0 %v2312
      %v3582 = vpop.f32.mrb[0].mxu0
      %v3583 = vadd.f32 %v3422, %v3582
      %v3584 = vpop.f32.mrb[0].mxu0
      %v3585 = vpop.f32.mrb[0].mxu0
      %v3586 = vadd.f32 %v3425, %v3585
      %v3587 = vpop.f32.mrb[0].mxu0
      %3588 = vmatprep.mubr.bf16.mxu0 0
      %3589 = vmatmul.mubr.bf16.gmra.mrb[0].mxu0 %v2313
      %v3590 = vpop.f32.mrb[0].mxu0
      %v3591 = vadd.f32 %v3430, %v3590
      %v3592 = vpop.f32.mrb[0].mxu0
      %v3593 = vpop.f32.mrb[0].mxu0
      %v3594 = vadd.f32 %v3433, %v3593
      %v3595 = vpop.f32.mrb[0].mxu0
      %3596 = vmatprep.mubr.bf16.mxu0 0
      %3597 = vmatmul.mubr.bf16.gmra.mrb[0].mxu0 %v2314
      %v3598 = vpop.f32.mrb[0].mxu0
      %v3599 = vadd.f32 %v3438, %v3598
      %v3600 = vpop.f32.mrb[0].mxu0
      %v3601 = vpop.f32.mrb[0].mxu0
      %v3602 = vadd.f32 %v3441, %v3601
      %v3603 = vpop.f32.mrb[0].mxu0
      %3604 = vmatprep.mubr.bf16.mxu0 0
      %3605 = vmatmul.mubr.bf16.gmra.mrb[0].mxu0 %v2315
      %v3606 = vpop.f32.mrb[0].mxu0
      %v3607 = vadd.f32 %v3446, %v3606
      %v3608 = vpop.f32.mrb[0].mxu0
      %v3609 = vpop.f32.mrb[0].mxu0
      %v3610 = vadd.f32 %v3449, %v3609
      %v3611 = vpop.f32.mrb[0].mxu0
      %3612 = vmatprep.mubr.bf16.mxu0 0
      %3613 = vmatmul.mubr.bf16.gmra.mrb[0].mxu0 %v2316
      %v3614 = vpop.f32.mrb[0].mxu0
      %v3615 = vadd.f32 %v3454, %v3614
      %v3616 = vpop.f32.mrb[0].mxu0
      %v3617 = vpop.f32.mrb[0].mxu0
      %v3618 = vadd.f32 %v3457, %v3617
      %v3619 = vpop.f32.mrb[0].mxu0
      %3620 = vmatprep.mubr.bf16.mxu0 0
      %3621 = vmatmul.mubr.bf16.gmra.mrb[0].mxu0 %v2317
      %v3622 = vpop.f32.mrb[0].mxu0
      %v3623 = vadd.f32 %v3462, %v3622
      %v3624 = vpop.f32.mrb[0].mxu0
      %v3625 = vpop.f32.mrb[0].mxu0
      %v3626 = vadd.f32 %v3465, %v3625
      %v3627 = vpop.f32.mrb[0].mxu0
      %3628 = vmatprep.mubr.bf16.mxu0 0
      %3629 = vmatmul.mubr.bf16.gmra.mrb[0].mxu0 %v2318
      %v3630 = vpop.f32.mrb[0].mxu0
      %v3631 = vadd.f32 %v3470, %v3630
      %v3632 = vpop.f32.mrb[0].mxu0
      %v3633 = vpop.f32.mrb[0].mxu0
      %v3634 = vadd.f32 %v3473, %v3633
      %v3635 = vpop.f32.mrb[0].mxu0
      %3636 = vmatprep.mubr.bf16.mxu0 0
      %3637 = vmatmul.mubr.bf16.gmra.mrb[0].mxu0 %v2319
      %v3638 = vpop.f32.mrb[0].mxu0
      %v3639 = vadd.f32 %v3478, %v3638
      %v3640 = vpop.f32.mrb[0].mxu0
      %v3641 = vpop.f32.mrb[0].mxu0
      %v3642 = vadd.f32 %v3481, %v3641
      %v3643 = vpop.f32.mrb[0].mxu0
      %3644 = vmatprep.mubr.bf16.mxu0 0
      %3645 = vmatmul.mubr.bf16.gmra.mrb[0].mxu0 %v2320
      %v3646 = vpop.f32.mrb[0].mxu0
      %v3647 = vadd.f32 %v3486, %v3646
      %v3648 = vpop.f32.mrb[0].mxu0
      %v3649 = vpop.f32.mrb[0].mxu0
      %v3650 = vadd.f32 %v3489, %v3649
      %v3651 = vpop.f32.mrb[0].mxu0
      %3652 = vmatprep.mubr.bf16.mxu0 0
      %3653 = vmatmul.mubr.bf16.gmra.mrb[0].mxu0 %v2321
      %v3654 = vpop.f32.mrb[0].mxu0
      %v3655 = vadd.f32 %v3494, %v3654
      %v3656 = vpop.f32.mrb[0].mxu0
      %v3657 = vpop.f32.mrb[0].mxu0
      %v3658 = vadd.f32 %v3497, %v3657
      %v3659 = vpop.f32.mrb[0].mxu0
      %3660 = vmatprep.mubr.bf16.mxu0 0
      %3661 = vmatmul.mubr.bf16.gmra.mrb[0].mxu0 %v2322
      %v3662 = vpop.f32.mrb[0].mxu0
      %v3663 = vadd.f32 %v3502, %v3662
      %v3664 = vpop.f32.mrb[0].mxu0
      %v3665 = vpop.f32.mrb[0].mxu0
      %v3666 = vadd.f32 %v3505, %v3665
      %v3667 = vpop.f32.mrb[0].mxu0
      %3668 = vmatprep.mubr.bf16.mxu0 0
      %3669 = vmatmul.mubr.bf16.gmra.mrb[0].mxu0 %v2323
      %v3670 = vpop.f32.mrb[0].mxu0
      %v3671 = vadd.f32 %v3510, %v3670
      %v3672 = vpop.f32.mrb[0].mxu0
      %v3673 = vpop.f32.mrb[0].mxu0
      %v3674 = vadd.f32 %v3513, %v3673
      %v3675 = vpop.f32.mrb[0].mxu0
      %3676 = vmatprep.mubr.bf16.mxu0 0
      %3677 = vmatmul.mubr.bf16.gmra.mrb[0].mxu0 %v2324
      %v3678 = vpop.f32.mrb[0].mxu0
      %v3679 = vadd.f32 %v3518, %v3678
      %v3680 = vpop.f32.mrb[0].mxu0
      %v3681 = vpop.f32.mrb[0].mxu0
      %v3682 = vadd.f32 %v3521, %v3681
      %v3683 = vpop.f32.mrb[0].mxu0
      %3684 = vmatprep.mubr.bf16.mxu0 0
      %3685 = vmatmul.mubr.bf16.gmra.mrb[0].mxu0 %v2325
      %v3686 = vpop.f32.mrb[0].mxu0
      %v3687 = vadd.f32 %v3526, %v3686
      %v3688 = vpop.f32.mrb[0].mxu0
      %v3689 = vpop.f32.mrb[0].mxu0
      %v3690 = vadd.f32 %v3529, %v3689
      %v3691 = vpop.f32.mrb[0].mxu0
      %3692 = vmatprep.mubr.bf16.mxu0 0
      %3693 = vmatmul.mubr.bf16.gmra.mrb[0].mxu0 %v2326
      %v3694 = vpop.f32.mrb[0].mxu0
      %v3695 = vadd.f32 %v3534, %v3694
      %v3696 = vpop.f32.mrb[0].mxu0
      %v3697 = vpop.f32.mrb[0].mxu0
      %v3698 = vadd.f32 %v3537, %v3697
      %v3699 = vpop.f32.mrb[0].mxu0
      %3700 = vmatprep.mubr.bf16.mxu0 0
      %3701 = vmatmul.mubr.bf16.gmra.mrb[0].mxu0 %v2327
      %v3702 = vpop.f32.mrb[0].mxu0
      %v3703 = vadd.f32 %v3542, %v3702
      %v3704 = vpop.f32.mrb[0].mxu0
      %v3705 = vpop.f32.mrb[0].mxu0
      %v3706 = vadd.f32 %v3545, %v3705
      %v3707 = vpop.f32.mrb[0].mxu0
      %3708 = vdwg.mxu0
      %v3709 = vld [vmem:[%s7] sm:$0x1]
      %v3711 = vlaneseq
      %v3712 = vshrl.u32 %v3711, 7
      %v3713 = vsub.s32 0, %v3712
      %v3714 = vrot.slane %v3709, %v3713
      %v3716 = vmul.f32 %v3583, %v3714
      %v3717 = vmul.f32 %v3586, %v3714
      %v3718 = vmul.f32 %v3591, %v3714
      %v3719 = vmul.f32 %v3594, %v3714
      %v3720 = vmul.f32 %v3599, %v3714
      %v3721 = vmul.f32 %v3602, %v3714
      %v3722 = vmul.f32 %v3607, %v3714
      %v3723 = vmul.f32 %v3610, %v3714
      %v3724 = vmul.f32 %v3615, %v3714
      %v3725 = vmul.f32 %v3618, %v3714
      %v3726 = vmul.f32 %v3623, %v3714
      %v3727 = vmul.f32 %v3626, %v3714
      %v3728 = vmul.f32 %v3631, %v3714
      %v3729 = vmul.f32 %v3634, %v3714
      %v3730 = vmul.f32 %v3639, %v3714
      %v3731 = vmul.f32 %v3642, %v3714
      %v3732 = vmul.f32 %v3647, %v3714
      %v3733 = vmul.f32 %v3650, %v3714
      %v3734 = vmul.f32 %v3655, %v3714
      %v3735 = vmul.f32 %v3658, %v3714
      %v3736 = vmul.f32 %v3663, %v3714
      %v3737 = vmul.f32 %v3666, %v3714
      %v3738 = vmul.f32 %v3671, %v3714
      %v3739 = vmul.f32 %v3674, %v3714
      %v3740 = vmul.f32 %v3679, %v3714
      %v3741 = vmul.f32 %v3682, %v3714
      %v3742 = vmul.f32 %v3687, %v3714
      %v3743 = vmul.f32 %v3690, %v3714
      %v3744 = vmul.f32 %v3695, %v3714
      %v3745 = vmul.f32 %v3698, %v3714
      %v3746 = vmul.f32 %v3703, %v3714
      %v3747 = vmul.f32 %v3706, %v3714
      %v3748 = vld [vmem:[%s8] sm:$0x1]
      %v3750 = vlaneseq
      %v3751 = vshrl.u32 %v3750, 7
      %v3752 = vsub.s32 0, %v3751
      %v3753 = vrot.slane %v3748, %v3752
      %v3755 = vadd.f32 %v3716, %v3753
      %v3756 = vadd.f32 %v3717, %v3753
      %v3757 = vadd.f32 %v3718, %v3753
      %v3758 = vadd.f32 %v3719, %v3753
      %v3759 = vadd.f32 %v3720, %v3753
      %v3760 = vadd.f32 %v3721, %v3753
      %v3761 = vadd.f32 %v3722, %v3753
      %v3762 = vadd.f32 %v3723, %v3753
      %v3763 = vadd.f32 %v3724, %v3753
      %v3764 = vadd.f32 %v3725, %v3753
      %v3765 = vadd.f32 %v3726, %v3753
      %v3766 = vadd.f32 %v3727, %v3753
      %v3767 = vadd.f32 %v3728, %v3753
      %v3768 = vadd.f32 %v3729, %v3753
      %v3769 = vadd.f32 %v3730, %v3753
      %v3770 = vadd.f32 %v3731, %v3753
      %v3771 = vadd.f32 %v3732, %v3753
      %v3772 = vadd.f32 %v3733, %v3753
      %v3773 = vadd.f32 %v3734, %v3753
      %v3774 = vadd.f32 %v3735, %v3753
      %v3775 = vadd.f32 %v3736, %v3753
      %v3776 = vadd.f32 %v3737, %v3753
      %v3777 = vadd.f32 %v3738, %v3753
      %v3778 = vadd.f32 %v3739, %v3753
      %v3779 = vadd.f32 %v3740, %v3753
      %v3780 = vadd.f32 %v3741, %v3753
      %v3781 = vadd.f32 %v3742, %v3753
      %v3782 = vadd.f32 %v3743, %v3753
      %v3783 = vadd.f32 %v3744, %v3753
      %v3784 = vadd.f32 %v3745, %v3753
      %v3785 = vadd.f32 %v3746, %v3753
      %v3786 = vadd.f32 %v3747, %v3753
      %v3787 = vsub.f32 0.0, %v3755
      %v3788 = vsub.f32 0.0, %v3756
      %v3789 = vsub.f32 0.0, %v3757
      %v3790 = vsub.f32 0.0, %v3758
      %v3791 = vsub.f32 0.0, %v3759
      %v3792 = vsub.f32 0.0, %v3760
      %v3793 = vsub.f32 0.0, %v3761
      %v3794 = vsub.f32 0.0, %v3762
      %v3795 = vsub.f32 0.0, %v3763
      %v3796 = vsub.f32 0.0, %v3764
      %v3797 = vsub.f32 0.0, %v3765
      %v3798 = vsub.f32 0.0, %v3766
      %v3799 = vsub.f32 0.0, %v3767
      %v3800 = vsub.f32 0.0, %v3768
      %v3801 = vsub.f32 0.0, %v3769
      %v3802 = vsub.f32 0.0, %v3770
      %v3803 = vsub.f32 0.0, %v3771
      %v3804 = vsub.f32 0.0, %v3772
      %v3805 = vsub.f32 0.0, %v3773
      %v3806 = vsub.f32 0.0, %v3774
      %v3807 = vsub.f32 0.0, %v3775
      %v3808 = vsub.f32 0.0, %v3776
      %v3809 = vsub.f32 0.0, %v3777
      %v3810 = vsub.f32 0.0, %v3778
      %v3811 = vsub.f32 0.0, %v3779
      %v3812 = vsub.f32 0.0, %v3780
      %v3813 = vsub.f32 0.0, %v3781
      %v3814 = vsub.f32 0.0, %v3782
      %v3815 = vsub.f32 0.0, %v3783
      %v3816 = vsub.f32 0.0, %v3784
      %v3817 = vsub.f32 0.0, %v3785
      %v3818 = vsub.f32 0.0, %v3786
      %v3819 = vmul.f32 %v3787, 1.442695
      %v3820 = vpow.pop %v3819
      %v3821 = vmul.f32 %v3788, 1.442695
      %v3822 = vpow.pop %v3821
      %v3823 = vmul.f32 %v3789, 1.442695
      %v3824 = vpow.pop %v3823
      %v3825 = vmul.f32 %v3790, 1.442695
      %v3826 = vpow.pop %v3825
      %v3827 = vmul.f32 %v3791, 1.442695
      %v3828 = vpow.pop %v3827
      %v3829 = vmul.f32 %v3792, 1.442695
      %v3830 = vpow.pop %v3829
      %v3831 = vmul.f32 %v3793, 1.442695
      %v3832 = vpow.pop %v3831
      %v3833 = vmul.f32 %v3794, 1.442695
      %v3834 = vpow.pop %v3833
      %v3835 = vmul.f32 %v3795, 1.442695
      %v3836 = vpow.pop %v3835
      %v3837 = vmul.f32 %v3796, 1.442695
      %v3838 = vpow.pop %v3837
      %v3839 = vmul.f32 %v3797, 1.442695
      %v3840 = vpow.pop %v3839
      %v3841 = vmul.f32 %v3798, 1.442695
      %v3842 = vpow.pop %v3841
      %v3843 = vmul.f32 %v3799, 1.442695
      %v3844 = vpow.pop %v3843
      %v3845 = vmul.f32 %v3800, 1.442695
      %v3846 = vpow.pop %v3845
      %v3847 = vmul.f32 %v3801, 1.442695
      %v3848 = vpow.pop %v3847
      %v3849 = vmul.f32 %v3802, 1.442695
      %v3850 = vpow.pop %v3849
      %v3851 = vmul.f32 %v3803, 1.442695
      %v3852 = vpow.pop %v3851
      %v3853 = vmul.f32 %v3804, 1.442695
      %v3854 = vpow.pop %v3853
      %v3855 = vmul.f32 %v3805, 1.442695
      %v3856 = vpow.pop %v3855
      %v3857 = vmul.f32 %v3806, 1.442695
      %v3858 = vpow.pop %v3857
      %v3859 = vmul.f32 %v3807, 1.442695
      %v3860 = vpow.pop %v3859
      %v3861 = vmul.f32 %v3808, 1.442695
      %v3862 = vpow.pop %v3861
      %v3863 = vmul.f32 %v3809, 1.442695
      %v3864 = vpow.pop %v3863
      %v3865 = vmul.f32 %v3810, 1.442695
      %v3866 = vpow.pop %v3865
      %v3867 = vmul.f32 %v3811, 1.442695
      %v3868 = vpow.pop %v3867
      %v3869 = vmul.f32 %v3812, 1.442695
      %v3870 = vpow.pop %v3869
      %v3871 = vmul.f32 %v3813, 1.442695
      %v3872 = vpow.pop %v3871
      %v3873 = vmul.f32 %v3814, 1.442695
      %v3874 = vpow.pop %v3873
      %v3875 = vmul.f32 %v3815, 1.442695
      %v3876 = vpow.pop %v3875
      %v3877 = vmul.f32 %v3816, 1.442695
      %v3878 = vpow.pop %v3877
      %v3879 = vmul.f32 %v3817, 1.442695
      %v3880 = vpow.pop %v3879
      %v3881 = vmul.f32 %v3818, 1.442695
      %v3882 = vpow.pop %v3881
      %v3883 = vadd.f32 %v3820, 1.0
      %v3884 = vadd.f32 %v3822, 1.0
      %v3885 = vadd.f32 %v3824, 1.0
      %v3886 = vadd.f32 %v3826, 1.0
      %v3887 = vadd.f32 %v3828, 1.0
      %v3888 = vadd.f32 %v3830, 1.0
      %v3889 = vadd.f32 %v3832, 1.0
      %v3890 = vadd.f32 %v3834, 1.0
      %v3891 = vadd.f32 %v3836, 1.0
      %v3892 = vadd.f32 %v3838, 1.0
      %v3893 = vadd.f32 %v3840, 1.0
      %v3894 = vadd.f32 %v3842, 1.0
      %v3895 = vadd.f32 %v3844, 1.0
      %v3896 = vadd.f32 %v3846, 1.0
      %v3897 = vadd.f32 %v3848, 1.0
      %v3898 = vadd.f32 %v3850, 1.0
      %v3899 = vadd.f32 %v3852, 1.0
      %v3900 = vadd.f32 %v3854, 1.0
      %v3901 = vadd.f32 %v3856, 1.0
      %v3902 = vadd.f32 %v3858, 1.0
      %v3903 = vadd.f32 %v3860, 1.0
      %v3904 = vadd.f32 %v3862, 1.0
      %v3905 = vadd.f32 %v3864, 1.0
      %v3906 = vadd.f32 %v3866, 1.0
      %v3907 = vadd.f32 %v3868, 1.0
      %v3908 = vadd.f32 %v3870, 1.0
      %v3909 = vadd.f32 %v3872, 1.0
      %v3910 = vadd.f32 %v3874, 1.0
      %v3911 = vadd.f32 %v3876, 1.0
      %v3912 = vadd.f32 %v3878, 1.0
      %v3913 = vadd.f32 %v3880, 1.0
      %v3914 = vadd.f32 %v3882, 1.0
      %v3915 = vrcp.pop %v3883
      %v3916 = vrcp.pop %v3884
      %v3917 = vrcp.pop %v3885
      %v3918 = vrcp.pop %v3886
      %v3919 = vrcp.pop %v3887
      %v3920 = vrcp.pop %v3888
      %v3921 = vrcp.pop %v3889
      %v3922 = vrcp.pop %v3890
      %v3923 = vrcp.pop %v3891
      %v3924 = vrcp.pop %v3892
      %v3925 = vrcp.pop %v3893
      %v3926 = vrcp.pop %v3894
      %v3927 = vrcp.pop %v3895
      %v3928 = vrcp.pop %v3896
      %v3929 = vrcp.pop %v3897
      %v3930 = vrcp.pop %v3898
      %v3931 = vrcp.pop %v3899
      %v3932 = vrcp.pop %v3900
      %v3933 = vrcp.pop %v3901
      %v3934 = vrcp.pop %v3902
      %v3935 = vrcp.pop %v3903
      %v3936 = vrcp.pop %v3904
      %v3937 = vrcp.pop %v3905
      %v3938 = vrcp.pop %v3906
      %v3939 = vrcp.pop %v3907
      %v3940 = vrcp.pop %v3908
      %v3941 = vrcp.pop %v3909
      %v3942 = vrcp.pop %v3910
      %v3943 = vrcp.pop %v3911
      %v3944 = vrcp.pop %v3912
      %v3945 = vrcp.pop %v3913
      %v3946 = vrcp.pop %v3914
      %v3947 = vmul.f32 %v3755, %v3915
      %v3948 = vmul.f32 %v3756, %v3916
      %v3949 = vmul.f32 %v3757, %v3917
      %v3950 = vmul.f32 %v3758, %v3918
      %v3951 = vmul.f32 %v3759, %v3919
      %v3952 = vmul.f32 %v3760, %v3920
      %v3953 = vmul.f32 %v3761, %v3921
      %v3954 = vmul.f32 %v3762, %v3922
      %v3955 = vmul.f32 %v3763, %v3923
      %v3956 = vmul.f32 %v3764, %v3924
      %v3957 = vmul.f32 %v3765, %v3925
      %v3958 = vmul.f32 %v3766, %v3926
      %v3959 = vmul.f32 %v3767, %v3927
      %v3960 = vmul.f32 %v3768, %v3928
      %v3961 = vmul.f32 %v3769, %v3929
      %v3962 = vmul.f32 %v3770, %v3930
      %v3963 = vmul.f32 %v3771, %v3931
      %v3964 = vmul.f32 %v3772, %v3932
      %v3965 = vmul.f32 %v3773, %v3933
      %v3966 = vmul.f32 %v3774, %v3934
      %v3967 = vmul.f32 %v3775, %v3935
      %v3968 = vmul.f32 %v3776, %v3936
      %v3969 = vmul.f32 %v3777, %v3937
      %v3970 = vmul.f32 %v3778, %v3938
      %v3971 = vmul.f32 %v3779, %v3939
      %v3972 = vmul.f32 %v3780, %v3940
      %v3973 = vmul.f32 %v3781, %v3941
      %v3974 = vmul.f32 %v3782, %v3942
      %v3975 = vmul.f32 %v3783, %v3943
      %v3976 = vmul.f32 %v3784, %v3944
      %v3977 = vmul.f32 %v3785, %v3945
      %v3978 = vmul.f32 %v3786, %v3946
      %v3979 = vunpack.c.l.bf16 %v520
      %v3980 = vunpack.c.l.bf16 %v521
      %v3981 = vunpack.c.l.bf16 %v522
      %v3982 = vunpack.c.l.bf16 %v523
      %v3983 = vunpack.c.l.bf16 %v524
      %v3984 = vunpack.c.l.bf16 %v525
      %v3985 = vunpack.c.l.bf16 %v526
      %v3986 = vunpack.c.l.bf16 %v527
      %v3987 = vunpack.c.l.bf16 %v528
      %v3988 = vunpack.c.l.bf16 %v529
      %v3989 = vunpack.c.l.bf16 %v530
      %v3990 = vunpack.c.l.bf16 %v531
      %v3991 = vunpack.c.l.bf16 %v532
      %v3992 = vunpack.c.l.bf16 %v533
      %v3993 = vunpack.c.l.bf16 %v534
      %v3994 = vunpack.c.l.bf16 %v535
      %v3995 = vunpack.c.l.bf16 %v536
      %v3996 = vunpack.c.l.bf16 %v537
      %v3997 = vunpack.c.l.bf16 %v538
      %v3998 = vunpack.c.l.bf16 %v539
      %v3999 = vunpack.c.l.bf16 %v540
      %v4000 = vunpack.c.l.bf16 %v541
      %v4001 = vunpack.c.l.bf16 %v542
      %v4002 = vunpack.c.l.bf16 %v543
      %v4003 = vunpack.c.l.bf16 %v544
      %v4004 = vunpack.c.l.bf16 %v545
      %v4005 = vunpack.c.l.bf16 %v546
      %v4006 = vunpack.c.l.bf16 %v547
      %v4007 = vunpack.c.l.bf16 %v548
      %v4008 = vunpack.c.l.bf16 %v549
      %v4009 = vunpack.c.l.bf16 %v550
      %v4010 = vunpack.c.l.bf16 %v551
      %v4011 = vadd.f32 %v3947, %v3979
      %v4012 = vadd.f32 %v3948, %v3980
      %v4013 = vadd.f32 %v3949, %v3981
      %v4014 = vadd.f32 %v3950, %v3982
      %v4015 = vadd.f32 %v3951, %v3983
      %v4016 = vadd.f32 %v3952, %v3984
      %v4017 = vadd.f32 %v3953, %v3985
      %v4018 = vadd.f32 %v3954, %v3986
      %v4019 = vadd.f32 %v3955, %v3987
      %v4020 = vadd.f32 %v3956, %v3988
      %v4021 = vadd.f32 %v3957, %v3989
      %v4022 = vadd.f32 %v3958, %v3990
      %v4023 = vadd.f32 %v3959, %v3991
      %v4024 = vadd.f32 %v3960, %v3992
      %v4025 = vadd.f32 %v3961, %v3993
      %v4026 = vadd.f32 %v3962, %v3994
      %v4027 = vadd.f32 %v3963, %v3995
      %v4028 = vadd.f32 %v3964, %v3996
      %v4029 = vadd.f32 %v3965, %v3997
      %v4030 = vadd.f32 %v3966, %v3998
      %v4031 = vadd.f32 %v3967, %v3999
      %v4032 = vadd.f32 %v3968, %v4000
      %v4033 = vadd.f32 %v3969, %v4001
      %v4034 = vadd.f32 %v3970, %v4002
      %v4035 = vadd.f32 %v3971, %v4003
      %v4036 = vadd.f32 %v3972, %v4004
      %v4037 = vadd.f32 %v3973, %v4005
      %v4038 = vadd.f32 %v3974, %v4006
      %v4039 = vadd.f32 %v3975, %v4007
      %v4040 = vadd.f32 %v3976, %v4008
      %v4041 = vadd.f32 %v3977, %v4009
      %v4042 = vadd.f32 %v3978, %v4010
      %v4043 = vpack.c.bf16 %v4012, %v4011
      %v4044 = vpack.c.bf16 %v4014, %v4013
      %v4045 = vpack.c.bf16 %v4016, %v4015
      %v4046 = vpack.c.bf16 %v4018, %v4017
      %v4047 = vpack.c.bf16 %v4020, %v4019
      %v4048 = vpack.c.bf16 %v4022, %v4021
      %v4049 = vpack.c.bf16 %v4024, %v4023
      %v4050 = vpack.c.bf16 %v4026, %v4025
      %v4051 = vpack.c.bf16 %v4028, %v4027
      %v4052 = vpack.c.bf16 %v4030, %v4029
      %v4053 = vpack.c.bf16 %v4032, %v4031
      %v4054 = vpack.c.bf16 %v4034, %v4033
      %v4055 = vpack.c.bf16 %v4036, %v4035
      %v4056 = vpack.c.bf16 %v4038, %v4037
      %v4057 = vpack.c.bf16 %v4040, %v4039
      %v4058 = vpack.c.bf16 %v4042, %v4041
      %v4075 = vunpack.c.l.b16 %v4043
      %v4076 = vunpack.c.h.b16 %v4043
      %v4077 = vunpack.c.l.b16 %v4044
      %v4078 = vunpack.c.h.b16 %v4044
      %v4079 = vunpack.c.l.b16 %v4045
      %v4080 = vunpack.c.h.b16 %v4045
      %v4081 = vunpack.c.l.b16 %v4046
      %v4082 = vunpack.c.h.b16 %v4046
      %v4083 = vunpack.c.l.b16 %v4047
      %v4084 = vunpack.c.h.b16 %v4047
      %v4085 = vunpack.c.l.b16 %v4048
      %v4086 = vunpack.c.h.b16 %v4048
      %v4087 = vunpack.c.l.b16 %v4049
      %v4088 = vunpack.c.h.b16 %v4049
      %v4089 = vunpack.c.l.b16 %v4050
      %v4090 = vunpack.c.h.b16 %v4050
      %v4091 = vunpack.c.l.b16 %v4051
      %v4092 = vunpack.c.h.b16 %v4051
      %v4093 = vunpack.c.l.b16 %v4052
      %v4094 = vunpack.c.h.b16 %v4052
      %v4095 = vunpack.c.l.b16 %v4053
      %v4096 = vunpack.c.h.b16 %v4053
      %v4097 = vunpack.c.l.b16 %v4054
      %v4098 = vunpack.c.h.b16 %v4054
      %v4099 = vunpack.c.l.b16 %v4055
      %v4100 = vunpack.c.h.b16 %v4055
      %v4101 = vunpack.c.l.b16 %v4056
      %v4102 = vunpack.c.h.b16 %v4056
      %v4103 = vunpack.c.l.b16 %v4057
      %v4104 = vunpack.c.h.b16 %v4057
      %v4105 = vunpack.c.l.b16 %v4058
      %v4106 = vunpack.c.h.b16 %v4058
      %v4107 = vpack.c.b16 %v4075, %v4075
      %v4108 = vpack.c.b16 %v4076, %v4076
      %v4109 = vpack.c.b16 %v4077, %v4077
      %v4110 = vpack.c.b16 %v4078, %v4078
      %v4111 = vpack.c.b16 %v4079, %v4079
      %v4112 = vpack.c.b16 %v4080, %v4080
      %v4113 = vpack.c.b16 %v4081, %v4081
      %v4114 = vpack.c.b16 %v4082, %v4082
      %v4115 = vpack.c.b16 %v4083, %v4083
      %v4116 = vpack.c.b16 %v4084, %v4084
      %v4117 = vpack.c.b16 %v4085, %v4085
      %v4118 = vpack.c.b16 %v4086, %v4086
      %v4119 = vpack.c.b16 %v4087, %v4087
      %v4120 = vpack.c.b16 %v4088, %v4088
      %v4121 = vpack.c.b16 %v4089, %v4089
      %v4122 = vpack.c.b16 %v4090, %v4090
      %v4123 = vpack.c.b16 %v4091, %v4091
      %v4124 = vpack.c.b16 %v4092, %v4092
      %v4125 = vpack.c.b16 %v4093, %v4093
      %v4126 = vpack.c.b16 %v4094, %v4094
      %v4127 = vpack.c.b16 %v4095, %v4095
      %v4128 = vpack.c.b16 %v4096, %v4096
      %v4129 = vpack.c.b16 %v4097, %v4097
      %v4130 = vpack.c.b16 %v4098, %v4098
      %v4131 = vpack.c.b16 %v4099, %v4099
      %v4132 = vpack.c.b16 %v4100, %v4100
      %v4133 = vpack.c.b16 %v4101, %v4101
      %v4134 = vpack.c.b16 %v4102, %v4102
      %v4135 = vpack.c.b16 %v4103, %v4103
      %v4136 = vpack.c.b16 %v4104, %v4104
      %v4137 = vpack.c.b16 %v4105, %v4105
      %v4138 = vpack.c.b16 %v4106, %v4106
      %4171 = vst [vmem:[%s499] sm:$0xf] %v4107
      %4172 = vst [vmem:[%s499 + $0x4] sm:$0xf] %v4108
      %4173 = vst [vmem:[%s499 + $0x8] sm:$0xf] %v4109
      %4174 = vst [vmem:[%s499 + $0xc] sm:$0xf] %v4110
      %4175 = vst [vmem:[%s499 + $0x10] sm:$0xf] %v4111
      %4176 = vst [vmem:[%s499 + $0x14] sm:$0xf] %v4112
      %4177 = vst [vmem:[%s499 + $0x18] sm:$0xf] %v4113
      %4178 = vst [vmem:[%s499 + $0x1c] sm:$0xf] %v4114
      %4179 = vst [vmem:[%s499 + $0x20] sm:$0xf] %v4115
      %4180 = vst [vmem:[%s499 + $0x24] sm:$0xf] %v4116
      %4181 = vst [vmem:[%s499 + $0x28] sm:$0xf] %v4117
      %4182 = vst [vmem:[%s499 + $0x2c] sm:$0xf] %v4118
      %4183 = vst [vmem:[%s499 + $0x30] sm:$0xf] %v4119
      %4184 = vst [vmem:[%s499 + $0x34] sm:$0xf] %v4120
      %4185 = vst [vmem:[%s499 + $0x38] sm:$0xf] %v4121
      %4186 = vst [vmem:[%s499 + $0x3c] sm:$0xf] %v4122
      %4187 = vst [vmem:[%s499 + $0x40] sm:$0xf] %v4123
      %4188 = vst [vmem:[%s499 + $0x44] sm:$0xf] %v4124
      %4189 = vst [vmem:[%s499 + $0x48] sm:$0xf] %v4125
      %4190 = vst [vmem:[%s499 + $0x4c] sm:$0xf] %v4126
      %4191 = vst [vmem:[%s499 + $0x50] sm:$0xf] %v4127
      %4192 = vst [vmem:[%s499 + $0x54] sm:$0xf] %v4128
      %4193 = vst [vmem:[%s499 + $0x58] sm:$0xf] %v4129
      %4194 = vst [vmem:[%s499 + $0x5c] sm:$0xf] %v4130
      %4195 = vst [vmem:[%s499 + $0x60] sm:$0xf] %v4131
      %4196 = vst [vmem:[%s499 + $0x64] sm:$0xf] %v4132
      %4197 = vst [vmem:[%s499 + $0x68] sm:$0xf] %v4133
      %4198 = vst [vmem:[%s499 + $0x6c] sm:$0xf] %v4134
      %4199 = vst [vmem:[%s499 + $0x70] sm:$0xf] %v4135
      %4200 = vst [vmem:[%s499 + $0x74] sm:$0xf] %v4136
      %4201 = vst [vmem:[%s499 + $0x78] sm:$0xf] %v4137
      %4202 = vst [vmem:[%s499 + $0x7c] sm:$0xf] %v4138
      %s4203 = smul.u32 16, %s25
      %p4204 = scmp.lt.s32.totalorder %s24, 1
      %s4205 = scalar_select %p4204, %s24, 1
      %p4206 = scmp.lt.s32.totalorder %s4203, 15
      %s4207 = scalar_select %p4206, %s4203, 15
      %s4208 = smul.addr %s4207, 2
      %s4209 = smul.addr %s4205, 32
      %s4210 = sadd.s32 %s4208, %s4209
      %s4211 = smul.addr %s4210, 4
      %s4212 = scalar_lea.vmem %s9, %s4211
      // Predicated region
      $region57: #{_forward_impl.1} parent=55 // pred_check
        %p4213 = pneg %p278
      $region58: #{_forward_impl.1} parent=55 // pred_check_branch
        %4215 = sbr.rel (%p4213) target = $region60
      $region59: #{_forward_impl.1} parent=55 // pred_region
        %s4216 = smul.u32 16, %s25
      $region60: #{_forward_impl.1} parent=55 // pred_fallthru
        _
    $region56: #{_forward_impl.1} parent=5 // pred_fallthru
      _
    %p4217 = scmp.le.s32.totalorder 2, %s15
    // Predicated region
    $region61: #{_forward_impl.1} parent=5 // pred_check
      %p4218 = pneg %p4217
    $region62: #{_forward_impl.1} parent=5 // pred_check_branch
      %4220 = sbr.rel (%p4218) target = $region64
    $region63: #{_forward_impl.1} parent=5 // pred_region
      %s4221 = ssub.s32 %s15, 2
      // Predicated region
      $region65: #{_forward_impl.1} parent=63 // pred_check
        %p4222 = pneg %p284
      $region66: #{_forward_impl.1} parent=63 // pred_check_branch
        %4224 = sbr.rel (%p4222) target = $region68
      $region67: #{_forward_impl.1} parent=63 // pred_region
        %s4225 = smul.u32 16, %s27
        %p4226 = scmp.lt.s32.totalorder %s26, 1
        %s4227 = scalar_select %p4226, %s26, 1
        %p4228 = scmp.lt.s32.totalorder %s4225, 15
        %s4229 = scalar_select %p4228, %s4225, 15
        %s4230 = smul.addr %s4229, 2
        %s4231 = smul.addr %s4227, 32
        %s4232 = sadd.s32 %s4230, %s4231
        %s4233 = smul.addr %s4232, 4
        %s4234 = scalar_lea.vmem %s9, %s4233
      $region68: #{_forward_impl.1} parent=63 // pred_fallthru
        _
    $region64: #{_forward_impl.1} parent=5 // pred_fallthru
      _
  $region6: #{_forward_impl.1} parent=0 // loop_footer
    %s19 = sadd.s32 1, %s15
  $region7: #{_forward_impl.1} parent=0 // loop_footer_branch
    %14 = sbr.rel target = $region3
  $region8: #{_forward_impl.1} parent=0 // loop_exit
    _

</llo_original>
